<compile_context>
chip_gen: v6e
topology: v6e:2x2x1
jax: 0.10.0
libtpu: 0.0.40
codegen_flags: <defaults>
</compile_context>

<pallas_src>
import jax
import jax.numpy as jnp
from jax.experimental import pallas as pl
from jax.experimental.pallas import tpu as pltpu

N_MELS = 8       # hp.n_mels_channel
HIDDEN = 32      # hp.hidden_dim
NUM_LAYERS = 2   # hp.num_layer (kernel below is written for exactly 2 layers)
SPK_DIM = 16     # hp.speaker_dim
BATCH = 2
SEQ = 8


def speaker_encoder_kernel(last_idx_ref,                 # SMEM (B,) int32 (scalar prefetch)
                           x_ref,                        # (B, T*F)  f32
                           wih0_ref, whh0_ref, b0_ref,   # (4,F,H) (4,H,H) (4,1,H)
                           wih1_ref, whh1_ref, b1_ref,   # (4,H,H) (4,H,H) (4,1,H)
                           wp_ref, bp_ref,               # (H,S) (1,S)
                           out_ref):                     # (B, S)
    B = x_ref.shape[0]
    F = wih0_ref.shape[1]
    H = wih0_ref.shape[2]
    T = x_ref.shape[1] // F

    # ---- Loop-invariant operands: load once, stay resident (all tiny). ------
    x_all = x_ref[...]                                    # (B, T*F)
    wih0 = [wih0_ref[g] for g in range(4)]                # 4 x (F, H), lane offset 0
    whh0 = [whh0_ref[g] for g in range(4)]                # 4 x (H, H)
    b0 = [b0_ref[g] for g in range(4)]                    # 4 x (1, H)
    wih1 = [wih1_ref[g] for g in range(4)]
    whh1 = [whh1_ref[g] for g in range(4)]
    b1 = [b1_ref[g] for g in range(4)]

    # Lengths arrive as SMEM scalars (index of the last valid frame).  Build
    # the (B, 1) compare vector once, off the hot loop.
    last_idx_vec = jnp.concatenate(
        [jnp.full((1, 1), last_idx_ref[b], dtype=jnp.int32) for b in range(B)],
        axis=0)                                           # (B, 1)

    def cell(inp, h, c, wih, whh, b):
        # Per-gate (B,K)@(K,H) dots: each gate pre-activation lands at lane
        # offset 0, so the combines below need no lane rotations on the
        # recurrent chain.  The input-side dot does not depend on h and
        # overlaps with the recurrent dot inside the MXU pipeline.
        pre = [jnp.dot(inp, wih[g], preferred_element_type=jnp.float32)
               + jnp.dot(h, whh[g], preferred_element_type=jnp.float32)
               + b[g]
               for g in range(4)]
        i = jax.nn.sigmoid(pre[0])
        f = jax.nn.sigmoid(pre[1])
        g = jnp.tanh(pre[2])
        o = jax.nn.sigmoid(pre[3])
        c_new = f * c + i * g
        h_new = o * jnp.tanh(c_new)
        return h_new, c_new

    zeros = jnp.zeros((B, H), jnp.float32)
    h0, c0 = zeros, zeros          # layer-0 state
    h1, c1 = zeros, zeros          # layer-1 state
    h_last = zeros                 # layer-1 hidden at (length - 1)

    # ---- Wavefront: iteration t = layer-0 step t  +  layer-1 step t-1. ------
    # The two cell updates are independent within an iteration, so the serial
    # critical path is ~(T+1) cell latencies instead of 2*T.  Static unroll of
    # T+1 = 9 iterations; ~6 live (B, H) vregs of carried state.
    # Scaling note: at realistic T, chunk time over a grid axis with
    # VMEM-carried (h, c) state instead of this unroll.
    for t in range(T + 1):
        h0_prev = h0                                      # layer-0 output of step t-1
        if t < T:
            x_t = x_all[:, t * F:(t + 1) * F]             # (B, F) static slice, off-chain
            h0, c0 = cell(x_t, h0, c0, wih0, whh0, b0)
        if t >= 1:
            h1, c1 = cell(h0_prev, h1, c1, wih1, whh1, b1)
            # "hidden at lengths-1" gather: per-step masked select (VPU filler,
            # not on the recurrence chain).
            h_last = jnp.where(last_idx_vec == (t - 1), h1, h_last)

    # ---- Projection + whole-tensor L2 normalisation. -------------------------
    proj = jnp.dot(h_last, wp_ref[...],
                   preferred_element_type=jnp.float32) + bp_ref[...]   # (B, S)
    # out = out / torch.norm(out): no eps, so an exactly-zero norm produces NaN
    # just like the PyTorch module.
    out_ref[...] = (proj * jax.lax.rsqrt(jnp.sum(proj * proj))).astype(out_ref.dtype)


def _full_block(shape):
    nd = len(shape)

    def idx(i, last_idx):          # (grid index, scalar-prefetch ref)
        return (0,) * nd

    return pl.BlockSpec(shape, idx)


@jax.jit
def speaker_encoder(x_btf, input_lengths, params):
    """x_btf: (B, T, n_mels) float32 (batch_first, as in the PyTorch module)."""
    B, T, F = x_btf.shape
    S = params["wp"].shape[1]

    # Free row-major metadata reshape: no transpose / extra HBM pass over x.
    x2d = x_btf.astype(jnp.float32).reshape(B, T * F)
    # torch gathers x[i][lengths[i] - 1]; (len - 1) % T reproduces torch/Python
    # negative indexing for len == 0 (picks the last frame) instead of silently
    # returning a zero embedding.
    last_idx = ((input_lengths.astype(jnp.int32) - 1) % T).reshape(B)

    operands = (x2d,
                params["wih0"], params["whh0"], params["b0"],
                params["wih1"], params["whh1"], params["b1"],
                params["wp"], params["bp"])

    grid_spec = pltpu.PrefetchScalarGridSpec(
        num_scalar_prefetch=1,                 # last_idx -> SMEM
        grid=(1,),                             # single batch block (see header notes)
        in_specs=[_full_block(op.shape) for op in operands],
        out_specs=pl.BlockSpec((B, S), lambda i, last_idx: (i, 0)),
    )

    return pl.pallas_call(
        speaker_encoder_kernel,
        out_shape=jax.ShapeDtypeStruct((B, S), jnp.float32),
        grid_spec=grid_spec,
        compiler_params=pltpu.CompilerParams(
            # Size-1 axis kept "parallel" so a batch-blocked megacore variant
            # (v7x) is only a spec change; a real split also needs the global
            # L2 norm hoisted to a cross-block reduction.
            dimension_semantics=("parallel",)),
    )(last_idx, *operands)


def init_params(key):
    """Synthetic params matching the module init (xavier_normal_ LSTM weights,
    zero LSTM biases), re-laid-out per gate for the kernel."""
    ks = jax.random.split(key, 6)

    def xavier(k, shape):                      # PyTorch xavier_normal_ on (out, in)
        fan_out, fan_in = shape
        std = (2.0 / (fan_in + fan_out)) ** 0.5
        return std * jax.random.normal(k, shape, jnp.float32)

    # PyTorch LSTM layout: weight_ih_l0 (4H, in), weight_hh_l0 (4H, H),
    # gate order [i, f, g, o] along the 4H axis.
    w_ih0 = xavier(ks[0], (4 * HIDDEN, N_MELS))
    w_hh0 = xavier(ks[1], (4 * HIDDEN, HIDDEN))
    w_ih1 = xavier(ks[2], (4 * HIDDEN, HIDDEN))
    w_hh1 = xavier(ks[3], (4 * HIDDEN, HIDDEN))
    w_proj = 0.1 * jax.random.normal(ks[4], (SPK_DIM, HIDDEN), jnp.float32)
    b_proj = 0.1 * jax.random.normal(ks[5], (SPK_DIM,), jnp.float32)

    def per_gate(w):
        # (4H, in) -> (4, in, H): one (in, H) matrix per gate so every gate
        # pre-activation in the kernel lands at lane offset 0 (no lane slicing).
        return jnp.stack([w[g * HIDDEN:(g + 1) * HIDDEN, :].T for g in range(4)],
                         axis=0)

    zero_bias = jnp.zeros((4, 1, HIDDEN), jnp.float32)     # b_ih + b_hh = 0
    return {
        "wih0": per_gate(w_ih0), "whh0": per_gate(w_hh0), "b0": zero_bias,
        "wih1": per_gate(w_ih1), "whh1": per_gate(w_hh1), "b1": zero_bias,
        "wp": w_proj.T, "bp": b_proj.reshape(1, SPK_DIM),
    }


def reference(x_btf, input_lengths, params):
    """Pure-JAX forward mirroring the PyTorch module (sanity check)."""
    B, T, _ = x_btf.shape
    H = params["whh0"].shape[1]

    def run_layer(inp, wih, whh, b):
        h = jnp.zeros((B, H), jnp.float32)
        c = jnp.zeros((B, H), jnp.float32)
        outs = []
        for t in range(T):
            x_t = inp[:, t, :]
            pre = [x_t @ wih[g] + h @ whh[g] + b[g] for g in range(4)]
            i = jax.nn.sigmoid(pre[0])
            f = jax.nn.sigmoid(pre[1])
            g = jnp.tanh(pre[2])
            o = jax.nn.sigmoid(pre[3])
            c = f * c + i * g
            h = o * jnp.tanh(c)
            outs.append(h)
        return jnp.stack(outs, axis=1)                     # (B, T, H)

    y = run_layer(x_btf.astype(jnp.float32),
                  params["wih0"], params["whh0"], params["b0"])
    y = run_layer(y, params["wih1"], params["whh1"], params["b1"])
    h_last = y[jnp.arange(B), input_lengths - 1]           # (B, H)
    out = h_last @ params["wp"] + params["bp"]
    return out / jnp.linalg.norm(out)


if __name__ == "__main__":
    key = jax.random.PRNGKey(0)
    k_x, k_p = jax.random.split(key)

    x = jax.random.normal(k_x, (BATCH, SEQ, N_MELS), jnp.float32)   # (B, T, n_mels)
    input_lengths = jnp.array([5, 8], dtype=jnp.int32)              # valid lengths <= SEQ
    params = init_params(k_p)

    out = jax.block_until_ready(speaker_encoder(x, input_lengths, params))
    ref = reference(x, input_lengths, params)

    assert out.shape == (BATCH, SPK_DIM)
    assert jnp.allclose(out, ref, atol=1e-3, rtol=1e-3), (out, ref)
    print("KERNEL_OK")
</pallas_src>

<mosaic_0001>
module attributes {stable_mosaic.version = 11 : i64} {
  func.func @speaker_encoder_kernel(%arg0: i32, %arg1: memref<2xi32, #tpu.memory_space<smem>>, %arg2: memref<2x64xf32, #tpu.memory_space<vmem>>, %arg3: memref<4x8x32xf32, #tpu.memory_space<vmem>>, %arg4: memref<4x32x32xf32, #tpu.memory_space<vmem>>, %arg5: memref<4x1x32xf32, #tpu.memory_space<vmem>>, %arg6: memref<4x32x32xf32, #tpu.memory_space<vmem>>, %arg7: memref<4x32x32xf32, #tpu.memory_space<vmem>>, %arg8: memref<4x1x32xf32, #tpu.memory_space<vmem>>, %arg9: memref<32x16xf32, #tpu.memory_space<vmem>>, %arg10: memref<1x16xf32, #tpu.memory_space<vmem>>, %arg11: memref<2x16xf32, #tpu.memory_space<vmem>>) attributes {dimension_semantics = [#tpu.dimension_semantics<parallel>], iteration_bounds = array<i64: 1>, scalar_prefetch = 1 : i64, scratch_operands = 0 : i64, tpu.core_type = #tpu.core_type<tc>, window_params = [{pipeline_mode = #tpu.pipeline_mode<synchronous>, transform_indices = @transform_0, window_bounds = array<i64: 2, 64>}, {pipeline_mode = #tpu.pipeline_mode<synchronous>, transform_indices = @transform_1, window_bounds = array<i64: 4, 8, 32>}, {pipeline_mode = #tpu.pipeline_mode<synchronous>, transform_indices = @transform_2, window_bounds = array<i64: 4, 32, 32>}, {pipeline_mode = #tpu.pipeline_mode<synchronous>, transform_indices = @transform_3, window_bounds = array<i64: 4, 1, 32>}, {pipeline_mode = #tpu.pipeline_mode<synchronous>, transform_indices = @transform_4, window_bounds = array<i64: 4, 32, 32>}, {pipeline_mode = #tpu.pipeline_mode<synchronous>, transform_indices = @transform_5, window_bounds = array<i64: 4, 32, 32>}, {pipeline_mode = #tpu.pipeline_mode<synchronous>, transform_indices = @transform_6, window_bounds = array<i64: 4, 1, 32>}, {pipeline_mode = #tpu.pipeline_mode<synchronous>, transform_indices = @transform_7, window_bounds = array<i64: 32, 16>}, {pipeline_mode = #tpu.pipeline_mode<synchronous>, transform_indices = @transform_8, window_bounds = array<i64: 1, 16>}, {transform_indices = @transform_9, window_bounds = array<i64: 2, 16>}]} {
    %c0 = arith.constant 0 : index
    %c0_0 = arith.constant 0 : index
    %0 = vector.load %arg2[%c0, %c0_0] : memref<2x64xf32, #tpu.memory_space<vmem>>, vector<2x64xf32>
    %c0_1 = arith.constant 0 : index
    %c0_2 = arith.constant 0 : index
    %c0_3 = arith.constant 0 : index
    %1 = vector.load %arg3[%c0_1, %c0_2, %c0_3] : memref<4x8x32xf32, #tpu.memory_space<vmem>>, vector<1x8x32xf32>
    %2 = vector.shape_cast %1 : vector<1x8x32xf32> to vector<8x32xf32>
    %c1 = arith.constant 1 : index
    %c0_4 = arith.constant 0 : index
    %c0_5 = arith.constant 0 : index
    %3 = vector.load %arg3[%c1, %c0_4, %c0_5] : memref<4x8x32xf32, #tpu.memory_space<vmem>>, vector<1x8x32xf32>
    %4 = vector.shape_cast %3 : vector<1x8x32xf32> to vector<8x32xf32>
    %c2 = arith.constant 2 : index
    %c0_6 = arith.constant 0 : index
    %c0_7 = arith.constant 0 : index
    %5 = vector.load %arg3[%c2, %c0_6, %c0_7] : memref<4x8x32xf32, #tpu.memory_space<vmem>>, vector<1x8x32xf32>
    %6 = vector.shape_cast %5 : vector<1x8x32xf32> to vector<8x32xf32>
    %c3 = arith.constant 3 : index
    %c0_8 = arith.constant 0 : index
    %c0_9 = arith.constant 0 : index
    %7 = vector.load %arg3[%c3, %c0_8, %c0_9] : memref<4x8x32xf32, #tpu.memory_space<vmem>>, vector<1x8x32xf32>
    %8 = vector.shape_cast %7 : vector<1x8x32xf32> to vector<8x32xf32>
    %c0_10 = arith.constant 0 : index
    %c0_11 = arith.constant 0 : index
    %c0_12 = arith.constant 0 : index
    %9 = vector.load %arg4[%c0_10, %c0_11, %c0_12] : memref<4x32x32xf32, #tpu.memory_space<vmem>>, vector<1x32x32xf32>
    %10 = vector.shape_cast %9 : vector<1x32x32xf32> to vector<32x32xf32>
    %c1_13 = arith.constant 1 : index
    %c0_14 = arith.constant 0 : index
    %c0_15 = arith.constant 0 : index
    %11 = vector.load %arg4[%c1_13, %c0_14, %c0_15] : memref<4x32x32xf32, #tpu.memory_space<vmem>>, vector<1x32x32xf32>
    %12 = vector.shape_cast %11 : vector<1x32x32xf32> to vector<32x32xf32>
    %c2_16 = arith.constant 2 : index
    %c0_17 = arith.constant 0 : index
    %c0_18 = arith.constant 0 : index
    %13 = vector.load %arg4[%c2_16, %c0_17, %c0_18] : memref<4x32x32xf32, #tpu.memory_space<vmem>>, vector<1x32x32xf32>
    %14 = vector.shape_cast %13 : vector<1x32x32xf32> to vector<32x32xf32>
    %c3_19 = arith.constant 3 : index
    %c0_20 = arith.constant 0 : index
    %c0_21 = arith.constant 0 : index
    %15 = vector.load %arg4[%c3_19, %c0_20, %c0_21] : memref<4x32x32xf32, #tpu.memory_space<vmem>>, vector<1x32x32xf32>
    %16 = vector.shape_cast %15 : vector<1x32x32xf32> to vector<32x32xf32>
    %c0_22 = arith.constant 0 : index
    %c0_23 = arith.constant 0 : index
    %c0_24 = arith.constant 0 : index
    %17 = vector.load %arg5[%c0_22, %c0_23, %c0_24] : memref<4x1x32xf32, #tpu.memory_space<vmem>>, vector<1x1x32xf32>
    %18 = vector.shape_cast %17 : vector<1x1x32xf32> to vector<1x32xf32>
    %c1_25 = arith.constant 1 : index
    %c0_26 = arith.constant 0 : index
    %c0_27 = arith.constant 0 : index
    %19 = vector.load %arg5[%c1_25, %c0_26, %c0_27] : memref<4x1x32xf32, #tpu.memory_space<vmem>>, vector<1x1x32xf32>
    %20 = vector.shape_cast %19 : vector<1x1x32xf32> to vector<1x32xf32>
    %c2_28 = arith.constant 2 : index
    %c0_29 = arith.constant 0 : index
    %c0_30 = arith.constant 0 : index
    %21 = vector.load %arg5[%c2_28, %c0_29, %c0_30] : memref<4x1x32xf32, #tpu.memory_space<vmem>>, vector<1x1x32xf32>
    %22 = vector.shape_cast %21 : vector<1x1x32xf32> to vector<1x32xf32>
    %c3_31 = arith.constant 3 : index
    %c0_32 = arith.constant 0 : index
    %c0_33 = arith.constant 0 : index
    %23 = vector.load %arg5[%c3_31, %c0_32, %c0_33] : memref<4x1x32xf32, #tpu.memory_space<vmem>>, vector<1x1x32xf32>
    %24 = vector.shape_cast %23 : vector<1x1x32xf32> to vector<1x32xf32>
    %c0_34 = arith.constant 0 : index
    %c0_35 = arith.constant 0 : index
    %c0_36 = arith.constant 0 : index
    %25 = vector.load %arg6[%c0_34, %c0_35, %c0_36] : memref<4x32x32xf32, #tpu.memory_space<vmem>>, vector<1x32x32xf32>
    %26 = vector.shape_cast %25 : vector<1x32x32xf32> to vector<32x32xf32>
    %c1_37 = arith.constant 1 : index
    %c0_38 = arith.constant 0 : index
    %c0_39 = arith.constant 0 : index
    %27 = vector.load %arg6[%c1_37, %c0_38, %c0_39] : memref<4x32x32xf32, #tpu.memory_space<vmem>>, vector<1x32x32xf32>
    %28 = vector.shape_cast %27 : vector<1x32x32xf32> to vector<32x32xf32>
    %c2_40 = arith.constant 2 : index
    %c0_41 = arith.constant 0 : index
    %c0_42 = arith.constant 0 : index
    %29 = vector.load %arg6[%c2_40, %c0_41, %c0_42] : memref<4x32x32xf32, #tpu.memory_space<vmem>>, vector<1x32x32xf32>
    %30 = vector.shape_cast %29 : vector<1x32x32xf32> to vector<32x32xf32>
    %c3_43 = arith.constant 3 : index
    %c0_44 = arith.constant 0 : index
    %c0_45 = arith.constant 0 : index
    %31 = vector.load %arg6[%c3_43, %c0_44, %c0_45] : memref<4x32x32xf32, #tpu.memory_space<vmem>>, vector<1x32x32xf32>
    %32 = vector.shape_cast %31 : vector<1x32x32xf32> to vector<32x32xf32>
    %c0_46 = arith.constant 0 : index
    %c0_47 = arith.constant 0 : index
    %c0_48 = arith.constant 0 : index
    %33 = vector.load %arg7[%c0_46, %c0_47, %c0_48] : memref<4x32x32xf32, #tpu.memory_space<vmem>>, vector<1x32x32xf32>
    %34 = vector.shape_cast %33 : vector<1x32x32xf32> to vector<32x32xf32>
    %c1_49 = arith.constant 1 : index
    %c0_50 = arith.constant 0 : index
    %c0_51 = arith.constant 0 : index
    %35 = vector.load %arg7[%c1_49, %c0_50, %c0_51] : memref<4x32x32xf32, #tpu.memory_space<vmem>>, vector<1x32x32xf32>
    %36 = vector.shape_cast %35 : vector<1x32x32xf32> to vector<32x32xf32>
    %c2_52 = arith.constant 2 : index
    %c0_53 = arith.constant 0 : index
    %c0_54 = arith.constant 0 : index
    %37 = vector.load %arg7[%c2_52, %c0_53, %c0_54] : memref<4x32x32xf32, #tpu.memory_space<vmem>>, vector<1x32x32xf32>
    %38 = vector.shape_cast %37 : vector<1x32x32xf32> to vector<32x32xf32>
    %c3_55 = arith.constant 3 : index
    %c0_56 = arith.constant 0 : index
    %c0_57 = arith.constant 0 : index
    %39 = vector.load %arg7[%c3_55, %c0_56, %c0_57] : memref<4x32x32xf32, #tpu.memory_space<vmem>>, vector<1x32x32xf32>
    %40 = vector.shape_cast %39 : vector<1x32x32xf32> to vector<32x32xf32>
    %c0_58 = arith.constant 0 : index
    %c0_59 = arith.constant 0 : index
    %c0_60 = arith.constant 0 : index
    %41 = vector.load %arg8[%c0_58, %c0_59, %c0_60] : memref<4x1x32xf32, #tpu.memory_space<vmem>>, vector<1x1x32xf32>
    %42 = vector.shape_cast %41 : vector<1x1x32xf32> to vector<1x32xf32>
    %c1_61 = arith.constant 1 : index
    %c0_62 = arith.constant 0 : index
    %c0_63 = arith.constant 0 : index
    %43 = vector.load %arg8[%c1_61, %c0_62, %c0_63] : memref<4x1x32xf32, #tpu.memory_space<vmem>>, vector<1x1x32xf32>
    %44 = vector.shape_cast %43 : vector<1x1x32xf32> to vector<1x32xf32>
    %c2_64 = arith.constant 2 : index
    %c0_65 = arith.constant 0 : index
    %c0_66 = arith.constant 0 : index
    %45 = vector.load %arg8[%c2_64, %c0_65, %c0_66] : memref<4x1x32xf32, #tpu.memory_space<vmem>>, vector<1x1x32xf32>
    %46 = vector.shape_cast %45 : vector<1x1x32xf32> to vector<1x32xf32>
    %c3_67 = arith.constant 3 : index
    %c0_68 = arith.constant 0 : index
    %c0_69 = arith.constant 0 : index
    %47 = vector.load %arg8[%c3_67, %c0_68, %c0_69] : memref<4x1x32xf32, #tpu.memory_space<vmem>>, vector<1x1x32xf32>
    %48 = vector.shape_cast %47 : vector<1x1x32xf32> to vector<1x32xf32>
    %c0_70 = arith.constant 0 : index
    %49 = memref.load %arg1[%c0_70] : memref<2xi32, #tpu.memory_space<smem>>
    %50 = vector.broadcast %49 : i32 to vector<1x1xi32>
    %c1_71 = arith.constant 1 : index
    %51 = memref.load %arg1[%c1_71] : memref<2xi32, #tpu.memory_space<smem>>
    %52 = vector.broadcast %51 : i32 to vector<1x1xi32>
    %53 = tpu.concatenate %50, %52 in 0 : vector<1x1xi32>, vector<1x1xi32> -> vector<2x1xi32>
    %cst = arith.constant 0.000000e+00 : f32
    %54 = vector.broadcast %cst : f32 to vector<2x32xf32>
    %55 = vector.extract_strided_slice %0 {offsets = [0, 0], sizes = [2, 8], strides = [1, 1]} : vector<2x64xf32> to vector<2x8xf32>
    %cst_72 = arith.constant dense<0.000000e+00> : vector<2x32xf32>
    %56 = tpu.matmul %55, %2, %cst_72 {dimension_numbers = #tpu.dot_dimension_numbers<[1], [0], [0], [1], [0, 0, 1, 1], [], []>} : vector<2x8xf32>, vector<8x32xf32>, vector<2x32xf32> -> vector<2x32xf32>
    %cst_73 = arith.constant dense<0.000000e+00> : vector<2x32xf32>
    %57 = tpu.matmul %54, %10, %cst_73 {dimension_numbers = #tpu.dot_dimension_numbers<[1], [0], [0], [1], [0, 0, 1, 1], [], []>} : vector<2x32xf32>, vector<32x32xf32>, vector<2x32xf32> -> vector<2x32xf32>
    %58 = arith.addf %56, %57 : vector<2x32xf32>
    %59 = vector.broadcast %18 : vector<1x32xf32> to vector<2x32xf32>
    %60 = arith.addf %58, %59 : vector<2x32xf32>
    %cst_74 = arith.constant dense<0.000000e+00> : vector<2x32xf32>
    %61 = tpu.matmul %55, %4, %cst_74 {dimension_numbers = #tpu.dot_dimension_numbers<[1], [0], [0], [1], [0, 0, 1, 1], [], []>} : vector<2x8xf32>, vector<8x32xf32>, vector<2x32xf32> -> vector<2x32xf32>
    %cst_75 = arith.constant dense<0.000000e+00> : vector<2x32xf32>
    %62 = tpu.matmul %54, %12, %cst_75 {dimension_numbers = #tpu.dot_dimension_numbers<[1], [0], [0], [1], [0, 0, 1, 1], [], []>} : vector<2x32xf32>, vector<32x32xf32>, vector<2x32xf32> -> vector<2x32xf32>
    %63 = arith.addf %61, %62 : vector<2x32xf32>
    %64 = vector.broadcast %20 : vector<1x32xf32> to vector<2x32xf32>
    %65 = arith.addf %63, %64 : vector<2x32xf32>
    %cst_76 = arith.constant dense<0.000000e+00> : vector<2x32xf32>
    %66 = tpu.matmul %55, %6, %cst_76 {dimension_numbers = #tpu.dot_dimension_numbers<[1], [0], [0], [1], [0, 0, 1, 1], [], []>} : vector<2x8xf32>, vector<8x32xf32>, vector<2x32xf32> -> vector<2x32xf32>
    %cst_77 = arith.constant dense<0.000000e+00> : vector<2x32xf32>
    %67 = tpu.matmul %54, %14, %cst_77 {dimension_numbers = #tpu.dot_dimension_numbers<[1], [0], [0], [1], [0, 0, 1, 1], [], []>} : vector<2x32xf32>, vector<32x32xf32>, vector<2x32xf32> -> vector<2x32xf32>
    %68 = arith.addf %66, %67 : vector<2x32xf32>
    %69 = vector.broadcast %22 : vector<1x32xf32> to vector<2x32xf32>
    %70 = arith.addf %68, %69 : vector<2x32xf32>
    %cst_78 = arith.constant dense<0.000000e+00> : vector<2x32xf32>
    %71 = tpu.matmul %55, %8, %cst_78 {dimension_numbers = #tpu.dot_dimension_numbers<[1], [0], [0], [1], [0, 0, 1, 1], [], []>} : vector<2x8xf32>, vector<8x32xf32>, vector<2x32xf32> -> vector<2x32xf32>
    %cst_79 = arith.constant dense<0.000000e+00> : vector<2x32xf32>
    %72 = tpu.matmul %54, %16, %cst_79 {dimension_numbers = #tpu.dot_dimension_numbers<[1], [0], [0], [1], [0, 0, 1, 1], [], []>} : vector<2x32xf32>, vector<32x32xf32>, vector<2x32xf32> -> vector<2x32xf32>
    %73 = arith.addf %71, %72 : vector<2x32xf32>
    %74 = vector.broadcast %24 : vector<1x32xf32> to vector<2x32xf32>
    %75 = arith.addf %73, %74 : vector<2x32xf32>
    %76 = arith.negf %60 : vector<2x32xf32>
    %77 = math.exp %76 : vector<2x32xf32>
    %cst_80 = arith.constant 1.000000e+00 : f32
    %78 = vector.broadcast %cst_80 : f32 to vector<2x32xf32>
    %79 = arith.addf %78, %77 : vector<2x32xf32>
    %80 = arith.divf %78, %79 : vector<2x32xf32>
    %81 = arith.negf %65 : vector<2x32xf32>
    %82 = math.exp %81 : vector<2x32xf32>
    %cst_81 = arith.constant 1.000000e+00 : f32
    %83 = vector.broadcast %cst_81 : f32 to vector<2x32xf32>
    %84 = arith.addf %83, %82 : vector<2x32xf32>
    %85 = arith.divf %83, %84 : vector<2x32xf32>
    %86 = math.tanh %70 : vector<2x32xf32>
    %87 = arith.negf %75 : vector<2x32xf32>
    %88 = math.exp %87 : vector<2x32xf32>
    %cst_82 = arith.constant 1.000000e+00 : f32
    %89 = vector.broadcast %cst_82 : f32 to vector<2x32xf32>
    %90 = arith.addf %89, %88 : vector<2x32xf32>
    %91 = arith.divf %89, %90 : vector<2x32xf32>
    %92 = arith.mulf %85, %54 : vector<2x32xf32>
    %93 = arith.mulf %80, %86 : vector<2x32xf32>
    %94 = arith.addf %92, %93 : vector<2x32xf32>
    %95 = math.tanh %94 : vector<2x32xf32>
    %96 = arith.mulf %91, %95 : vector<2x32xf32>
    %97 = vector.extract_strided_slice %0 {offsets = [0, 8], sizes = [2, 8], strides = [1, 1]} : vector<2x64xf32> to vector<2x8xf32>
    %cst_83 = arith.constant dense<0.000000e+00> : vector<2x32xf32>
    %98 = tpu.matmul %97, %2, %cst_83 {dimension_numbers = #tpu.dot_dimension_numbers<[1], [0], [0], [1], [0, 0, 1, 1], [], []>} : vector<2x8xf32>, vector<8x32xf32>, vector<2x32xf32> -> vector<2x32xf32>
    %cst_84 = arith.constant dense<0.000000e+00> : vector<2x32xf32>
    %99 = tpu.matmul %96, %10, %cst_84 {dimension_numbers = #tpu.dot_dimension_numbers<[1], [0], [0], [1], [0, 0, 1, 1], [], []>} : vector<2x32xf32>, vector<32x32xf32>, vector<2x32xf32> -> vector<2x32xf32>
    %100 = arith.addf %98, %99 : vector<2x32xf32>
    %101 = vector.broadcast %18 : vector<1x32xf32> to vector<2x32xf32>
    %102 = arith.addf %100, %101 : vector<2x32xf32>
    %cst_85 = arith.constant dense<0.000000e+00> : vector<2x32xf32>
    %103 = tpu.matmul %97, %4, %cst_85 {dimension_numbers = #tpu.dot_dimension_numbers<[1], [0], [0], [1], [0, 0, 1, 1], [], []>} : vector<2x8xf32>, vector<8x32xf32>, vector<2x32xf32> -> vector<2x32xf32>
    %cst_86 = arith.constant dense<0.000000e+00> : vector<2x32xf32>
    %104 = tpu.matmul %96, %12, %cst_86 {dimension_numbers = #tpu.dot_dimension_numbers<[1], [0], [0], [1], [0, 0, 1, 1], [], []>} : vector<2x32xf32>, vector<32x32xf32>, vector<2x32xf32> -> vector<2x32xf32>
    %105 = arith.addf %103, %104 : vector<2x32xf32>
    %106 = vector.broadcast %20 : vector<1x32xf32> to vector<2x32xf32>
    %107 = arith.addf %105, %106 : vector<2x32xf32>
    %cst_87 = arith.constant dense<0.000000e+00> : vector<2x32xf32>
    %108 = tpu.matmul %97, %6, %cst_87 {dimension_numbers = #tpu.dot_dimension_numbers<[1], [0], [0], [1], [0, 0, 1, 1], [], []>} : vector<2x8xf32>, vector<8x32xf32>, vector<2x32xf32> -> vector<2x32xf32>
    %cst_88 = arith.constant dense<0.000000e+00> : vector<2x32xf32>
    %109 = tpu.matmul %96, %14, %cst_88 {dimension_numbers = #tpu.dot_dimension_numbers<[1], [0], [0], [1], [0, 0, 1, 1], [], []>} : vector<2x32xf32>, vector<32x32xf32>, vector<2x32xf32> -> vector<2x32xf32>
    %110 = arith.addf %108, %109 : vector<2x32xf32>
    %111 = vector.broadcast %22 : vector<1x32xf32> to vector<2x32xf32>
    %112 = arith.addf %110, %111 : vector<2x32xf32>
    %cst_89 = arith.constant dense<0.000000e+00> : vector<2x32xf32>
    %113 = tpu.matmul %97, %8, %cst_89 {dimension_numbers = #tpu.dot_dimension_numbers<[1], [0], [0], [1], [0, 0, 1, 1], [], []>} : vector<2x8xf32>, vector<8x32xf32>, vector<2x32xf32> -> vector<2x32xf32>
    %cst_90 = arith.constant dense<0.000000e+00> : vector<2x32xf32>
    %114 = tpu.matmul %96, %16, %cst_90 {dimension_numbers = #tpu.dot_dimension_numbers<[1], [0], [0], [1], [0, 0, 1, 1], [], []>} : vector<2x32xf32>, vector<32x32xf32>, vector<2x32xf32> -> vector<2x32xf32>
    %115 = arith.addf %113, %114 : vector<2x32xf32>
    %116 = vector.broadcast %24 : vector<1x32xf32> to vector<2x32xf32>
    %117 = arith.addf %115, %116 : vector<2x32xf32>
    %118 = arith.negf %102 : vector<2x32xf32>
    %119 = math.exp %118 : vector<2x32xf32>
    %cst_91 = arith.constant 1.000000e+00 : f32
    %120 = vector.broadcast %cst_91 : f32 to vector<2x32xf32>
    %121 = arith.addf %120, %119 : vector<2x32xf32>
    %122 = arith.divf %120, %121 : vector<2x32xf32>
    %123 = arith.negf %107 : vector<2x32xf32>
    %124 = math.exp %123 : vector<2x32xf32>
    %cst_92 = arith.constant 1.000000e+00 : f32
    %125 = vector.broadcast %cst_92 : f32 to vector<2x32xf32>
    %126 = arith.addf %125, %124 : vector<2x32xf32>
    %127 = arith.divf %125, %126 : vector<2x32xf32>
    %128 = math.tanh %112 : vector<2x32xf32>
    %129 = arith.negf %117 : vector<2x32xf32>
    %130 = math.exp %129 : vector<2x32xf32>
    %cst_93 = arith.constant 1.000000e+00 : f32
    %131 = vector.broadcast %cst_93 : f32 to vector<2x32xf32>
    %132 = arith.addf %131, %130 : vector<2x32xf32>
    %133 = arith.divf %131, %132 : vector<2x32xf32>
    %134 = arith.mulf %127, %94 : vector<2x32xf32>
    %135 = arith.mulf %122, %128 : vector<2x32xf32>
    %136 = arith.addf %134, %135 : vector<2x32xf32>
    %137 = math.tanh %136 : vector<2x32xf32>
    %138 = arith.mulf %133, %137 : vector<2x32xf32>
    %cst_94 = arith.constant dense<0.000000e+00> : vector<2x32xf32>
    %139 = tpu.matmul %96, %26, %cst_94 {dimension_numbers = #tpu.dot_dimension_numbers<[1], [0], [0], [1], [0, 0, 1, 1], [], []>} : vector<2x32xf32>, vector<32x32xf32>, vector<2x32xf32> -> vector<2x32xf32>
    %cst_95 = arith.constant dense<0.000000e+00> : vector<2x32xf32>
    %140 = tpu.matmul %54, %34, %cst_95 {dimension_numbers = #tpu.dot_dimension_numbers<[1], [0], [0], [1], [0, 0, 1, 1], [], []>} : vector<2x32xf32>, vector<32x32xf32>, vector<2x32xf32> -> vector<2x32xf32>
    %141 = arith.addf %139, %140 : vector<2x32xf32>
    %142 = vector.broadcast %42 : vector<1x32xf32> to vector<2x32xf32>
    %143 = arith.addf %141, %142 : vector<2x32xf32>
    %cst_96 = arith.constant dense<0.000000e+00> : vector<2x32xf32>
    %144 = tpu.matmul %96, %28, %cst_96 {dimension_numbers = #tpu.dot_dimension_numbers<[1], [0], [0], [1], [0, 0, 1, 1], [], []>} : vector<2x32xf32>, vector<32x32xf32>, vector<2x32xf32> -> vector<2x32xf32>
    %cst_97 = arith.constant dense<0.000000e+00> : vector<2x32xf32>
    %145 = tpu.matmul %54, %36, %cst_97 {dimension_numbers = #tpu.dot_dimension_numbers<[1], [0], [0], [1], [0, 0, 1, 1], [], []>} : vector<2x32xf32>, vector<32x32xf32>, vector<2x32xf32> -> vector<2x32xf32>
    %146 = arith.addf %144, %145 : vector<2x32xf32>
    %147 = vector.broadcast %44 : vector<1x32xf32> to vector<2x32xf32>
    %148 = arith.addf %146, %147 : vector<2x32xf32>
    %cst_98 = arith.constant dense<0.000000e+00> : vector<2x32xf32>
    %149 = tpu.matmul %96, %30, %cst_98 {dimension_numbers = #tpu.dot_dimension_numbers<[1], [0], [0], [1], [0, 0, 1, 1], [], []>} : vector<2x32xf32>, vector<32x32xf32>, vector<2x32xf32> -> vector<2x32xf32>
    %cst_99 = arith.constant dense<0.000000e+00> : vector<2x32xf32>
    %150 = tpu.matmul %54, %38, %cst_99 {dimension_numbers = #tpu.dot_dimension_numbers<[1], [0], [0], [1], [0, 0, 1, 1], [], []>} : vector<2x32xf32>, vector<32x32xf32>, vector<2x32xf32> -> vector<2x32xf32>
    %151 = arith.addf %149, %150 : vector<2x32xf32>
    %152 = vector.broadcast %46 : vector<1x32xf32> to vector<2x32xf32>
    %153 = arith.addf %151, %152 : vector<2x32xf32>
    %cst_100 = arith.constant dense<0.000000e+00> : vector<2x32xf32>
    %154 = tpu.matmul %96, %32, %cst_100 {dimension_numbers = #tpu.dot_dimension_numbers<[1], [0], [0], [1], [0, 0, 1, 1], [], []>} : vector<2x32xf32>, vector<32x32xf32>, vector<2x32xf32> -> vector<2x32xf32>
    %cst_101 = arith.constant dense<0.000000e+00> : vector<2x32xf32>
    %155 = tpu.matmul %54, %40, %cst_101 {dimension_numbers = #tpu.dot_dimension_numbers<[1], [0], [0], [1], [0, 0, 1, 1], [], []>} : vector<2x32xf32>, vector<32x32xf32>, vector<2x32xf32> -> vector<2x32xf32>
    %156 = arith.addf %154, %155 : vector<2x32xf32>
    %157 = vector.broadcast %48 : vector<1x32xf32> to vector<2x32xf32>
    %158 = arith.addf %156, %157 : vector<2x32xf32>
    %159 = arith.negf %143 : vector<2x32xf32>
    %160 = math.exp %159 : vector<2x32xf32>
    %cst_102 = arith.constant 1.000000e+00 : f32
    %161 = vector.broadcast %cst_102 : f32 to vector<2x32xf32>
    %162 = arith.addf %161, %160 : vector<2x32xf32>
    %163 = arith.divf %161, %162 : vector<2x32xf32>
    %164 = arith.negf %148 : vector<2x32xf32>
    %165 = math.exp %164 : vector<2x32xf32>
    %cst_103 = arith.constant 1.000000e+00 : f32
    %166 = vector.broadcast %cst_103 : f32 to vector<2x32xf32>
    %167 = arith.addf %166, %165 : vector<2x32xf32>
    %168 = arith.divf %166, %167 : vector<2x32xf32>
    %169 = math.tanh %153 : vector<2x32xf32>
    %170 = arith.negf %158 : vector<2x32xf32>
    %171 = math.exp %170 : vector<2x32xf32>
    %cst_104 = arith.constant 1.000000e+00 : f32
    %172 = vector.broadcast %cst_104 : f32 to vector<2x32xf32>
    %173 = arith.addf %172, %171 : vector<2x32xf32>
    %174 = arith.divf %172, %173 : vector<2x32xf32>
    %175 = arith.mulf %168, %54 : vector<2x32xf32>
    %176 = arith.mulf %163, %169 : vector<2x32xf32>
    %177 = arith.addf %175, %176 : vector<2x32xf32>
    %178 = math.tanh %177 : vector<2x32xf32>
    %179 = arith.mulf %174, %178 : vector<2x32xf32>
    %c0_i32 = arith.constant 0 : i32
    %180 = vector.broadcast %c0_i32 : i32 to vector<2x1xi32>
    %181 = arith.cmpi eq, %53, %180 : vector<2x1xi32>
    %182 = vector.shape_cast %181 : vector<2x1xi1> to vector<2x1xi1>
    %183 = vector.broadcast %182 : vector<2x1xi1> to vector<2x32xi1>
    %184 = arith.select %183, %179, %54 : vector<2x32xi1>, vector<2x32xf32>
    %185 = vector.extract_strided_slice %0 {offsets = [0, 16], sizes = [2, 8], strides = [1, 1]} : vector<2x64xf32> to vector<2x8xf32>
    %cst_105 = arith.constant dense<0.000000e+00> : vector<2x32xf32>
    %186 = tpu.matmul %185, %2, %cst_105 {dimension_numbers = #tpu.dot_dimension_numbers<[1], [0], [0], [1], [0, 0, 1, 1], [], []>} : vector<2x8xf32>, vector<8x32xf32>, vector<2x32xf32> -> vector<2x32xf32>
    %cst_106 = arith.constant dense<0.000000e+00> : vector<2x32xf32>
    %187 = tpu.matmul %138, %10, %cst_106 {dimension_numbers = #tpu.dot_dimension_numbers<[1], [0], [0], [1], [0, 0, 1, 1], [], []>} : vector<2x32xf32>, vector<32x32xf32>, vector<2x32xf32> -> vector<2x32xf32>
    %188 = arith.addf %186, %187 : vector<2x32xf32>
    %189 = vector.broadcast %18 : vector<1x32xf32> to vector<2x32xf32>
    %190 = arith.addf %188, %189 : vector<2x32xf32>
    %cst_107 = arith.constant dense<0.000000e+00> : vector<2x32xf32>
    %191 = tpu.matmul %185, %4, %cst_107 {dimension_numbers = #tpu.dot_dimension_numbers<[1], [0], [0], [1], [0, 0, 1, 1], [], []>} : vector<2x8xf32>, vector<8x32xf32>, vector<2x32xf32> -> vector<2x32xf32>
    %cst_108 = arith.constant dense<0.000000e+00> : vector<2x32xf32>
    %192 = tpu.matmul %138, %12, %cst_108 {dimension_numbers = #tpu.dot_dimension_numbers<[1], [0], [0], [1], [0, 0, 1, 1], [], []>} : vector<2x32xf32>, vector<32x32xf32>, vector<2x32xf32> -> vector<2x32xf32>
    %193 = arith.addf %191, %192 : vector<2x32xf32>
    %194 = vector.broadcast %20 : vector<1x32xf32> to vector<2x32xf32>
    %195 = arith.addf %193, %194 : vector<2x32xf32>
    %cst_109 = arith.constant dense<0.000000e+00> : vector<2x32xf32>
    %196 = tpu.matmul %185, %6, %cst_109 {dimension_numbers = #tpu.dot_dimension_numbers<[1], [0], [0], [1], [0, 0, 1, 1], [], []>} : vector<2x8xf32>, vector<8x32xf32>, vector<2x32xf32> -> vector<2x32xf32>
    %cst_110 = arith.constant dense<0.000000e+00> : vector<2x32xf32>
    %197 = tpu.matmul %138, %14, %cst_110 {dimension_numbers = #tpu.dot_dimension_numbers<[1], [0], [0], [1], [0, 0, 1, 1], [], []>} : vector<2x32xf32>, vector<32x32xf32>, vector<2x32xf32> -> vector<2x32xf32>
    %198 = arith.addf %196, %197 : vector<2x32xf32>
    %199 = vector.broadcast %22 : vector<1x32xf32> to vector<2x32xf32>
    %200 = arith.addf %198, %199 : vector<2x32xf32>
    %cst_111 = arith.constant dense<0.000000e+00> : vector<2x32xf32>
    %201 = tpu.matmul %185, %8, %cst_111 {dimension_numbers = #tpu.dot_dimension_numbers<[1], [0], [0], [1], [0, 0, 1, 1], [], []>} : vector<2x8xf32>, vector<8x32xf32>, vector<2x32xf32> -> vector<2x32xf32>
    %cst_112 = arith.constant dense<0.000000e+00> : vector<2x32xf32>
    %202 = tpu.matmul %138, %16, %cst_112 {dimension_numbers = #tpu.dot_dimension_numbers<[1], [0], [0], [1], [0, 0, 1, 1], [], []>} : vector<2x32xf32>, vector<32x32xf32>, vector<2x32xf32> -> vector<2x32xf32>
    %203 = arith.addf %201, %202 : vector<2x32xf32>
    %204 = vector.broadcast %24 : vector<1x32xf32> to vector<2x32xf32>
    %205 = arith.addf %203, %204 : vector<2x32xf32>
    %206 = arith.negf %190 : vector<2x32xf32>
    %207 = math.exp %206 : vector<2x32xf32>
    %cst_113 = arith.constant 1.000000e+00 : f32
    %208 = vector.broadcast %cst_113 : f32 to vector<2x32xf32>
    %209 = arith.addf %208, %207 : vector<2x32xf32>
    %210 = arith.divf %208, %209 : vector<2x32xf32>
    %211 = arith.negf %195 : vector<2x32xf32>
    %212 = math.exp %211 : vector<2x32xf32>
    %cst_114 = arith.constant 1.000000e+00 : f32
    %213 = vector.broadcast %cst_114 : f32 to vector<2x32xf32>
    %214 = arith.addf %213, %212 : vector<2x32xf32>
    %215 = arith.divf %213, %214 : vector<2x32xf32>
    %216 = math.tanh %200 : vector<2x32xf32>
    %217 = arith.negf %205 : vector<2x32xf32>
    %218 = math.exp %217 : vector<2x32xf32>
    %cst_115 = arith.constant 1.000000e+00 : f32
    %219 = vector.broadcast %cst_115 : f32 to vector<2x32xf32>
    %220 = arith.addf %219, %218 : vector<2x32xf32>
    %221 = arith.divf %219, %220 : vector<2x32xf32>
    %222 = arith.mulf %215, %136 : vector<2x32xf32>
    %223 = arith.mulf %210, %216 : vector<2x32xf32>
    %224 = arith.addf %222, %223 : vector<2x32xf32>
    %225 = math.tanh %224 : vector<2x32xf32>
    %226 = arith.mulf %221, %225 : vector<2x32xf32>
    %cst_116 = arith.constant dense<0.000000e+00> : vector<2x32xf32>
    %227 = tpu.matmul %138, %26, %cst_116 {dimension_numbers = #tpu.dot_dimension_numbers<[1], [0], [0], [1], [0, 0, 1, 1], [], []>} : vector<2x32xf32>, vector<32x32xf32>, vector<2x32xf32> -> vector<2x32xf32>
    %cst_117 = arith.constant dense<0.000000e+00> : vector<2x32xf32>
    %228 = tpu.matmul %179, %34, %cst_117 {dimension_numbers = #tpu.dot_dimension_numbers<[1], [0], [0], [1], [0, 0, 1, 1], [], []>} : vector<2x32xf32>, vector<32x32xf32>, vector<2x32xf32> -> vector<2x32xf32>
    %229 = arith.addf %227, %228 : vector<2x32xf32>
    %230 = vector.broadcast %42 : vector<1x32xf32> to vector<2x32xf32>
    %231 = arith.addf %229, %230 : vector<2x32xf32>
    %cst_118 = arith.constant dense<0.000000e+00> : vector<2x32xf32>
    %232 = tpu.matmul %138, %28, %cst_118 {dimension_numbers = #tpu.dot_dimension_numbers<[1], [0], [0], [1], [0, 0, 1, 1], [], []>} : vector<2x32xf32>, vector<32x32xf32>, vector<2x32xf32> -> vector<2x32xf32>
    %cst_119 = arith.constant dense<0.000000e+00> : vector<2x32xf32>
    %233 = tpu.matmul %179, %36, %cst_119 {dimension_numbers = #tpu.dot_dimension_numbers<[1], [0], [0], [1], [0, 0, 1, 1], [], []>} : vector<2x32xf32>, vector<32x32xf32>, vector<2x32xf32> -> vector<2x32xf32>
    %234 = arith.addf %232, %233 : vector<2x32xf32>
    %235 = vector.broadcast %44 : vector<1x32xf32> to vector<2x32xf32>
    %236 = arith.addf %234, %235 : vector<2x32xf32>
    %cst_120 = arith.constant dense<0.000000e+00> : vector<2x32xf32>
    %237 = tpu.matmul %138, %30, %cst_120 {dimension_numbers = #tpu.dot_dimension_numbers<[1], [0], [0], [1], [0, 0, 1, 1], [], []>} : vector<2x32xf32>, vector<32x32xf32>, vector<2x32xf32> -> vector<2x32xf32>
    %cst_121 = arith.constant dense<0.000000e+00> : vector<2x32xf32>
    %238 = tpu.matmul %179, %38, %cst_121 {dimension_numbers = #tpu.dot_dimension_numbers<[1], [0], [0], [1], [0, 0, 1, 1], [], []>} : vector<2x32xf32>, vector<32x32xf32>, vector<2x32xf32> -> vector<2x32xf32>
    %239 = arith.addf %237, %238 : vector<2x32xf32>
    %240 = vector.broadcast %46 : vector<1x32xf32> to vector<2x32xf32>
    %241 = arith.addf %239, %240 : vector<2x32xf32>
    %cst_122 = arith.constant dense<0.000000e+00> : vector<2x32xf32>
    %242 = tpu.matmul %138, %32, %cst_122 {dimension_numbers = #tpu.dot_dimension_numbers<[1], [0], [0], [1], [0, 0, 1, 1], [], []>} : vector<2x32xf32>, vector<32x32xf32>, vector<2x32xf32> -> vector<2x32xf32>
    %cst_123 = arith.constant dense<0.000000e+00> : vector<2x32xf32>
    %243 = tpu.matmul %179, %40, %cst_123 {dimension_numbers = #tpu.dot_dimension_numbers<[1], [0], [0], [1], [0, 0, 1, 1], [], []>} : vector<2x32xf32>, vector<32x32xf32>, vector<2x32xf32> -> vector<2x32xf32>
    %244 = arith.addf %242, %243 : vector<2x32xf32>
    %245 = vector.broadcast %48 : vector<1x32xf32> to vector<2x32xf32>
    %246 = arith.addf %244, %245 : vector<2x32xf32>
    %247 = arith.negf %231 : vector<2x32xf32>
    %248 = math.exp %247 : vector<2x32xf32>
    %cst_124 = arith.constant 1.000000e+00 : f32
    %249 = vector.broadcast %cst_124 : f32 to vector<2x32xf32>
    %250 = arith.addf %249, %248 : vector<2x32xf32>
    %251 = arith.divf %249, %250 : vector<2x32xf32>
    %252 = arith.negf %236 : vector<2x32xf32>
    %253 = math.exp %252 : vector<2x32xf32>
    %cst_125 = arith.constant 1.000000e+00 : f32
    %254 = vector.broadcast %cst_125 : f32 to vector<2x32xf32>
    %255 = arith.addf %254, %253 : vector<2x32xf32>
    %256 = arith.divf %254, %255 : vector<2x32xf32>
    %257 = math.tanh %241 : vector<2x32xf32>
    %258 = arith.negf %246 : vector<2x32xf32>
    %259 = math.exp %258 : vector<2x32xf32>
    %cst_126 = arith.constant 1.000000e+00 : f32
    %260 = vector.broadcast %cst_126 : f32 to vector<2x32xf32>
    %261 = arith.addf %260, %259 : vector<2x32xf32>
    %262 = arith.divf %260, %261 : vector<2x32xf32>
    %263 = arith.mulf %256, %177 : vector<2x32xf32>
    %264 = arith.mulf %251, %257 : vector<2x32xf32>
    %265 = arith.addf %263, %264 : vector<2x32xf32>
    %266 = math.tanh %265 : vector<2x32xf32>
    %267 = arith.mulf %262, %266 : vector<2x32xf32>
    %c1_i32 = arith.constant 1 : i32
    %268 = vector.broadcast %c1_i32 : i32 to vector<2x1xi32>
    %269 = arith.cmpi eq, %53, %268 : vector<2x1xi32>
    %270 = vector.shape_cast %269 : vector<2x1xi1> to vector<2x1xi1>
    %271 = vector.broadcast %270 : vector<2x1xi1> to vector<2x32xi1>
    %272 = arith.select %271, %267, %184 : vector<2x32xi1>, vector<2x32xf32>
    %273 = vector.extract_strided_slice %0 {offsets = [0, 24], sizes = [2, 8], strides = [1, 1]} : vector<2x64xf32> to vector<2x8xf32>
    %cst_127 = arith.constant dense<0.000000e+00> : vector<2x32xf32>
    %274 = tpu.matmul %273, %2, %cst_127 {dimension_numbers = #tpu.dot_dimension_numbers<[1], [0], [0], [1], [0, 0, 1, 1], [], []>} : vector<2x8xf32>, vector<8x32xf32>, vector<2x32xf32> -> vector<2x32xf32>
    %cst_128 = arith.constant dense<0.000000e+00> : vector<2x32xf32>
    %275 = tpu.matmul %226, %10, %cst_128 {dimension_numbers = #tpu.dot_dimension_numbers<[1], [0], [0], [1], [0, 0, 1, 1], [], []>} : vector<2x32xf32>, vector<32x32xf32>, vector<2x32xf32> -> vector<2x32xf32>
    %276 = arith.addf %274, %275 : vector<2x32xf32>
    %277 = vector.broadcast %18 : vector<1x32xf32> to vector<2x32xf32>
    %278 = arith.addf %276, %277 : vector<2x32xf32>
    %cst_129 = arith.constant dense<0.000000e+00> : vector<2x32xf32>
    %279 = tpu.matmul %273, %4, %cst_129 {dimension_numbers = #tpu.dot_dimension_numbers<[1], [0], [0], [1], [0, 0, 1, 1], [], []>} : vector<2x8xf32>, vector<8x32xf32>, vector<2x32xf32> -> vector<2x32xf32>
    %cst_130 = arith.constant dense<0.000000e+00> : vector<2x32xf32>
    %280 = tpu.matmul %226, %12, %cst_130 {dimension_numbers = #tpu.dot_dimension_numbers<[1], [0], [0], [1], [0, 0, 1, 1], [], []>} : vector<2x32xf32>, vector<32x32xf32>, vector<2x32xf32> -> vector<2x32xf32>
    %281 = arith.addf %279, %280 : vector<2x32xf32>
    %282 = vector.broadcast %20 : vector<1x32xf32> to vector<2x32xf32>
    %283 = arith.addf %281, %282 : vector<2x32xf32>
    %cst_131 = arith.constant dense<0.000000e+00> : vector<2x32xf32>
    %284 = tpu.matmul %273, %6, %cst_131 {dimension_numbers = #tpu.dot_dimension_numbers<[1], [0], [0], [1], [0, 0, 1, 1], [], []>} : vector<2x8xf32>, vector<8x32xf32>, vector<2x32xf32> -> vector<2x32xf32>
    %cst_132 = arith.constant dense<0.000000e+00> : vector<2x32xf32>
    %285 = tpu.matmul %226, %14, %cst_132 {dimension_numbers = #tpu.dot_dimension_numbers<[1], [0], [0], [1], [0, 0, 1, 1], [], []>} : vector<2x32xf32>, vector<32x32xf32>, vector<2x32xf32> -> vector<2x32xf32>
    %286 = arith.addf %284, %285 : vector<2x32xf32>
    %287 = vector.broadcast %22 : vector<1x32xf32> to vector<2x32xf32>
    %288 = arith.addf %286, %287 : vector<2x32xf32>
    %cst_133 = arith.constant dense<0.000000e+00> : vector<2x32xf32>
    %289 = tpu.matmul %273, %8, %cst_133 {dimension_numbers = #tpu.dot_dimension_numbers<[1], [0], [0], [1], [0, 0, 1, 1], [], []>} : vector<2x8xf32>, vector<8x32xf32>, vector<2x32xf32> -> vector<2x32xf32>
    %cst_134 = arith.constant dense<0.000000e+00> : vector<2x32xf32>
    %290 = tpu.matmul %226, %16, %cst_134 {dimension_numbers = #tpu.dot_dimension_numbers<[1], [0], [0], [1], [0, 0, 1, 1], [], []>} : vector<2x32xf32>, vector<32x32xf32>, vector<2x32xf32> -> vector<2x32xf32>
    %291 = arith.addf %289, %290 : vector<2x32xf32>
    %292 = vector.broadcast %24 : vector<1x32xf32> to vector<2x32xf32>
    %293 = arith.addf %291, %292 : vector<2x32xf32>
    %294 = arith.negf %278 : vector<2x32xf32>
    %295 = math.exp %294 : vector<2x32xf32>
    %cst_135 = arith.constant 1.000000e+00 : f32
    %296 = vector.broadcast %cst_135 : f32 to vector<2x32xf32>
    %297 = arith.addf %296, %295 : vector<2x32xf32>
    %298 = arith.divf %296, %297 : vector<2x32xf32>
    %299 = arith.negf %283 : vector<2x32xf32>
    %300 = math.exp %299 : vector<2x32xf32>
    %cst_136 = arith.constant 1.000000e+00 : f32
    %301 = vector.broadcast %cst_136 : f32 to vector<2x32xf32>
    %302 = arith.addf %301, %300 : vector<2x32xf32>
    %303 = arith.divf %301, %302 : vector<2x32xf32>
    %304 = math.tanh %288 : vector<2x32xf32>
    %305 = arith.negf %293 : vector<2x32xf32>
    %306 = math.exp %305 : vector<2x32xf32>
    %cst_137 = arith.constant 1.000000e+00 : f32
    %307 = vector.broadcast %cst_137 : f32 to vector<2x32xf32>
    %308 = arith.addf %307, %306 : vector<2x32xf32>
    %309 = arith.divf %307, %308 : vector<2x32xf32>
    %310 = arith.mulf %303, %224 : vector<2x32xf32>
    %311 = arith.mulf %298, %304 : vector<2x32xf32>
    %312 = arith.addf %310, %311 : vector<2x32xf32>
    %313 = math.tanh %312 : vector<2x32xf32>
    %314 = arith.mulf %309, %313 : vector<2x32xf32>
    %cst_138 = arith.constant dense<0.000000e+00> : vector<2x32xf32>
    %315 = tpu.matmul %226, %26, %cst_138 {dimension_numbers = #tpu.dot_dimension_numbers<[1], [0], [0], [1], [0, 0, 1, 1], [], []>} : vector<2x32xf32>, vector<32x32xf32>, vector<2x32xf32> -> vector<2x32xf32>
    %cst_139 = arith.constant dense<0.000000e+00> : vector<2x32xf32>
    %316 = tpu.matmul %267, %34, %cst_139 {dimension_numbers = #tpu.dot_dimension_numbers<[1], [0], [0], [1], [0, 0, 1, 1], [], []>} : vector<2x32xf32>, vector<32x32xf32>, vector<2x32xf32> -> vector<2x32xf32>
    %317 = arith.addf %315, %316 : vector<2x32xf32>
    %318 = vector.broadcast %42 : vector<1x32xf32> to vector<2x32xf32>
    %319 = arith.addf %317, %318 : vector<2x32xf32>
    %cst_140 = arith.constant dense<0.000000e+00> : vector<2x32xf32>
    %320 = tpu.matmul %226, %28, %cst_140 {dimension_numbers = #tpu.dot_dimension_numbers<[1], [0], [0], [1], [0, 0, 1, 1], [], []>} : vector<2x32xf32>, vector<32x32xf32>, vector<2x32xf32> -> vector<2x32xf32>
    %cst_141 = arith.constant dense<0.000000e+00> : vector<2x32xf32>
    %321 = tpu.matmul %267, %36, %cst_141 {dimension_numbers = #tpu.dot_dimension_numbers<[1], [0], [0], [1], [0, 0, 1, 1], [], []>} : vector<2x32xf32>, vector<32x32xf32>, vector<2x32xf32> -> vector<2x32xf32>
    %322 = arith.addf %320, %321 : vector<2x32xf32>
    %323 = vector.broadcast %44 : vector<1x32xf32> to vector<2x32xf32>
    %324 = arith.addf %322, %323 : vector<2x32xf32>
    %cst_142 = arith.constant dense<0.000000e+00> : vector<2x32xf32>
    %325 = tpu.matmul %226, %30, %cst_142 {dimension_numbers = #tpu.dot_dimension_numbers<[1], [0], [0], [1], [0, 0, 1, 1], [], []>} : vector<2x32xf32>, vector<32x32xf32>, vector<2x32xf32> -> vector<2x32xf32>
    %cst_143 = arith.constant dense<0.000000e+00> : vector<2x32xf32>
    %326 = tpu.matmul %267, %38, %cst_143 {dimension_numbers = #tpu.dot_dimension_numbers<[1], [0], [0], [1], [0, 0, 1, 1], [], []>} : vector<2x32xf32>, vector<32x32xf32>, vector<2x32xf32> -> vector<2x32xf32>
    %327 = arith.addf %325, %326 : vector<2x32xf32>
    %328 = vector.broadcast %46 : vector<1x32xf32> to vector<2x32xf32>
    %329 = arith.addf %327, %328 : vector<2x32xf32>
    %cst_144 = arith.constant dense<0.000000e+00> : vector<2x32xf32>
    %330 = tpu.matmul %226, %32, %cst_144 {dimension_numbers = #tpu.dot_dimension_numbers<[1], [0], [0], [1], [0, 0, 1, 1], [], []>} : vector<2x32xf32>, vector<32x32xf32>, vector<2x32xf32> -> vector<2x32xf32>
    %cst_145 = arith.constant dense<0.000000e+00> : vector<2x32xf32>
    %331 = tpu.matmul %267, %40, %cst_145 {dimension_numbers = #tpu.dot_dimension_numbers<[1], [0], [0], [1], [0, 0, 1, 1], [], []>} : vector<2x32xf32>, vector<32x32xf32>, vector<2x32xf32> -> vector<2x32xf32>
    %332 = arith.addf %330, %331 : vector<2x32xf32>
    %333 = vector.broadcast %48 : vector<1x32xf32> to vector<2x32xf32>
    %334 = arith.addf %332, %333 : vector<2x32xf32>
    %335 = arith.negf %319 : vector<2x32xf32>
    %336 = math.exp %335 : vector<2x32xf32>
    %cst_146 = arith.constant 1.000000e+00 : f32
    %337 = vector.broadcast %cst_146 : f32 to vector<2x32xf32>
    %338 = arith.addf %337, %336 : vector<2x32xf32>
    %339 = arith.divf %337, %338 : vector<2x32xf32>
    %340 = arith.negf %324 : vector<2x32xf32>
    %341 = math.exp %340 : vector<2x32xf32>
    %cst_147 = arith.constant 1.000000e+00 : f32
    %342 = vector.broadcast %cst_147 : f32 to vector<2x32xf32>
    %343 = arith.addf %342, %341 : vector<2x32xf32>
    %344 = arith.divf %342, %343 : vector<2x32xf32>
    %345 = math.tanh %329 : vector<2x32xf32>
    %346 = arith.negf %334 : vector<2x32xf32>
    %347 = math.exp %346 : vector<2x32xf32>
    %cst_148 = arith.constant 1.000000e+00 : f32
    %348 = vector.broadcast %cst_148 : f32 to vector<2x32xf32>
    %349 = arith.addf %348, %347 : vector<2x32xf32>
    %350 = arith.divf %348, %349 : vector<2x32xf32>
    %351 = arith.mulf %344, %265 : vector<2x32xf32>
    %352 = arith.mulf %339, %345 : vector<2x32xf32>
    %353 = arith.addf %351, %352 : vector<2x32xf32>
    %354 = math.tanh %353 : vector<2x32xf32>
    %355 = arith.mulf %350, %354 : vector<2x32xf32>
    %c2_i32 = arith.constant 2 : i32
    %356 = vector.broadcast %c2_i32 : i32 to vector<2x1xi32>
    %357 = arith.cmpi eq, %53, %356 : vector<2x1xi32>
    %358 = vector.shape_cast %357 : vector<2x1xi1> to vector<2x1xi1>
    %359 = vector.broadcast %358 : vector<2x1xi1> to vector<2x32xi1>
    %360 = arith.select %359, %355, %272 : vector<2x32xi1>, vector<2x32xf32>
    %361 = vector.extract_strided_slice %0 {offsets = [0, 32], sizes = [2, 8], strides = [1, 1]} : vector<2x64xf32> to vector<2x8xf32>
    %cst_149 = arith.constant dense<0.000000e+00> : vector<2x32xf32>
    %362 = tpu.matmul %361, %2, %cst_149 {dimension_numbers = #tpu.dot_dimension_numbers<[1], [0], [0], [1], [0, 0, 1, 1], [], []>} : vector<2x8xf32>, vector<8x32xf32>, vector<2x32xf32> -> vector<2x32xf32>
    %cst_150 = arith.constant dense<0.000000e+00> : vector<2x32xf32>
    %363 = tpu.matmul %314, %10, %cst_150 {dimension_numbers = #tpu.dot_dimension_numbers<[1], [0], [0], [1], [0, 0, 1, 1], [], []>} : vector<2x32xf32>, vector<32x32xf32>, vector<2x32xf32> -> vector<2x32xf32>
    %364 = arith.addf %362, %363 : vector<2x32xf32>
    %365 = vector.broadcast %18 : vector<1x32xf32> to vector<2x32xf32>
    %366 = arith.addf %364, %365 : vector<2x32xf32>
    %cst_151 = arith.constant dense<0.000000e+00> : vector<2x32xf32>
    %367 = tpu.matmul %361, %4, %cst_151 {dimension_numbers = #tpu.dot_dimension_numbers<[1], [0], [0], [1], [0, 0, 1, 1], [], []>} : vector<2x8xf32>, vector<8x32xf32>, vector<2x32xf32> -> vector<2x32xf32>
    %cst_152 = arith.constant dense<0.000000e+00> : vector<2x32xf32>
    %368 = tpu.matmul %314, %12, %cst_152 {dimension_numbers = #tpu.dot_dimension_numbers<[1], [0], [0], [1], [0, 0, 1, 1], [], []>} : vector<2x32xf32>, vector<32x32xf32>, vector<2x32xf32> -> vector<2x32xf32>
    %369 = arith.addf %367, %368 : vector<2x32xf32>
    %370 = vector.broadcast %20 : vector<1x32xf32> to vector<2x32xf32>
    %371 = arith.addf %369, %370 : vector<2x32xf32>
    %cst_153 = arith.constant dense<0.000000e+00> : vector<2x32xf32>
    %372 = tpu.matmul %361, %6, %cst_153 {dimension_numbers = #tpu.dot_dimension_numbers<[1], [0], [0], [1], [0, 0, 1, 1], [], []>} : vector<2x8xf32>, vector<8x32xf32>, vector<2x32xf32> -> vector<2x32xf32>
    %cst_154 = arith.constant dense<0.000000e+00> : vector<2x32xf32>
    %373 = tpu.matmul %314, %14, %cst_154 {dimension_numbers = #tpu.dot_dimension_numbers<[1], [0], [0], [1], [0, 0, 1, 1], [], []>} : vector<2x32xf32>, vector<32x32xf32>, vector<2x32xf32> -> vector<2x32xf32>
    %374 = arith.addf %372, %373 : vector<2x32xf32>
    %375 = vector.broadcast %22 : vector<1x32xf32> to vector<2x32xf32>
    %376 = arith.addf %374, %375 : vector<2x32xf32>
    %cst_155 = arith.constant dense<0.000000e+00> : vector<2x32xf32>
    %377 = tpu.matmul %361, %8, %cst_155 {dimension_numbers = #tpu.dot_dimension_numbers<[1], [0], [0], [1], [0, 0, 1, 1], [], []>} : vector<2x8xf32>, vector<8x32xf32>, vector<2x32xf32> -> vector<2x32xf32>
    %cst_156 = arith.constant dense<0.000000e+00> : vector<2x32xf32>
    %378 = tpu.matmul %314, %16, %cst_156 {dimension_numbers = #tpu.dot_dimension_numbers<[1], [0], [0], [1], [0, 0, 1, 1], [], []>} : vector<2x32xf32>, vector<32x32xf32>, vector<2x32xf32> -> vector<2x32xf32>
    %379 = arith.addf %377, %378 : vector<2x32xf32>
    %380 = vector.broadcast %24 : vector<1x32xf32> to vector<2x32xf32>
    %381 = arith.addf %379, %380 : vector<2x32xf32>
    %382 = arith.negf %366 : vector<2x32xf32>
    %383 = math.exp %382 : vector<2x32xf32>
    %cst_157 = arith.constant 1.000000e+00 : f32
    %384 = vector.broadcast %cst_157 : f32 to vector<2x32xf32>
    %385 = arith.addf %384, %383 : vector<2x32xf32>
    %386 = arith.divf %384, %385 : vector<2x32xf32>
    %387 = arith.negf %371 : vector<2x32xf32>
    %388 = math.exp %387 : vector<2x32xf32>
    %cst_158 = arith.constant 1.000000e+00 : f32
    %389 = vector.broadcast %cst_158 : f32 to vector<2x32xf32>
    %390 = arith.addf %389, %388 : vector<2x32xf32>
    %391 = arith.divf %389, %390 : vector<2x32xf32>
    %392 = math.tanh %376 : vector<2x32xf32>
    %393 = arith.negf %381 : vector<2x32xf32>
    %394 = math.exp %393 : vector<2x32xf32>
    %cst_159 = arith.constant 1.000000e+00 : f32
    %395 = vector.broadcast %cst_159 : f32 to vector<2x32xf32>
    %396 = arith.addf %395, %394 : vector<2x32xf32>
    %397 = arith.divf %395, %396 : vector<2x32xf32>
    %398 = arith.mulf %391, %312 : vector<2x32xf32>
    %399 = arith.mulf %386, %392 : vector<2x32xf32>
    %400 = arith.addf %398, %399 : vector<2x32xf32>
    %401 = math.tanh %400 : vector<2x32xf32>
    %402 = arith.mulf %397, %401 : vector<2x32xf32>
    %cst_160 = arith.constant dense<0.000000e+00> : vector<2x32xf32>
    %403 = tpu.matmul %314, %26, %cst_160 {dimension_numbers = #tpu.dot_dimension_numbers<[1], [0], [0], [1], [0, 0, 1, 1], [], []>} : vector<2x32xf32>, vector<32x32xf32>, vector<2x32xf32> -> vector<2x32xf32>
    %cst_161 = arith.constant dense<0.000000e+00> : vector<2x32xf32>
    %404 = tpu.matmul %355, %34, %cst_161 {dimension_numbers = #tpu.dot_dimension_numbers<[1], [0], [0], [1], [0, 0, 1, 1], [], []>} : vector<2x32xf32>, vector<32x32xf32>, vector<2x32xf32> -> vector<2x32xf32>
    %405 = arith.addf %403, %404 : vector<2x32xf32>
    %406 = vector.broadcast %42 : vector<1x32xf32> to vector<2x32xf32>
    %407 = arith.addf %405, %406 : vector<2x32xf32>
    %cst_162 = arith.constant dense<0.000000e+00> : vector<2x32xf32>
    %408 = tpu.matmul %314, %28, %cst_162 {dimension_numbers = #tpu.dot_dimension_numbers<[1], [0], [0], [1], [0, 0, 1, 1], [], []>} : vector<2x32xf32>, vector<32x32xf32>, vector<2x32xf32> -> vector<2x32xf32>
    %cst_163 = arith.constant dense<0.000000e+00> : vector<2x32xf32>
    %409 = tpu.matmul %355, %36, %cst_163 {dimension_numbers = #tpu.dot_dimension_numbers<[1], [0], [0], [1], [0, 0, 1, 1], [], []>} : vector<2x32xf32>, vector<32x32xf32>, vector<2x32xf32> -> vector<2x32xf32>
    %410 = arith.addf %408, %409 : vector<2x32xf32>
    %411 = vector.broadcast %44 : vector<1x32xf32> to vector<2x32xf32>
    %412 = arith.addf %410, %411 : vector<2x32xf32>
    %cst_164 = arith.constant dense<0.000000e+00> : vector<2x32xf32>
    %413 = tpu.matmul %314, %30, %cst_164 {dimension_numbers = #tpu.dot_dimension_numbers<[1], [0], [0], [1], [0, 0, 1, 1], [], []>} : vector<2x32xf32>, vector<32x32xf32>, vector<2x32xf32> -> vector<2x32xf32>
    %cst_165 = arith.constant dense<0.000000e+00> : vector<2x32xf32>
    %414 = tpu.matmul %355, %38, %cst_165 {dimension_numbers = #tpu.dot_dimension_numbers<[1], [0], [0], [1], [0, 0, 1, 1], [], []>} : vector<2x32xf32>, vector<32x32xf32>, vector<2x32xf32> -> vector<2x32xf32>
    %415 = arith.addf %413, %414 : vector<2x32xf32>
    %416 = vector.broadcast %46 : vector<1x32xf32> to vector<2x32xf32>
    %417 = arith.addf %415, %416 : vector<2x32xf32>
    %cst_166 = arith.constant dense<0.000000e+00> : vector<2x32xf32>
    %418 = tpu.matmul %314, %32, %cst_166 {dimension_numbers = #tpu.dot_dimension_numbers<[1], [0], [0], [1], [0, 0, 1, 1], [], []>} : vector<2x32xf32>, vector<32x32xf32>, vector<2x32xf32> -> vector<2x32xf32>
    %cst_167 = arith.constant dense<0.000000e+00> : vector<2x32xf32>
    %419 = tpu.matmul %355, %40, %cst_167 {dimension_numbers = #tpu.dot_dimension_numbers<[1], [0], [0], [1], [0, 0, 1, 1], [], []>} : vector<2x32xf32>, vector<32x32xf32>, vector<2x32xf32> -> vector<2x32xf32>
    %420 = arith.addf %418, %419 : vector<2x32xf32>
    %421 = vector.broadcast %48 : vector<1x32xf32> to vector<2x32xf32>
    %422 = arith.addf %420, %421 : vector<2x32xf32>
    %423 = arith.negf %407 : vector<2x32xf32>
    %424 = math.exp %423 : vector<2x32xf32>
    %cst_168 = arith.constant 1.000000e+00 : f32
    %425 = vector.broadcast %cst_168 : f32 to vector<2x32xf32>
    %426 = arith.addf %425, %424 : vector<2x32xf32>
    %427 = arith.divf %425, %426 : vector<2x32xf32>
    %428 = arith.negf %412 : vector<2x32xf32>
    %429 = math.exp %428 : vector<2x32xf32>
    %cst_169 = arith.constant 1.000000e+00 : f32
    %430 = vector.broadcast %cst_169 : f32 to vector<2x32xf32>
    %431 = arith.addf %430, %429 : vector<2x32xf32>
    %432 = arith.divf %430, %431 : vector<2x32xf32>
    %433 = math.tanh %417 : vector<2x32xf32>
    %434 = arith.negf %422 : vector<2x32xf32>
    %435 = math.exp %434 : vector<2x32xf32>
    %cst_170 = arith.constant 1.000000e+00 : f32
    %436 = vector.broadcast %cst_170 : f32 to vector<2x32xf32>
    %437 = arith.addf %436, %435 : vector<2x32xf32>
    %438 = arith.divf %436, %437 : vector<2x32xf32>
    %439 = arith.mulf %432, %353 : vector<2x32xf32>
    %440 = arith.mulf %427, %433 : vector<2x32xf32>
    %441 = arith.addf %439, %440 : vector<2x32xf32>
    %442 = math.tanh %441 : vector<2x32xf32>
    %443 = arith.mulf %438, %442 : vector<2x32xf32>
    %c3_i32 = arith.constant 3 : i32
    %444 = vector.broadcast %c3_i32 : i32 to vector<2x1xi32>
    %445 = arith.cmpi eq, %53, %444 : vector<2x1xi32>
    %446 = vector.shape_cast %445 : vector<2x1xi1> to vector<2x1xi1>
    %447 = vector.broadcast %446 : vector<2x1xi1> to vector<2x32xi1>
    %448 = arith.select %447, %443, %360 : vector<2x32xi1>, vector<2x32xf32>
    %449 = vector.extract_strided_slice %0 {offsets = [0, 40], sizes = [2, 8], strides = [1, 1]} : vector<2x64xf32> to vector<2x8xf32>
    %cst_171 = arith.constant dense<0.000000e+00> : vector<2x32xf32>
    %450 = tpu.matmul %449, %2, %cst_171 {dimension_numbers = #tpu.dot_dimension_numbers<[1], [0], [0], [1], [0, 0, 1, 1], [], []>} : vector<2x8xf32>, vector<8x32xf32>, vector<2x32xf32> -> vector<2x32xf32>
    %cst_172 = arith.constant dense<0.000000e+00> : vector<2x32xf32>
    %451 = tpu.matmul %402, %10, %cst_172 {dimension_numbers = #tpu.dot_dimension_numbers<[1], [0], [0], [1], [0, 0, 1, 1], [], []>} : vector<2x32xf32>, vector<32x32xf32>, vector<2x32xf32> -> vector<2x32xf32>
    %452 = arith.addf %450, %451 : vector<2x32xf32>
    %453 = vector.broadcast %18 : vector<1x32xf32> to vector<2x32xf32>
    %454 = arith.addf %452, %453 : vector<2x32xf32>
    %cst_173 = arith.constant dense<0.000000e+00> : vector<2x32xf32>
    %455 = tpu.matmul %449, %4, %cst_173 {dimension_numbers = #tpu.dot_dimension_numbers<[1], [0], [0], [1], [0, 0, 1, 1], [], []>} : vector<2x8xf32>, vector<8x32xf32>, vector<2x32xf32> -> vector<2x32xf32>
    %cst_174 = arith.constant dense<0.000000e+00> : vector<2x32xf32>
    %456 = tpu.matmul %402, %12, %cst_174 {dimension_numbers = #tpu.dot_dimension_numbers<[1], [0], [0], [1], [0, 0, 1, 1], [], []>} : vector<2x32xf32>, vector<32x32xf32>, vector<2x32xf32> -> vector<2x32xf32>
    %457 = arith.addf %455, %456 : vector<2x32xf32>
    %458 = vector.broadcast %20 : vector<1x32xf32> to vector<2x32xf32>
    %459 = arith.addf %457, %458 : vector<2x32xf32>
    %cst_175 = arith.constant dense<0.000000e+00> : vector<2x32xf32>
    %460 = tpu.matmul %449, %6, %cst_175 {dimension_numbers = #tpu.dot_dimension_numbers<[1], [0], [0], [1], [0, 0, 1, 1], [], []>} : vector<2x8xf32>, vector<8x32xf32>, vector<2x32xf32> -> vector<2x32xf32>
    %cst_176 = arith.constant dense<0.000000e+00> : vector<2x32xf32>
    %461 = tpu.matmul %402, %14, %cst_176 {dimension_numbers = #tpu.dot_dimension_numbers<[1], [0], [0], [1], [0, 0, 1, 1], [], []>} : vector<2x32xf32>, vector<32x32xf32>, vector<2x32xf32> -> vector<2x32xf32>
    %462 = arith.addf %460, %461 : vector<2x32xf32>
    %463 = vector.broadcast %22 : vector<1x32xf32> to vector<2x32xf32>
    %464 = arith.addf %462, %463 : vector<2x32xf32>
    %cst_177 = arith.constant dense<0.000000e+00> : vector<2x32xf32>
    %465 = tpu.matmul %449, %8, %cst_177 {dimension_numbers = #tpu.dot_dimension_numbers<[1], [0], [0], [1], [0, 0, 1, 1], [], []>} : vector<2x8xf32>, vector<8x32xf32>, vector<2x32xf32> -> vector<2x32xf32>
    %cst_178 = arith.constant dense<0.000000e+00> : vector<2x32xf32>
    %466 = tpu.matmul %402, %16, %cst_178 {dimension_numbers = #tpu.dot_dimension_numbers<[1], [0], [0], [1], [0, 0, 1, 1], [], []>} : vector<2x32xf32>, vector<32x32xf32>, vector<2x32xf32> -> vector<2x32xf32>
    %467 = arith.addf %465, %466 : vector<2x32xf32>
    %468 = vector.broadcast %24 : vector<1x32xf32> to vector<2x32xf32>
    %469 = arith.addf %467, %468 : vector<2x32xf32>
    %470 = arith.negf %454 : vector<2x32xf32>
    %471 = math.exp %470 : vector<2x32xf32>
    %cst_179 = arith.constant 1.000000e+00 : f32
    %472 = vector.broadcast %cst_179 : f32 to vector<2x32xf32>
    %473 = arith.addf %472, %471 : vector<2x32xf32>
    %474 = arith.divf %472, %473 : vector<2x32xf32>
    %475 = arith.negf %459 : vector<2x32xf32>
    %476 = math.exp %475 : vector<2x32xf32>
    %cst_180 = arith.constant 1.000000e+00 : f32
    %477 = vector.broadcast %cst_180 : f32 to vector<2x32xf32>
    %478 = arith.addf %477, %476 : vector<2x32xf32>
    %479 = arith.divf %477, %478 : vector<2x32xf32>
    %480 = math.tanh %464 : vector<2x32xf32>
    %481 = arith.negf %469 : vector<2x32xf32>
    %482 = math.exp %481 : vector<2x32xf32>
    %cst_181 = arith.constant 1.000000e+00 : f32
    %483 = vector.broadcast %cst_181 : f32 to vector<2x32xf32>
    %484 = arith.addf %483, %482 : vector<2x32xf32>
    %485 = arith.divf %483, %484 : vector<2x32xf32>
    %486 = arith.mulf %479, %400 : vector<2x32xf32>
    %487 = arith.mulf %474, %480 : vector<2x32xf32>
    %488 = arith.addf %486, %487 : vector<2x32xf32>
    %489 = math.tanh %488 : vector<2x32xf32>
    %490 = arith.mulf %485, %489 : vector<2x32xf32>
    %cst_182 = arith.constant dense<0.000000e+00> : vector<2x32xf32>
    %491 = tpu.matmul %402, %26, %cst_182 {dimension_numbers = #tpu.dot_dimension_numbers<[1], [0], [0], [1], [0, 0, 1, 1], [], []>} : vector<2x32xf32>, vector<32x32xf32>, vector<2x32xf32> -> vector<2x32xf32>
    %cst_183 = arith.constant dense<0.000000e+00> : vector<2x32xf32>
    %492 = tpu.matmul %443, %34, %cst_183 {dimension_numbers = #tpu.dot_dimension_numbers<[1], [0], [0], [1], [0, 0, 1, 1], [], []>} : vector<2x32xf32>, vector<32x32xf32>, vector<2x32xf32> -> vector<2x32xf32>
    %493 = arith.addf %491, %492 : vector<2x32xf32>
    %494 = vector.broadcast %42 : vector<1x32xf32> to vector<2x32xf32>
    %495 = arith.addf %493, %494 : vector<2x32xf32>
    %cst_184 = arith.constant dense<0.000000e+00> : vector<2x32xf32>
    %496 = tpu.matmul %402, %28, %cst_184 {dimension_numbers = #tpu.dot_dimension_numbers<[1], [0], [0], [1], [0, 0, 1, 1], [], []>} : vector<2x32xf32>, vector<32x32xf32>, vector<2x32xf32> -> vector<2x32xf32>
    %cst_185 = arith.constant dense<0.000000e+00> : vector<2x32xf32>
    %497 = tpu.matmul %443, %36, %cst_185 {dimension_numbers = #tpu.dot_dimension_numbers<[1], [0], [0], [1], [0, 0, 1, 1], [], []>} : vector<2x32xf32>, vector<32x32xf32>, vector<2x32xf32> -> vector<2x32xf32>
    %498 = arith.addf %496, %497 : vector<2x32xf32>
    %499 = vector.broadcast %44 : vector<1x32xf32> to vector<2x32xf32>
    %500 = arith.addf %498, %499 : vector<2x32xf32>
    %cst_186 = arith.constant dense<0.000000e+00> : vector<2x32xf32>
    %501 = tpu.matmul %402, %30, %cst_186 {dimension_numbers = #tpu.dot_dimension_numbers<[1], [0], [0], [1], [0, 0, 1, 1], [], []>} : vector<2x32xf32>, vector<32x32xf32>, vector<2x32xf32> -> vector<2x32xf32>
    %cst_187 = arith.constant dense<0.000000e+00> : vector<2x32xf32>
    %502 = tpu.matmul %443, %38, %cst_187 {dimension_numbers = #tpu.dot_dimension_numbers<[1], [0], [0], [1], [0, 0, 1, 1], [], []>} : vector<2x32xf32>, vector<32x32xf32>, vector<2x32xf32> -> vector<2x32xf32>
    %503 = arith.addf %501, %502 : vector<2x32xf32>
    %504 = vector.broadcast %46 : vector<1x32xf32> to vector<2x32xf32>
    %505 = arith.addf %503, %504 : vector<2x32xf32>
    %cst_188 = arith.constant dense<0.000000e+00> : vector<2x32xf32>
    %506 = tpu.matmul %402, %32, %cst_188 {dimension_numbers = #tpu.dot_dimension_numbers<[1], [0], [0], [1], [0, 0, 1, 1], [], []>} : vector<2x32xf32>, vector<32x32xf32>, vector<2x32xf32> -> vector<2x32xf32>
    %cst_189 = arith.constant dense<0.000000e+00> : vector<2x32xf32>
    %507 = tpu.matmul %443, %40, %cst_189 {dimension_numbers = #tpu.dot_dimension_numbers<[1], [0], [0], [1], [0, 0, 1, 1], [], []>} : vector<2x32xf32>, vector<32x32xf32>, vector<2x32xf32> -> vector<2x32xf32>
    %508 = arith.addf %506, %507 : vector<2x32xf32>
    %509 = vector.broadcast %48 : vector<1x32xf32> to vector<2x32xf32>
    %510 = arith.addf %508, %509 : vector<2x32xf32>
    %511 = arith.negf %495 : vector<2x32xf32>
    %512 = math.exp %511 : vector<2x32xf32>
    %cst_190 = arith.constant 1.000000e+00 : f32
    %513 = vector.broadcast %cst_190 : f32 to vector<2x32xf32>
    %514 = arith.addf %513, %512 : vector<2x32xf32>
    %515 = arith.divf %513, %514 : vector<2x32xf32>
    %516 = arith.negf %500 : vector<2x32xf32>
    %517 = math.exp %516 : vector<2x32xf32>
    %cst_191 = arith.constant 1.000000e+00 : f32
    %518 = vector.broadcast %cst_191 : f32 to vector<2x32xf32>
    %519 = arith.addf %518, %517 : vector<2x32xf32>
    %520 = arith.divf %518, %519 : vector<2x32xf32>
    %521 = math.tanh %505 : vector<2x32xf32>
    %522 = arith.negf %510 : vector<2x32xf32>
    %523 = math.exp %522 : vector<2x32xf32>
    %cst_192 = arith.constant 1.000000e+00 : f32
    %524 = vector.broadcast %cst_192 : f32 to vector<2x32xf32>
    %525 = arith.addf %524, %523 : vector<2x32xf32>
    %526 = arith.divf %524, %525 : vector<2x32xf32>
    %527 = arith.mulf %520, %441 : vector<2x32xf32>
    %528 = arith.mulf %515, %521 : vector<2x32xf32>
    %529 = arith.addf %527, %528 : vector<2x32xf32>
    %530 = math.tanh %529 : vector<2x32xf32>
    %531 = arith.mulf %526, %530 : vector<2x32xf32>
    %c4_i32 = arith.constant 4 : i32
    %532 = vector.broadcast %c4_i32 : i32 to vector<2x1xi32>
    %533 = arith.cmpi eq, %53, %532 : vector<2x1xi32>
    %534 = vector.shape_cast %533 : vector<2x1xi1> to vector<2x1xi1>
    %535 = vector.broadcast %534 : vector<2x1xi1> to vector<2x32xi1>
    %536 = arith.select %535, %531, %448 : vector<2x32xi1>, vector<2x32xf32>
    %537 = vector.extract_strided_slice %0 {offsets = [0, 48], sizes = [2, 8], strides = [1, 1]} : vector<2x64xf32> to vector<2x8xf32>
    %cst_193 = arith.constant dense<0.000000e+00> : vector<2x32xf32>
    %538 = tpu.matmul %537, %2, %cst_193 {dimension_numbers = #tpu.dot_dimension_numbers<[1], [0], [0], [1], [0, 0, 1, 1], [], []>} : vector<2x8xf32>, vector<8x32xf32>, vector<2x32xf32> -> vector<2x32xf32>
    %cst_194 = arith.constant dense<0.000000e+00> : vector<2x32xf32>
    %539 = tpu.matmul %490, %10, %cst_194 {dimension_numbers = #tpu.dot_dimension_numbers<[1], [0], [0], [1], [0, 0, 1, 1], [], []>} : vector<2x32xf32>, vector<32x32xf32>, vector<2x32xf32> -> vector<2x32xf32>
    %540 = arith.addf %538, %539 : vector<2x32xf32>
    %541 = vector.broadcast %18 : vector<1x32xf32> to vector<2x32xf32>
    %542 = arith.addf %540, %541 : vector<2x32xf32>
    %cst_195 = arith.constant dense<0.000000e+00> : vector<2x32xf32>
    %543 = tpu.matmul %537, %4, %cst_195 {dimension_numbers = #tpu.dot_dimension_numbers<[1], [0], [0], [1], [0, 0, 1, 1], [], []>} : vector<2x8xf32>, vector<8x32xf32>, vector<2x32xf32> -> vector<2x32xf32>
    %cst_196 = arith.constant dense<0.000000e+00> : vector<2x32xf32>
    %544 = tpu.matmul %490, %12, %cst_196 {dimension_numbers = #tpu.dot_dimension_numbers<[1], [0], [0], [1], [0, 0, 1, 1], [], []>} : vector<2x32xf32>, vector<32x32xf32>, vector<2x32xf32> -> vector<2x32xf32>
    %545 = arith.addf %543, %544 : vector<2x32xf32>
    %546 = vector.broadcast %20 : vector<1x32xf32> to vector<2x32xf32>
    %547 = arith.addf %545, %546 : vector<2x32xf32>
    %cst_197 = arith.constant dense<0.000000e+00> : vector<2x32xf32>
    %548 = tpu.matmul %537, %6, %cst_197 {dimension_numbers = #tpu.dot_dimension_numbers<[1], [0], [0], [1], [0, 0, 1, 1], [], []>} : vector<2x8xf32>, vector<8x32xf32>, vector<2x32xf32> -> vector<2x32xf32>
    %cst_198 = arith.constant dense<0.000000e+00> : vector<2x32xf32>
    %549 = tpu.matmul %490, %14, %cst_198 {dimension_numbers = #tpu.dot_dimension_numbers<[1], [0], [0], [1], [0, 0, 1, 1], [], []>} : vector<2x32xf32>, vector<32x32xf32>, vector<2x32xf32> -> vector<2x32xf32>
    %550 = arith.addf %548, %549 : vector<2x32xf32>
    %551 = vector.broadcast %22 : vector<1x32xf32> to vector<2x32xf32>
    %552 = arith.addf %550, %551 : vector<2x32xf32>
    %cst_199 = arith.constant dense<0.000000e+00> : vector<2x32xf32>
    %553 = tpu.matmul %537, %8, %cst_199 {dimension_numbers = #tpu.dot_dimension_numbers<[1], [0], [0], [1], [0, 0, 1, 1], [], []>} : vector<2x8xf32>, vector<8x32xf32>, vector<2x32xf32> -> vector<2x32xf32>
    %cst_200 = arith.constant dense<0.000000e+00> : vector<2x32xf32>
    %554 = tpu.matmul %490, %16, %cst_200 {dimension_numbers = #tpu.dot_dimension_numbers<[1], [0], [0], [1], [0, 0, 1, 1], [], []>} : vector<2x32xf32>, vector<32x32xf32>, vector<2x32xf32> -> vector<2x32xf32>
    %555 = arith.addf %553, %554 : vector<2x32xf32>
    %556 = vector.broadcast %24 : vector<1x32xf32> to vector<2x32xf32>
    %557 = arith.addf %555, %556 : vector<2x32xf32>
    %558 = arith.negf %542 : vector<2x32xf32>
    %559 = math.exp %558 : vector<2x32xf32>
    %cst_201 = arith.constant 1.000000e+00 : f32
    %560 = vector.broadcast %cst_201 : f32 to vector<2x32xf32>
    %561 = arith.addf %560, %559 : vector<2x32xf32>
    %562 = arith.divf %560, %561 : vector<2x32xf32>
    %563 = arith.negf %547 : vector<2x32xf32>
    %564 = math.exp %563 : vector<2x32xf32>
    %cst_202 = arith.constant 1.000000e+00 : f32
    %565 = vector.broadcast %cst_202 : f32 to vector<2x32xf32>
    %566 = arith.addf %565, %564 : vector<2x32xf32>
    %567 = arith.divf %565, %566 : vector<2x32xf32>
    %568 = math.tanh %552 : vector<2x32xf32>
    %569 = arith.negf %557 : vector<2x32xf32>
    %570 = math.exp %569 : vector<2x32xf32>
    %cst_203 = arith.constant 1.000000e+00 : f32
    %571 = vector.broadcast %cst_203 : f32 to vector<2x32xf32>
    %572 = arith.addf %571, %570 : vector<2x32xf32>
    %573 = arith.divf %571, %572 : vector<2x32xf32>
    %574 = arith.mulf %567, %488 : vector<2x32xf32>
    %575 = arith.mulf %562, %568 : vector<2x32xf32>
    %576 = arith.addf %574, %575 : vector<2x32xf32>
    %577 = math.tanh %576 : vector<2x32xf32>
    %578 = arith.mulf %573, %577 : vector<2x32xf32>
    %cst_204 = arith.constant dense<0.000000e+00> : vector<2x32xf32>
    %579 = tpu.matmul %490, %26, %cst_204 {dimension_numbers = #tpu.dot_dimension_numbers<[1], [0], [0], [1], [0, 0, 1, 1], [], []>} : vector<2x32xf32>, vector<32x32xf32>, vector<2x32xf32> -> vector<2x32xf32>
    %cst_205 = arith.constant dense<0.000000e+00> : vector<2x32xf32>
    %580 = tpu.matmul %531, %34, %cst_205 {dimension_numbers = #tpu.dot_dimension_numbers<[1], [0], [0], [1], [0, 0, 1, 1], [], []>} : vector<2x32xf32>, vector<32x32xf32>, vector<2x32xf32> -> vector<2x32xf32>
    %581 = arith.addf %579, %580 : vector<2x32xf32>
    %582 = vector.broadcast %42 : vector<1x32xf32> to vector<2x32xf32>
    %583 = arith.addf %581, %582 : vector<2x32xf32>
    %cst_206 = arith.constant dense<0.000000e+00> : vector<2x32xf32>
    %584 = tpu.matmul %490, %28, %cst_206 {dimension_numbers = #tpu.dot_dimension_numbers<[1], [0], [0], [1], [0, 0, 1, 1], [], []>} : vector<2x32xf32>, vector<32x32xf32>, vector<2x32xf32> -> vector<2x32xf32>
    %cst_207 = arith.constant dense<0.000000e+00> : vector<2x32xf32>
    %585 = tpu.matmul %531, %36, %cst_207 {dimension_numbers = #tpu.dot_dimension_numbers<[1], [0], [0], [1], [0, 0, 1, 1], [], []>} : vector<2x32xf32>, vector<32x32xf32>, vector<2x32xf32> -> vector<2x32xf32>
    %586 = arith.addf %584, %585 : vector<2x32xf32>
    %587 = vector.broadcast %44 : vector<1x32xf32> to vector<2x32xf32>
    %588 = arith.addf %586, %587 : vector<2x32xf32>
    %cst_208 = arith.constant dense<0.000000e+00> : vector<2x32xf32>
    %589 = tpu.matmul %490, %30, %cst_208 {dimension_numbers = #tpu.dot_dimension_numbers<[1], [0], [0], [1], [0, 0, 1, 1], [], []>} : vector<2x32xf32>, vector<32x32xf32>, vector<2x32xf32> -> vector<2x32xf32>
    %cst_209 = arith.constant dense<0.000000e+00> : vector<2x32xf32>
    %590 = tpu.matmul %531, %38, %cst_209 {dimension_numbers = #tpu.dot_dimension_numbers<[1], [0], [0], [1], [0, 0, 1, 1], [], []>} : vector<2x32xf32>, vector<32x32xf32>, vector<2x32xf32> -> vector<2x32xf32>
    %591 = arith.addf %589, %590 : vector<2x32xf32>
    %592 = vector.broadcast %46 : vector<1x32xf32> to vector<2x32xf32>
    %593 = arith.addf %591, %592 : vector<2x32xf32>
    %cst_210 = arith.constant dense<0.000000e+00> : vector<2x32xf32>
    %594 = tpu.matmul %490, %32, %cst_210 {dimension_numbers = #tpu.dot_dimension_numbers<[1], [0], [0], [1], [0, 0, 1, 1], [], []>} : vector<2x32xf32>, vector<32x32xf32>, vector<2x32xf32> -> vector<2x32xf32>
    %cst_211 = arith.constant dense<0.000000e+00> : vector<2x32xf32>
    %595 = tpu.matmul %531, %40, %cst_211 {dimension_numbers = #tpu.dot_dimension_numbers<[1], [0], [0], [1], [0, 0, 1, 1], [], []>} : vector<2x32xf32>, vector<32x32xf32>, vector<2x32xf32> -> vector<2x32xf32>
    %596 = arith.addf %594, %595 : vector<2x32xf32>
    %597 = vector.broadcast %48 : vector<1x32xf32> to vector<2x32xf32>
    %598 = arith.addf %596, %597 : vector<2x32xf32>
    %599 = arith.negf %583 : vector<2x32xf32>
    %600 = math.exp %599 : vector<2x32xf32>
    %cst_212 = arith.constant 1.000000e+00 : f32
    %601 = vector.broadcast %cst_212 : f32 to vector<2x32xf32>
    %602 = arith.addf %601, %600 : vector<2x32xf32>
    %603 = arith.divf %601, %602 : vector<2x32xf32>
    %604 = arith.negf %588 : vector<2x32xf32>
    %605 = math.exp %604 : vector<2x32xf32>
    %cst_213 = arith.constant 1.000000e+00 : f32
    %606 = vector.broadcast %cst_213 : f32 to vector<2x32xf32>
    %607 = arith.addf %606, %605 : vector<2x32xf32>
    %608 = arith.divf %606, %607 : vector<2x32xf32>
    %609 = math.tanh %593 : vector<2x32xf32>
    %610 = arith.negf %598 : vector<2x32xf32>
    %611 = math.exp %610 : vector<2x32xf32>
    %cst_214 = arith.constant 1.000000e+00 : f32
    %612 = vector.broadcast %cst_214 : f32 to vector<2x32xf32>
    %613 = arith.addf %612, %611 : vector<2x32xf32>
    %614 = arith.divf %612, %613 : vector<2x32xf32>
    %615 = arith.mulf %608, %529 : vector<2x32xf32>
    %616 = arith.mulf %603, %609 : vector<2x32xf32>
    %617 = arith.addf %615, %616 : vector<2x32xf32>
    %618 = math.tanh %617 : vector<2x32xf32>
    %619 = arith.mulf %614, %618 : vector<2x32xf32>
    %c5_i32 = arith.constant 5 : i32
    %620 = vector.broadcast %c5_i32 : i32 to vector<2x1xi32>
    %621 = arith.cmpi eq, %53, %620 : vector<2x1xi32>
    %622 = vector.shape_cast %621 : vector<2x1xi1> to vector<2x1xi1>
    %623 = vector.broadcast %622 : vector<2x1xi1> to vector<2x32xi1>
    %624 = arith.select %623, %619, %536 : vector<2x32xi1>, vector<2x32xf32>
    %625 = vector.extract_strided_slice %0 {offsets = [0, 56], sizes = [2, 8], strides = [1, 1]} : vector<2x64xf32> to vector<2x8xf32>
    %cst_215 = arith.constant dense<0.000000e+00> : vector<2x32xf32>
    %626 = tpu.matmul %625, %2, %cst_215 {dimension_numbers = #tpu.dot_dimension_numbers<[1], [0], [0], [1], [0, 0, 1, 1], [], []>} : vector<2x8xf32>, vector<8x32xf32>, vector<2x32xf32> -> vector<2x32xf32>
    %cst_216 = arith.constant dense<0.000000e+00> : vector<2x32xf32>
    %627 = tpu.matmul %578, %10, %cst_216 {dimension_numbers = #tpu.dot_dimension_numbers<[1], [0], [0], [1], [0, 0, 1, 1], [], []>} : vector<2x32xf32>, vector<32x32xf32>, vector<2x32xf32> -> vector<2x32xf32>
    %628 = arith.addf %626, %627 : vector<2x32xf32>
    %629 = vector.broadcast %18 : vector<1x32xf32> to vector<2x32xf32>
    %630 = arith.addf %628, %629 : vector<2x32xf32>
    %cst_217 = arith.constant dense<0.000000e+00> : vector<2x32xf32>
    %631 = tpu.matmul %625, %4, %cst_217 {dimension_numbers = #tpu.dot_dimension_numbers<[1], [0], [0], [1], [0, 0, 1, 1], [], []>} : vector<2x8xf32>, vector<8x32xf32>, vector<2x32xf32> -> vector<2x32xf32>
    %cst_218 = arith.constant dense<0.000000e+00> : vector<2x32xf32>
    %632 = tpu.matmul %578, %12, %cst_218 {dimension_numbers = #tpu.dot_dimension_numbers<[1], [0], [0], [1], [0, 0, 1, 1], [], []>} : vector<2x32xf32>, vector<32x32xf32>, vector<2x32xf32> -> vector<2x32xf32>
    %633 = arith.addf %631, %632 : vector<2x32xf32>
    %634 = vector.broadcast %20 : vector<1x32xf32> to vector<2x32xf32>
    %635 = arith.addf %633, %634 : vector<2x32xf32>
    %cst_219 = arith.constant dense<0.000000e+00> : vector<2x32xf32>
    %636 = tpu.matmul %625, %6, %cst_219 {dimension_numbers = #tpu.dot_dimension_numbers<[1], [0], [0], [1], [0, 0, 1, 1], [], []>} : vector<2x8xf32>, vector<8x32xf32>, vector<2x32xf32> -> vector<2x32xf32>
    %cst_220 = arith.constant dense<0.000000e+00> : vector<2x32xf32>
    %637 = tpu.matmul %578, %14, %cst_220 {dimension_numbers = #tpu.dot_dimension_numbers<[1], [0], [0], [1], [0, 0, 1, 1], [], []>} : vector<2x32xf32>, vector<32x32xf32>, vector<2x32xf32> -> vector<2x32xf32>
    %638 = arith.addf %636, %637 : vector<2x32xf32>
    %639 = vector.broadcast %22 : vector<1x32xf32> to vector<2x32xf32>
    %640 = arith.addf %638, %639 : vector<2x32xf32>
    %cst_221 = arith.constant dense<0.000000e+00> : vector<2x32xf32>
    %641 = tpu.matmul %625, %8, %cst_221 {dimension_numbers = #tpu.dot_dimension_numbers<[1], [0], [0], [1], [0, 0, 1, 1], [], []>} : vector<2x8xf32>, vector<8x32xf32>, vector<2x32xf32> -> vector<2x32xf32>
    %cst_222 = arith.constant dense<0.000000e+00> : vector<2x32xf32>
    %642 = tpu.matmul %578, %16, %cst_222 {dimension_numbers = #tpu.dot_dimension_numbers<[1], [0], [0], [1], [0, 0, 1, 1], [], []>} : vector<2x32xf32>, vector<32x32xf32>, vector<2x32xf32> -> vector<2x32xf32>
    %643 = arith.addf %641, %642 : vector<2x32xf32>
    %644 = vector.broadcast %24 : vector<1x32xf32> to vector<2x32xf32>
    %645 = arith.addf %643, %644 : vector<2x32xf32>
    %646 = arith.negf %630 : vector<2x32xf32>
    %647 = math.exp %646 : vector<2x32xf32>
    %cst_223 = arith.constant 1.000000e+00 : f32
    %648 = vector.broadcast %cst_223 : f32 to vector<2x32xf32>
    %649 = arith.addf %648, %647 : vector<2x32xf32>
    %650 = arith.divf %648, %649 : vector<2x32xf32>
    %651 = arith.negf %635 : vector<2x32xf32>
    %652 = math.exp %651 : vector<2x32xf32>
    %cst_224 = arith.constant 1.000000e+00 : f32
    %653 = vector.broadcast %cst_224 : f32 to vector<2x32xf32>
    %654 = arith.addf %653, %652 : vector<2x32xf32>
    %655 = arith.divf %653, %654 : vector<2x32xf32>
    %656 = math.tanh %640 : vector<2x32xf32>
    %657 = arith.negf %645 : vector<2x32xf32>
    %658 = math.exp %657 : vector<2x32xf32>
    %cst_225 = arith.constant 1.000000e+00 : f32
    %659 = vector.broadcast %cst_225 : f32 to vector<2x32xf32>
    %660 = arith.addf %659, %658 : vector<2x32xf32>
    %661 = arith.divf %659, %660 : vector<2x32xf32>
    %662 = arith.mulf %655, %576 : vector<2x32xf32>
    %663 = arith.mulf %650, %656 : vector<2x32xf32>
    %664 = arith.addf %662, %663 : vector<2x32xf32>
    %665 = math.tanh %664 : vector<2x32xf32>
    %666 = arith.mulf %661, %665 : vector<2x32xf32>
    %cst_226 = arith.constant dense<0.000000e+00> : vector<2x32xf32>
    %667 = tpu.matmul %578, %26, %cst_226 {dimension_numbers = #tpu.dot_dimension_numbers<[1], [0], [0], [1], [0, 0, 1, 1], [], []>} : vector<2x32xf32>, vector<32x32xf32>, vector<2x32xf32> -> vector<2x32xf32>
    %cst_227 = arith.constant dense<0.000000e+00> : vector<2x32xf32>
    %668 = tpu.matmul %619, %34, %cst_227 {dimension_numbers = #tpu.dot_dimension_numbers<[1], [0], [0], [1], [0, 0, 1, 1], [], []>} : vector<2x32xf32>, vector<32x32xf32>, vector<2x32xf32> -> vector<2x32xf32>
    %669 = arith.addf %667, %668 : vector<2x32xf32>
    %670 = vector.broadcast %42 : vector<1x32xf32> to vector<2x32xf32>
    %671 = arith.addf %669, %670 : vector<2x32xf32>
    %cst_228 = arith.constant dense<0.000000e+00> : vector<2x32xf32>
    %672 = tpu.matmul %578, %28, %cst_228 {dimension_numbers = #tpu.dot_dimension_numbers<[1], [0], [0], [1], [0, 0, 1, 1], [], []>} : vector<2x32xf32>, vector<32x32xf32>, vector<2x32xf32> -> vector<2x32xf32>
    %cst_229 = arith.constant dense<0.000000e+00> : vector<2x32xf32>
    %673 = tpu.matmul %619, %36, %cst_229 {dimension_numbers = #tpu.dot_dimension_numbers<[1], [0], [0], [1], [0, 0, 1, 1], [], []>} : vector<2x32xf32>, vector<32x32xf32>, vector<2x32xf32> -> vector<2x32xf32>
    %674 = arith.addf %672, %673 : vector<2x32xf32>
    %675 = vector.broadcast %44 : vector<1x32xf32> to vector<2x32xf32>
    %676 = arith.addf %674, %675 : vector<2x32xf32>
    %cst_230 = arith.constant dense<0.000000e+00> : vector<2x32xf32>
    %677 = tpu.matmul %578, %30, %cst_230 {dimension_numbers = #tpu.dot_dimension_numbers<[1], [0], [0], [1], [0, 0, 1, 1], [], []>} : vector<2x32xf32>, vector<32x32xf32>, vector<2x32xf32> -> vector<2x32xf32>
    %cst_231 = arith.constant dense<0.000000e+00> : vector<2x32xf32>
    %678 = tpu.matmul %619, %38, %cst_231 {dimension_numbers = #tpu.dot_dimension_numbers<[1], [0], [0], [1], [0, 0, 1, 1], [], []>} : vector<2x32xf32>, vector<32x32xf32>, vector<2x32xf32> -> vector<2x32xf32>
    %679 = arith.addf %677, %678 : vector<2x32xf32>
    %680 = vector.broadcast %46 : vector<1x32xf32> to vector<2x32xf32>
    %681 = arith.addf %679, %680 : vector<2x32xf32>
    %cst_232 = arith.constant dense<0.000000e+00> : vector<2x32xf32>
    %682 = tpu.matmul %578, %32, %cst_232 {dimension_numbers = #tpu.dot_dimension_numbers<[1], [0], [0], [1], [0, 0, 1, 1], [], []>} : vector<2x32xf32>, vector<32x32xf32>, vector<2x32xf32> -> vector<2x32xf32>
    %cst_233 = arith.constant dense<0.000000e+00> : vector<2x32xf32>
    %683 = tpu.matmul %619, %40, %cst_233 {dimension_numbers = #tpu.dot_dimension_numbers<[1], [0], [0], [1], [0, 0, 1, 1], [], []>} : vector<2x32xf32>, vector<32x32xf32>, vector<2x32xf32> -> vector<2x32xf32>
    %684 = arith.addf %682, %683 : vector<2x32xf32>
    %685 = vector.broadcast %48 : vector<1x32xf32> to vector<2x32xf32>
    %686 = arith.addf %684, %685 : vector<2x32xf32>
    %687 = arith.negf %671 : vector<2x32xf32>
    %688 = math.exp %687 : vector<2x32xf32>
    %cst_234 = arith.constant 1.000000e+00 : f32
    %689 = vector.broadcast %cst_234 : f32 to vector<2x32xf32>
    %690 = arith.addf %689, %688 : vector<2x32xf32>
    %691 = arith.divf %689, %690 : vector<2x32xf32>
    %692 = arith.negf %676 : vector<2x32xf32>
    %693 = math.exp %692 : vector<2x32xf32>
    %cst_235 = arith.constant 1.000000e+00 : f32
    %694 = vector.broadcast %cst_235 : f32 to vector<2x32xf32>
    %695 = arith.addf %694, %693 : vector<2x32xf32>
    %696 = arith.divf %694, %695 : vector<2x32xf32>
    %697 = math.tanh %681 : vector<2x32xf32>
    %698 = arith.negf %686 : vector<2x32xf32>
    %699 = math.exp %698 : vector<2x32xf32>
    %cst_236 = arith.constant 1.000000e+00 : f32
    %700 = vector.broadcast %cst_236 : f32 to vector<2x32xf32>
    %701 = arith.addf %700, %699 : vector<2x32xf32>
    %702 = arith.divf %700, %701 : vector<2x32xf32>
    %703 = arith.mulf %696, %617 : vector<2x32xf32>
    %704 = arith.mulf %691, %697 : vector<2x32xf32>
    %705 = arith.addf %703, %704 : vector<2x32xf32>
    %706 = math.tanh %705 : vector<2x32xf32>
    %707 = arith.mulf %702, %706 : vector<2x32xf32>
    %c6_i32 = arith.constant 6 : i32
    %708 = vector.broadcast %c6_i32 : i32 to vector<2x1xi32>
    %709 = arith.cmpi eq, %53, %708 : vector<2x1xi32>
    %710 = vector.shape_cast %709 : vector<2x1xi1> to vector<2x1xi1>
    %711 = vector.broadcast %710 : vector<2x1xi1> to vector<2x32xi1>
    %712 = arith.select %711, %707, %624 : vector<2x32xi1>, vector<2x32xf32>
    %cst_237 = arith.constant dense<0.000000e+00> : vector<2x32xf32>
    %713 = tpu.matmul %666, %26, %cst_237 {dimension_numbers = #tpu.dot_dimension_numbers<[1], [0], [0], [1], [0, 0, 1, 1], [], []>} : vector<2x32xf32>, vector<32x32xf32>, vector<2x32xf32> -> vector<2x32xf32>
    %cst_238 = arith.constant dense<0.000000e+00> : vector<2x32xf32>
    %714 = tpu.matmul %707, %34, %cst_238 {dimension_numbers = #tpu.dot_dimension_numbers<[1], [0], [0], [1], [0, 0, 1, 1], [], []>} : vector<2x32xf32>, vector<32x32xf32>, vector<2x32xf32> -> vector<2x32xf32>
    %715 = arith.addf %713, %714 : vector<2x32xf32>
    %716 = vector.broadcast %42 : vector<1x32xf32> to vector<2x32xf32>
    %717 = arith.addf %715, %716 : vector<2x32xf32>
    %cst_239 = arith.constant dense<0.000000e+00> : vector<2x32xf32>
    %718 = tpu.matmul %666, %28, %cst_239 {dimension_numbers = #tpu.dot_dimension_numbers<[1], [0], [0], [1], [0, 0, 1, 1], [], []>} : vector<2x32xf32>, vector<32x32xf32>, vector<2x32xf32> -> vector<2x32xf32>
    %cst_240 = arith.constant dense<0.000000e+00> : vector<2x32xf32>
    %719 = tpu.matmul %707, %36, %cst_240 {dimension_numbers = #tpu.dot_dimension_numbers<[1], [0], [0], [1], [0, 0, 1, 1], [], []>} : vector<2x32xf32>, vector<32x32xf32>, vector<2x32xf32> -> vector<2x32xf32>
    %720 = arith.addf %718, %719 : vector<2x32xf32>
    %721 = vector.broadcast %44 : vector<1x32xf32> to vector<2x32xf32>
    %722 = arith.addf %720, %721 : vector<2x32xf32>
    %cst_241 = arith.constant dense<0.000000e+00> : vector<2x32xf32>
    %723 = tpu.matmul %666, %30, %cst_241 {dimension_numbers = #tpu.dot_dimension_numbers<[1], [0], [0], [1], [0, 0, 1, 1], [], []>} : vector<2x32xf32>, vector<32x32xf32>, vector<2x32xf32> -> vector<2x32xf32>
    %cst_242 = arith.constant dense<0.000000e+00> : vector<2x32xf32>
    %724 = tpu.matmul %707, %38, %cst_242 {dimension_numbers = #tpu.dot_dimension_numbers<[1], [0], [0], [1], [0, 0, 1, 1], [], []>} : vector<2x32xf32>, vector<32x32xf32>, vector<2x32xf32> -> vector<2x32xf32>
    %725 = arith.addf %723, %724 : vector<2x32xf32>
    %726 = vector.broadcast %46 : vector<1x32xf32> to vector<2x32xf32>
    %727 = arith.addf %725, %726 : vector<2x32xf32>
    %cst_243 = arith.constant dense<0.000000e+00> : vector<2x32xf32>
    %728 = tpu.matmul %666, %32, %cst_243 {dimension_numbers = #tpu.dot_dimension_numbers<[1], [0], [0], [1], [0, 0, 1, 1], [], []>} : vector<2x32xf32>, vector<32x32xf32>, vector<2x32xf32> -> vector<2x32xf32>
    %cst_244 = arith.constant dense<0.000000e+00> : vector<2x32xf32>
    %729 = tpu.matmul %707, %40, %cst_244 {dimension_numbers = #tpu.dot_dimension_numbers<[1], [0], [0], [1], [0, 0, 1, 1], [], []>} : vector<2x32xf32>, vector<32x32xf32>, vector<2x32xf32> -> vector<2x32xf32>
    %730 = arith.addf %728, %729 : vector<2x32xf32>
    %731 = vector.broadcast %48 : vector<1x32xf32> to vector<2x32xf32>
    %732 = arith.addf %730, %731 : vector<2x32xf32>
    %733 = arith.negf %717 : vector<2x32xf32>
    %734 = math.exp %733 : vector<2x32xf32>
    %cst_245 = arith.constant 1.000000e+00 : f32
    %735 = vector.broadcast %cst_245 : f32 to vector<2x32xf32>
    %736 = arith.addf %735, %734 : vector<2x32xf32>
    %737 = arith.divf %735, %736 : vector<2x32xf32>
    %738 = arith.negf %722 : vector<2x32xf32>
    %739 = math.exp %738 : vector<2x32xf32>
    %cst_246 = arith.constant 1.000000e+00 : f32
    %740 = vector.broadcast %cst_246 : f32 to vector<2x32xf32>
    %741 = arith.addf %740, %739 : vector<2x32xf32>
    %742 = arith.divf %740, %741 : vector<2x32xf32>
    %743 = math.tanh %727 : vector<2x32xf32>
    %744 = arith.negf %732 : vector<2x32xf32>
    %745 = math.exp %744 : vector<2x32xf32>
    %cst_247 = arith.constant 1.000000e+00 : f32
    %746 = vector.broadcast %cst_247 : f32 to vector<2x32xf32>
    %747 = arith.addf %746, %745 : vector<2x32xf32>
    %748 = arith.divf %746, %747 : vector<2x32xf32>
    %749 = arith.mulf %742, %705 : vector<2x32xf32>
    %750 = arith.mulf %737, %743 : vector<2x32xf32>
    %751 = arith.addf %749, %750 : vector<2x32xf32>
    %752 = math.tanh %751 : vector<2x32xf32>
    %753 = arith.mulf %748, %752 : vector<2x32xf32>
    %c7_i32 = arith.constant 7 : i32
    %754 = vector.broadcast %c7_i32 : i32 to vector<2x1xi32>
    %755 = arith.cmpi eq, %53, %754 : vector<2x1xi32>
    %756 = vector.shape_cast %755 : vector<2x1xi1> to vector<2x1xi1>
    %757 = vector.broadcast %756 : vector<2x1xi1> to vector<2x32xi1>
    %758 = arith.select %757, %753, %712 : vector<2x32xi1>, vector<2x32xf32>
    %c0_248 = arith.constant 0 : index
    %c0_249 = arith.constant 0 : index
    %759 = vector.load %arg9[%c0_248, %c0_249] : memref<32x16xf32, #tpu.memory_space<vmem>>, vector<32x16xf32>
    %cst_250 = arith.constant dense<0.000000e+00> : vector<2x16xf32>
    %760 = tpu.matmul %758, %759, %cst_250 {dimension_numbers = #tpu.dot_dimension_numbers<[1], [0], [0], [1], [0, 0, 1, 1], [], []>} : vector<2x32xf32>, vector<32x16xf32>, vector<2x16xf32> -> vector<2x16xf32>
    %c0_251 = arith.constant 0 : index
    %c0_252 = arith.constant 0 : index
    %761 = vector.load %arg10[%c0_251, %c0_252] : memref<1x16xf32, #tpu.memory_space<vmem>>, vector<1x16xf32>
    %762 = vector.broadcast %761 : vector<1x16xf32> to vector<2x16xf32>
    %763 = arith.addf %760, %762 : vector<2x16xf32>
    %764 = arith.mulf %763, %763 : vector<2x16xf32>
    %765 = vector.shape_cast %764 : vector<2x16xf32> to vector<1x2x16xf32>
    %cst_253 = arith.constant dense<0.000000e+00> : vector<1xf32>
    %766 = vector.multi_reduction <add>, %765, %cst_253 [1, 2] : vector<1x2x16xf32> to vector<1xf32>
    %767 = vector.shape_cast %766 : vector<1xf32> to vector<1x1x1xf32>
    %768 = vector.extract %767[0, 0, 0] : f32 from vector<1x1x1xf32>
    %769 = math.rsqrt %768 : f32
    %770 = vector.broadcast %769 : f32 to vector<2x16xf32>
    %771 = arith.mulf %763, %770 : vector<2x16xf32>
    %c0_254 = arith.constant 0 : index
    %c0_255 = arith.constant 0 : index
    %772 = vector.load %arg11[%c0_254, %c0_255] : memref<2x16xf32, #tpu.memory_space<vmem>>, vector<2x16xf32>
    tpu.vector_store %arg11[%c0_254, %c0_255], %771 {strides = array<i32>} : memref<2x16xf32, #tpu.memory_space<vmem>>, vector<2x16xf32>,
    return
  }
  func.func @transform_0(%arg0: i32, %arg1: memref<2xi32, #tpu.memory_space<smem>>) -> (i32, i32) {
    %c0_i32 = arith.constant 0 : i32
    %c0_i32_0 = arith.constant 0 : i32
    %c0_i32_1 = arith.constant 0 : i32
    return %c0_i32, %c0_i32_0 : i32, i32
  }
  func.func @transform_1(%arg0: i32, %arg1: memref<2xi32, #tpu.memory_space<smem>>) -> (i32, i32, i32) {
    %c0_i32 = arith.constant 0 : i32
    %c0_i32_0 = arith.constant 0 : i32
    %c0_i32_1 = arith.constant 0 : i32
    %c0_i32_2 = arith.constant 0 : i32
    return %c0_i32, %c0_i32_0, %c0_i32_1 : i32, i32, i32
  }
  func.func @transform_2(%arg0: i32, %arg1: memref<2xi32, #tpu.memory_space<smem>>) -> (i32, i32, i32) {
    %c0_i32 = arith.constant 0 : i32
    %c0_i32_0 = arith.constant 0 : i32
    %c0_i32_1 = arith.constant 0 : i32
    %c0_i32_2 = arith.constant 0 : i32
    return %c0_i32, %c0_i32_0, %c0_i32_1 : i32, i32, i32
  }
  func.func @transform_3(%arg0: i32, %arg1: memref<2xi32, #tpu.memory_space<smem>>) -> (i32, i32, i32) {
    %c0_i32 = arith.constant 0 : i32
    %c0_i32_0 = arith.constant 0 : i32
    %c0_i32_1 = arith.constant 0 : i32
    %c0_i32_2 = arith.constant 0 : i32
    return %c0_i32, %c0_i32_0, %c0_i32_1 : i32, i32, i32
  }
  func.func @transform_4(%arg0: i32, %arg1: memref<2xi32, #tpu.memory_space<smem>>) -> (i32, i32, i32) {
    %c0_i32 = arith.constant 0 : i32
    %c0_i32_0 = arith.constant 0 : i32
    %c0_i32_1 = arith.constant 0 : i32
    %c0_i32_2 = arith.constant 0 : i32
    return %c0_i32, %c0_i32_0, %c0_i32_1 : i32, i32, i32
  }
  func.func @transform_5(%arg0: i32, %arg1: memref<2xi32, #tpu.memory_space<smem>>) -> (i32, i32, i32) {
    %c0_i32 = arith.constant 0 : i32
    %c0_i32_0 = arith.constant 0 : i32
    %c0_i32_1 = arith.constant 0 : i32
    %c0_i32_2 = arith.constant 0 : i32
    return %c0_i32, %c0_i32_0, %c0_i32_1 : i32, i32, i32
  }
  func.func @transform_6(%arg0: i32, %arg1: memref<2xi32, #tpu.memory_space<smem>>) -> (i32, i32, i32) {
    %c0_i32 = arith.constant 0 : i32
    %c0_i32_0 = arith.constant 0 : i32
    %c0_i32_1 = arith.constant 0 : i32
    %c0_i32_2 = arith.constant 0 : i32
    return %c0_i32, %c0_i32_0, %c0_i32_1 : i32, i32, i32
  }
  func.func @transform_7(%arg0: i32, %arg1: memref<2xi32, #tpu.memory_space<smem>>) -> (i32, i32) {
    %c0_i32 = arith.constant 0 : i32
    %c0_i32_0 = arith.constant 0 : i32
    %c0_i32_1 = arith.constant 0 : i32
    return %c0_i32, %c0_i32_0 : i32, i32
  }
  func.func @transform_8(%arg0: i32, %arg1: memref<2xi32, #tpu.memory_space<smem>>) -> (i32, i32) {
    %c0_i32 = arith.constant 0 : i32
    %c0_i32_0 = arith.constant 0 : i32
    %c0_i32_1 = arith.constant 0 : i32
    return %c0_i32, %c0_i32_0 : i32, i32
  }
  func.func @transform_9(%arg0: i32, %arg1: memref<2xi32, #tpu.memory_space<smem>>) -> (i32, i32) {
    %c0_i32 = arith.constant 0 : i32
    %c0_i32_0 = arith.constant 0 : i32
    return %arg0, %c0_i32 : i32, i32
  }
}

</mosaic_0001>

<llo_original>
// kernel: speaker_encoder.1
$region0: #{speaker_encoder.1}
  #allocation0 [shape = 'u32[]', space=smem, size = 0x4, offset = 0x4, fixed_abs, tag = 'smem constant byte address 0x4 - core index']
  #allocation1 [shape = 'u32[144,128]{1,0:T(1,128)}', space=vmem, size = 0x12000, scoped, tag = 'internal scratch']
  #allocation2 [shape = 's32[1]{0}', space=sflag, size = 0x4, scoped, tag = 'scoped memory for speaker_encoder.1']
  #allocation3 [shape = 'u8[512]{0}', space=smem, size = 0x200, scoped, tag = 'prefetched SMEM operand 0']
  %s0 = inlined_call_operand.vmem [shape: s32[2], index: 0, kind: input, shape index: {}]
  %s1 = inlined_call_operand.vmem [shape: f32[2,64], index: 1, kind: input, shape index: {}]
  %s2 = inlined_call_operand.vmem [shape: f32[4,8,32], index: 2, kind: input, shape index: {}]
  %s3 = inlined_call_operand.hbm [shape: f32[4,32,32], index: 3, kind: input, shape index: {}]
  %s4 = inlined_call_operand.vmem [shape: f32[4,1,32], index: 4, kind: input, shape index: {}]
  %s5 = inlined_call_operand.hbm [shape: f32[4,32,32], index: 5, kind: input, shape index: {}]
  %s6 = inlined_call_operand.hbm [shape: f32[4,32,32], index: 6, kind: input, shape index: {}]
  %s7 = inlined_call_operand.vmem [shape: f32[4,1,32], index: 7, kind: input, shape index: {}]
  %s8 = inlined_call_operand.vmem [shape: f32[32,16], index: 8, kind: input, shape index: {}]
  %s9 = inlined_call_operand.vmem [shape: f32[1,16], index: 9, kind: input, shape index: {}]
  %s10 = inlined_call_operand.hbm [shape: f32[2,16], index: 10, kind: output, shape index: {}]
  %s11 = sld [smem:[#allocation0]]
  $region58: #{speaker_encoder.1} parent=0
    _
  %s13 = ssub.s32 1, %s11
  %s14 = scalar_select 0, %s13, %s11
  %s15 = sshll.u32 %s0, 4
  %s16 = int_to_ptr.vmem [resolvable:$true] %s15
  %18 = dma.vmem_to_smem %s16, 16, [#allocation3], [#allocation2]
  %19 = dma.done [#allocation2], 16
  %20 = sfence
  $region1: #{speaker_encoder.1} parent=0
    #allocation4 [shape = 'u8[65536]{0}', space=vmem, size = 0x10000, scoped, tag = 'input window, operand 3, single buffered']
    #allocation5 [shape = 's32[1]{0}', space=sflag, size = 0x4, scoped, tag = 'scoped memory for speaker_encoder.1']
    #allocation6 [shape = 's32[1]{0}', space=sflag, size = 0x4, scoped, tag = 'scoped memory for speaker_encoder.1']
    #allocation7 [shape = 'u8[65536]{0}', space=vmem, size = 0x10000, scoped, tag = 'input window, operand 5, single buffered']
    #allocation8 [shape = 's32[1]{0}', space=sflag, size = 0x4, scoped, tag = 'scoped memory for speaker_encoder.1']
    #allocation9 [shape = 'u8[65536]{0}', space=vmem, size = 0x10000, scoped, tag = 'input window, operand 6, single buffered']
    #allocation10 [shape = 'u8[1024]{0}', space=vmem, size = 0x400, scoped, tag = 'output window, operand 0, single buffered']
    %21 = vsyncpa [#allocation5], 0
    %22 = vsyncpa [#allocation8], 0
    %23 = vsyncpa [#allocation6], 0
    // Predicated region
    $region2: #{speaker_encoder.1} parent=1 // pred_check
      _
    $region3: #{speaker_encoder.1} parent=1 // pred_check_branch
      %25 = sbr.rel (0) target = $region5
    $region4: #{speaker_encoder.1} parent=1 // pred_region
      _
    $region5: #{speaker_encoder.1} parent=1 // pred_fallthru
      _
    // Predicated region
    $region6: #{speaker_encoder.1} parent=1 // pred_check
      _
    $region7: #{speaker_encoder.1} parent=1 // pred_check_branch
      %27 = sbr.rel (0) target = $region9
    $region8: #{speaker_encoder.1} parent=1 // pred_region
      _
    $region9: #{speaker_encoder.1} parent=1 // pred_fallthru
      _
    // Predicated region
    $region10: #{speaker_encoder.1} parent=1 // pred_check
      _
    $region11: #{speaker_encoder.1} parent=1 // pred_check_branch
      %29 = sbr.rel (0) target = $region13
    $region12: #{speaker_encoder.1} parent=1 // pred_region
      %s31 = ssub.s32 2048, 2048
      %32 = vsyncadd [#allocation5], %s31
      %s33 = sshll.u32 [#allocation4], 4
      %s34 = int_to_ptr.vmem [resolvable:$true] %s33
      %39 = dma.hbm_to_vmem [thread:$0]  %s3, 2048, %s34, [#allocation5], 128, 128, 8
    $region13: #{speaker_encoder.1} parent=1 // pred_fallthru
      _
    // Predicated region
    $region14: #{speaker_encoder.1} parent=1 // pred_check
      _
    $region15: #{speaker_encoder.1} parent=1 // pred_check_branch
      %41 = sbr.rel (0) target = $region17
    $region16: #{speaker_encoder.1} parent=1 // pred_region
      _
    $region17: #{speaker_encoder.1} parent=1 // pred_fallthru
      _
    // Predicated region
    $region18: #{speaker_encoder.1} parent=1 // pred_check
      _
    $region19: #{speaker_encoder.1} parent=1 // pred_check_branch
      %43 = sbr.rel (0) target = $region21
    $region20: #{speaker_encoder.1} parent=1 // pred_region
      %s45 = ssub.s32 2048, 2048
      %46 = vsyncadd [#allocation8], %s45
      %s47 = sshll.u32 [#allocation7], 4
      %s48 = int_to_ptr.vmem [resolvable:$true] %s47
      %53 = dma.hbm_to_vmem [thread:$0]  %s5, 2048, %s48, [#allocation8], 128, 128, 8
    $region21: #{speaker_encoder.1} parent=1 // pred_fallthru
      _
    // Predicated region
    $region22: #{speaker_encoder.1} parent=1 // pred_check
      _
    $region23: #{speaker_encoder.1} parent=1 // pred_check_branch
      %55 = sbr.rel (0) target = $region25
    $region24: #{speaker_encoder.1} parent=1 // pred_region
      %s57 = ssub.s32 2048, 2048
      %58 = vsyncadd [#allocation8], %s57
      %s59 = sshll.u32 [#allocation9], 4
      %s60 = int_to_ptr.vmem [resolvable:$true] %s59
      %65 = dma.hbm_to_vmem [thread:$0]  %s6, 2048, %s60, [#allocation8], 128, 128, 8
    $region25: #{speaker_encoder.1} parent=1 // pred_fallthru
      _
    // Predicated region
    $region26: #{speaker_encoder.1} parent=1 // pred_check
      _
    $region27: #{speaker_encoder.1} parent=1 // pred_check_branch
      %67 = sbr.rel (0) target = $region29
    $region28: #{speaker_encoder.1} parent=1 // pred_region
      _
    $region29: #{speaker_encoder.1} parent=1 // pred_fallthru
      _
    // Predicated region
    $region30: #{speaker_encoder.1} parent=1 // pred_check
      _
    $region31: #{speaker_encoder.1} parent=1 // pred_check_branch
      %69 = sbr.rel (0) target = $region33
    $region32: #{speaker_encoder.1} parent=1 // pred_region
      _
    $region33: #{speaker_encoder.1} parent=1 // pred_fallthru
      _
    // Predicated region
    $region34: #{speaker_encoder.1} parent=1 // pred_check
      _
    $region35: #{speaker_encoder.1} parent=1 // pred_check_branch
      %71 = sbr.rel (0) target = $region37
    $region36: #{speaker_encoder.1} parent=1 // pred_region
      _
    $region37: #{speaker_encoder.1} parent=1 // pred_fallthru
      _
    // Predicated region
    $region38: #{speaker_encoder.1} parent=1 // pred_check
      _
    $region39: #{speaker_encoder.1} parent=1 // pred_check_branch
      %73 = sbr.rel (0) target = $region41
    $region40: #{speaker_encoder.1} parent=1 // pred_region
      %74 = dma.done [#allocation5], 2048
    $region41: #{speaker_encoder.1} parent=1 // pred_fallthru
      _
    // Predicated region
    $region42: #{speaker_encoder.1} parent=1 // pred_check
      _
    $region43: #{speaker_encoder.1} parent=1 // pred_check_branch
      %76 = sbr.rel (0) target = $region45
    $region44: #{speaker_encoder.1} parent=1 // pred_region
      %77 = dma.done [#allocation8], 2048
    $region45: #{speaker_encoder.1} parent=1 // pred_fallthru
      _
    // Predicated region
    $region46: #{speaker_encoder.1} parent=1 // pred_check
      _
    $region47: #{speaker_encoder.1} parent=1 // pred_check_branch
      %79 = sbr.rel (0) target = $region49
    $region48: #{speaker_encoder.1} parent=1 // pred_region
      %80 = dma.done [#allocation8], 2048
    $region49: #{speaker_encoder.1} parent=1 // pred_fallthru
      _
    %v81 = vld [vmem:[%s1] sm:$0x3]
    %v82 = vld [vmem:[%s2] sm:$0xff]
    %s83 = scalar_lea.vmem %s2, 8
    %v84 = vld [vmem:[%s83] sm:$0xff]
    %s85 = scalar_lea.vmem %s2, 16
    %v86 = vld [vmem:[%s85] sm:$0xff]
    %s87 = scalar_lea.vmem %s2, 24
    %v88 = vld [vmem:[%s87] sm:$0xff]
    %v89 = vld [vmem:[#allocation4] sm:$0xff]
    %v90 = vld [vmem:[#allocation4 + $0x8] sm:$0xff]
    %v91 = vld [vmem:[#allocation4 + $0x10] sm:$0xff]
    %v92 = vld [vmem:[#allocation4 + $0x18] sm:$0xff]
    %s93 = scalar_lea.vmem [#allocation4], 32
    %v94 = vld [vmem:[%s93] sm:$0xff]
    %v95 = vld [vmem:[%s93 + $0x8] sm:$0xff]
    %v96 = vld [vmem:[%s93 + $0x10] sm:$0xff]
    %v97 = vld [vmem:[%s93 + $0x18] sm:$0xff]
    %s98 = scalar_lea.vmem [#allocation4], 64
    %v99 = vld [vmem:[%s98] sm:$0xff]
    %v100 = vld [vmem:[%s98 + $0x8] sm:$0xff]
    %v101 = vld [vmem:[%s98 + $0x10] sm:$0xff]
    %v102 = vld [vmem:[%s98 + $0x18] sm:$0xff]
    %s103 = scalar_lea.vmem [#allocation4], 96
    %v104 = vld [vmem:[%s103] sm:$0xff]
    %v105 = vld [vmem:[%s103 + $0x8] sm:$0xff]
    %v106 = vld [vmem:[%s103 + $0x10] sm:$0xff]
    %v107 = vld [vmem:[%s103 + $0x18] sm:$0xff]
    %v108 = vld [vmem:[%s4] sm:$0x1]
    %s109 = scalar_lea.vmem %s4, 1
    %v110 = vld [vmem:[%s109] sm:$0x1]
    %s111 = scalar_lea.vmem %s4, 2
    %v112 = vld [vmem:[%s111] sm:$0x1]
    %s113 = scalar_lea.vmem %s4, 3
    %v114 = vld [vmem:[%s113] sm:$0x1]
    %v115 = vld [vmem:[#allocation7] sm:$0xff]
    %v116 = vld [vmem:[#allocation7 + $0x8] sm:$0xff]
    %v117 = vld [vmem:[#allocation7 + $0x10] sm:$0xff]
    %v118 = vld [vmem:[#allocation7 + $0x18] sm:$0xff]
    %s119 = scalar_lea.vmem [#allocation7], 32
    %v120 = vld [vmem:[%s119] sm:$0xff]
    %v121 = vld [vmem:[%s119 + $0x8] sm:$0xff]
    %v122 = vld [vmem:[%s119 + $0x10] sm:$0xff]
    %v123 = vld [vmem:[%s119 + $0x18] sm:$0xff]
    %s124 = scalar_lea.vmem [#allocation7], 64
    %v125 = vld [vmem:[%s124] sm:$0xff]
    %v126 = vld [vmem:[%s124 + $0x8] sm:$0xff]
    %v127 = vld [vmem:[%s124 + $0x10] sm:$0xff]
    %v128 = vld [vmem:[%s124 + $0x18] sm:$0xff]
    %s129 = scalar_lea.vmem [#allocation7], 96
    %v130 = vld [vmem:[%s129] sm:$0xff]
    %v131 = vld [vmem:[%s129 + $0x8] sm:$0xff]
    %v132 = vld [vmem:[%s129 + $0x10] sm:$0xff]
    %v133 = vld [vmem:[%s129 + $0x18] sm:$0xff]
    %v134 = vld [vmem:[#allocation9] sm:$0xff]
    %v135 = vld [vmem:[#allocation9 + $0x8] sm:$0xff]
    %v136 = vld [vmem:[#allocation9 + $0x10] sm:$0xff]
    %v137 = vld [vmem:[#allocation9 + $0x18] sm:$0xff]
    %s138 = scalar_lea.vmem [#allocation9], 32
    %v139 = vld [vmem:[%s138] sm:$0xff]
    %v140 = vld [vmem:[%s138 + $0x8] sm:$0xff]
    %v141 = vld [vmem:[%s138 + $0x10] sm:$0xff]
    %v142 = vld [vmem:[%s138 + $0x18] sm:$0xff]
    %s143 = scalar_lea.vmem [#allocation9], 64
    %v144 = vld [vmem:[%s143] sm:$0xff]
    %v145 = vld [vmem:[%s143 + $0x8] sm:$0xff]
    %v146 = vld [vmem:[%s143 + $0x10] sm:$0xff]
    %v147 = vld [vmem:[%s143 + $0x18] sm:$0xff]
    %s148 = scalar_lea.vmem [#allocation9], 96
    %v149 = vld [vmem:[%s148] sm:$0xff]
    %v150 = vld [vmem:[%s148 + $0x8] sm:$0xff]
    %v151 = vld [vmem:[%s148 + $0x10] sm:$0xff]
    %v152 = vld [vmem:[%s148 + $0x18] sm:$0xff]
    %v153 = vld [vmem:[%s7] sm:$0x1]
    %s154 = scalar_lea.vmem %s7, 1
    %v155 = vld [vmem:[%s154] sm:$0x1]
    %s156 = scalar_lea.vmem %s7, 2
    %v157 = vld [vmem:[%s156] sm:$0x1]
    %s158 = scalar_lea.vmem %s7, 3
    %v159 = vld [vmem:[%s158] sm:$0x1]
    %s160 = sld [smem:[#allocation3]]
    %v161 = vstv %s160
    %s162 = sld [smem:[#allocation3 + $0x1]]
    %v163 = vstv %s162
    %vm164 = vcmask 1040384
    %v165 = vsel %vm164, %v161, %v163
    %vm166 = vcmask 261120
    %v168 = vsel %vm166, 0.0, 0
    %170 = vmatprep.subr.mxu0 0.0
    %171 = vmatpush1.msra.mxu0 0.0
    %172 = vmatprep.subr.mxu0 0.0
    %173 = vmatpush1.msra.mxu0 0.0
    %174 = vmatprep.subr.mxu0 0.0
    %175 = vmatpush1.msra.mxu0 0.0
    %176 = vmatprep.subr.mxu0 0.0
    %177 = vmatpush1.msra.mxu0 0.0
    %178 = vmatprep.subr.mxu0 0.0
    %179 = vmatpush1.msra.mxu0 0.0
    %180 = vmatprep.subr.mxu0 0.0
    %181 = vmatpush1.msra.mxu0 0.0
    %182 = vmatprep.subr.mxu0 0.0
    %183 = vmatpush1.msra.mxu0 0.0
    %184 = vmatprep.subr.mxu0 0.0
    %185 = vmatpush1.msra.mxu0 0.0
    %186 = vmatprep.subr.mxu0 0.0
    %187 = vmatpush1.msra.mxu0 0.0
    %188 = vmatprep.subr.mxu0 0.0
    %189 = vmatpush1.msra.mxu0 0.0
    %190 = vmatprep.subr.mxu0 0.0
    %191 = vmatpush1.msra.mxu0 0.0
    %192 = vmatprep.subr.mxu0 0.0
    %193 = vmatpush1.msra.mxu0 0.0
    %194 = vmatprep.subr.mxu0 0.0
    %195 = vmatpush1.msra.mxu0 %v92
    %196 = vmatprep.subr.mxu0 0.0
    %197 = vmatpush1.msra.mxu0 %v91
    %198 = vmatprep.subr.mxu0 0.0
    %199 = vmatpush1.msra.mxu0 %v90
    %200 = vmatprep.subr.mxu0 0.0
    %201 = vmatpush1.msra.mxu0 %v89
    %202 = vmatprep.subr.mxu0 0.0
    %203 = vmatpush2.msra.mxu0 0.0
    %204 = vmatprep.subr.mxu0 0.0
    %205 = vmatpush2.msra.mxu0 0.0
    %206 = vmatprep.subr.mxu0 0.0
    %207 = vmatpush2.msra.mxu0 0.0
    %208 = vmatprep.subr.mxu0 0.0
    %209 = vmatpush2.msra.mxu0 0.0
    %210 = vmatprep.subr.mxu0 0.0
    %211 = vmatpush2.msra.mxu0 0.0
    %212 = vmatprep.subr.mxu0 0.0
    %213 = vmatpush2.msra.mxu0 0.0
    %214 = vmatprep.subr.mxu0 0.0
    %215 = vmatpush2.msra.mxu0 0.0
    %216 = vmatprep.subr.mxu0 0.0
    %217 = vmatpush2.msra.mxu0 0.0
    %218 = vmatprep.subr.mxu0 0.0
    %219 = vmatpush2.msra.mxu0 0.0
    %220 = vmatprep.subr.mxu0 0.0
    %221 = vmatpush2.msra.mxu0 0.0
    %222 = vmatprep.subr.mxu0 0.0
    %223 = vmatpush2.msra.mxu0 0.0
    %224 = vmatprep.subr.mxu0 0.0
    %225 = vmatpush2.msra.mxu0 0.0
    %226 = vmatprep.subr.mxu0 0.0
    %227 = vmatpush2.msra.mxu0 0.0
    %228 = vmatprep.subr.mxu0 0.0
    %229 = vmatpush2.msra.mxu0 0.0
    %230 = vmatprep.subr.mxu0 0.0
    %231 = vmatpush2.msra.mxu0 0.0
    %232 = vmatprep.subr.mxu0 0.0
    %233 = vmatpush2.msra.mxu0 0.0
    %234 = vmatprep.mubr.f32.mxu0 0.0
    %235 = vmatmul.mubr.f32.gmra.mxu0 %v168
    %v236 = vpop.f32.mrf.mxu0
    %v237 = vadd.f32 0.0, %v236
    %v238 = vpop.f32.mrf.mxu0
    %239 = vdwg.mxu0
    %vm240 = vcmask 64512
    %v242 = vsel %vm240, %v81, 0
    %244 = vmatprep.subr.mxu0 0.0
    %245 = vmatpush1.msra.mxu0 0.0
    %246 = vmatprep.subr.mxu0 0.0
    %247 = vmatpush1.msra.mxu0 0.0
    %248 = vmatprep.subr.mxu0 0.0
    %249 = vmatpush1.msra.mxu0 0.0
    %250 = vmatprep.subr.mxu0 0.0
    %251 = vmatpush1.msra.mxu0 0.0
    %252 = vmatprep.subr.mxu0 0.0
    %253 = vmatpush1.msra.mxu0 0.0
    %254 = vmatprep.subr.mxu0 0.0
    %255 = vmatpush1.msra.mxu0 0.0
    %256 = vmatprep.subr.mxu0 0.0
    %257 = vmatpush1.msra.mxu0 0.0
    %258 = vmatprep.subr.mxu0 0.0
    %259 = vmatpush1.msra.mxu0 0.0
    %260 = vmatprep.subr.mxu0 0.0
    %261 = vmatpush1.msra.mxu0 0.0
    %262 = vmatprep.subr.mxu0 0.0
    %263 = vmatpush1.msra.mxu0 0.0
    %264 = vmatprep.subr.mxu0 0.0
    %265 = vmatpush1.msra.mxu0 0.0
    %266 = vmatprep.subr.mxu0 0.0
    %267 = vmatpush1.msra.mxu0 0.0
    %268 = vmatprep.subr.mxu0 0.0
    %269 = vmatpush1.msra.mxu0 0.0
    %270 = vmatprep.subr.mxu0 0.0
    %271 = vmatpush1.msra.mxu0 0.0
    %272 = vmatprep.subr.mxu0 0.0
    %273 = vmatpush1.msra.mxu0 0.0
    %274 = vmatprep.subr.mxu0 0.0
    %275 = vmatpush1.msra.mxu0 %v82
    %276 = vmatprep.subr.mxu0 0.0
    %277 = vmatpush2.msra.mxu0 0.0
    %278 = vmatprep.subr.mxu0 0.0
    %279 = vmatpush2.msra.mxu0 0.0
    %280 = vmatprep.subr.mxu0 0.0
    %281 = vmatpush2.msra.mxu0 0.0
    %282 = vmatprep.subr.mxu0 0.0
    %283 = vmatpush2.msra.mxu0 0.0
    %284 = vmatprep.subr.mxu0 0.0
    %285 = vmatpush2.msra.mxu0 0.0
    %286 = vmatprep.subr.mxu0 0.0
    %287 = vmatpush2.msra.mxu0 0.0
    %288 = vmatprep.subr.mxu0 0.0
    %289 = vmatpush2.msra.mxu0 0.0
    %290 = vmatprep.subr.mxu0 0.0
    %291 = vmatpush2.msra.mxu0 0.0
    %292 = vmatprep.subr.mxu0 0.0
    %293 = vmatpush2.msra.mxu0 0.0
    %294 = vmatprep.subr.mxu0 0.0
    %295 = vmatpush2.msra.mxu0 0.0
    %296 = vmatprep.subr.mxu0 0.0
    %297 = vmatpush2.msra.mxu0 0.0
    %298 = vmatprep.subr.mxu0 0.0
    %299 = vmatpush2.msra.mxu0 0.0
    %300 = vmatprep.subr.mxu0 0.0
    %301 = vmatpush2.msra.mxu0 0.0
    %302 = vmatprep.subr.mxu0 0.0
    %303 = vmatpush2.msra.mxu0 0.0
    %304 = vmatprep.subr.mxu0 0.0
    %305 = vmatpush2.msra.mxu0 0.0
    %306 = vmatprep.subr.mxu0 0.0
    %307 = vmatpush2.msra.mxu0 0.0
    %308 = vmatprep.mubr.f32.mxu0 0.0
    %309 = vmatmul.mubr.f32.gmra.mxu0 %v242
    %v310 = vpop.f32.mrf.mxu0
    %v311 = vadd.f32 %v237, %v310
    %v312 = vpop.f32.mrf.mxu0
    %313 = vdwg.mxu0
    %v315 = vlaneseq
    %v316 = vshrl.u32 %v315, 7
    %v317 = vsub.s32 0, %v316
    %v318 = vrot.slane %v108, %v317
    %v320 = vadd.f32 %v311, %v318
    %321 = vmatprep.subr.mxu0 0.0
    %322 = vmatpush1.msra.mxu0 0.0
    %323 = vmatprep.subr.mxu0 0.0
    %324 = vmatpush1.msra.mxu0 0.0
    %325 = vmatprep.subr.mxu0 0.0
    %326 = vmatpush1.msra.mxu0 0.0
    %327 = vmatprep.subr.mxu0 0.0
    %328 = vmatpush1.msra.mxu0 0.0
    %329 = vmatprep.subr.mxu0 0.0
    %330 = vmatpush1.msra.mxu0 0.0
    %331 = vmatprep.subr.mxu0 0.0
    %332 = vmatpush1.msra.mxu0 0.0
    %333 = vmatprep.subr.mxu0 0.0
    %334 = vmatpush1.msra.mxu0 0.0
    %335 = vmatprep.subr.mxu0 0.0
    %336 = vmatpush1.msra.mxu0 0.0
    %337 = vmatprep.subr.mxu0 0.0
    %338 = vmatpush1.msra.mxu0 0.0
    %339 = vmatprep.subr.mxu0 0.0
    %340 = vmatpush1.msra.mxu0 0.0
    %341 = vmatprep.subr.mxu0 0.0
    %342 = vmatpush1.msra.mxu0 0.0
    %343 = vmatprep.subr.mxu0 0.0
    %344 = vmatpush1.msra.mxu0 0.0
    %345 = vmatprep.subr.mxu0 0.0
    %346 = vmatpush1.msra.mxu0 %v97
    %347 = vmatprep.subr.mxu0 0.0
    %348 = vmatpush1.msra.mxu0 %v96
    %349 = vmatprep.subr.mxu0 0.0
    %350 = vmatpush1.msra.mxu0 %v95
    %351 = vmatprep.subr.mxu0 0.0
    %352 = vmatpush1.msra.mxu0 %v94
    %353 = vmatprep.subr.mxu0 0.0
    %354 = vmatpush2.msra.mxu0 0.0
    %355 = vmatprep.subr.mxu0 0.0
    %356 = vmatpush2.msra.mxu0 0.0
    %357 = vmatprep.subr.mxu0 0.0
    %358 = vmatpush2.msra.mxu0 0.0
    %359 = vmatprep.subr.mxu0 0.0
    %360 = vmatpush2.msra.mxu0 0.0
    %361 = vmatprep.subr.mxu0 0.0
    %362 = vmatpush2.msra.mxu0 0.0
    %363 = vmatprep.subr.mxu0 0.0
    %364 = vmatpush2.msra.mxu0 0.0
    %365 = vmatprep.subr.mxu0 0.0
    %366 = vmatpush2.msra.mxu0 0.0
    %367 = vmatprep.subr.mxu0 0.0
    %368 = vmatpush2.msra.mxu0 0.0
    %369 = vmatprep.subr.mxu0 0.0
    %370 = vmatpush2.msra.mxu0 0.0
    %371 = vmatprep.subr.mxu0 0.0
    %372 = vmatpush2.msra.mxu0 0.0
    %373 = vmatprep.subr.mxu0 0.0
    %374 = vmatpush2.msra.mxu0 0.0
    %375 = vmatprep.subr.mxu0 0.0
    %376 = vmatpush2.msra.mxu0 0.0
    %377 = vmatprep.subr.mxu0 0.0
    %378 = vmatpush2.msra.mxu0 0.0
    %379 = vmatprep.subr.mxu0 0.0
    %380 = vmatpush2.msra.mxu0 0.0
    %381 = vmatprep.subr.mxu0 0.0
    %382 = vmatpush2.msra.mxu0 0.0
    %383 = vmatprep.subr.mxu0 0.0
    %384 = vmatpush2.msra.mxu0 0.0
    %385 = vmatprep.mubr.f32.mxu0 0.0
    %386 = vmatmul.mubr.f32.gmra.mxu0 %v168
    %v387 = vpop.f32.mrf.mxu0
    %v388 = vadd.f32 0.0, %v387
    %v389 = vpop.f32.mrf.mxu0
    %390 = vdwg.mxu0
    %391 = vmatprep.subr.mxu0 0.0
    %392 = vmatpush1.msra.mxu0 0.0
    %393 = vmatprep.subr.mxu0 0.0
    %394 = vmatpush1.msra.mxu0 0.0
    %395 = vmatprep.subr.mxu0 0.0
    %396 = vmatpush1.msra.mxu0 0.0
    %397 = vmatprep.subr.mxu0 0.0
    %398 = vmatpush1.msra.mxu0 0.0
    %399 = vmatprep.subr.mxu0 0.0
    %400 = vmatpush1.msra.mxu0 0.0
    %401 = vmatprep.subr.mxu0 0.0
    %402 = vmatpush1.msra.mxu0 0.0
    %403 = vmatprep.subr.mxu0 0.0
    %404 = vmatpush1.msra.mxu0 0.0
    %405 = vmatprep.subr.mxu0 0.0
    %406 = vmatpush1.msra.mxu0 0.0
    %407 = vmatprep.subr.mxu0 0.0
    %408 = vmatpush1.msra.mxu0 0.0
    %409 = vmatprep.subr.mxu0 0.0
    %410 = vmatpush1.msra.mxu0 0.0
    %411 = vmatprep.subr.mxu0 0.0
    %412 = vmatpush1.msra.mxu0 0.0
    %413 = vmatprep.subr.mxu0 0.0
    %414 = vmatpush1.msra.mxu0 0.0
    %415 = vmatprep.subr.mxu0 0.0
    %416 = vmatpush1.msra.mxu0 0.0
    %417 = vmatprep.subr.mxu0 0.0
    %418 = vmatpush1.msra.mxu0 0.0
    %419 = vmatprep.subr.mxu0 0.0
    %420 = vmatpush1.msra.mxu0 0.0
    %421 = vmatprep.subr.mxu0 0.0
    %422 = vmatpush1.msra.mxu0 %v84
    %423 = vmatprep.subr.mxu0 0.0
    %424 = vmatpush2.msra.mxu0 0.0
    %425 = vmatprep.subr.mxu0 0.0
    %426 = vmatpush2.msra.mxu0 0.0
    %427 = vmatprep.subr.mxu0 0.0
    %428 = vmatpush2.msra.mxu0 0.0
    %429 = vmatprep.subr.mxu0 0.0
    %430 = vmatpush2.msra.mxu0 0.0
    %431 = vmatprep.subr.mxu0 0.0
    %432 = vmatpush2.msra.mxu0 0.0
    %433 = vmatprep.subr.mxu0 0.0
    %434 = vmatpush2.msra.mxu0 0.0
    %435 = vmatprep.subr.mxu0 0.0
    %436 = vmatpush2.msra.mxu0 0.0
    %437 = vmatprep.subr.mxu0 0.0
    %438 = vmatpush2.msra.mxu0 0.0
    %439 = vmatprep.subr.mxu0 0.0
    %440 = vmatpush2.msra.mxu0 0.0
    %441 = vmatprep.subr.mxu0 0.0
    %442 = vmatpush2.msra.mxu0 0.0
    %443 = vmatprep.subr.mxu0 0.0
    %444 = vmatpush2.msra.mxu0 0.0
    %445 = vmatprep.subr.mxu0 0.0
    %446 = vmatpush2.msra.mxu0 0.0
    %447 = vmatprep.subr.mxu0 0.0
    %448 = vmatpush2.msra.mxu0 0.0
    %449 = vmatprep.subr.mxu0 0.0
    %450 = vmatpush2.msra.mxu0 0.0
    %451 = vmatprep.subr.mxu0 0.0
    %452 = vmatpush2.msra.mxu0 0.0
    %453 = vmatprep.subr.mxu0 0.0
    %454 = vmatpush2.msra.mxu0 0.0
    %455 = vmatprep.mubr.f32.mxu0 0.0
    %456 = vmatmul.mubr.f32.gmra.mxu0 %v242
    %v457 = vpop.f32.mrf.mxu0
    %v458 = vadd.f32 %v388, %v457
    %v459 = vpop.f32.mrf.mxu0
    %460 = vdwg.mxu0
    %v462 = vlaneseq
    %v463 = vshrl.u32 %v462, 7
    %v464 = vsub.s32 0, %v463
    %v465 = vrot.slane %v110, %v464
    %v467 = vadd.f32 %v458, %v465
    %468 = vmatprep.subr.mxu0 0.0
    %469 = vmatpush1.msra.mxu0 0.0
    %470 = vmatprep.subr.mxu0 0.0
    %471 = vmatpush1.msra.mxu0 0.0
    %472 = vmatprep.subr.mxu0 0.0
    %473 = vmatpush1.msra.mxu0 0.0
    %474 = vmatprep.subr.mxu0 0.0
    %475 = vmatpush1.msra.mxu0 0.0
    %476 = vmatprep.subr.mxu0 0.0
    %477 = vmatpush1.msra.mxu0 0.0
    %478 = vmatprep.subr.mxu0 0.0
    %479 = vmatpush1.msra.mxu0 0.0
    %480 = vmatprep.subr.mxu0 0.0
    %481 = vmatpush1.msra.mxu0 0.0
    %482 = vmatprep.subr.mxu0 0.0
    %483 = vmatpush1.msra.mxu0 0.0
    %484 = vmatprep.subr.mxu0 0.0
    %485 = vmatpush1.msra.mxu0 0.0
    %486 = vmatprep.subr.mxu0 0.0
    %487 = vmatpush1.msra.mxu0 0.0
    %488 = vmatprep.subr.mxu0 0.0
    %489 = vmatpush1.msra.mxu0 0.0
    %490 = vmatprep.subr.mxu0 0.0
    %491 = vmatpush1.msra.mxu0 0.0
    %492 = vmatprep.subr.mxu0 0.0
    %493 = vmatpush1.msra.mxu0 %v102
    %494 = vmatprep.subr.mxu0 0.0
    %495 = vmatpush1.msra.mxu0 %v101
    %496 = vmatprep.subr.mxu0 0.0
    %497 = vmatpush1.msra.mxu0 %v100
    %498 = vmatprep.subr.mxu0 0.0
    %499 = vmatpush1.msra.mxu0 %v99
    %500 = vmatprep.subr.mxu0 0.0
    %501 = vmatpush2.msra.mxu0 0.0
    %502 = vmatprep.subr.mxu0 0.0
    %503 = vmatpush2.msra.mxu0 0.0
    %504 = vmatprep.subr.mxu0 0.0
    %505 = vmatpush2.msra.mxu0 0.0
    %506 = vmatprep.subr.mxu0 0.0
    %507 = vmatpush2.msra.mxu0 0.0
    %508 = vmatprep.subr.mxu0 0.0
    %509 = vmatpush2.msra.mxu0 0.0
    %510 = vmatprep.subr.mxu0 0.0
    %511 = vmatpush2.msra.mxu0 0.0
    %512 = vmatprep.subr.mxu0 0.0
    %513 = vmatpush2.msra.mxu0 0.0
    %514 = vmatprep.subr.mxu0 0.0
    %515 = vmatpush2.msra.mxu0 0.0
    %516 = vmatprep.subr.mxu0 0.0
    %517 = vmatpush2.msra.mxu0 0.0
    %518 = vmatprep.subr.mxu0 0.0
    %519 = vmatpush2.msra.mxu0 0.0
    %520 = vmatprep.subr.mxu0 0.0
    %521 = vmatpush2.msra.mxu0 0.0
    %522 = vmatprep.subr.mxu0 0.0
    %523 = vmatpush2.msra.mxu0 0.0
    %524 = vmatprep.subr.mxu0 0.0
    %525 = vmatpush2.msra.mxu0 0.0
    %526 = vmatprep.subr.mxu0 0.0
    %527 = vmatpush2.msra.mxu0 0.0
    %528 = vmatprep.subr.mxu0 0.0
    %529 = vmatpush2.msra.mxu0 0.0
    %530 = vmatprep.subr.mxu0 0.0
    %531 = vmatpush2.msra.mxu0 0.0
    %532 = vmatprep.mubr.f32.mxu0 0.0
    %533 = vmatmul.mubr.f32.gmra.mxu0 %v168
    %v534 = vpop.f32.mrf.mxu0
    %v535 = vadd.f32 0.0, %v534
    %v536 = vpop.f32.mrf.mxu0
    %537 = vdwg.mxu0
    %538 = vmatprep.subr.mxu0 0.0
    %539 = vmatpush1.msra.mxu0 0.0
    %540 = vmatprep.subr.mxu0 0.0
    %541 = vmatpush1.msra.mxu0 0.0
    %542 = vmatprep.subr.mxu0 0.0
    %543 = vmatpush1.msra.mxu0 0.0
    %544 = vmatprep.subr.mxu0 0.0
    %545 = vmatpush1.msra.mxu0 0.0
    %546 = vmatprep.subr.mxu0 0.0
    %547 = vmatpush1.msra.mxu0 0.0
    %548 = vmatprep.subr.mxu0 0.0
    %549 = vmatpush1.msra.mxu0 0.0
    %550 = vmatprep.subr.mxu0 0.0
    %551 = vmatpush1.msra.mxu0 0.0
    %552 = vmatprep.subr.mxu0 0.0
    %553 = vmatpush1.msra.mxu0 0.0
    %554 = vmatprep.subr.mxu0 0.0
    %555 = vmatpush1.msra.mxu0 0.0
    %556 = vmatprep.subr.mxu0 0.0
    %557 = vmatpush1.msra.mxu0 0.0
    %558 = vmatprep.subr.mxu0 0.0
    %559 = vmatpush1.msra.mxu0 0.0
    %560 = vmatprep.subr.mxu0 0.0
    %561 = vmatpush1.msra.mxu0 0.0
    %562 = vmatprep.subr.mxu0 0.0
    %563 = vmatpush1.msra.mxu0 0.0
    %564 = vmatprep.subr.mxu0 0.0
    %565 = vmatpush1.msra.mxu0 0.0
    %566 = vmatprep.subr.mxu0 0.0
    %567 = vmatpush1.msra.mxu0 0.0
    %568 = vmatprep.subr.mxu0 0.0
    %569 = vmatpush1.msra.mxu0 %v86
    %570 = vmatprep.subr.mxu0 0.0
    %571 = vmatpush2.msra.mxu0 0.0
    %572 = vmatprep.subr.mxu0 0.0
    %573 = vmatpush2.msra.mxu0 0.0
    %574 = vmatprep.subr.mxu0 0.0
    %575 = vmatpush2.msra.mxu0 0.0
    %576 = vmatprep.subr.mxu0 0.0
    %577 = vmatpush2.msra.mxu0 0.0
    %578 = vmatprep.subr.mxu0 0.0
    %579 = vmatpush2.msra.mxu0 0.0
    %580 = vmatprep.subr.mxu0 0.0
    %581 = vmatpush2.msra.mxu0 0.0
    %582 = vmatprep.subr.mxu0 0.0
    %583 = vmatpush2.msra.mxu0 0.0
    %584 = vmatprep.subr.mxu0 0.0
    %585 = vmatpush2.msra.mxu0 0.0
    %586 = vmatprep.subr.mxu0 0.0
    %587 = vmatpush2.msra.mxu0 0.0
    %588 = vmatprep.subr.mxu0 0.0
    %589 = vmatpush2.msra.mxu0 0.0
    %590 = vmatprep.subr.mxu0 0.0
    %591 = vmatpush2.msra.mxu0 0.0
    %592 = vmatprep.subr.mxu0 0.0
    %593 = vmatpush2.msra.mxu0 0.0
    %594 = vmatprep.subr.mxu0 0.0
    %595 = vmatpush2.msra.mxu0 0.0
    %596 = vmatprep.subr.mxu0 0.0
    %597 = vmatpush2.msra.mxu0 0.0
    %598 = vmatprep.subr.mxu0 0.0
    %599 = vmatpush2.msra.mxu0 0.0
    %600 = vmatprep.subr.mxu0 0.0
    %601 = vmatpush2.msra.mxu0 0.0
    %602 = vmatprep.mubr.f32.mxu0 0.0
    %603 = vmatmul.mubr.f32.gmra.mxu0 %v242
    %v604 = vpop.f32.mrf.mxu0
    %v605 = vadd.f32 %v535, %v604
    %v606 = vpop.f32.mrf.mxu0
    %607 = vdwg.mxu0
    %v609 = vlaneseq
    %v610 = vshrl.u32 %v609, 7
    %v611 = vsub.s32 0, %v610
    %v612 = vrot.slane %v112, %v611
    %v614 = vadd.f32 %v605, %v612
    %615 = vmatprep.subr.mxu0 0.0
    %616 = vmatpush1.msra.mxu0 0.0
    %617 = vmatprep.subr.mxu0 0.0
    %618 = vmatpush1.msra.mxu0 0.0
    %619 = vmatprep.subr.mxu0 0.0
    %620 = vmatpush1.msra.mxu0 0.0
    %621 = vmatprep.subr.mxu0 0.0
    %622 = vmatpush1.msra.mxu0 0.0
    %623 = vmatprep.subr.mxu0 0.0
    %624 = vmatpush1.msra.mxu0 0.0
    %625 = vmatprep.subr.mxu0 0.0
    %626 = vmatpush1.msra.mxu0 0.0
    %627 = vmatprep.subr.mxu0 0.0
    %628 = vmatpush1.msra.mxu0 0.0
    %629 = vmatprep.subr.mxu0 0.0
    %630 = vmatpush1.msra.mxu0 0.0
    %631 = vmatprep.subr.mxu0 0.0
    %632 = vmatpush1.msra.mxu0 0.0
    %633 = vmatprep.subr.mxu0 0.0
    %634 = vmatpush1.msra.mxu0 0.0
    %635 = vmatprep.subr.mxu0 0.0
    %636 = vmatpush1.msra.mxu0 0.0
    %637 = vmatprep.subr.mxu0 0.0
    %638 = vmatpush1.msra.mxu0 0.0
    %639 = vmatprep.subr.mxu0 0.0
    %640 = vmatpush1.msra.mxu0 %v107
    %641 = vmatprep.subr.mxu0 0.0
    %642 = vmatpush1.msra.mxu0 %v106
    %643 = vmatprep.subr.mxu0 0.0
    %644 = vmatpush1.msra.mxu0 %v105
    %645 = vmatprep.subr.mxu0 0.0
    %646 = vmatpush1.msra.mxu0 %v104
    %647 = vmatprep.subr.mxu0 0.0
    %648 = vmatpush2.msra.mxu0 0.0
    %649 = vmatprep.subr.mxu0 0.0
    %650 = vmatpush2.msra.mxu0 0.0
    %651 = vmatprep.subr.mxu0 0.0
    %652 = vmatpush2.msra.mxu0 0.0
    %653 = vmatprep.subr.mxu0 0.0
    %654 = vmatpush2.msra.mxu0 0.0
    %655 = vmatprep.subr.mxu0 0.0
    %656 = vmatpush2.msra.mxu0 0.0
    %657 = vmatprep.subr.mxu0 0.0
    %658 = vmatpush2.msra.mxu0 0.0
    %659 = vmatprep.subr.mxu0 0.0
    %660 = vmatpush2.msra.mxu0 0.0
    %661 = vmatprep.subr.mxu0 0.0
    %662 = vmatpush2.msra.mxu0 0.0
    %663 = vmatprep.subr.mxu0 0.0
    %664 = vmatpush2.msra.mxu0 0.0
    %665 = vmatprep.subr.mxu0 0.0
    %666 = vmatpush2.msra.mxu0 0.0
    %667 = vmatprep.subr.mxu0 0.0
    %668 = vmatpush2.msra.mxu0 0.0
    %669 = vmatprep.subr.mxu0 0.0
    %670 = vmatpush2.msra.mxu0 0.0
    %671 = vmatprep.subr.mxu0 0.0
    %672 = vmatpush2.msra.mxu0 0.0
    %673 = vmatprep.subr.mxu0 0.0
    %674 = vmatpush2.msra.mxu0 0.0
    %675 = vmatprep.subr.mxu0 0.0
    %676 = vmatpush2.msra.mxu0 0.0
    %677 = vmatprep.subr.mxu0 0.0
    %678 = vmatpush2.msra.mxu0 0.0
    %679 = vmatprep.mubr.f32.mxu0 0.0
    %680 = vmatmul.mubr.f32.gmra.mxu0 %v168
    %v681 = vpop.f32.mrf.mxu0
    %v682 = vadd.f32 0.0, %v681
    %v683 = vpop.f32.mrf.mxu0
    %684 = vdwg.mxu0
    %685 = vmatprep.subr.mxu0 0.0
    %686 = vmatpush1.msra.mxu0 0.0
    %687 = vmatprep.subr.mxu0 0.0
    %688 = vmatpush1.msra.mxu0 0.0
    %689 = vmatprep.subr.mxu0 0.0
    %690 = vmatpush1.msra.mxu0 0.0
    %691 = vmatprep.subr.mxu0 0.0
    %692 = vmatpush1.msra.mxu0 0.0
    %693 = vmatprep.subr.mxu0 0.0
    %694 = vmatpush1.msra.mxu0 0.0
    %695 = vmatprep.subr.mxu0 0.0
    %696 = vmatpush1.msra.mxu0 0.0
    %697 = vmatprep.subr.mxu0 0.0
    %698 = vmatpush1.msra.mxu0 0.0
    %699 = vmatprep.subr.mxu0 0.0
    %700 = vmatpush1.msra.mxu0 0.0
    %701 = vmatprep.subr.mxu0 0.0
    %702 = vmatpush1.msra.mxu0 0.0
    %703 = vmatprep.subr.mxu0 0.0
    %704 = vmatpush1.msra.mxu0 0.0
    %705 = vmatprep.subr.mxu0 0.0
    %706 = vmatpush1.msra.mxu0 0.0
    %707 = vmatprep.subr.mxu0 0.0
    %708 = vmatpush1.msra.mxu0 0.0
    %709 = vmatprep.subr.mxu0 0.0
    %710 = vmatpush1.msra.mxu0 0.0
    %711 = vmatprep.subr.mxu0 0.0
    %712 = vmatpush1.msra.mxu0 0.0
    %713 = vmatprep.subr.mxu0 0.0
    %714 = vmatpush1.msra.mxu0 0.0
    %715 = vmatprep.subr.mxu0 0.0
    %716 = vmatpush1.msra.mxu0 %v88
    %717 = vmatprep.subr.mxu0 0.0
    %718 = vmatpush2.msra.mxu0 0.0
    %719 = vmatprep.subr.mxu0 0.0
    %720 = vmatpush2.msra.mxu0 0.0
    %721 = vmatprep.subr.mxu0 0.0
    %722 = vmatpush2.msra.mxu0 0.0
    %723 = vmatprep.subr.mxu0 0.0
    %724 = vmatpush2.msra.mxu0 0.0
    %725 = vmatprep.subr.mxu0 0.0
    %726 = vmatpush2.msra.mxu0 0.0
    %727 = vmatprep.subr.mxu0 0.0
    %728 = vmatpush2.msra.mxu0 0.0
    %729 = vmatprep.subr.mxu0 0.0
    %730 = vmatpush2.msra.mxu0 0.0
    %731 = vmatprep.subr.mxu0 0.0
    %732 = vmatpush2.msra.mxu0 0.0
    %733 = vmatprep.subr.mxu0 0.0
    %734 = vmatpush2.msra.mxu0 0.0
    %735 = vmatprep.subr.mxu0 0.0
    %736 = vmatpush2.msra.mxu0 0.0
    %737 = vmatprep.subr.mxu0 0.0
    %738 = vmatpush2.msra.mxu0 0.0
    %739 = vmatprep.subr.mxu0 0.0
    %740 = vmatpush2.msra.mxu0 0.0
    %741 = vmatprep.subr.mxu0 0.0
    %742 = vmatpush2.msra.mxu0 0.0
    %743 = vmatprep.subr.mxu0 0.0
    %744 = vmatpush2.msra.mxu0 0.0
    %745 = vmatprep.subr.mxu0 0.0
    %746 = vmatpush2.msra.mxu0 0.0
    %747 = vmatprep.subr.mxu0 0.0
    %748 = vmatpush2.msra.mxu0 0.0
    %749 = vmatprep.mubr.f32.mxu0 0.0
    %750 = vmatmul.mubr.f32.gmra.mxu0 %v242
    %v751 = vpop.f32.mrf.mxu0
    %v752 = vadd.f32 %v682, %v751
    %v753 = vpop.f32.mrf.mxu0
    %754 = vdwg.mxu0
    %v756 = vlaneseq
    %v757 = vshrl.u32 %v756, 7
    %v758 = vsub.s32 0, %v757
    %v759 = vrot.slane %v114, %v758
    %v761 = vadd.f32 %v752, %v759
    %v762 = vxor.u32 %v320, 2147483648
    %v763 = vmul.f32 %v762, 1.442695
    %v764 = vpow.pop %v763
    %v765 = vadd.f32 %v764, 1.0
    %v766 = vrcp.pop %v765
    %v767 = vmul.f32 1.0, %v766
    %v768 = vxor.u32 %v467, 2147483648
    %v769 = vmul.f32 %v768, 1.442695
    %v770 = vpow.pop %v769
    %v771 = vadd.f32 %v770, 1.0
    %v772 = vrcp.pop %v771
    %v773 = vmul.f32 1.0, %v772
    %v774 = vtanh.pop %v614
    %v775 = vxor.u32 %v761, 2147483648
    %v776 = vmul.f32 %v775, 1.442695
    %v777 = vpow.pop %v776
    %v778 = vadd.f32 %v777, 1.0
    %v779 = vrcp.pop %v778
    %v780 = vmul.f32 1.0, %v779
    %v781 = vmul.f32 %v773, 0.0
    %v782 = vmul.f32 %v767, %v774
    %v783 = vadd.f32 %v781, %v782
    %v784 = vtanh.pop %v783
    %v785 = vmul.f32 %v780, %v784
    %v787 = vsel %vm166, %v785, 0
    %789 = vmatprep.subr.mxu0 0.0
    %790 = vmatpush1.msra.mxu0 0.0
    %791 = vmatprep.subr.mxu0 0.0
    %792 = vmatpush1.msra.mxu0 0.0
    %793 = vmatprep.subr.mxu0 0.0
    %794 = vmatpush1.msra.mxu0 0.0
    %795 = vmatprep.subr.mxu0 0.0
    %796 = vmatpush1.msra.mxu0 0.0
    %797 = vmatprep.subr.mxu0 0.0
    %798 = vmatpush1.msra.mxu0 0.0
    %799 = vmatprep.subr.mxu0 0.0
    %800 = vmatpush1.msra.mxu0 0.0
    %801 = vmatprep.subr.mxu0 0.0
    %802 = vmatpush1.msra.mxu0 0.0
    %803 = vmatprep.subr.mxu0 0.0
    %804 = vmatpush1.msra.mxu0 0.0
    %805 = vmatprep.subr.mxu0 0.0
    %806 = vmatpush1.msra.mxu0 0.0
    %807 = vmatprep.subr.mxu0 0.0
    %808 = vmatpush1.msra.mxu0 0.0
    %809 = vmatprep.subr.mxu0 0.0
    %810 = vmatpush1.msra.mxu0 0.0
    %811 = vmatprep.subr.mxu0 0.0
    %812 = vmatpush1.msra.mxu0 0.0
    %813 = vmatprep.subr.mxu0 0.0
    %814 = vmatpush1.msra.mxu0 %v92
    %815 = vmatprep.subr.mxu0 0.0
    %816 = vmatpush1.msra.mxu0 %v91
    %817 = vmatprep.subr.mxu0 0.0
    %818 = vmatpush1.msra.mxu0 %v90
    %819 = vmatprep.subr.mxu0 0.0
    %820 = vmatpush1.msra.mxu0 %v89
    %821 = vmatprep.subr.mxu0 0.0
    %822 = vmatpush2.msra.mxu0 0.0
    %823 = vmatprep.subr.mxu0 0.0
    %824 = vmatpush2.msra.mxu0 0.0
    %825 = vmatprep.subr.mxu0 0.0
    %826 = vmatpush2.msra.mxu0 0.0
    %827 = vmatprep.subr.mxu0 0.0
    %828 = vmatpush2.msra.mxu0 0.0
    %829 = vmatprep.subr.mxu0 0.0
    %830 = vmatpush2.msra.mxu0 0.0
    %831 = vmatprep.subr.mxu0 0.0
    %832 = vmatpush2.msra.mxu0 0.0
    %833 = vmatprep.subr.mxu0 0.0
    %834 = vmatpush2.msra.mxu0 0.0
    %835 = vmatprep.subr.mxu0 0.0
    %836 = vmatpush2.msra.mxu0 0.0
    %837 = vmatprep.subr.mxu0 0.0
    %838 = vmatpush2.msra.mxu0 0.0
    %839 = vmatprep.subr.mxu0 0.0
    %840 = vmatpush2.msra.mxu0 0.0
    %841 = vmatprep.subr.mxu0 0.0
    %842 = vmatpush2.msra.mxu0 0.0
    %843 = vmatprep.subr.mxu0 0.0
    %844 = vmatpush2.msra.mxu0 0.0
    %845 = vmatprep.subr.mxu0 0.0
    %846 = vmatpush2.msra.mxu0 0.0
    %847 = vmatprep.subr.mxu0 0.0
    %848 = vmatpush2.msra.mxu0 0.0
    %849 = vmatprep.subr.mxu0 0.0
    %850 = vmatpush2.msra.mxu0 0.0
    %851 = vmatprep.subr.mxu0 0.0
    %852 = vmatpush2.msra.mxu0 0.0
    %853 = vmatprep.mubr.f32.mxu0 0.0
    %854 = vmatmul.mubr.f32.gmra.mxu0 %v787
    %v855 = vpop.f32.mrf.mxu0
    %v856 = vadd.f32 0.0, %v855
    %v857 = vpop.f32.mrf.mxu0
    %858 = vdwg.mxu0
    %859 = vrot.lane.b32.xlu0 %v81, 120
    %v860 = vpop.permute.xlu0 %859
    %v861 = vsel %vm240, %v860, 0
    %863 = vmatprep.subr.mxu0 0.0
    %864 = vmatpush1.msra.mxu0 0.0
    %865 = vmatprep.subr.mxu0 0.0
    %866 = vmatpush1.msra.mxu0 0.0
    %867 = vmatprep.subr.mxu0 0.0
    %868 = vmatpush1.msra.mxu0 0.0
    %869 = vmatprep.subr.mxu0 0.0
    %870 = vmatpush1.msra.mxu0 0.0
    %871 = vmatprep.subr.mxu0 0.0
    %872 = vmatpush1.msra.mxu0 0.0
    %873 = vmatprep.subr.mxu0 0.0
    %874 = vmatpush1.msra.mxu0 0.0
    %875 = vmatprep.subr.mxu0 0.0
    %876 = vmatpush1.msra.mxu0 0.0
    %877 = vmatprep.subr.mxu0 0.0
    %878 = vmatpush1.msra.mxu0 0.0
    %879 = vmatprep.subr.mxu0 0.0
    %880 = vmatpush1.msra.mxu0 0.0
    %881 = vmatprep.subr.mxu0 0.0
    %882 = vmatpush1.msra.mxu0 0.0
    %883 = vmatprep.subr.mxu0 0.0
    %884 = vmatpush1.msra.mxu0 0.0
    %885 = vmatprep.subr.mxu0 0.0
    %886 = vmatpush1.msra.mxu0 0.0
    %887 = vmatprep.subr.mxu0 0.0
    %888 = vmatpush1.msra.mxu0 0.0
    %889 = vmatprep.subr.mxu0 0.0
    %890 = vmatpush1.msra.mxu0 0.0
    %891 = vmatprep.subr.mxu0 0.0
    %892 = vmatpush1.msra.mxu0 0.0
    %893 = vmatprep.subr.mxu0 0.0
    %894 = vmatpush1.msra.mxu0 %v82
    %895 = vmatprep.subr.mxu0 0.0
    %896 = vmatpush2.msra.mxu0 0.0
    %897 = vmatprep.subr.mxu0 0.0
    %898 = vmatpush2.msra.mxu0 0.0
    %899 = vmatprep.subr.mxu0 0.0
    %900 = vmatpush2.msra.mxu0 0.0
    %901 = vmatprep.subr.mxu0 0.0
    %902 = vmatpush2.msra.mxu0 0.0
    %903 = vmatprep.subr.mxu0 0.0
    %904 = vmatpush2.msra.mxu0 0.0
    %905 = vmatprep.subr.mxu0 0.0
    %906 = vmatpush2.msra.mxu0 0.0
    %907 = vmatprep.subr.mxu0 0.0
    %908 = vmatpush2.msra.mxu0 0.0
    %909 = vmatprep.subr.mxu0 0.0
    %910 = vmatpush2.msra.mxu0 0.0
    %911 = vmatprep.subr.mxu0 0.0
    %912 = vmatpush2.msra.mxu0 0.0
    %913 = vmatprep.subr.mxu0 0.0
    %914 = vmatpush2.msra.mxu0 0.0
    %915 = vmatprep.subr.mxu0 0.0
    %916 = vmatpush2.msra.mxu0 0.0
    %917 = vmatprep.subr.mxu0 0.0
    %918 = vmatpush2.msra.mxu0 0.0
    %919 = vmatprep.subr.mxu0 0.0
    %920 = vmatpush2.msra.mxu0 0.0
    %921 = vmatprep.subr.mxu0 0.0
    %922 = vmatpush2.msra.mxu0 0.0
    %923 = vmatprep.subr.mxu0 0.0
    %924 = vmatpush2.msra.mxu0 0.0
    %925 = vmatprep.subr.mxu0 0.0
    %926 = vmatpush2.msra.mxu0 0.0
    %927 = vmatprep.mubr.f32.mxu0 0.0
    %928 = vmatmul.mubr.f32.gmra.mxu0 %v861
    %v929 = vpop.f32.mrf.mxu0
    %v930 = vadd.f32 %v856, %v929
    %v931 = vpop.f32.mrf.mxu0
    %932 = vdwg.mxu0
    %v933 = vadd.f32 %v930, %v318
    %934 = vmatprep.subr.mxu0 0.0
    %935 = vmatpush1.msra.mxu0 0.0
    %936 = vmatprep.subr.mxu0 0.0
    %937 = vmatpush1.msra.mxu0 0.0
    %938 = vmatprep.subr.mxu0 0.0
    %939 = vmatpush1.msra.mxu0 0.0
    %940 = vmatprep.subr.mxu0 0.0
    %941 = vmatpush1.msra.mxu0 0.0
    %942 = vmatprep.subr.mxu0 0.0
    %943 = vmatpush1.msra.mxu0 0.0
    %944 = vmatprep.subr.mxu0 0.0
    %945 = vmatpush1.msra.mxu0 0.0
    %946 = vmatprep.subr.mxu0 0.0
    %947 = vmatpush1.msra.mxu0 0.0
    %948 = vmatprep.subr.mxu0 0.0
    %949 = vmatpush1.msra.mxu0 0.0
    %950 = vmatprep.subr.mxu0 0.0
    %951 = vmatpush1.msra.mxu0 0.0
    %952 = vmatprep.subr.mxu0 0.0
    %953 = vmatpush1.msra.mxu0 0.0
    %954 = vmatprep.subr.mxu0 0.0
    %955 = vmatpush1.msra.mxu0 0.0
    %956 = vmatprep.subr.mxu0 0.0
    %957 = vmatpush1.msra.mxu0 0.0
    %958 = vmatprep.subr.mxu0 0.0
    %959 = vmatpush1.msra.mxu0 %v97
    %960 = vmatprep.subr.mxu0 0.0
    %961 = vmatpush1.msra.mxu0 %v96
    %962 = vmatprep.subr.mxu0 0.0
    %963 = vmatpush1.msra.mxu0 %v95
    %964 = vmatprep.subr.mxu0 0.0
    %965 = vmatpush1.msra.mxu0 %v94
    %966 = vmatprep.subr.mxu0 0.0
    %967 = vmatpush2.msra.mxu0 0.0
    %968 = vmatprep.subr.mxu0 0.0
    %969 = vmatpush2.msra.mxu0 0.0
    %970 = vmatprep.subr.mxu0 0.0
    %971 = vmatpush2.msra.mxu0 0.0
    %972 = vmatprep.subr.mxu0 0.0
    %973 = vmatpush2.msra.mxu0 0.0
    %974 = vmatprep.subr.mxu0 0.0
    %975 = vmatpush2.msra.mxu0 0.0
    %976 = vmatprep.subr.mxu0 0.0
    %977 = vmatpush2.msra.mxu0 0.0
    %978 = vmatprep.subr.mxu0 0.0
    %979 = vmatpush2.msra.mxu0 0.0
    %980 = vmatprep.subr.mxu0 0.0
    %981 = vmatpush2.msra.mxu0 0.0
    %982 = vmatprep.subr.mxu0 0.0
    %983 = vmatpush2.msra.mxu0 0.0
    %984 = vmatprep.subr.mxu0 0.0
    %985 = vmatpush2.msra.mxu0 0.0
    %986 = vmatprep.subr.mxu0 0.0
    %987 = vmatpush2.msra.mxu0 0.0
    %988 = vmatprep.subr.mxu0 0.0
    %989 = vmatpush2.msra.mxu0 0.0
    %990 = vmatprep.subr.mxu0 0.0
    %991 = vmatpush2.msra.mxu0 0.0
    %992 = vmatprep.subr.mxu0 0.0
    %993 = vmatpush2.msra.mxu0 0.0
    %994 = vmatprep.subr.mxu0 0.0
    %995 = vmatpush2.msra.mxu0 0.0
    %996 = vmatprep.subr.mxu0 0.0
    %997 = vmatpush2.msra.mxu0 0.0
    %998 = vmatprep.mubr.f32.mxu0 0.0
    %999 = vmatmul.mubr.f32.gmra.mxu0 %v787
    %v1000 = vpop.f32.mrf.mxu0
    %v1001 = vadd.f32 0.0, %v1000
    %v1002 = vpop.f32.mrf.mxu0
    %1003 = vdwg.mxu0
    %1004 = vmatprep.subr.mxu0 0.0
    %1005 = vmatpush1.msra.mxu0 0.0
    %1006 = vmatprep.subr.mxu0 0.0
    %1007 = vmatpush1.msra.mxu0 0.0
    %1008 = vmatprep.subr.mxu0 0.0
    %1009 = vmatpush1.msra.mxu0 0.0
    %1010 = vmatprep.subr.mxu0 0.0
    %1011 = vmatpush1.msra.mxu0 0.0
    %1012 = vmatprep.subr.mxu0 0.0
    %1013 = vmatpush1.msra.mxu0 0.0
    %1014 = vmatprep.subr.mxu0 0.0
    %1015 = vmatpush1.msra.mxu0 0.0
    %1016 = vmatprep.subr.mxu0 0.0
    %1017 = vmatpush1.msra.mxu0 0.0
    %1018 = vmatprep.subr.mxu0 0.0
    %1019 = vmatpush1.msra.mxu0 0.0
    %1020 = vmatprep.subr.mxu0 0.0
    %1021 = vmatpush1.msra.mxu0 0.0
    %1022 = vmatprep.subr.mxu0 0.0
    %1023 = vmatpush1.msra.mxu0 0.0
    %1024 = vmatprep.subr.mxu0 0.0
    %1025 = vmatpush1.msra.mxu0 0.0
    %1026 = vmatprep.subr.mxu0 0.0
    %1027 = vmatpush1.msra.mxu0 0.0
    %1028 = vmatprep.subr.mxu0 0.0
    %1029 = vmatpush1.msra.mxu0 0.0
    %1030 = vmatprep.subr.mxu0 0.0
    %1031 = vmatpush1.msra.mxu0 0.0
    %1032 = vmatprep.subr.mxu0 0.0
    %1033 = vmatpush1.msra.mxu0 0.0
    %1034 = vmatprep.subr.mxu0 0.0
    %1035 = vmatpush1.msra.mxu0 %v84
    %1036 = vmatprep.subr.mxu0 0.0
    %1037 = vmatpush2.msra.mxu0 0.0
    %1038 = vmatprep.subr.mxu0 0.0
    %1039 = vmatpush2.msra.mxu0 0.0
    %1040 = vmatprep.subr.mxu0 0.0
    %1041 = vmatpush2.msra.mxu0 0.0
    %1042 = vmatprep.subr.mxu0 0.0
    %1043 = vmatpush2.msra.mxu0 0.0
    %1044 = vmatprep.subr.mxu0 0.0
    %1045 = vmatpush2.msra.mxu0 0.0
    %1046 = vmatprep.subr.mxu0 0.0
    %1047 = vmatpush2.msra.mxu0 0.0
    %1048 = vmatprep.subr.mxu0 0.0
    %1049 = vmatpush2.msra.mxu0 0.0
    %1050 = vmatprep.subr.mxu0 0.0
    %1051 = vmatpush2.msra.mxu0 0.0
    %1052 = vmatprep.subr.mxu0 0.0
    %1053 = vmatpush2.msra.mxu0 0.0
    %1054 = vmatprep.subr.mxu0 0.0
    %1055 = vmatpush2.msra.mxu0 0.0
    %1056 = vmatprep.subr.mxu0 0.0
    %1057 = vmatpush2.msra.mxu0 0.0
    %1058 = vmatprep.subr.mxu0 0.0
    %1059 = vmatpush2.msra.mxu0 0.0
    %1060 = vmatprep.subr.mxu0 0.0
    %1061 = vmatpush2.msra.mxu0 0.0
    %1062 = vmatprep.subr.mxu0 0.0
    %1063 = vmatpush2.msra.mxu0 0.0
    %1064 = vmatprep.subr.mxu0 0.0
    %1065 = vmatpush2.msra.mxu0 0.0
    %1066 = vmatprep.subr.mxu0 0.0
    %1067 = vmatpush2.msra.mxu0 0.0
    %1068 = vmatprep.mubr.f32.mxu0 0.0
    %1069 = vmatmul.mubr.f32.gmra.mxu0 %v861
    %v1070 = vpop.f32.mrf.mxu0
    %v1071 = vadd.f32 %v1001, %v1070
    %v1072 = vpop.f32.mrf.mxu0
    %1073 = vdwg.mxu0
    %v1074 = vadd.f32 %v1071, %v465
    %1075 = vmatprep.subr.mxu0 0.0
    %1076 = vmatpush1.msra.mxu0 0.0
    %1077 = vmatprep.subr.mxu0 0.0
    %1078 = vmatpush1.msra.mxu0 0.0
    %1079 = vmatprep.subr.mxu0 0.0
    %1080 = vmatpush1.msra.mxu0 0.0
    %1081 = vmatprep.subr.mxu0 0.0
    %1082 = vmatpush1.msra.mxu0 0.0
    %1083 = vmatprep.subr.mxu0 0.0
    %1084 = vmatpush1.msra.mxu0 0.0
    %1085 = vmatprep.subr.mxu0 0.0
    %1086 = vmatpush1.msra.mxu0 0.0
    %1087 = vmatprep.subr.mxu0 0.0
    %1088 = vmatpush1.msra.mxu0 0.0
    %1089 = vmatprep.subr.mxu0 0.0
    %1090 = vmatpush1.msra.mxu0 0.0
    %1091 = vmatprep.subr.mxu0 0.0
    %1092 = vmatpush1.msra.mxu0 0.0
    %1093 = vmatprep.subr.mxu0 0.0
    %1094 = vmatpush1.msra.mxu0 0.0
    %1095 = vmatprep.subr.mxu0 0.0
    %1096 = vmatpush1.msra.mxu0 0.0
    %1097 = vmatprep.subr.mxu0 0.0
    %1098 = vmatpush1.msra.mxu0 0.0
    %1099 = vmatprep.subr.mxu0 0.0
    %1100 = vmatpush1.msra.mxu0 %v102
    %1101 = vmatprep.subr.mxu0 0.0
    %1102 = vmatpush1.msra.mxu0 %v101
    %1103 = vmatprep.subr.mxu0 0.0
    %1104 = vmatpush1.msra.mxu0 %v100
    %1105 = vmatprep.subr.mxu0 0.0
    %1106 = vmatpush1.msra.mxu0 %v99
    %1107 = vmatprep.subr.mxu0 0.0
    %1108 = vmatpush2.msra.mxu0 0.0
    %1109 = vmatprep.subr.mxu0 0.0
    %1110 = vmatpush2.msra.mxu0 0.0
    %1111 = vmatprep.subr.mxu0 0.0
    %1112 = vmatpush2.msra.mxu0 0.0
    %1113 = vmatprep.subr.mxu0 0.0
    %1114 = vmatpush2.msra.mxu0 0.0
    %1115 = vmatprep.subr.mxu0 0.0
    %1116 = vmatpush2.msra.mxu0 0.0
    %1117 = vmatprep.subr.mxu0 0.0
    %1118 = vmatpush2.msra.mxu0 0.0
    %1119 = vmatprep.subr.mxu0 0.0
    %1120 = vmatpush2.msra.mxu0 0.0
    %1121 = vmatprep.subr.mxu0 0.0
    %1122 = vmatpush2.msra.mxu0 0.0
    %1123 = vmatprep.subr.mxu0 0.0
    %1124 = vmatpush2.msra.mxu0 0.0
    %1125 = vmatprep.subr.mxu0 0.0
    %1126 = vmatpush2.msra.mxu0 0.0
    %1127 = vmatprep.subr.mxu0 0.0
    %1128 = vmatpush2.msra.mxu0 0.0
    %1129 = vmatprep.subr.mxu0 0.0
    %1130 = vmatpush2.msra.mxu0 0.0
    %1131 = vmatprep.subr.mxu0 0.0
    %1132 = vmatpush2.msra.mxu0 0.0
    %1133 = vmatprep.subr.mxu0 0.0
    %1134 = vmatpush2.msra.mxu0 0.0
    %1135 = vmatprep.subr.mxu0 0.0
    %1136 = vmatpush2.msra.mxu0 0.0
    %1137 = vmatprep.subr.mxu0 0.0
    %1138 = vmatpush2.msra.mxu0 0.0
    %1139 = vmatprep.mubr.f32.mxu0 0.0
    %1140 = vmatmul.mubr.f32.gmra.mxu0 %v787
    %v1141 = vpop.f32.mrf.mxu0
    %v1142 = vadd.f32 0.0, %v1141
    %v1143 = vpop.f32.mrf.mxu0
    %1144 = vdwg.mxu0
    %1145 = vmatprep.subr.mxu0 0.0
    %1146 = vmatpush1.msra.mxu0 0.0
    %1147 = vmatprep.subr.mxu0 0.0
    %1148 = vmatpush1.msra.mxu0 0.0
    %1149 = vmatprep.subr.mxu0 0.0
    %1150 = vmatpush1.msra.mxu0 0.0
    %1151 = vmatprep.subr.mxu0 0.0
    %1152 = vmatpush1.msra.mxu0 0.0
    %1153 = vmatprep.subr.mxu0 0.0
    %1154 = vmatpush1.msra.mxu0 0.0
    %1155 = vmatprep.subr.mxu0 0.0
    %1156 = vmatpush1.msra.mxu0 0.0
    %1157 = vmatprep.subr.mxu0 0.0
    %1158 = vmatpush1.msra.mxu0 0.0
    %1159 = vmatprep.subr.mxu0 0.0
    %1160 = vmatpush1.msra.mxu0 0.0
    %1161 = vmatprep.subr.mxu0 0.0
    %1162 = vmatpush1.msra.mxu0 0.0
    %1163 = vmatprep.subr.mxu0 0.0
    %1164 = vmatpush1.msra.mxu0 0.0
    %1165 = vmatprep.subr.mxu0 0.0
    %1166 = vmatpush1.msra.mxu0 0.0
    %1167 = vmatprep.subr.mxu0 0.0
    %1168 = vmatpush1.msra.mxu0 0.0
    %1169 = vmatprep.subr.mxu0 0.0
    %1170 = vmatpush1.msra.mxu0 0.0
    %1171 = vmatprep.subr.mxu0 0.0
    %1172 = vmatpush1.msra.mxu0 0.0
    %1173 = vmatprep.subr.mxu0 0.0
    %1174 = vmatpush1.msra.mxu0 0.0
    %1175 = vmatprep.subr.mxu0 0.0
    %1176 = vmatpush1.msra.mxu0 %v86
    %1177 = vmatprep.subr.mxu0 0.0
    %1178 = vmatpush2.msra.mxu0 0.0
    %1179 = vmatprep.subr.mxu0 0.0
    %1180 = vmatpush2.msra.mxu0 0.0
    %1181 = vmatprep.subr.mxu0 0.0
    %1182 = vmatpush2.msra.mxu0 0.0
    %1183 = vmatprep.subr.mxu0 0.0
    %1184 = vmatpush2.msra.mxu0 0.0
    %1185 = vmatprep.subr.mxu0 0.0
    %1186 = vmatpush2.msra.mxu0 0.0
    %1187 = vmatprep.subr.mxu0 0.0
    %1188 = vmatpush2.msra.mxu0 0.0
    %1189 = vmatprep.subr.mxu0 0.0
    %1190 = vmatpush2.msra.mxu0 0.0
    %1191 = vmatprep.subr.mxu0 0.0
    %1192 = vmatpush2.msra.mxu0 0.0
    %1193 = vmatprep.subr.mxu0 0.0
    %1194 = vmatpush2.msra.mxu0 0.0
    %1195 = vmatprep.subr.mxu0 0.0
    %1196 = vmatpush2.msra.mxu0 0.0
    %1197 = vmatprep.subr.mxu0 0.0
    %1198 = vmatpush2.msra.mxu0 0.0
    %1199 = vmatprep.subr.mxu0 0.0
    %1200 = vmatpush2.msra.mxu0 0.0
    %1201 = vmatprep.subr.mxu0 0.0
    %1202 = vmatpush2.msra.mxu0 0.0
    %1203 = vmatprep.subr.mxu0 0.0
    %1204 = vmatpush2.msra.mxu0 0.0
    %1205 = vmatprep.subr.mxu0 0.0
    %1206 = vmatpush2.msra.mxu0 0.0
    %1207 = vmatprep.subr.mxu0 0.0
    %1208 = vmatpush2.msra.mxu0 0.0
    %1209 = vmatprep.mubr.f32.mxu0 0.0
    %1210 = vmatmul.mubr.f32.gmra.mxu0 %v861
    %v1211 = vpop.f32.mrf.mxu0
    %v1212 = vadd.f32 %v1142, %v1211
    %v1213 = vpop.f32.mrf.mxu0
    %1214 = vdwg.mxu0
    %v1215 = vadd.f32 %v1212, %v612
    %1216 = vmatprep.subr.mxu0 0.0
    %1217 = vmatpush1.msra.mxu0 0.0
    %1218 = vmatprep.subr.mxu0 0.0
    %1219 = vmatpush1.msra.mxu0 0.0
    %1220 = vmatprep.subr.mxu0 0.0
    %1221 = vmatpush1.msra.mxu0 0.0
    %1222 = vmatprep.subr.mxu0 0.0
    %1223 = vmatpush1.msra.mxu0 0.0
    %1224 = vmatprep.subr.mxu0 0.0
    %1225 = vmatpush1.msra.mxu0 0.0
    %1226 = vmatprep.subr.mxu0 0.0
    %1227 = vmatpush1.msra.mxu0 0.0
    %1228 = vmatprep.subr.mxu0 0.0
    %1229 = vmatpush1.msra.mxu0 0.0
    %1230 = vmatprep.subr.mxu0 0.0
    %1231 = vmatpush1.msra.mxu0 0.0
    %1232 = vmatprep.subr.mxu0 0.0
    %1233 = vmatpush1.msra.mxu0 0.0
    %1234 = vmatprep.subr.mxu0 0.0
    %1235 = vmatpush1.msra.mxu0 0.0
    %1236 = vmatprep.subr.mxu0 0.0
    %1237 = vmatpush1.msra.mxu0 0.0
    %1238 = vmatprep.subr.mxu0 0.0
    %1239 = vmatpush1.msra.mxu0 0.0
    %1240 = vmatprep.subr.mxu0 0.0
    %1241 = vmatpush1.msra.mxu0 %v107
    %1242 = vmatprep.subr.mxu0 0.0
    %1243 = vmatpush1.msra.mxu0 %v106
    %1244 = vmatprep.subr.mxu0 0.0
    %1245 = vmatpush1.msra.mxu0 %v105
    %1246 = vmatprep.subr.mxu0 0.0
    %1247 = vmatpush1.msra.mxu0 %v104
    %1248 = vmatprep.subr.mxu0 0.0
    %1249 = vmatpush2.msra.mxu0 0.0
    %1250 = vmatprep.subr.mxu0 0.0
    %1251 = vmatpush2.msra.mxu0 0.0
    %1252 = vmatprep.subr.mxu0 0.0
    %1253 = vmatpush2.msra.mxu0 0.0
    %1254 = vmatprep.subr.mxu0 0.0
    %1255 = vmatpush2.msra.mxu0 0.0
    %1256 = vmatprep.subr.mxu0 0.0
    %1257 = vmatpush2.msra.mxu0 0.0
    %1258 = vmatprep.subr.mxu0 0.0
    %1259 = vmatpush2.msra.mxu0 0.0
    %1260 = vmatprep.subr.mxu0 0.0
    %1261 = vmatpush2.msra.mxu0 0.0
    %1262 = vmatprep.subr.mxu0 0.0
    %1263 = vmatpush2.msra.mxu0 0.0
    %1264 = vmatprep.subr.mxu0 0.0
    %1265 = vmatpush2.msra.mxu0 0.0
    %1266 = vmatprep.subr.mxu0 0.0
    %1267 = vmatpush2.msra.mxu0 0.0
    %1268 = vmatprep.subr.mxu0 0.0
    %1269 = vmatpush2.msra.mxu0 0.0
    %1270 = vmatprep.subr.mxu0 0.0
    %1271 = vmatpush2.msra.mxu0 0.0
    %1272 = vmatprep.subr.mxu0 0.0
    %1273 = vmatpush2.msra.mxu0 0.0
    %1274 = vmatprep.subr.mxu0 0.0
    %1275 = vmatpush2.msra.mxu0 0.0
    %1276 = vmatprep.subr.mxu0 0.0
    %1277 = vmatpush2.msra.mxu0 0.0
    %1278 = vmatprep.subr.mxu0 0.0
    %1279 = vmatpush2.msra.mxu0 0.0
    %1280 = vmatprep.mubr.f32.mxu0 0.0
    %1281 = vmatmul.mubr.f32.gmra.mxu0 %v787
    %v1282 = vpop.f32.mrf.mxu0
    %v1283 = vadd.f32 0.0, %v1282
    %v1284 = vpop.f32.mrf.mxu0
    %1285 = vdwg.mxu0
    %1286 = vmatprep.subr.mxu0 0.0
    %1287 = vmatpush1.msra.mxu0 0.0
    %1288 = vmatprep.subr.mxu0 0.0
    %1289 = vmatpush1.msra.mxu0 0.0
    %1290 = vmatprep.subr.mxu0 0.0
    %1291 = vmatpush1.msra.mxu0 0.0
    %1292 = vmatprep.subr.mxu0 0.0
    %1293 = vmatpush1.msra.mxu0 0.0
    %1294 = vmatprep.subr.mxu0 0.0
    %1295 = vmatpush1.msra.mxu0 0.0
    %1296 = vmatprep.subr.mxu0 0.0
    %1297 = vmatpush1.msra.mxu0 0.0
    %1298 = vmatprep.subr.mxu0 0.0
    %1299 = vmatpush1.msra.mxu0 0.0
    %1300 = vmatprep.subr.mxu0 0.0
    %1301 = vmatpush1.msra.mxu0 0.0
    %1302 = vmatprep.subr.mxu0 0.0
    %1303 = vmatpush1.msra.mxu0 0.0
    %1304 = vmatprep.subr.mxu0 0.0
    %1305 = vmatpush1.msra.mxu0 0.0
    %1306 = vmatprep.subr.mxu0 0.0
    %1307 = vmatpush1.msra.mxu0 0.0
    %1308 = vmatprep.subr.mxu0 0.0
    %1309 = vmatpush1.msra.mxu0 0.0
    %1310 = vmatprep.subr.mxu0 0.0
    %1311 = vmatpush1.msra.mxu0 0.0
    %1312 = vmatprep.subr.mxu0 0.0
    %1313 = vmatpush1.msra.mxu0 0.0
    %1314 = vmatprep.subr.mxu0 0.0
    %1315 = vmatpush1.msra.mxu0 0.0
    %1316 = vmatprep.subr.mxu0 0.0
    %1317 = vmatpush1.msra.mxu0 %v88
    %1318 = vmatprep.subr.mxu0 0.0
    %1319 = vmatpush2.msra.mxu0 0.0
    %1320 = vmatprep.subr.mxu0 0.0
    %1321 = vmatpush2.msra.mxu0 0.0
    %1322 = vmatprep.subr.mxu0 0.0
    %1323 = vmatpush2.msra.mxu0 0.0
    %1324 = vmatprep.subr.mxu0 0.0
    %1325 = vmatpush2.msra.mxu0 0.0
    %1326 = vmatprep.subr.mxu0 0.0
    %1327 = vmatpush2.msra.mxu0 0.0
    %1328 = vmatprep.subr.mxu0 0.0
    %1329 = vmatpush2.msra.mxu0 0.0
    %1330 = vmatprep.subr.mxu0 0.0
    %1331 = vmatpush2.msra.mxu0 0.0
    %1332 = vmatprep.subr.mxu0 0.0
    %1333 = vmatpush2.msra.mxu0 0.0
    %1334 = vmatprep.subr.mxu0 0.0
    %1335 = vmatpush2.msra.mxu0 0.0
    %1336 = vmatprep.subr.mxu0 0.0
    %1337 = vmatpush2.msra.mxu0 0.0
    %1338 = vmatprep.subr.mxu0 0.0
    %1339 = vmatpush2.msra.mxu0 0.0
    %1340 = vmatprep.subr.mxu0 0.0
    %1341 = vmatpush2.msra.mxu0 0.0
    %1342 = vmatprep.subr.mxu0 0.0
    %1343 = vmatpush2.msra.mxu0 0.0
    %1344 = vmatprep.subr.mxu0 0.0
    %1345 = vmatpush2.msra.mxu0 0.0
    %1346 = vmatprep.subr.mxu0 0.0
    %1347 = vmatpush2.msra.mxu0 0.0
    %1348 = vmatprep.subr.mxu0 0.0
    %1349 = vmatpush2.msra.mxu0 0.0
    %1350 = vmatprep.mubr.f32.mxu0 0.0
    %1351 = vmatmul.mubr.f32.gmra.mxu0 %v861
    %v1352 = vpop.f32.mrf.mxu0
    %v1353 = vadd.f32 %v1283, %v1352
    %v1354 = vpop.f32.mrf.mxu0
    %1355 = vdwg.mxu0
    %v1356 = vadd.f32 %v1353, %v759
    %v1357 = vxor.u32 %v933, 2147483648
    %v1358 = vmul.f32 %v1357, 1.442695
    %v1359 = vpow.pop %v1358
    %v1360 = vadd.f32 %v1359, 1.0
    %v1361 = vrcp.pop %v1360
    %v1362 = vmul.f32 1.0, %v1361
    %v1363 = vxor.u32 %v1074, 2147483648
    %v1364 = vmul.f32 %v1363, 1.442695
    %v1365 = vpow.pop %v1364
    %v1366 = vadd.f32 %v1365, 1.0
    %v1367 = vrcp.pop %v1366
    %v1368 = vmul.f32 1.0, %v1367
    %v1369 = vtanh.pop %v1215
    %v1370 = vxor.u32 %v1356, 2147483648
    %v1371 = vmul.f32 %v1370, 1.442695
    %v1372 = vpow.pop %v1371
    %v1373 = vadd.f32 %v1372, 1.0
    %v1374 = vrcp.pop %v1373
    %v1375 = vmul.f32 1.0, %v1374
    %v1376 = vmul.f32 %v1368, %v783
    %v1377 = vmul.f32 %v1362, %v1369
    %v1378 = vadd.f32 %v1376, %v1377
    %v1379 = vtanh.pop %v1378
    %v1380 = vmul.f32 %v1375, %v1379
    %1381 = vmatprep.subr.mxu0 0.0
    %1382 = vmatpush1.msra.mxu0 0.0
    %1383 = vmatprep.subr.mxu0 0.0
    %1384 = vmatpush1.msra.mxu0 0.0
    %1385 = vmatprep.subr.mxu0 0.0
    %1386 = vmatpush1.msra.mxu0 0.0
    %1387 = vmatprep.subr.mxu0 0.0
    %1388 = vmatpush1.msra.mxu0 0.0
    %1389 = vmatprep.subr.mxu0 0.0
    %1390 = vmatpush1.msra.mxu0 0.0
    %1391 = vmatprep.subr.mxu0 0.0
    %1392 = vmatpush1.msra.mxu0 0.0
    %1393 = vmatprep.subr.mxu0 0.0
    %1394 = vmatpush1.msra.mxu0 0.0
    %1395 = vmatprep.subr.mxu0 0.0
    %1396 = vmatpush1.msra.mxu0 0.0
    %1397 = vmatprep.subr.mxu0 0.0
    %1398 = vmatpush1.msra.mxu0 0.0
    %1399 = vmatprep.subr.mxu0 0.0
    %1400 = vmatpush1.msra.mxu0 0.0
    %1401 = vmatprep.subr.mxu0 0.0
    %1402 = vmatpush1.msra.mxu0 0.0
    %1403 = vmatprep.subr.mxu0 0.0
    %1404 = vmatpush1.msra.mxu0 0.0
    %1405 = vmatprep.subr.mxu0 0.0
    %1406 = vmatpush1.msra.mxu0 %v137
    %1407 = vmatprep.subr.mxu0 0.0
    %1408 = vmatpush1.msra.mxu0 %v136
    %1409 = vmatprep.subr.mxu0 0.0
    %1410 = vmatpush1.msra.mxu0 %v135
    %1411 = vmatprep.subr.mxu0 0.0
    %1412 = vmatpush1.msra.mxu0 %v134
    %1413 = vmatprep.subr.mxu0 0.0
    %1414 = vmatpush2.msra.mxu0 0.0
    %1415 = vmatprep.subr.mxu0 0.0
    %1416 = vmatpush2.msra.mxu0 0.0
    %1417 = vmatprep.subr.mxu0 0.0
    %1418 = vmatpush2.msra.mxu0 0.0
    %1419 = vmatprep.subr.mxu0 0.0
    %1420 = vmatpush2.msra.mxu0 0.0
    %1421 = vmatprep.subr.mxu0 0.0
    %1422 = vmatpush2.msra.mxu0 0.0
    %1423 = vmatprep.subr.mxu0 0.0
    %1424 = vmatpush2.msra.mxu0 0.0
    %1425 = vmatprep.subr.mxu0 0.0
    %1426 = vmatpush2.msra.mxu0 0.0
    %1427 = vmatprep.subr.mxu0 0.0
    %1428 = vmatpush2.msra.mxu0 0.0
    %1429 = vmatprep.subr.mxu0 0.0
    %1430 = vmatpush2.msra.mxu0 0.0
    %1431 = vmatprep.subr.mxu0 0.0
    %1432 = vmatpush2.msra.mxu0 0.0
    %1433 = vmatprep.subr.mxu0 0.0
    %1434 = vmatpush2.msra.mxu0 0.0
    %1435 = vmatprep.subr.mxu0 0.0
    %1436 = vmatpush2.msra.mxu0 0.0
    %1437 = vmatprep.subr.mxu0 0.0
    %1438 = vmatpush2.msra.mxu0 0.0
    %1439 = vmatprep.subr.mxu0 0.0
    %1440 = vmatpush2.msra.mxu0 0.0
    %1441 = vmatprep.subr.mxu0 0.0
    %1442 = vmatpush2.msra.mxu0 0.0
    %1443 = vmatprep.subr.mxu0 0.0
    %1444 = vmatpush2.msra.mxu0 0.0
    %1445 = vmatprep.mubr.f32.mxu0 0.0
    %1446 = vmatmul.mubr.f32.gmra.mxu0 %v168
    %v1447 = vpop.f32.mrf.mxu0
    %v1448 = vadd.f32 0.0, %v1447
    %v1449 = vpop.f32.mrf.mxu0
    %1450 = vdwg.mxu0
    %1451 = vmatprep.subr.mxu0 0.0
    %1452 = vmatpush1.msra.mxu0 0.0
    %1453 = vmatprep.subr.mxu0 0.0
    %1454 = vmatpush1.msra.mxu0 0.0
    %1455 = vmatprep.subr.mxu0 0.0
    %1456 = vmatpush1.msra.mxu0 0.0
    %1457 = vmatprep.subr.mxu0 0.0
    %1458 = vmatpush1.msra.mxu0 0.0
    %1459 = vmatprep.subr.mxu0 0.0
    %1460 = vmatpush1.msra.mxu0 0.0
    %1461 = vmatprep.subr.mxu0 0.0
    %1462 = vmatpush1.msra.mxu0 0.0
    %1463 = vmatprep.subr.mxu0 0.0
    %1464 = vmatpush1.msra.mxu0 0.0
    %1465 = vmatprep.subr.mxu0 0.0
    %1466 = vmatpush1.msra.mxu0 0.0
    %1467 = vmatprep.subr.mxu0 0.0
    %1468 = vmatpush1.msra.mxu0 0.0
    %1469 = vmatprep.subr.mxu0 0.0
    %1470 = vmatpush1.msra.mxu0 0.0
    %1471 = vmatprep.subr.mxu0 0.0
    %1472 = vmatpush1.msra.mxu0 0.0
    %1473 = vmatprep.subr.mxu0 0.0
    %1474 = vmatpush1.msra.mxu0 0.0
    %1475 = vmatprep.subr.mxu0 0.0
    %1476 = vmatpush1.msra.mxu0 %v118
    %1477 = vmatprep.subr.mxu0 0.0
    %1478 = vmatpush1.msra.mxu0 %v117
    %1479 = vmatprep.subr.mxu0 0.0
    %1480 = vmatpush1.msra.mxu0 %v116
    %1481 = vmatprep.subr.mxu0 0.0
    %1482 = vmatpush1.msra.mxu0 %v115
    %1483 = vmatprep.subr.mxu0 0.0
    %1484 = vmatpush2.msra.mxu0 0.0
    %1485 = vmatprep.subr.mxu0 0.0
    %1486 = vmatpush2.msra.mxu0 0.0
    %1487 = vmatprep.subr.mxu0 0.0
    %1488 = vmatpush2.msra.mxu0 0.0
    %1489 = vmatprep.subr.mxu0 0.0
    %1490 = vmatpush2.msra.mxu0 0.0
    %1491 = vmatprep.subr.mxu0 0.0
    %1492 = vmatpush2.msra.mxu0 0.0
    %1493 = vmatprep.subr.mxu0 0.0
    %1494 = vmatpush2.msra.mxu0 0.0
    %1495 = vmatprep.subr.mxu0 0.0
    %1496 = vmatpush2.msra.mxu0 0.0
    %1497 = vmatprep.subr.mxu0 0.0
    %1498 = vmatpush2.msra.mxu0 0.0
    %1499 = vmatprep.subr.mxu0 0.0
    %1500 = vmatpush2.msra.mxu0 0.0
    %1501 = vmatprep.subr.mxu0 0.0
    %1502 = vmatpush2.msra.mxu0 0.0
    %1503 = vmatprep.subr.mxu0 0.0
    %1504 = vmatpush2.msra.mxu0 0.0
    %1505 = vmatprep.subr.mxu0 0.0
    %1506 = vmatpush2.msra.mxu0 0.0
    %1507 = vmatprep.subr.mxu0 0.0
    %1508 = vmatpush2.msra.mxu0 0.0
    %1509 = vmatprep.subr.mxu0 0.0
    %1510 = vmatpush2.msra.mxu0 0.0
    %1511 = vmatprep.subr.mxu0 0.0
    %1512 = vmatpush2.msra.mxu0 0.0
    %1513 = vmatprep.subr.mxu0 0.0
    %1514 = vmatpush2.msra.mxu0 0.0
    %1515 = vmatprep.mubr.f32.mxu0 0.0
    %1516 = vmatmul.mubr.f32.gmra.mxu0 %v787
    %v1517 = vpop.f32.mrf.mxu0
    %v1518 = vadd.f32 %v1448, %v1517
    %v1519 = vpop.f32.mrf.mxu0
    %1520 = vdwg.mxu0
    %v1522 = vlaneseq
    %v1523 = vshrl.u32 %v1522, 7
    %v1524 = vsub.s32 0, %v1523
    %v1525 = vrot.slane %v153, %v1524
    %v1527 = vadd.f32 %v1518, %v1525
    %1528 = vmatprep.subr.mxu0 0.0
    %1529 = vmatpush1.msra.mxu0 0.0
    %1530 = vmatprep.subr.mxu0 0.0
    %1531 = vmatpush1.msra.mxu0 0.0
    %1532 = vmatprep.subr.mxu0 0.0
    %1533 = vmatpush1.msra.mxu0 0.0
    %1534 = vmatprep.subr.mxu0 0.0
    %1535 = vmatpush1.msra.mxu0 0.0
    %1536 = vmatprep.subr.mxu0 0.0
    %1537 = vmatpush1.msra.mxu0 0.0
    %1538 = vmatprep.subr.mxu0 0.0
    %1539 = vmatpush1.msra.mxu0 0.0
    %1540 = vmatprep.subr.mxu0 0.0
    %1541 = vmatpush1.msra.mxu0 0.0
    %1542 = vmatprep.subr.mxu0 0.0
    %1543 = vmatpush1.msra.mxu0 0.0
    %1544 = vmatprep.subr.mxu0 0.0
    %1545 = vmatpush1.msra.mxu0 0.0
    %1546 = vmatprep.subr.mxu0 0.0
    %1547 = vmatpush1.msra.mxu0 0.0
    %1548 = vmatprep.subr.mxu0 0.0
    %1549 = vmatpush1.msra.mxu0 0.0
    %1550 = vmatprep.subr.mxu0 0.0
    %1551 = vmatpush1.msra.mxu0 0.0
    %1552 = vmatprep.subr.mxu0 0.0
    %1553 = vmatpush1.msra.mxu0 %v142
    %1554 = vmatprep.subr.mxu0 0.0
    %1555 = vmatpush1.msra.mxu0 %v141
    %1556 = vmatprep.subr.mxu0 0.0
    %1557 = vmatpush1.msra.mxu0 %v140
    %1558 = vmatprep.subr.mxu0 0.0
    %1559 = vmatpush1.msra.mxu0 %v139
    %1560 = vmatprep.subr.mxu0 0.0
    %1561 = vmatpush2.msra.mxu0 0.0
    %1562 = vmatprep.subr.mxu0 0.0
    %1563 = vmatpush2.msra.mxu0 0.0
    %1564 = vmatprep.subr.mxu0 0.0
    %1565 = vmatpush2.msra.mxu0 0.0
    %1566 = vmatprep.subr.mxu0 0.0
    %1567 = vmatpush2.msra.mxu0 0.0
    %1568 = vmatprep.subr.mxu0 0.0
    %1569 = vmatpush2.msra.mxu0 0.0
    %1570 = vmatprep.subr.mxu0 0.0
    %1571 = vmatpush2.msra.mxu0 0.0
    %1572 = vmatprep.subr.mxu0 0.0
    %1573 = vmatpush2.msra.mxu0 0.0
    %1574 = vmatprep.subr.mxu0 0.0
    %1575 = vmatpush2.msra.mxu0 0.0
    %1576 = vmatprep.subr.mxu0 0.0
    %1577 = vmatpush2.msra.mxu0 0.0
    %1578 = vmatprep.subr.mxu0 0.0
    %1579 = vmatpush2.msra.mxu0 0.0
    %1580 = vmatprep.subr.mxu0 0.0
    %1581 = vmatpush2.msra.mxu0 0.0
    %1582 = vmatprep.subr.mxu0 0.0
    %1583 = vmatpush2.msra.mxu0 0.0
    %1584 = vmatprep.subr.mxu0 0.0
    %1585 = vmatpush2.msra.mxu0 0.0
    %1586 = vmatprep.subr.mxu0 0.0
    %1587 = vmatpush2.msra.mxu0 0.0
    %1588 = vmatprep.subr.mxu0 0.0
    %1589 = vmatpush2.msra.mxu0 0.0
    %1590 = vmatprep.subr.mxu0 0.0
    %1591 = vmatpush2.msra.mxu0 0.0
    %1592 = vmatprep.mubr.f32.mxu0 0.0
    %1593 = vmatmul.mubr.f32.gmra.mxu0 %v168
    %v1594 = vpop.f32.mrf.mxu0
    %v1595 = vadd.f32 0.0, %v1594
    %v1596 = vpop.f32.mrf.mxu0
    %1597 = vdwg.mxu0
    %1598 = vmatprep.subr.mxu0 0.0
    %1599 = vmatpush1.msra.mxu0 0.0
    %1600 = vmatprep.subr.mxu0 0.0
    %1601 = vmatpush1.msra.mxu0 0.0
    %1602 = vmatprep.subr.mxu0 0.0
    %1603 = vmatpush1.msra.mxu0 0.0
    %1604 = vmatprep.subr.mxu0 0.0
    %1605 = vmatpush1.msra.mxu0 0.0
    %1606 = vmatprep.subr.mxu0 0.0
    %1607 = vmatpush1.msra.mxu0 0.0
    %1608 = vmatprep.subr.mxu0 0.0
    %1609 = vmatpush1.msra.mxu0 0.0
    %1610 = vmatprep.subr.mxu0 0.0
    %1611 = vmatpush1.msra.mxu0 0.0
    %1612 = vmatprep.subr.mxu0 0.0
    %1613 = vmatpush1.msra.mxu0 0.0
    %1614 = vmatprep.subr.mxu0 0.0
    %1615 = vmatpush1.msra.mxu0 0.0
    %1616 = vmatprep.subr.mxu0 0.0
    %1617 = vmatpush1.msra.mxu0 0.0
    %1618 = vmatprep.subr.mxu0 0.0
    %1619 = vmatpush1.msra.mxu0 0.0
    %1620 = vmatprep.subr.mxu0 0.0
    %1621 = vmatpush1.msra.mxu0 0.0
    %1622 = vmatprep.subr.mxu0 0.0
    %1623 = vmatpush1.msra.mxu0 %v123
    %1624 = vmatprep.subr.mxu0 0.0
    %1625 = vmatpush1.msra.mxu0 %v122
    %1626 = vmatprep.subr.mxu0 0.0
    %1627 = vmatpush1.msra.mxu0 %v121
    %1628 = vmatprep.subr.mxu0 0.0
    %1629 = vmatpush1.msra.mxu0 %v120
    %1630 = vmatprep.subr.mxu0 0.0
    %1631 = vmatpush2.msra.mxu0 0.0
    %1632 = vmatprep.subr.mxu0 0.0
    %1633 = vmatpush2.msra.mxu0 0.0
    %1634 = vmatprep.subr.mxu0 0.0
    %1635 = vmatpush2.msra.mxu0 0.0
    %1636 = vmatprep.subr.mxu0 0.0
    %1637 = vmatpush2.msra.mxu0 0.0
    %1638 = vmatprep.subr.mxu0 0.0
    %1639 = vmatpush2.msra.mxu0 0.0
    %1640 = vmatprep.subr.mxu0 0.0
    %1641 = vmatpush2.msra.mxu0 0.0
    %1642 = vmatprep.subr.mxu0 0.0
    %1643 = vmatpush2.msra.mxu0 0.0
    %1644 = vmatprep.subr.mxu0 0.0
    %1645 = vmatpush2.msra.mxu0 0.0
    %1646 = vmatprep.subr.mxu0 0.0
    %1647 = vmatpush2.msra.mxu0 0.0
    %1648 = vmatprep.subr.mxu0 0.0
    %1649 = vmatpush2.msra.mxu0 0.0
    %1650 = vmatprep.subr.mxu0 0.0
    %1651 = vmatpush2.msra.mxu0 0.0
    %1652 = vmatprep.subr.mxu0 0.0
    %1653 = vmatpush2.msra.mxu0 0.0
    %1654 = vmatprep.subr.mxu0 0.0
    %1655 = vmatpush2.msra.mxu0 0.0
    %1656 = vmatprep.subr.mxu0 0.0
    %1657 = vmatpush2.msra.mxu0 0.0
    %1658 = vmatprep.subr.mxu0 0.0
    %1659 = vmatpush2.msra.mxu0 0.0
    %1660 = vmatprep.subr.mxu0 0.0
    %1661 = vmatpush2.msra.mxu0 0.0
    %1662 = vmatprep.mubr.f32.mxu0 0.0
    %1663 = vmatmul.mubr.f32.gmra.mxu0 %v787
    %v1664 = vpop.f32.mrf.mxu0
    %v1665 = vadd.f32 %v1595, %v1664
    %v1666 = vpop.f32.mrf.mxu0
    %1667 = vdwg.mxu0
    %v1669 = vlaneseq
    %v1670 = vshrl.u32 %v1669, 7
    %v1671 = vsub.s32 0, %v1670
    %v1672 = vrot.slane %v155, %v1671
    %v1674 = vadd.f32 %v1665, %v1672
    %1675 = vmatprep.subr.mxu0 0.0
    %1676 = vmatpush1.msra.mxu0 0.0
    %1677 = vmatprep.subr.mxu0 0.0
    %1678 = vmatpush1.msra.mxu0 0.0
    %1679 = vmatprep.subr.mxu0 0.0
    %1680 = vmatpush1.msra.mxu0 0.0
    %1681 = vmatprep.subr.mxu0 0.0
    %1682 = vmatpush1.msra.mxu0 0.0
    %1683 = vmatprep.subr.mxu0 0.0
    %1684 = vmatpush1.msra.mxu0 0.0
    %1685 = vmatprep.subr.mxu0 0.0
    %1686 = vmatpush1.msra.mxu0 0.0
    %1687 = vmatprep.subr.mxu0 0.0
    %1688 = vmatpush1.msra.mxu0 0.0
    %1689 = vmatprep.subr.mxu0 0.0
    %1690 = vmatpush1.msra.mxu0 0.0
    %1691 = vmatprep.subr.mxu0 0.0
    %1692 = vmatpush1.msra.mxu0 0.0
    %1693 = vmatprep.subr.mxu0 0.0
    %1694 = vmatpush1.msra.mxu0 0.0
    %1695 = vmatprep.subr.mxu0 0.0
    %1696 = vmatpush1.msra.mxu0 0.0
    %1697 = vmatprep.subr.mxu0 0.0
    %1698 = vmatpush1.msra.mxu0 0.0
    %1699 = vmatprep.subr.mxu0 0.0
    %1700 = vmatpush1.msra.mxu0 %v147
    %1701 = vmatprep.subr.mxu0 0.0
    %1702 = vmatpush1.msra.mxu0 %v146
    %1703 = vmatprep.subr.mxu0 0.0
    %1704 = vmatpush1.msra.mxu0 %v145
    %1705 = vmatprep.subr.mxu0 0.0
    %1706 = vmatpush1.msra.mxu0 %v144
    %1707 = vmatprep.subr.mxu0 0.0
    %1708 = vmatpush2.msra.mxu0 0.0
    %1709 = vmatprep.subr.mxu0 0.0
    %1710 = vmatpush2.msra.mxu0 0.0
    %1711 = vmatprep.subr.mxu0 0.0
    %1712 = vmatpush2.msra.mxu0 0.0
    %1713 = vmatprep.subr.mxu0 0.0
    %1714 = vmatpush2.msra.mxu0 0.0
    %1715 = vmatprep.subr.mxu0 0.0
    %1716 = vmatpush2.msra.mxu0 0.0
    %1717 = vmatprep.subr.mxu0 0.0
    %1718 = vmatpush2.msra.mxu0 0.0
    %1719 = vmatprep.subr.mxu0 0.0
    %1720 = vmatpush2.msra.mxu0 0.0
    %1721 = vmatprep.subr.mxu0 0.0
    %1722 = vmatpush2.msra.mxu0 0.0
    %1723 = vmatprep.subr.mxu0 0.0
    %1724 = vmatpush2.msra.mxu0 0.0
    %1725 = vmatprep.subr.mxu0 0.0
    %1726 = vmatpush2.msra.mxu0 0.0
    %1727 = vmatprep.subr.mxu0 0.0
    %1728 = vmatpush2.msra.mxu0 0.0
    %1729 = vmatprep.subr.mxu0 0.0
    %1730 = vmatpush2.msra.mxu0 0.0
    %1731 = vmatprep.subr.mxu0 0.0
    %1732 = vmatpush2.msra.mxu0 0.0
    %1733 = vmatprep.subr.mxu0 0.0
    %1734 = vmatpush2.msra.mxu0 0.0
    %1735 = vmatprep.subr.mxu0 0.0
    %1736 = vmatpush2.msra.mxu0 0.0
    %1737 = vmatprep.subr.mxu0 0.0
    %1738 = vmatpush2.msra.mxu0 0.0
    %1739 = vmatprep.mubr.f32.mxu0 0.0
    %1740 = vmatmul.mubr.f32.gmra.mxu0 %v168
    %v1741 = vpop.f32.mrf.mxu0
    %v1742 = vadd.f32 0.0, %v1741
    %v1743 = vpop.f32.mrf.mxu0
    %1744 = vdwg.mxu0
    %1745 = vmatprep.subr.mxu0 0.0
    %1746 = vmatpush1.msra.mxu0 0.0
    %1747 = vmatprep.subr.mxu0 0.0
    %1748 = vmatpush1.msra.mxu0 0.0
    %1749 = vmatprep.subr.mxu0 0.0
    %1750 = vmatpush1.msra.mxu0 0.0
    %1751 = vmatprep.subr.mxu0 0.0
    %1752 = vmatpush1.msra.mxu0 0.0
    %1753 = vmatprep.subr.mxu0 0.0
    %1754 = vmatpush1.msra.mxu0 0.0
    %1755 = vmatprep.subr.mxu0 0.0
    %1756 = vmatpush1.msra.mxu0 0.0
    %1757 = vmatprep.subr.mxu0 0.0
    %1758 = vmatpush1.msra.mxu0 0.0
    %1759 = vmatprep.subr.mxu0 0.0
    %1760 = vmatpush1.msra.mxu0 0.0
    %1761 = vmatprep.subr.mxu0 0.0
    %1762 = vmatpush1.msra.mxu0 0.0
    %1763 = vmatprep.subr.mxu0 0.0
    %1764 = vmatpush1.msra.mxu0 0.0
    %1765 = vmatprep.subr.mxu0 0.0
    %1766 = vmatpush1.msra.mxu0 0.0
    %1767 = vmatprep.subr.mxu0 0.0
    %1768 = vmatpush1.msra.mxu0 0.0
    %1769 = vmatprep.subr.mxu0 0.0
    %1770 = vmatpush1.msra.mxu0 %v128
    %1771 = vmatprep.subr.mxu0 0.0
    %1772 = vmatpush1.msra.mxu0 %v127
    %1773 = vmatprep.subr.mxu0 0.0
    %1774 = vmatpush1.msra.mxu0 %v126
    %1775 = vmatprep.subr.mxu0 0.0
    %1776 = vmatpush1.msra.mxu0 %v125
    %1777 = vmatprep.subr.mxu0 0.0
    %1778 = vmatpush2.msra.mxu0 0.0
    %1779 = vmatprep.subr.mxu0 0.0
    %1780 = vmatpush2.msra.mxu0 0.0
    %1781 = vmatprep.subr.mxu0 0.0
    %1782 = vmatpush2.msra.mxu0 0.0
    %1783 = vmatprep.subr.mxu0 0.0
    %1784 = vmatpush2.msra.mxu0 0.0
    %1785 = vmatprep.subr.mxu0 0.0
    %1786 = vmatpush2.msra.mxu0 0.0
    %1787 = vmatprep.subr.mxu0 0.0
    %1788 = vmatpush2.msra.mxu0 0.0
    %1789 = vmatprep.subr.mxu0 0.0
    %1790 = vmatpush2.msra.mxu0 0.0
    %1791 = vmatprep.subr.mxu0 0.0
    %1792 = vmatpush2.msra.mxu0 0.0
    %1793 = vmatprep.subr.mxu0 0.0
    %1794 = vmatpush2.msra.mxu0 0.0
    %1795 = vmatprep.subr.mxu0 0.0
    %1796 = vmatpush2.msra.mxu0 0.0
    %1797 = vmatprep.subr.mxu0 0.0
    %1798 = vmatpush2.msra.mxu0 0.0
    %1799 = vmatprep.subr.mxu0 0.0
    %1800 = vmatpush2.msra.mxu0 0.0
    %1801 = vmatprep.subr.mxu0 0.0
    %1802 = vmatpush2.msra.mxu0 0.0
    %1803 = vmatprep.subr.mxu0 0.0
    %1804 = vmatpush2.msra.mxu0 0.0
    %1805 = vmatprep.subr.mxu0 0.0
    %1806 = vmatpush2.msra.mxu0 0.0
    %1807 = vmatprep.subr.mxu0 0.0
    %1808 = vmatpush2.msra.mxu0 0.0
    %1809 = vmatprep.mubr.f32.mxu0 0.0
    %1810 = vmatmul.mubr.f32.gmra.mxu0 %v787
    %v1811 = vpop.f32.mrf.mxu0
    %v1812 = vadd.f32 %v1742, %v1811
    %v1813 = vpop.f32.mrf.mxu0
    %1814 = vdwg.mxu0
    %v1816 = vlaneseq
    %v1817 = vshrl.u32 %v1816, 7
    %v1818 = vsub.s32 0, %v1817
    %v1819 = vrot.slane %v157, %v1818
    %v1821 = vadd.f32 %v1812, %v1819
    %1822 = vmatprep.subr.mxu0 0.0
    %1823 = vmatpush1.msra.mxu0 0.0
    %1824 = vmatprep.subr.mxu0 0.0
    %1825 = vmatpush1.msra.mxu0 0.0
    %1826 = vmatprep.subr.mxu0 0.0
    %1827 = vmatpush1.msra.mxu0 0.0
    %1828 = vmatprep.subr.mxu0 0.0
    %1829 = vmatpush1.msra.mxu0 0.0
    %1830 = vmatprep.subr.mxu0 0.0
    %1831 = vmatpush1.msra.mxu0 0.0
    %1832 = vmatprep.subr.mxu0 0.0
    %1833 = vmatpush1.msra.mxu0 0.0
    %1834 = vmatprep.subr.mxu0 0.0
    %1835 = vmatpush1.msra.mxu0 0.0
    %1836 = vmatprep.subr.mxu0 0.0
    %1837 = vmatpush1.msra.mxu0 0.0
    %1838 = vmatprep.subr.mxu0 0.0
    %1839 = vmatpush1.msra.mxu0 0.0
    %1840 = vmatprep.subr.mxu0 0.0
    %1841 = vmatpush1.msra.mxu0 0.0
    %1842 = vmatprep.subr.mxu0 0.0
    %1843 = vmatpush1.msra.mxu0 0.0
    %1844 = vmatprep.subr.mxu0 0.0
    %1845 = vmatpush1.msra.mxu0 0.0
    %1846 = vmatprep.subr.mxu0 0.0
    %1847 = vmatpush1.msra.mxu0 %v152
    %1848 = vmatprep.subr.mxu0 0.0
    %1849 = vmatpush1.msra.mxu0 %v151
    %1850 = vmatprep.subr.mxu0 0.0
    %1851 = vmatpush1.msra.mxu0 %v150
    %1852 = vmatprep.subr.mxu0 0.0
    %1853 = vmatpush1.msra.mxu0 %v149
    %1854 = vmatprep.subr.mxu0 0.0
    %1855 = vmatpush2.msra.mxu0 0.0
    %1856 = vmatprep.subr.mxu0 0.0
    %1857 = vmatpush2.msra.mxu0 0.0
    %1858 = vmatprep.subr.mxu0 0.0
    %1859 = vmatpush2.msra.mxu0 0.0
    %1860 = vmatprep.subr.mxu0 0.0
    %1861 = vmatpush2.msra.mxu0 0.0
    %1862 = vmatprep.subr.mxu0 0.0
    %1863 = vmatpush2.msra.mxu0 0.0
    %1864 = vmatprep.subr.mxu0 0.0
    %1865 = vmatpush2.msra.mxu0 0.0
    %1866 = vmatprep.subr.mxu0 0.0
    %1867 = vmatpush2.msra.mxu0 0.0
    %1868 = vmatprep.subr.mxu0 0.0
    %1869 = vmatpush2.msra.mxu0 0.0
    %1870 = vmatprep.subr.mxu0 0.0
    %1871 = vmatpush2.msra.mxu0 0.0
    %1872 = vmatprep.subr.mxu0 0.0
    %1873 = vmatpush2.msra.mxu0 0.0
    %1874 = vmatprep.subr.mxu0 0.0
    %1875 = vmatpush2.msra.mxu0 0.0
    %1876 = vmatprep.subr.mxu0 0.0
    %1877 = vmatpush2.msra.mxu0 0.0
    %1878 = vmatprep.subr.mxu0 0.0
    %1879 = vmatpush2.msra.mxu0 0.0
    %1880 = vmatprep.subr.mxu0 0.0
    %1881 = vmatpush2.msra.mxu0 0.0
    %1882 = vmatprep.subr.mxu0 0.0
    %1883 = vmatpush2.msra.mxu0 0.0
    %1884 = vmatprep.subr.mxu0 0.0
    %1885 = vmatpush2.msra.mxu0 0.0
    %1886 = vmatprep.mubr.f32.mxu0 0.0
    %1887 = vmatmul.mubr.f32.gmra.mxu0 %v168
    %v1888 = vpop.f32.mrf.mxu0
    %v1889 = vadd.f32 0.0, %v1888
    %v1890 = vpop.f32.mrf.mxu0
    %1891 = vdwg.mxu0
    %1892 = vmatprep.subr.mxu0 0.0
    %1893 = vmatpush1.msra.mxu0 0.0
    %1894 = vmatprep.subr.mxu0 0.0
    %1895 = vmatpush1.msra.mxu0 0.0
    %1896 = vmatprep.subr.mxu0 0.0
    %1897 = vmatpush1.msra.mxu0 0.0
    %1898 = vmatprep.subr.mxu0 0.0
    %1899 = vmatpush1.msra.mxu0 0.0
    %1900 = vmatprep.subr.mxu0 0.0
    %1901 = vmatpush1.msra.mxu0 0.0
    %1902 = vmatprep.subr.mxu0 0.0
    %1903 = vmatpush1.msra.mxu0 0.0
    %1904 = vmatprep.subr.mxu0 0.0
    %1905 = vmatpush1.msra.mxu0 0.0
    %1906 = vmatprep.subr.mxu0 0.0
    %1907 = vmatpush1.msra.mxu0 0.0
    %1908 = vmatprep.subr.mxu0 0.0
    %1909 = vmatpush1.msra.mxu0 0.0
    %1910 = vmatprep.subr.mxu0 0.0
    %1911 = vmatpush1.msra.mxu0 0.0
    %1912 = vmatprep.subr.mxu0 0.0
    %1913 = vmatpush1.msra.mxu0 0.0
    %1914 = vmatprep.subr.mxu0 0.0
    %1915 = vmatpush1.msra.mxu0 0.0
    %1916 = vmatprep.subr.mxu0 0.0
    %1917 = vmatpush1.msra.mxu0 %v133
    %1918 = vmatprep.subr.mxu0 0.0
    %1919 = vmatpush1.msra.mxu0 %v132
    %1920 = vmatprep.subr.mxu0 0.0
    %1921 = vmatpush1.msra.mxu0 %v131
    %1922 = vmatprep.subr.mxu0 0.0
    %1923 = vmatpush1.msra.mxu0 %v130
    %1924 = vmatprep.subr.mxu0 0.0
    %1925 = vmatpush2.msra.mxu0 0.0
    %1926 = vmatprep.subr.mxu0 0.0
    %1927 = vmatpush2.msra.mxu0 0.0
    %1928 = vmatprep.subr.mxu0 0.0
    %1929 = vmatpush2.msra.mxu0 0.0
    %1930 = vmatprep.subr.mxu0 0.0
    %1931 = vmatpush2.msra.mxu0 0.0
    %1932 = vmatprep.subr.mxu0 0.0
    %1933 = vmatpush2.msra.mxu0 0.0
    %1934 = vmatprep.subr.mxu0 0.0
    %1935 = vmatpush2.msra.mxu0 0.0
    %1936 = vmatprep.subr.mxu0 0.0
    %1937 = vmatpush2.msra.mxu0 0.0
    %1938 = vmatprep.subr.mxu0 0.0
    %1939 = vmatpush2.msra.mxu0 0.0
    %1940 = vmatprep.subr.mxu0 0.0
    %1941 = vmatpush2.msra.mxu0 0.0
    %1942 = vmatprep.subr.mxu0 0.0
    %1943 = vmatpush2.msra.mxu0 0.0
    %1944 = vmatprep.subr.mxu0 0.0
    %1945 = vmatpush2.msra.mxu0 0.0
    %1946 = vmatprep.subr.mxu0 0.0
    %1947 = vmatpush2.msra.mxu0 0.0
    %1948 = vmatprep.subr.mxu0 0.0
    %1949 = vmatpush2.msra.mxu0 0.0
    %1950 = vmatprep.subr.mxu0 0.0
    %1951 = vmatpush2.msra.mxu0 0.0
    %1952 = vmatprep.subr.mxu0 0.0
    %1953 = vmatpush2.msra.mxu0 0.0
    %1954 = vmatprep.subr.mxu0 0.0
    %1955 = vmatpush2.msra.mxu0 0.0
    %1956 = vmatprep.mubr.f32.mxu0 0.0
    %1957 = vmatmul.mubr.f32.gmra.mxu0 %v787
    %v1958 = vpop.f32.mrf.mxu0
    %v1959 = vadd.f32 %v1889, %v1958
    %v1960 = vpop.f32.mrf.mxu0
    %1961 = vdwg.mxu0
    %v1963 = vlaneseq
    %v1964 = vshrl.u32 %v1963, 7
    %v1965 = vsub.s32 0, %v1964
    %v1966 = vrot.slane %v159, %v1965
    %v1968 = vadd.f32 %v1959, %v1966
    %v1969 = vxor.u32 %v1527, 2147483648
    %v1970 = vmul.f32 %v1969, 1.442695
    %v1971 = vpow.pop %v1970
    %v1972 = vadd.f32 %v1971, 1.0
    %v1973 = vrcp.pop %v1972
    %v1974 = vmul.f32 1.0, %v1973
    %v1975 = vxor.u32 %v1674, 2147483648
    %v1976 = vmul.f32 %v1975, 1.442695
    %v1977 = vpow.pop %v1976
    %v1978 = vadd.f32 %v1977, 1.0
    %v1979 = vrcp.pop %v1978
    %v1980 = vmul.f32 1.0, %v1979
    %v1981 = vtanh.pop %v1821
    %v1982 = vxor.u32 %v1968, 2147483648
    %v1983 = vmul.f32 %v1982, 1.442695
    %v1984 = vpow.pop %v1983
    %v1985 = vadd.f32 %v1984, 1.0
    %v1986 = vrcp.pop %v1985
    %v1987 = vmul.f32 1.0, %v1986
    %v1988 = vmul.f32 %v1980, 0.0
    %v1989 = vmul.f32 %v1974, %v1981
    %v1990 = vadd.f32 %v1988, %v1989
    %v1991 = vtanh.pop %v1990
    %v1992 = vmul.f32 %v1987, %v1991
    %vm1993 = vcmp.eq.s32.totalorder %v165, 0
    %v1994 = vsel %vm1993, 1, 0
    %1995 = vset.pattern.permute.xlu0 0
    %1996 = vperm.xlu0 %1995, %v1994
    %v1997 = vpop.permute.xlu0 %1996
    %vm1998 = vcmp.eq.s32.totalorder %v1997, 1
    %v1999 = vsel %vm1998, %v1992, 0.0
    %v2001 = vsel %vm166, %v1380, 0
    %2003 = vmatprep.subr.mxu0 0.0
    %2004 = vmatpush1.msra.mxu0 0.0
    %2005 = vmatprep.subr.mxu0 0.0
    %2006 = vmatpush1.msra.mxu0 0.0
    %2007 = vmatprep.subr.mxu0 0.0
    %2008 = vmatpush1.msra.mxu0 0.0
    %2009 = vmatprep.subr.mxu0 0.0
    %2010 = vmatpush1.msra.mxu0 0.0
    %2011 = vmatprep.subr.mxu0 0.0
    %2012 = vmatpush1.msra.mxu0 0.0
    %2013 = vmatprep.subr.mxu0 0.0
    %2014 = vmatpush1.msra.mxu0 0.0
    %2015 = vmatprep.subr.mxu0 0.0
    %2016 = vmatpush1.msra.mxu0 0.0
    %2017 = vmatprep.subr.mxu0 0.0
    %2018 = vmatpush1.msra.mxu0 0.0
    %2019 = vmatprep.subr.mxu0 0.0
    %2020 = vmatpush1.msra.mxu0 0.0
    %2021 = vmatprep.subr.mxu0 0.0
    %2022 = vmatpush1.msra.mxu0 0.0
    %2023 = vmatprep.subr.mxu0 0.0
    %2024 = vmatpush1.msra.mxu0 0.0
    %2025 = vmatprep.subr.mxu0 0.0
    %2026 = vmatpush1.msra.mxu0 0.0
    %2027 = vmatprep.subr.mxu0 0.0
    %2028 = vmatpush1.msra.mxu0 %v92
    %2029 = vmatprep.subr.mxu0 0.0
    %2030 = vmatpush1.msra.mxu0 %v91
    %2031 = vmatprep.subr.mxu0 0.0
    %2032 = vmatpush1.msra.mxu0 %v90
    %2033 = vmatprep.subr.mxu0 0.0
    %2034 = vmatpush1.msra.mxu0 %v89
    %2035 = vmatprep.subr.mxu0 0.0
    %2036 = vmatpush2.msra.mxu0 0.0
    %2037 = vmatprep.subr.mxu0 0.0
    %2038 = vmatpush2.msra.mxu0 0.0
    %2039 = vmatprep.subr.mxu0 0.0
    %2040 = vmatpush2.msra.mxu0 0.0
    %2041 = vmatprep.subr.mxu0 0.0
    %2042 = vmatpush2.msra.mxu0 0.0
    %2043 = vmatprep.subr.mxu0 0.0
    %2044 = vmatpush2.msra.mxu0 0.0
    %2045 = vmatprep.subr.mxu0 0.0
    %2046 = vmatpush2.msra.mxu0 0.0
    %2047 = vmatprep.subr.mxu0 0.0
    %2048 = vmatpush2.msra.mxu0 0.0
    %2049 = vmatprep.subr.mxu0 0.0
    %2050 = vmatpush2.msra.mxu0 0.0
    %2051 = vmatprep.subr.mxu0 0.0
    %2052 = vmatpush2.msra.mxu0 0.0
    %2053 = vmatprep.subr.mxu0 0.0
    %2054 = vmatpush2.msra.mxu0 0.0
    %2055 = vmatprep.subr.mxu0 0.0
    %2056 = vmatpush2.msra.mxu0 0.0
    %2057 = vmatprep.subr.mxu0 0.0
    %2058 = vmatpush2.msra.mxu0 0.0
    %2059 = vmatprep.subr.mxu0 0.0
    %2060 = vmatpush2.msra.mxu0 0.0
    %2061 = vmatprep.subr.mxu0 0.0
    %2062 = vmatpush2.msra.mxu0 0.0
    %2063 = vmatprep.subr.mxu0 0.0
    %2064 = vmatpush2.msra.mxu0 0.0
    %2065 = vmatprep.subr.mxu0 0.0
    %2066 = vmatpush2.msra.mxu0 0.0
    %2067 = vmatprep.mubr.f32.mxu0 0.0
    %2068 = vmatmul.mubr.f32.gmra.mxu0 %v2001
    %v2069 = vpop.f32.mrf.mxu0
    %v2070 = vadd.f32 0.0, %v2069
    %v2071 = vpop.f32.mrf.mxu0
    %2072 = vdwg.mxu0
    %2073 = vrot.lane.b32.xlu0 %v81, 112
    %v2074 = vpop.permute.xlu0 %2073
    %v2075 = vsel %vm240, %v2074, 0
    %2077 = vmatprep.subr.mxu0 0.0
    %2078 = vmatpush1.msra.mxu0 0.0
    %2079 = vmatprep.subr.mxu0 0.0
    %2080 = vmatpush1.msra.mxu0 0.0
    %2081 = vmatprep.subr.mxu0 0.0
    %2082 = vmatpush1.msra.mxu0 0.0
    %2083 = vmatprep.subr.mxu0 0.0
    %2084 = vmatpush1.msra.mxu0 0.0
    %2085 = vmatprep.subr.mxu0 0.0
    %2086 = vmatpush1.msra.mxu0 0.0
    %2087 = vmatprep.subr.mxu0 0.0
    %2088 = vmatpush1.msra.mxu0 0.0
    %2089 = vmatprep.subr.mxu0 0.0
    %2090 = vmatpush1.msra.mxu0 0.0
    %2091 = vmatprep.subr.mxu0 0.0
    %2092 = vmatpush1.msra.mxu0 0.0
    %2093 = vmatprep.subr.mxu0 0.0
    %2094 = vmatpush1.msra.mxu0 0.0
    %2095 = vmatprep.subr.mxu0 0.0
    %2096 = vmatpush1.msra.mxu0 0.0
    %2097 = vmatprep.subr.mxu0 0.0
    %2098 = vmatpush1.msra.mxu0 0.0
    %2099 = vmatprep.subr.mxu0 0.0
    %2100 = vmatpush1.msra.mxu0 0.0
    %2101 = vmatprep.subr.mxu0 0.0
    %2102 = vmatpush1.msra.mxu0 0.0
    %2103 = vmatprep.subr.mxu0 0.0
    %2104 = vmatpush1.msra.mxu0 0.0
    %2105 = vmatprep.subr.mxu0 0.0
    %2106 = vmatpush1.msra.mxu0 0.0
    %2107 = vmatprep.subr.mxu0 0.0
    %2108 = vmatpush1.msra.mxu0 %v82
    %2109 = vmatprep.subr.mxu0 0.0
    %2110 = vmatpush2.msra.mxu0 0.0
    %2111 = vmatprep.subr.mxu0 0.0
    %2112 = vmatpush2.msra.mxu0 0.0
    %2113 = vmatprep.subr.mxu0 0.0
    %2114 = vmatpush2.msra.mxu0 0.0
    %2115 = vmatprep.subr.mxu0 0.0
    %2116 = vmatpush2.msra.mxu0 0.0
    %2117 = vmatprep.subr.mxu0 0.0
    %2118 = vmatpush2.msra.mxu0 0.0
    %2119 = vmatprep.subr.mxu0 0.0
    %2120 = vmatpush2.msra.mxu0 0.0
    %2121 = vmatprep.subr.mxu0 0.0
    %2122 = vmatpush2.msra.mxu0 0.0
    %2123 = vmatprep.subr.mxu0 0.0
    %2124 = vmatpush2.msra.mxu0 0.0
    %2125 = vmatprep.subr.mxu0 0.0
    %2126 = vmatpush2.msra.mxu0 0.0
    %2127 = vmatprep.subr.mxu0 0.0
    %2128 = vmatpush2.msra.mxu0 0.0
    %2129 = vmatprep.subr.mxu0 0.0
    %2130 = vmatpush2.msra.mxu0 0.0
    %2131 = vmatprep.subr.mxu0 0.0
    %2132 = vmatpush2.msra.mxu0 0.0
    %2133 = vmatprep.subr.mxu0 0.0
    %2134 = vmatpush2.msra.mxu0 0.0
    %2135 = vmatprep.subr.mxu0 0.0
    %2136 = vmatpush2.msra.mxu0 0.0
    %2137 = vmatprep.subr.mxu0 0.0
    %2138 = vmatpush2.msra.mxu0 0.0
    %2139 = vmatprep.subr.mxu0 0.0
    %2140 = vmatpush2.msra.mxu0 0.0
    %2141 = vmatprep.mubr.f32.mxu0 0.0
    %2142 = vmatmul.mubr.f32.gmra.mxu0 %v2075
    %v2143 = vpop.f32.mrf.mxu0
    %v2144 = vadd.f32 %v2070, %v2143
    %v2145 = vpop.f32.mrf.mxu0
    %2146 = vdwg.mxu0
    %v2147 = vadd.f32 %v2144, %v318
    %2148 = vmatprep.subr.mxu0 0.0
    %2149 = vmatpush1.msra.mxu0 0.0
    %2150 = vmatprep.subr.mxu0 0.0
    %2151 = vmatpush1.msra.mxu0 0.0
    %2152 = vmatprep.subr.mxu0 0.0
    %2153 = vmatpush1.msra.mxu0 0.0
    %2154 = vmatprep.subr.mxu0 0.0
    %2155 = vmatpush1.msra.mxu0 0.0
    %2156 = vmatprep.subr.mxu0 0.0
    %2157 = vmatpush1.msra.mxu0 0.0
    %2158 = vmatprep.subr.mxu0 0.0
    %2159 = vmatpush1.msra.mxu0 0.0
    %2160 = vmatprep.subr.mxu0 0.0
    %2161 = vmatpush1.msra.mxu0 0.0
    %2162 = vmatprep.subr.mxu0 0.0
    %2163 = vmatpush1.msra.mxu0 0.0
    %2164 = vmatprep.subr.mxu0 0.0
    %2165 = vmatpush1.msra.mxu0 0.0
    %2166 = vmatprep.subr.mxu0 0.0
    %2167 = vmatpush1.msra.mxu0 0.0
    %2168 = vmatprep.subr.mxu0 0.0
    %2169 = vmatpush1.msra.mxu0 0.0
    %2170 = vmatprep.subr.mxu0 0.0
    %2171 = vmatpush1.msra.mxu0 0.0
    %2172 = vmatprep.subr.mxu0 0.0
    %2173 = vmatpush1.msra.mxu0 %v97
    %2174 = vmatprep.subr.mxu0 0.0
    %2175 = vmatpush1.msra.mxu0 %v96
    %2176 = vmatprep.subr.mxu0 0.0
    %2177 = vmatpush1.msra.mxu0 %v95
    %2178 = vmatprep.subr.mxu0 0.0
    %2179 = vmatpush1.msra.mxu0 %v94
    %2180 = vmatprep.subr.mxu0 0.0
    %2181 = vmatpush2.msra.mxu0 0.0
    %2182 = vmatprep.subr.mxu0 0.0
    %2183 = vmatpush2.msra.mxu0 0.0
    %2184 = vmatprep.subr.mxu0 0.0
    %2185 = vmatpush2.msra.mxu0 0.0
    %2186 = vmatprep.subr.mxu0 0.0
    %2187 = vmatpush2.msra.mxu0 0.0
    %2188 = vmatprep.subr.mxu0 0.0
    %2189 = vmatpush2.msra.mxu0 0.0
    %2190 = vmatprep.subr.mxu0 0.0
    %2191 = vmatpush2.msra.mxu0 0.0
    %2192 = vmatprep.subr.mxu0 0.0
    %2193 = vmatpush2.msra.mxu0 0.0
    %2194 = vmatprep.subr.mxu0 0.0
    %2195 = vmatpush2.msra.mxu0 0.0
    %2196 = vmatprep.subr.mxu0 0.0
    %2197 = vmatpush2.msra.mxu0 0.0
    %2198 = vmatprep.subr.mxu0 0.0
    %2199 = vmatpush2.msra.mxu0 0.0
    %2200 = vmatprep.subr.mxu0 0.0
    %2201 = vmatpush2.msra.mxu0 0.0
    %2202 = vmatprep.subr.mxu0 0.0
    %2203 = vmatpush2.msra.mxu0 0.0
    %2204 = vmatprep.subr.mxu0 0.0
    %2205 = vmatpush2.msra.mxu0 0.0
    %2206 = vmatprep.subr.mxu0 0.0
    %2207 = vmatpush2.msra.mxu0 0.0
    %2208 = vmatprep.subr.mxu0 0.0
    %2209 = vmatpush2.msra.mxu0 0.0
    %2210 = vmatprep.subr.mxu0 0.0
    %2211 = vmatpush2.msra.mxu0 0.0
    %2212 = vmatprep.mubr.f32.mxu0 0.0
    %2213 = vmatmul.mubr.f32.gmra.mxu0 %v2001
    %v2214 = vpop.f32.mrf.mxu0
    %v2215 = vadd.f32 0.0, %v2214
    %v2216 = vpop.f32.mrf.mxu0
    %2217 = vdwg.mxu0
    %2218 = vmatprep.subr.mxu0 0.0
    %2219 = vmatpush1.msra.mxu0 0.0
    %2220 = vmatprep.subr.mxu0 0.0
    %2221 = vmatpush1.msra.mxu0 0.0
    %2222 = vmatprep.subr.mxu0 0.0
    %2223 = vmatpush1.msra.mxu0 0.0
    %2224 = vmatprep.subr.mxu0 0.0
    %2225 = vmatpush1.msra.mxu0 0.0
    %2226 = vmatprep.subr.mxu0 0.0
    %2227 = vmatpush1.msra.mxu0 0.0
    %2228 = vmatprep.subr.mxu0 0.0
    %2229 = vmatpush1.msra.mxu0 0.0
    %2230 = vmatprep.subr.mxu0 0.0
    %2231 = vmatpush1.msra.mxu0 0.0
    %2232 = vmatprep.subr.mxu0 0.0
    %2233 = vmatpush1.msra.mxu0 0.0
    %2234 = vmatprep.subr.mxu0 0.0
    %2235 = vmatpush1.msra.mxu0 0.0
    %2236 = vmatprep.subr.mxu0 0.0
    %2237 = vmatpush1.msra.mxu0 0.0
    %2238 = vmatprep.subr.mxu0 0.0
    %2239 = vmatpush1.msra.mxu0 0.0
    %2240 = vmatprep.subr.mxu0 0.0
    %2241 = vmatpush1.msra.mxu0 0.0
    %2242 = vmatprep.subr.mxu0 0.0
    %2243 = vmatpush1.msra.mxu0 0.0
    %2244 = vmatprep.subr.mxu0 0.0
    %2245 = vmatpush1.msra.mxu0 0.0
    %2246 = vmatprep.subr.mxu0 0.0
    %2247 = vmatpush1.msra.mxu0 0.0
    %2248 = vmatprep.subr.mxu0 0.0
    %2249 = vmatpush1.msra.mxu0 %v84
    %2250 = vmatprep.subr.mxu0 0.0
    %2251 = vmatpush2.msra.mxu0 0.0
    %2252 = vmatprep.subr.mxu0 0.0
    %2253 = vmatpush2.msra.mxu0 0.0
    %2254 = vmatprep.subr.mxu0 0.0
    %2255 = vmatpush2.msra.mxu0 0.0
    %2256 = vmatprep.subr.mxu0 0.0
    %2257 = vmatpush2.msra.mxu0 0.0
    %2258 = vmatprep.subr.mxu0 0.0
    %2259 = vmatpush2.msra.mxu0 0.0
    %2260 = vmatprep.subr.mxu0 0.0
    %2261 = vmatpush2.msra.mxu0 0.0
    %2262 = vmatprep.subr.mxu0 0.0
    %2263 = vmatpush2.msra.mxu0 0.0
    %2264 = vmatprep.subr.mxu0 0.0
    %2265 = vmatpush2.msra.mxu0 0.0
    %2266 = vmatprep.subr.mxu0 0.0
    %2267 = vmatpush2.msra.mxu0 0.0
    %2268 = vmatprep.subr.mxu0 0.0
    %2269 = vmatpush2.msra.mxu0 0.0
    %2270 = vmatprep.subr.mxu0 0.0
    %2271 = vmatpush2.msra.mxu0 0.0
    %2272 = vmatprep.subr.mxu0 0.0
    %2273 = vmatpush2.msra.mxu0 0.0
    %2274 = vmatprep.subr.mxu0 0.0
    %2275 = vmatpush2.msra.mxu0 0.0
    %2276 = vmatprep.subr.mxu0 0.0
    %2277 = vmatpush2.msra.mxu0 0.0
    %2278 = vmatprep.subr.mxu0 0.0
    %2279 = vmatpush2.msra.mxu0 0.0
    %2280 = vmatprep.subr.mxu0 0.0
    %2281 = vmatpush2.msra.mxu0 0.0
    %2282 = vmatprep.mubr.f32.mxu0 0.0
    %2283 = vmatmul.mubr.f32.gmra.mxu0 %v2075
    %v2284 = vpop.f32.mrf.mxu0
    %v2285 = vadd.f32 %v2215, %v2284
    %v2286 = vpop.f32.mrf.mxu0
    %2287 = vdwg.mxu0
    %v2288 = vadd.f32 %v2285, %v465
    %2289 = vmatprep.subr.mxu0 0.0
    %2290 = vmatpush1.msra.mxu0 0.0
    %2291 = vmatprep.subr.mxu0 0.0
    %2292 = vmatpush1.msra.mxu0 0.0
    %2293 = vmatprep.subr.mxu0 0.0
    %2294 = vmatpush1.msra.mxu0 0.0
    %2295 = vmatprep.subr.mxu0 0.0
    %2296 = vmatpush1.msra.mxu0 0.0
    %2297 = vmatprep.subr.mxu0 0.0
    %2298 = vmatpush1.msra.mxu0 0.0
    %2299 = vmatprep.subr.mxu0 0.0
    %2300 = vmatpush1.msra.mxu0 0.0
    %2301 = vmatprep.subr.mxu0 0.0
    %2302 = vmatpush1.msra.mxu0 0.0
    %2303 = vmatprep.subr.mxu0 0.0
    %2304 = vmatpush1.msra.mxu0 0.0
    %2305 = vmatprep.subr.mxu0 0.0
    %2306 = vmatpush1.msra.mxu0 0.0
    %2307 = vmatprep.subr.mxu0 0.0
    %2308 = vmatpush1.msra.mxu0 0.0
    %2309 = vmatprep.subr.mxu0 0.0
    %2310 = vmatpush1.msra.mxu0 0.0
    %2311 = vmatprep.subr.mxu0 0.0
    %2312 = vmatpush1.msra.mxu0 0.0
    %2313 = vmatprep.subr.mxu0 0.0
    %2314 = vmatpush1.msra.mxu0 %v102
    %2315 = vmatprep.subr.mxu0 0.0
    %2316 = vmatpush1.msra.mxu0 %v101
    %2317 = vmatprep.subr.mxu0 0.0
    %2318 = vmatpush1.msra.mxu0 %v100
    %2319 = vmatprep.subr.mxu0 0.0
    %2320 = vmatpush1.msra.mxu0 %v99
    %2321 = vmatprep.subr.mxu0 0.0
    %2322 = vmatpush2.msra.mxu0 0.0
    %2323 = vmatprep.subr.mxu0 0.0
    %2324 = vmatpush2.msra.mxu0 0.0
    %2325 = vmatprep.subr.mxu0 0.0
    %2326 = vmatpush2.msra.mxu0 0.0
    %2327 = vmatprep.subr.mxu0 0.0
    %2328 = vmatpush2.msra.mxu0 0.0
    %2329 = vmatprep.subr.mxu0 0.0
    %2330 = vmatpush2.msra.mxu0 0.0
    %2331 = vmatprep.subr.mxu0 0.0
    %2332 = vmatpush2.msra.mxu0 0.0
    %2333 = vmatprep.subr.mxu0 0.0
    %2334 = vmatpush2.msra.mxu0 0.0
    %2335 = vmatprep.subr.mxu0 0.0
    %2336 = vmatpush2.msra.mxu0 0.0
    %2337 = vmatprep.subr.mxu0 0.0
    %2338 = vmatpush2.msra.mxu0 0.0
    %2339 = vmatprep.subr.mxu0 0.0
    %2340 = vmatpush2.msra.mxu0 0.0
    %2341 = vmatprep.subr.mxu0 0.0
    %2342 = vmatpush2.msra.mxu0 0.0
    %2343 = vmatprep.subr.mxu0 0.0
    %2344 = vmatpush2.msra.mxu0 0.0
    %2345 = vmatprep.subr.mxu0 0.0
    %2346 = vmatpush2.msra.mxu0 0.0
    %2347 = vmatprep.subr.mxu0 0.0
    %2348 = vmatpush2.msra.mxu0 0.0
    %2349 = vmatprep.subr.mxu0 0.0
    %2350 = vmatpush2.msra.mxu0 0.0
    %2351 = vmatprep.subr.mxu0 0.0
    %2352 = vmatpush2.msra.mxu0 0.0
    %2353 = vmatprep.mubr.f32.mxu0 0.0
    %2354 = vmatmul.mubr.f32.gmra.mxu0 %v2001
    %v2355 = vpop.f32.mrf.mxu0
    %v2356 = vadd.f32 0.0, %v2355
    %v2357 = vpop.f32.mrf.mxu0
    %2358 = vdwg.mxu0
    %2359 = vmatprep.subr.mxu0 0.0
    %2360 = vmatpush1.msra.mxu0 0.0
    %2361 = vmatprep.subr.mxu0 0.0
    %2362 = vmatpush1.msra.mxu0 0.0
    %2363 = vmatprep.subr.mxu0 0.0
    %2364 = vmatpush1.msra.mxu0 0.0
    %2365 = vmatprep.subr.mxu0 0.0
    %2366 = vmatpush1.msra.mxu0 0.0
    %2367 = vmatprep.subr.mxu0 0.0
    %2368 = vmatpush1.msra.mxu0 0.0
    %2369 = vmatprep.subr.mxu0 0.0
    %2370 = vmatpush1.msra.mxu0 0.0
    %2371 = vmatprep.subr.mxu0 0.0
    %2372 = vmatpush1.msra.mxu0 0.0
    %2373 = vmatprep.subr.mxu0 0.0
    %2374 = vmatpush1.msra.mxu0 0.0
    %2375 = vmatprep.subr.mxu0 0.0
    %2376 = vmatpush1.msra.mxu0 0.0
    %2377 = vmatprep.subr.mxu0 0.0
    %2378 = vmatpush1.msra.mxu0 0.0
    %2379 = vmatprep.subr.mxu0 0.0
    %2380 = vmatpush1.msra.mxu0 0.0
    %2381 = vmatprep.subr.mxu0 0.0
    %2382 = vmatpush1.msra.mxu0 0.0
    %2383 = vmatprep.subr.mxu0 0.0
    %2384 = vmatpush1.msra.mxu0 0.0
    %2385 = vmatprep.subr.mxu0 0.0
    %2386 = vmatpush1.msra.mxu0 0.0
    %2387 = vmatprep.subr.mxu0 0.0
    %2388 = vmatpush1.msra.mxu0 0.0
    %2389 = vmatprep.subr.mxu0 0.0
    %2390 = vmatpush1.msra.mxu0 %v86
    %2391 = vmatprep.subr.mxu0 0.0
    %2392 = vmatpush2.msra.mxu0 0.0
    %2393 = vmatprep.subr.mxu0 0.0
    %2394 = vmatpush2.msra.mxu0 0.0
    %2395 = vmatprep.subr.mxu0 0.0
    %2396 = vmatpush2.msra.mxu0 0.0
    %2397 = vmatprep.subr.mxu0 0.0
    %2398 = vmatpush2.msra.mxu0 0.0
    %2399 = vmatprep.subr.mxu0 0.0
    %2400 = vmatpush2.msra.mxu0 0.0
    %2401 = vmatprep.subr.mxu0 0.0
    %2402 = vmatpush2.msra.mxu0 0.0
    %2403 = vmatprep.subr.mxu0 0.0
    %2404 = vmatpush2.msra.mxu0 0.0
    %2405 = vmatprep.subr.mxu0 0.0
    %2406 = vmatpush2.msra.mxu0 0.0
    %2407 = vmatprep.subr.mxu0 0.0
    %2408 = vmatpush2.msra.mxu0 0.0
    %2409 = vmatprep.subr.mxu0 0.0
    %2410 = vmatpush2.msra.mxu0 0.0
    %2411 = vmatprep.subr.mxu0 0.0
    %2412 = vmatpush2.msra.mxu0 0.0
    %2413 = vmatprep.subr.mxu0 0.0
    %2414 = vmatpush2.msra.mxu0 0.0
    %2415 = vmatprep.subr.mxu0 0.0
    %2416 = vmatpush2.msra.mxu0 0.0
    %2417 = vmatprep.subr.mxu0 0.0
    %2418 = vmatpush2.msra.mxu0 0.0
    %2419 = vmatprep.subr.mxu0 0.0
    %2420 = vmatpush2.msra.mxu0 0.0
    %2421 = vmatprep.subr.mxu0 0.0
    %2422 = vmatpush2.msra.mxu0 0.0
    %2423 = vmatprep.mubr.f32.mxu0 0.0
    %2424 = vmatmul.mubr.f32.gmra.mxu0 %v2075
    %v2425 = vpop.f32.mrf.mxu0
    %v2426 = vadd.f32 %v2356, %v2425
    %v2427 = vpop.f32.mrf.mxu0
    %2428 = vdwg.mxu0
    %v2429 = vadd.f32 %v2426, %v612
    %2430 = vmatprep.subr.mxu0 0.0
    %2431 = vmatpush1.msra.mxu0 0.0
    %2432 = vmatprep.subr.mxu0 0.0
    %2433 = vmatpush1.msra.mxu0 0.0
    %2434 = vmatprep.subr.mxu0 0.0
    %2435 = vmatpush1.msra.mxu0 0.0
    %2436 = vmatprep.subr.mxu0 0.0
    %2437 = vmatpush1.msra.mxu0 0.0
    %2438 = vmatprep.subr.mxu0 0.0
    %2439 = vmatpush1.msra.mxu0 0.0
    %2440 = vmatprep.subr.mxu0 0.0
    %2441 = vmatpush1.msra.mxu0 0.0
    %2442 = vmatprep.subr.mxu0 0.0
    %2443 = vmatpush1.msra.mxu0 0.0
    %2444 = vmatprep.subr.mxu0 0.0
    %2445 = vmatpush1.msra.mxu0 0.0
    %2446 = vmatprep.subr.mxu0 0.0
    %2447 = vmatpush1.msra.mxu0 0.0
    %2448 = vmatprep.subr.mxu0 0.0
    %2449 = vmatpush1.msra.mxu0 0.0
    %2450 = vmatprep.subr.mxu0 0.0
    %2451 = vmatpush1.msra.mxu0 0.0
    %2452 = vmatprep.subr.mxu0 0.0
    %2453 = vmatpush1.msra.mxu0 0.0
    %2454 = vmatprep.subr.mxu0 0.0
    %2455 = vmatpush1.msra.mxu0 %v107
    %2456 = vmatprep.subr.mxu0 0.0
    %2457 = vmatpush1.msra.mxu0 %v106
    %2458 = vmatprep.subr.mxu0 0.0
    %2459 = vmatpush1.msra.mxu0 %v105
    %2460 = vmatprep.subr.mxu0 0.0
    %2461 = vmatpush1.msra.mxu0 %v104
    %2462 = vmatprep.subr.mxu0 0.0
    %2463 = vmatpush2.msra.mxu0 0.0
    %2464 = vmatprep.subr.mxu0 0.0
    %2465 = vmatpush2.msra.mxu0 0.0
    %2466 = vmatprep.subr.mxu0 0.0
    %2467 = vmatpush2.msra.mxu0 0.0
    %2468 = vmatprep.subr.mxu0 0.0
    %2469 = vmatpush2.msra.mxu0 0.0
    %2470 = vmatprep.subr.mxu0 0.0
    %2471 = vmatpush2.msra.mxu0 0.0
    %2472 = vmatprep.subr.mxu0 0.0
    %2473 = vmatpush2.msra.mxu0 0.0
    %2474 = vmatprep.subr.mxu0 0.0
    %2475 = vmatpush2.msra.mxu0 0.0
    %2476 = vmatprep.subr.mxu0 0.0
    %2477 = vmatpush2.msra.mxu0 0.0
    %2478 = vmatprep.subr.mxu0 0.0
    %2479 = vmatpush2.msra.mxu0 0.0
    %2480 = vmatprep.subr.mxu0 0.0
    %2481 = vmatpush2.msra.mxu0 0.0
    %2482 = vmatprep.subr.mxu0 0.0
    %2483 = vmatpush2.msra.mxu0 0.0
    %2484 = vmatprep.subr.mxu0 0.0
    %2485 = vmatpush2.msra.mxu0 0.0
    %2486 = vmatprep.subr.mxu0 0.0
    %2487 = vmatpush2.msra.mxu0 0.0
    %2488 = vmatprep.subr.mxu0 0.0
    %2489 = vmatpush2.msra.mxu0 0.0
    %2490 = vmatprep.subr.mxu0 0.0
    %2491 = vmatpush2.msra.mxu0 0.0
    %2492 = vmatprep.subr.mxu0 0.0
    %2493 = vmatpush2.msra.mxu0 0.0
    %2494 = vmatprep.mubr.f32.mxu0 0.0
    %2495 = vmatmul.mubr.f32.gmra.mxu0 %v2001
    %v2496 = vpop.f32.mrf.mxu0
    %v2497 = vadd.f32 0.0, %v2496
    %v2498 = vpop.f32.mrf.mxu0
    %2499 = vdwg.mxu0
    %2500 = vmatprep.subr.mxu0 0.0
    %2501 = vmatpush1.msra.mxu0 0.0
    %2502 = vmatprep.subr.mxu0 0.0
    %2503 = vmatpush1.msra.mxu0 0.0
    %2504 = vmatprep.subr.mxu0 0.0
    %2505 = vmatpush1.msra.mxu0 0.0
    %2506 = vmatprep.subr.mxu0 0.0
    %2507 = vmatpush1.msra.mxu0 0.0
    %2508 = vmatprep.subr.mxu0 0.0
    %2509 = vmatpush1.msra.mxu0 0.0
    %2510 = vmatprep.subr.mxu0 0.0
    %2511 = vmatpush1.msra.mxu0 0.0
    %2512 = vmatprep.subr.mxu0 0.0
    %2513 = vmatpush1.msra.mxu0 0.0
    %2514 = vmatprep.subr.mxu0 0.0
    %2515 = vmatpush1.msra.mxu0 0.0
    %2516 = vmatprep.subr.mxu0 0.0
    %2517 = vmatpush1.msra.mxu0 0.0
    %2518 = vmatprep.subr.mxu0 0.0
    %2519 = vmatpush1.msra.mxu0 0.0
    %2520 = vmatprep.subr.mxu0 0.0
    %2521 = vmatpush1.msra.mxu0 0.0
    %2522 = vmatprep.subr.mxu0 0.0
    %2523 = vmatpush1.msra.mxu0 0.0
    %2524 = vmatprep.subr.mxu0 0.0
    %2525 = vmatpush1.msra.mxu0 0.0
    %2526 = vmatprep.subr.mxu0 0.0
    %2527 = vmatpush1.msra.mxu0 0.0
    %2528 = vmatprep.subr.mxu0 0.0
    %2529 = vmatpush1.msra.mxu0 0.0
    %2530 = vmatprep.subr.mxu0 0.0
    %2531 = vmatpush1.msra.mxu0 %v88
    %2532 = vmatprep.subr.mxu0 0.0
    %2533 = vmatpush2.msra.mxu0 0.0
    %2534 = vmatprep.subr.mxu0 0.0
    %2535 = vmatpush2.msra.mxu0 0.0
    %2536 = vmatprep.subr.mxu0 0.0
    %2537 = vmatpush2.msra.mxu0 0.0
    %2538 = vmatprep.subr.mxu0 0.0
    %2539 = vmatpush2.msra.mxu0 0.0
    %2540 = vmatprep.subr.mxu0 0.0
    %2541 = vmatpush2.msra.mxu0 0.0
    %2542 = vmatprep.subr.mxu0 0.0
    %2543 = vmatpush2.msra.mxu0 0.0
    %2544 = vmatprep.subr.mxu0 0.0
    %2545 = vmatpush2.msra.mxu0 0.0
    %2546 = vmatprep.subr.mxu0 0.0
    %2547 = vmatpush2.msra.mxu0 0.0
    %2548 = vmatprep.subr.mxu0 0.0
    %2549 = vmatpush2.msra.mxu0 0.0
    %2550 = vmatprep.subr.mxu0 0.0
    %2551 = vmatpush2.msra.mxu0 0.0
    %2552 = vmatprep.subr.mxu0 0.0
    %2553 = vmatpush2.msra.mxu0 0.0
    %2554 = vmatprep.subr.mxu0 0.0
    %2555 = vmatpush2.msra.mxu0 0.0
    %2556 = vmatprep.subr.mxu0 0.0
    %2557 = vmatpush2.msra.mxu0 0.0
    %2558 = vmatprep.subr.mxu0 0.0
    %2559 = vmatpush2.msra.mxu0 0.0
    %2560 = vmatprep.subr.mxu0 0.0
    %2561 = vmatpush2.msra.mxu0 0.0
    %2562 = vmatprep.subr.mxu0 0.0
    %2563 = vmatpush2.msra.mxu0 0.0
    %2564 = vmatprep.mubr.f32.mxu0 0.0
    %2565 = vmatmul.mubr.f32.gmra.mxu0 %v2075
    %v2566 = vpop.f32.mrf.mxu0
    %v2567 = vadd.f32 %v2497, %v2566
    %v2568 = vpop.f32.mrf.mxu0
    %2569 = vdwg.mxu0
    %v2570 = vadd.f32 %v2567, %v759
    %v2571 = vxor.u32 %v2147, 2147483648
    %v2572 = vmul.f32 %v2571, 1.442695
    %v2573 = vpow.pop %v2572
    %v2574 = vadd.f32 %v2573, 1.0
    %v2575 = vrcp.pop %v2574
    %v2576 = vmul.f32 1.0, %v2575
    %v2577 = vxor.u32 %v2288, 2147483648
    %v2578 = vmul.f32 %v2577, 1.442695
    %v2579 = vpow.pop %v2578
    %v2580 = vadd.f32 %v2579, 1.0
    %v2581 = vrcp.pop %v2580
    %v2582 = vmul.f32 1.0, %v2581
    %v2583 = vtanh.pop %v2429
    %v2584 = vxor.u32 %v2570, 2147483648
    %v2585 = vmul.f32 %v2584, 1.442695
    %v2586 = vpow.pop %v2585
    %v2587 = vadd.f32 %v2586, 1.0
    %v2588 = vrcp.pop %v2587
    %v2589 = vmul.f32 1.0, %v2588
    %v2590 = vmul.f32 %v2582, %v1378
    %v2591 = vmul.f32 %v2576, %v2583
    %v2592 = vadd.f32 %v2590, %v2591
    %v2593 = vtanh.pop %v2592
    %v2594 = vmul.f32 %v2589, %v2593
    %v2596 = vsel %vm166, %v1992, 0
    %2598 = vmatprep.subr.mxu0 0.0
    %2599 = vmatpush1.msra.mxu0 0.0
    %2600 = vmatprep.subr.mxu0 0.0
    %2601 = vmatpush1.msra.mxu0 0.0
    %2602 = vmatprep.subr.mxu0 0.0
    %2603 = vmatpush1.msra.mxu0 0.0
    %2604 = vmatprep.subr.mxu0 0.0
    %2605 = vmatpush1.msra.mxu0 0.0
    %2606 = vmatprep.subr.mxu0 0.0
    %2607 = vmatpush1.msra.mxu0 0.0
    %2608 = vmatprep.subr.mxu0 0.0
    %2609 = vmatpush1.msra.mxu0 0.0
    %2610 = vmatprep.subr.mxu0 0.0
    %2611 = vmatpush1.msra.mxu0 0.0
    %2612 = vmatprep.subr.mxu0 0.0
    %2613 = vmatpush1.msra.mxu0 0.0
    %2614 = vmatprep.subr.mxu0 0.0
    %2615 = vmatpush1.msra.mxu0 0.0
    %2616 = vmatprep.subr.mxu0 0.0
    %2617 = vmatpush1.msra.mxu0 0.0
    %2618 = vmatprep.subr.mxu0 0.0
    %2619 = vmatpush1.msra.mxu0 0.0
    %2620 = vmatprep.subr.mxu0 0.0
    %2621 = vmatpush1.msra.mxu0 0.0
    %2622 = vmatprep.subr.mxu0 0.0
    %2623 = vmatpush1.msra.mxu0 %v137
    %2624 = vmatprep.subr.mxu0 0.0
    %2625 = vmatpush1.msra.mxu0 %v136
    %2626 = vmatprep.subr.mxu0 0.0
    %2627 = vmatpush1.msra.mxu0 %v135
    %2628 = vmatprep.subr.mxu0 0.0
    %2629 = vmatpush1.msra.mxu0 %v134
    %2630 = vmatprep.subr.mxu0 0.0
    %2631 = vmatpush2.msra.mxu0 0.0
    %2632 = vmatprep.subr.mxu0 0.0
    %2633 = vmatpush2.msra.mxu0 0.0
    %2634 = vmatprep.subr.mxu0 0.0
    %2635 = vmatpush2.msra.mxu0 0.0
    %2636 = vmatprep.subr.mxu0 0.0
    %2637 = vmatpush2.msra.mxu0 0.0
    %2638 = vmatprep.subr.mxu0 0.0
    %2639 = vmatpush2.msra.mxu0 0.0
    %2640 = vmatprep.subr.mxu0 0.0
    %2641 = vmatpush2.msra.mxu0 0.0
    %2642 = vmatprep.subr.mxu0 0.0
    %2643 = vmatpush2.msra.mxu0 0.0
    %2644 = vmatprep.subr.mxu0 0.0
    %2645 = vmatpush2.msra.mxu0 0.0
    %2646 = vmatprep.subr.mxu0 0.0
    %2647 = vmatpush2.msra.mxu0 0.0
    %2648 = vmatprep.subr.mxu0 0.0
    %2649 = vmatpush2.msra.mxu0 0.0
    %2650 = vmatprep.subr.mxu0 0.0
    %2651 = vmatpush2.msra.mxu0 0.0
    %2652 = vmatprep.subr.mxu0 0.0
    %2653 = vmatpush2.msra.mxu0 0.0
    %2654 = vmatprep.subr.mxu0 0.0
    %2655 = vmatpush2.msra.mxu0 0.0
    %2656 = vmatprep.subr.mxu0 0.0
    %2657 = vmatpush2.msra.mxu0 0.0
    %2658 = vmatprep.subr.mxu0 0.0
    %2659 = vmatpush2.msra.mxu0 0.0
    %2660 = vmatprep.subr.mxu0 0.0
    %2661 = vmatpush2.msra.mxu0 0.0
    %2662 = vmatprep.mubr.f32.mxu0 0.0
    %2663 = vmatmul.mubr.f32.gmra.mxu0 %v2596
    %v2664 = vpop.f32.mrf.mxu0
    %v2665 = vadd.f32 0.0, %v2664
    %v2666 = vpop.f32.mrf.mxu0
    %2667 = vdwg.mxu0
    %2668 = vmatprep.subr.mxu0 0.0
    %2669 = vmatpush1.msra.mxu0 0.0
    %2670 = vmatprep.subr.mxu0 0.0
    %2671 = vmatpush1.msra.mxu0 0.0
    %2672 = vmatprep.subr.mxu0 0.0
    %2673 = vmatpush1.msra.mxu0 0.0
    %2674 = vmatprep.subr.mxu0 0.0
    %2675 = vmatpush1.msra.mxu0 0.0
    %2676 = vmatprep.subr.mxu0 0.0
    %2677 = vmatpush1.msra.mxu0 0.0
    %2678 = vmatprep.subr.mxu0 0.0
    %2679 = vmatpush1.msra.mxu0 0.0
    %2680 = vmatprep.subr.mxu0 0.0
    %2681 = vmatpush1.msra.mxu0 0.0
    %2682 = vmatprep.subr.mxu0 0.0
    %2683 = vmatpush1.msra.mxu0 0.0
    %2684 = vmatprep.subr.mxu0 0.0
    %2685 = vmatpush1.msra.mxu0 0.0
    %2686 = vmatprep.subr.mxu0 0.0
    %2687 = vmatpush1.msra.mxu0 0.0
    %2688 = vmatprep.subr.mxu0 0.0
    %2689 = vmatpush1.msra.mxu0 0.0
    %2690 = vmatprep.subr.mxu0 0.0
    %2691 = vmatpush1.msra.mxu0 0.0
    %2692 = vmatprep.subr.mxu0 0.0
    %2693 = vmatpush1.msra.mxu0 %v118
    %2694 = vmatprep.subr.mxu0 0.0
    %2695 = vmatpush1.msra.mxu0 %v117
    %2696 = vmatprep.subr.mxu0 0.0
    %2697 = vmatpush1.msra.mxu0 %v116
    %2698 = vmatprep.subr.mxu0 0.0
    %2699 = vmatpush1.msra.mxu0 %v115
    %2700 = vmatprep.subr.mxu0 0.0
    %2701 = vmatpush2.msra.mxu0 0.0
    %2702 = vmatprep.subr.mxu0 0.0
    %2703 = vmatpush2.msra.mxu0 0.0
    %2704 = vmatprep.subr.mxu0 0.0
    %2705 = vmatpush2.msra.mxu0 0.0
    %2706 = vmatprep.subr.mxu0 0.0
    %2707 = vmatpush2.msra.mxu0 0.0
    %2708 = vmatprep.subr.mxu0 0.0
    %2709 = vmatpush2.msra.mxu0 0.0
    %2710 = vmatprep.subr.mxu0 0.0
    %2711 = vmatpush2.msra.mxu0 0.0
    %2712 = vmatprep.subr.mxu0 0.0
    %2713 = vmatpush2.msra.mxu0 0.0
    %2714 = vmatprep.subr.mxu0 0.0
    %2715 = vmatpush2.msra.mxu0 0.0
    %2716 = vmatprep.subr.mxu0 0.0
    %2717 = vmatpush2.msra.mxu0 0.0
    %2718 = vmatprep.subr.mxu0 0.0
    %2719 = vmatpush2.msra.mxu0 0.0
    %2720 = vmatprep.subr.mxu0 0.0
    %2721 = vmatpush2.msra.mxu0 0.0
    %2722 = vmatprep.subr.mxu0 0.0
    %2723 = vmatpush2.msra.mxu0 0.0
    %2724 = vmatprep.subr.mxu0 0.0
    %2725 = vmatpush2.msra.mxu0 0.0
    %2726 = vmatprep.subr.mxu0 0.0
    %2727 = vmatpush2.msra.mxu0 0.0
    %2728 = vmatprep.subr.mxu0 0.0
    %2729 = vmatpush2.msra.mxu0 0.0
    %2730 = vmatprep.subr.mxu0 0.0
    %2731 = vmatpush2.msra.mxu0 0.0
    %2732 = vmatprep.mubr.f32.mxu0 0.0
    %2733 = vmatmul.mubr.f32.gmra.mxu0 %v2001
    %v2734 = vpop.f32.mrf.mxu0
    %v2735 = vadd.f32 %v2665, %v2734
    %v2736 = vpop.f32.mrf.mxu0
    %2737 = vdwg.mxu0
    %v2738 = vadd.f32 %v2735, %v1525
    %2739 = vmatprep.subr.mxu0 0.0
    %2740 = vmatpush1.msra.mxu0 0.0
    %2741 = vmatprep.subr.mxu0 0.0
    %2742 = vmatpush1.msra.mxu0 0.0
    %2743 = vmatprep.subr.mxu0 0.0
    %2744 = vmatpush1.msra.mxu0 0.0
    %2745 = vmatprep.subr.mxu0 0.0
    %2746 = vmatpush1.msra.mxu0 0.0
    %2747 = vmatprep.subr.mxu0 0.0
    %2748 = vmatpush1.msra.mxu0 0.0
    %2749 = vmatprep.subr.mxu0 0.0
    %2750 = vmatpush1.msra.mxu0 0.0
    %2751 = vmatprep.subr.mxu0 0.0
    %2752 = vmatpush1.msra.mxu0 0.0
    %2753 = vmatprep.subr.mxu0 0.0
    %2754 = vmatpush1.msra.mxu0 0.0
    %2755 = vmatprep.subr.mxu0 0.0
    %2756 = vmatpush1.msra.mxu0 0.0
    %2757 = vmatprep.subr.mxu0 0.0
    %2758 = vmatpush1.msra.mxu0 0.0
    %2759 = vmatprep.subr.mxu0 0.0
    %2760 = vmatpush1.msra.mxu0 0.0
    %2761 = vmatprep.subr.mxu0 0.0
    %2762 = vmatpush1.msra.mxu0 0.0
    %2763 = vmatprep.subr.mxu0 0.0
    %2764 = vmatpush1.msra.mxu0 %v142
    %2765 = vmatprep.subr.mxu0 0.0
    %2766 = vmatpush1.msra.mxu0 %v141
    %2767 = vmatprep.subr.mxu0 0.0
    %2768 = vmatpush1.msra.mxu0 %v140
    %2769 = vmatprep.subr.mxu0 0.0
    %2770 = vmatpush1.msra.mxu0 %v139
    %2771 = vmatprep.subr.mxu0 0.0
    %2772 = vmatpush2.msra.mxu0 0.0
    %2773 = vmatprep.subr.mxu0 0.0
    %2774 = vmatpush2.msra.mxu0 0.0
    %2775 = vmatprep.subr.mxu0 0.0
    %2776 = vmatpush2.msra.mxu0 0.0
    %2777 = vmatprep.subr.mxu0 0.0
    %2778 = vmatpush2.msra.mxu0 0.0
    %2779 = vmatprep.subr.mxu0 0.0
    %2780 = vmatpush2.msra.mxu0 0.0
    %2781 = vmatprep.subr.mxu0 0.0
    %2782 = vmatpush2.msra.mxu0 0.0
    %2783 = vmatprep.subr.mxu0 0.0
    %2784 = vmatpush2.msra.mxu0 0.0
    %2785 = vmatprep.subr.mxu0 0.0
    %2786 = vmatpush2.msra.mxu0 0.0
    %2787 = vmatprep.subr.mxu0 0.0
    %2788 = vmatpush2.msra.mxu0 0.0
    %2789 = vmatprep.subr.mxu0 0.0
    %2790 = vmatpush2.msra.mxu0 0.0
    %2791 = vmatprep.subr.mxu0 0.0
    %2792 = vmatpush2.msra.mxu0 0.0
    %2793 = vmatprep.subr.mxu0 0.0
    %2794 = vmatpush2.msra.mxu0 0.0
    %2795 = vmatprep.subr.mxu0 0.0
    %2796 = vmatpush2.msra.mxu0 0.0
    %2797 = vmatprep.subr.mxu0 0.0
    %2798 = vmatpush2.msra.mxu0 0.0
    %2799 = vmatprep.subr.mxu0 0.0
    %2800 = vmatpush2.msra.mxu0 0.0
    %2801 = vmatprep.subr.mxu0 0.0
    %2802 = vmatpush2.msra.mxu0 0.0
    %2803 = vmatprep.mubr.f32.mxu0 0.0
    %2804 = vmatmul.mubr.f32.gmra.mxu0 %v2596
    %v2805 = vpop.f32.mrf.mxu0
    %v2806 = vadd.f32 0.0, %v2805
    %v2807 = vpop.f32.mrf.mxu0
    %2808 = vdwg.mxu0
    %2809 = vmatprep.subr.mxu0 0.0
    %2810 = vmatpush1.msra.mxu0 0.0
    %2811 = vmatprep.subr.mxu0 0.0
    %2812 = vmatpush1.msra.mxu0 0.0
    %2813 = vmatprep.subr.mxu0 0.0
    %2814 = vmatpush1.msra.mxu0 0.0
    %2815 = vmatprep.subr.mxu0 0.0
    %2816 = vmatpush1.msra.mxu0 0.0
    %2817 = vmatprep.subr.mxu0 0.0
    %2818 = vmatpush1.msra.mxu0 0.0
    %2819 = vmatprep.subr.mxu0 0.0
    %2820 = vmatpush1.msra.mxu0 0.0
    %2821 = vmatprep.subr.mxu0 0.0
    %2822 = vmatpush1.msra.mxu0 0.0
    %2823 = vmatprep.subr.mxu0 0.0
    %2824 = vmatpush1.msra.mxu0 0.0
    %2825 = vmatprep.subr.mxu0 0.0
    %2826 = vmatpush1.msra.mxu0 0.0
    %2827 = vmatprep.subr.mxu0 0.0
    %2828 = vmatpush1.msra.mxu0 0.0
    %2829 = vmatprep.subr.mxu0 0.0
    %2830 = vmatpush1.msra.mxu0 0.0
    %2831 = vmatprep.subr.mxu0 0.0
    %2832 = vmatpush1.msra.mxu0 0.0
    %2833 = vmatprep.subr.mxu0 0.0
    %2834 = vmatpush1.msra.mxu0 %v123
    %2835 = vmatprep.subr.mxu0 0.0
    %2836 = vmatpush1.msra.mxu0 %v122
    %2837 = vmatprep.subr.mxu0 0.0
    %2838 = vmatpush1.msra.mxu0 %v121
    %2839 = vmatprep.subr.mxu0 0.0
    %2840 = vmatpush1.msra.mxu0 %v120
    %2841 = vmatprep.subr.mxu0 0.0
    %2842 = vmatpush2.msra.mxu0 0.0
    %2843 = vmatprep.subr.mxu0 0.0
    %2844 = vmatpush2.msra.mxu0 0.0
    %2845 = vmatprep.subr.mxu0 0.0
    %2846 = vmatpush2.msra.mxu0 0.0
    %2847 = vmatprep.subr.mxu0 0.0
    %2848 = vmatpush2.msra.mxu0 0.0
    %2849 = vmatprep.subr.mxu0 0.0
    %2850 = vmatpush2.msra.mxu0 0.0
    %2851 = vmatprep.subr.mxu0 0.0
    %2852 = vmatpush2.msra.mxu0 0.0
    %2853 = vmatprep.subr.mxu0 0.0
    %2854 = vmatpush2.msra.mxu0 0.0
    %2855 = vmatprep.subr.mxu0 0.0
    %2856 = vmatpush2.msra.mxu0 0.0
    %2857 = vmatprep.subr.mxu0 0.0
    %2858 = vmatpush2.msra.mxu0 0.0
    %2859 = vmatprep.subr.mxu0 0.0
    %2860 = vmatpush2.msra.mxu0 0.0
    %2861 = vmatprep.subr.mxu0 0.0
    %2862 = vmatpush2.msra.mxu0 0.0
    %2863 = vmatprep.subr.mxu0 0.0
    %2864 = vmatpush2.msra.mxu0 0.0
    %2865 = vmatprep.subr.mxu0 0.0
    %2866 = vmatpush2.msra.mxu0 0.0
    %2867 = vmatprep.subr.mxu0 0.0
    %2868 = vmatpush2.msra.mxu0 0.0
    %2869 = vmatprep.subr.mxu0 0.0
    %2870 = vmatpush2.msra.mxu0 0.0
    %2871 = vmatprep.subr.mxu0 0.0
    %2872 = vmatpush2.msra.mxu0 0.0
    %2873 = vmatprep.mubr.f32.mxu0 0.0
    %2874 = vmatmul.mubr.f32.gmra.mxu0 %v2001
    %v2875 = vpop.f32.mrf.mxu0
    %v2876 = vadd.f32 %v2806, %v2875
    %v2877 = vpop.f32.mrf.mxu0
    %2878 = vdwg.mxu0
    %v2879 = vadd.f32 %v2876, %v1672
    %2880 = vmatprep.subr.mxu0 0.0
    %2881 = vmatpush1.msra.mxu0 0.0
    %2882 = vmatprep.subr.mxu0 0.0
    %2883 = vmatpush1.msra.mxu0 0.0
    %2884 = vmatprep.subr.mxu0 0.0
    %2885 = vmatpush1.msra.mxu0 0.0
    %2886 = vmatprep.subr.mxu0 0.0
    %2887 = vmatpush1.msra.mxu0 0.0
    %2888 = vmatprep.subr.mxu0 0.0
    %2889 = vmatpush1.msra.mxu0 0.0
    %2890 = vmatprep.subr.mxu0 0.0
    %2891 = vmatpush1.msra.mxu0 0.0
    %2892 = vmatprep.subr.mxu0 0.0
    %2893 = vmatpush1.msra.mxu0 0.0
    %2894 = vmatprep.subr.mxu0 0.0
    %2895 = vmatpush1.msra.mxu0 0.0
    %2896 = vmatprep.subr.mxu0 0.0
    %2897 = vmatpush1.msra.mxu0 0.0
    %2898 = vmatprep.subr.mxu0 0.0
    %2899 = vmatpush1.msra.mxu0 0.0
    %2900 = vmatprep.subr.mxu0 0.0
    %2901 = vmatpush1.msra.mxu0 0.0
    %2902 = vmatprep.subr.mxu0 0.0
    %2903 = vmatpush1.msra.mxu0 0.0
    %2904 = vmatprep.subr.mxu0 0.0
    %2905 = vmatpush1.msra.mxu0 %v147
    %2906 = vmatprep.subr.mxu0 0.0
    %2907 = vmatpush1.msra.mxu0 %v146
    %2908 = vmatprep.subr.mxu0 0.0
    %2909 = vmatpush1.msra.mxu0 %v145
    %2910 = vmatprep.subr.mxu0 0.0
    %2911 = vmatpush1.msra.mxu0 %v144
    %2912 = vmatprep.subr.mxu0 0.0
    %2913 = vmatpush2.msra.mxu0 0.0
    %2914 = vmatprep.subr.mxu0 0.0
    %2915 = vmatpush2.msra.mxu0 0.0
    %2916 = vmatprep.subr.mxu0 0.0
    %2917 = vmatpush2.msra.mxu0 0.0
    %2918 = vmatprep.subr.mxu0 0.0
    %2919 = vmatpush2.msra.mxu0 0.0
    %2920 = vmatprep.subr.mxu0 0.0
    %2921 = vmatpush2.msra.mxu0 0.0
    %2922 = vmatprep.subr.mxu0 0.0
    %2923 = vmatpush2.msra.mxu0 0.0
    %2924 = vmatprep.subr.mxu0 0.0
    %2925 = vmatpush2.msra.mxu0 0.0
    %2926 = vmatprep.subr.mxu0 0.0
    %2927 = vmatpush2.msra.mxu0 0.0
    %2928 = vmatprep.subr.mxu0 0.0
    %2929 = vmatpush2.msra.mxu0 0.0
    %2930 = vmatprep.subr.mxu0 0.0
    %2931 = vmatpush2.msra.mxu0 0.0
    %2932 = vmatprep.subr.mxu0 0.0
    %2933 = vmatpush2.msra.mxu0 0.0
    %2934 = vmatprep.subr.mxu0 0.0
    %2935 = vmatpush2.msra.mxu0 0.0
    %2936 = vmatprep.subr.mxu0 0.0
    %2937 = vmatpush2.msra.mxu0 0.0
    %2938 = vmatprep.subr.mxu0 0.0
    %2939 = vmatpush2.msra.mxu0 0.0
    %2940 = vmatprep.subr.mxu0 0.0
    %2941 = vmatpush2.msra.mxu0 0.0
    %2942 = vmatprep.subr.mxu0 0.0
    %2943 = vmatpush2.msra.mxu0 0.0
    %2944 = vmatprep.mubr.f32.mxu0 0.0
    %2945 = vmatmul.mubr.f32.gmra.mxu0 %v2596
    %v2946 = vpop.f32.mrf.mxu0
    %v2947 = vadd.f32 0.0, %v2946
    %v2948 = vpop.f32.mrf.mxu0
    %2949 = vdwg.mxu0
    %2950 = vmatprep.subr.mxu0 0.0
    %2951 = vmatpush1.msra.mxu0 0.0
    %2952 = vmatprep.subr.mxu0 0.0
    %2953 = vmatpush1.msra.mxu0 0.0
    %2954 = vmatprep.subr.mxu0 0.0
    %2955 = vmatpush1.msra.mxu0 0.0
    %2956 = vmatprep.subr.mxu0 0.0
    %2957 = vmatpush1.msra.mxu0 0.0
    %2958 = vmatprep.subr.mxu0 0.0
    %2959 = vmatpush1.msra.mxu0 0.0
    %2960 = vmatprep.subr.mxu0 0.0
    %2961 = vmatpush1.msra.mxu0 0.0
    %2962 = vmatprep.subr.mxu0 0.0
    %2963 = vmatpush1.msra.mxu0 0.0
    %2964 = vmatprep.subr.mxu0 0.0
    %2965 = vmatpush1.msra.mxu0 0.0
    %2966 = vmatprep.subr.mxu0 0.0
    %2967 = vmatpush1.msra.mxu0 0.0
    %2968 = vmatprep.subr.mxu0 0.0
    %2969 = vmatpush1.msra.mxu0 0.0
    %2970 = vmatprep.subr.mxu0 0.0
    %2971 = vmatpush1.msra.mxu0 0.0
    %2972 = vmatprep.subr.mxu0 0.0
    %2973 = vmatpush1.msra.mxu0 0.0
    %2974 = vmatprep.subr.mxu0 0.0
    %2975 = vmatpush1.msra.mxu0 %v128
    %2976 = vmatprep.subr.mxu0 0.0
    %2977 = vmatpush1.msra.mxu0 %v127
    %2978 = vmatprep.subr.mxu0 0.0
    %2979 = vmatpush1.msra.mxu0 %v126
    %2980 = vmatprep.subr.mxu0 0.0
    %2981 = vmatpush1.msra.mxu0 %v125
    %2982 = vmatprep.subr.mxu0 0.0
    %2983 = vmatpush2.msra.mxu0 0.0
    %2984 = vmatprep.subr.mxu0 0.0
    %2985 = vmatpush2.msra.mxu0 0.0
    %2986 = vmatprep.subr.mxu0 0.0
    %2987 = vmatpush2.msra.mxu0 0.0
    %2988 = vmatprep.subr.mxu0 0.0
    %2989 = vmatpush2.msra.mxu0 0.0
    %2990 = vmatprep.subr.mxu0 0.0
    %2991 = vmatpush2.msra.mxu0 0.0
    %2992 = vmatprep.subr.mxu0 0.0
    %2993 = vmatpush2.msra.mxu0 0.0
    %2994 = vmatprep.subr.mxu0 0.0
    %2995 = vmatpush2.msra.mxu0 0.0
    %2996 = vmatprep.subr.mxu0 0.0
    %2997 = vmatpush2.msra.mxu0 0.0
    %2998 = vmatprep.subr.mxu0 0.0
    %2999 = vmatpush2.msra.mxu0 0.0
    %3000 = vmatprep.subr.mxu0 0.0
    %3001 = vmatpush2.msra.mxu0 0.0
    %3002 = vmatprep.subr.mxu0 0.0
    %3003 = vmatpush2.msra.mxu0 0.0
    %3004 = vmatprep.subr.mxu0 0.0
    %3005 = vmatpush2.msra.mxu0 0.0
    %3006 = vmatprep.subr.mxu0 0.0
    %3007 = vmatpush2.msra.mxu0 0.0
    %3008 = vmatprep.subr.mxu0 0.0
    %3009 = vmatpush2.msra.mxu0 0.0
    %3010 = vmatprep.subr.mxu0 0.0
    %3011 = vmatpush2.msra.mxu0 0.0
    %3012 = vmatprep.subr.mxu0 0.0
    %3013 = vmatpush2.msra.mxu0 0.0
    %3014 = vmatprep.mubr.f32.mxu0 0.0
    %3015 = vmatmul.mubr.f32.gmra.mxu0 %v2001
    %v3016 = vpop.f32.mrf.mxu0
    %v3017 = vadd.f32 %v2947, %v3016
    %v3018 = vpop.f32.mrf.mxu0
    %3019 = vdwg.mxu0
    %v3020 = vadd.f32 %v3017, %v1819
    %3021 = vmatprep.subr.mxu0 0.0
    %3022 = vmatpush1.msra.mxu0 0.0
    %3023 = vmatprep.subr.mxu0 0.0
    %3024 = vmatpush1.msra.mxu0 0.0
    %3025 = vmatprep.subr.mxu0 0.0
    %3026 = vmatpush1.msra.mxu0 0.0
    %3027 = vmatprep.subr.mxu0 0.0
    %3028 = vmatpush1.msra.mxu0 0.0
    %3029 = vmatprep.subr.mxu0 0.0
    %3030 = vmatpush1.msra.mxu0 0.0
    %3031 = vmatprep.subr.mxu0 0.0
    %3032 = vmatpush1.msra.mxu0 0.0
    %3033 = vmatprep.subr.mxu0 0.0
    %3034 = vmatpush1.msra.mxu0 0.0
    %3035 = vmatprep.subr.mxu0 0.0
    %3036 = vmatpush1.msra.mxu0 0.0
    %3037 = vmatprep.subr.mxu0 0.0
    %3038 = vmatpush1.msra.mxu0 0.0
    %3039 = vmatprep.subr.mxu0 0.0
    %3040 = vmatpush1.msra.mxu0 0.0
    %3041 = vmatprep.subr.mxu0 0.0
    %3042 = vmatpush1.msra.mxu0 0.0
    %3043 = vmatprep.subr.mxu0 0.0
    %3044 = vmatpush1.msra.mxu0 0.0
    %3045 = vmatprep.subr.mxu0 0.0
    %3046 = vmatpush1.msra.mxu0 %v152
    %3047 = vmatprep.subr.mxu0 0.0
    %3048 = vmatpush1.msra.mxu0 %v151
    %3049 = vmatprep.subr.mxu0 0.0
    %3050 = vmatpush1.msra.mxu0 %v150
    %3051 = vmatprep.subr.mxu0 0.0
    %3052 = vmatpush1.msra.mxu0 %v149
    %3053 = vmatprep.subr.mxu0 0.0
    %3054 = vmatpush2.msra.mxu0 0.0
    %3055 = vmatprep.subr.mxu0 0.0
    %3056 = vmatpush2.msra.mxu0 0.0
    %3057 = vmatprep.subr.mxu0 0.0
    %3058 = vmatpush2.msra.mxu0 0.0
    %3059 = vmatprep.subr.mxu0 0.0
    %3060 = vmatpush2.msra.mxu0 0.0
    %3061 = vmatprep.subr.mxu0 0.0
    %3062 = vmatpush2.msra.mxu0 0.0
    %3063 = vmatprep.subr.mxu0 0.0
    %3064 = vmatpush2.msra.mxu0 0.0
    %3065 = vmatprep.subr.mxu0 0.0
    %3066 = vmatpush2.msra.mxu0 0.0
    %3067 = vmatprep.subr.mxu0 0.0
    %3068 = vmatpush2.msra.mxu0 0.0
    %3069 = vmatprep.subr.mxu0 0.0
    %3070 = vmatpush2.msra.mxu0 0.0
    %3071 = vmatprep.subr.mxu0 0.0
    %3072 = vmatpush2.msra.mxu0 0.0
    %3073 = vmatprep.subr.mxu0 0.0
    %3074 = vmatpush2.msra.mxu0 0.0
    %3075 = vmatprep.subr.mxu0 0.0
    %3076 = vmatpush2.msra.mxu0 0.0
    %3077 = vmatprep.subr.mxu0 0.0
    %3078 = vmatpush2.msra.mxu0 0.0
    %3079 = vmatprep.subr.mxu0 0.0
    %3080 = vmatpush2.msra.mxu0 0.0
    %3081 = vmatprep.subr.mxu0 0.0
    %3082 = vmatpush2.msra.mxu0 0.0
    %3083 = vmatprep.subr.mxu0 0.0
    %3084 = vmatpush2.msra.mxu0 0.0
    %3085 = vmatprep.mubr.f32.mxu0 0.0
    %3086 = vmatmul.mubr.f32.gmra.mxu0 %v2596
    %v3087 = vpop.f32.mrf.mxu0
    %v3088 = vadd.f32 0.0, %v3087
    %v3089 = vpop.f32.mrf.mxu0
    %3090 = vdwg.mxu0
    %3091 = vmatprep.subr.mxu0 0.0
    %3092 = vmatpush1.msra.mxu0 0.0
    %3093 = vmatprep.subr.mxu0 0.0
    %3094 = vmatpush1.msra.mxu0 0.0
    %3095 = vmatprep.subr.mxu0 0.0
    %3096 = vmatpush1.msra.mxu0 0.0
    %3097 = vmatprep.subr.mxu0 0.0
    %3098 = vmatpush1.msra.mxu0 0.0
    %3099 = vmatprep.subr.mxu0 0.0
    %3100 = vmatpush1.msra.mxu0 0.0
    %3101 = vmatprep.subr.mxu0 0.0
    %3102 = vmatpush1.msra.mxu0 0.0
    %3103 = vmatprep.subr.mxu0 0.0
    %3104 = vmatpush1.msra.mxu0 0.0
    %3105 = vmatprep.subr.mxu0 0.0
    %3106 = vmatpush1.msra.mxu0 0.0
    %3107 = vmatprep.subr.mxu0 0.0
    %3108 = vmatpush1.msra.mxu0 0.0
    %3109 = vmatprep.subr.mxu0 0.0
    %3110 = vmatpush1.msra.mxu0 0.0
    %3111 = vmatprep.subr.mxu0 0.0
    %3112 = vmatpush1.msra.mxu0 0.0
    %3113 = vmatprep.subr.mxu0 0.0
    %3114 = vmatpush1.msra.mxu0 0.0
    %3115 = vmatprep.subr.mxu0 0.0
    %3116 = vmatpush1.msra.mxu0 %v133
    %3117 = vmatprep.subr.mxu0 0.0
    %3118 = vmatpush1.msra.mxu0 %v132
    %3119 = vmatprep.subr.mxu0 0.0
    %3120 = vmatpush1.msra.mxu0 %v131
    %3121 = vmatprep.subr.mxu0 0.0
    %3122 = vmatpush1.msra.mxu0 %v130
    %3123 = vmatprep.subr.mxu0 0.0
    %3124 = vmatpush2.msra.mxu0 0.0
    %3125 = vmatprep.subr.mxu0 0.0
    %3126 = vmatpush2.msra.mxu0 0.0
    %3127 = vmatprep.subr.mxu0 0.0
    %3128 = vmatpush2.msra.mxu0 0.0
    %3129 = vmatprep.subr.mxu0 0.0
    %3130 = vmatpush2.msra.mxu0 0.0
    %3131 = vmatprep.subr.mxu0 0.0
    %3132 = vmatpush2.msra.mxu0 0.0
    %3133 = vmatprep.subr.mxu0 0.0
    %3134 = vmatpush2.msra.mxu0 0.0
    %3135 = vmatprep.subr.mxu0 0.0
    %3136 = vmatpush2.msra.mxu0 0.0
    %3137 = vmatprep.subr.mxu0 0.0
    %3138 = vmatpush2.msra.mxu0 0.0
    %3139 = vmatprep.subr.mxu0 0.0
    %3140 = vmatpush2.msra.mxu0 0.0
    %3141 = vmatprep.subr.mxu0 0.0
    %3142 = vmatpush2.msra.mxu0 0.0
    %3143 = vmatprep.subr.mxu0 0.0
    %3144 = vmatpush2.msra.mxu0 0.0
    %3145 = vmatprep.subr.mxu0 0.0
    %3146 = vmatpush2.msra.mxu0 0.0
    %3147 = vmatprep.subr.mxu0 0.0
    %3148 = vmatpush2.msra.mxu0 0.0
    %3149 = vmatprep.subr.mxu0 0.0
    %3150 = vmatpush2.msra.mxu0 0.0
    %3151 = vmatprep.subr.mxu0 0.0
    %3152 = vmatpush2.msra.mxu0 0.0
    %3153 = vmatprep.subr.mxu0 0.0
    %3154 = vmatpush2.msra.mxu0 0.0
    %3155 = vmatprep.mubr.f32.mxu0 0.0
    %3156 = vmatmul.mubr.f32.gmra.mxu0 %v2001
    %v3157 = vpop.f32.mrf.mxu0
    %v3158 = vadd.f32 %v3088, %v3157
    %v3159 = vpop.f32.mrf.mxu0
    %3160 = vdwg.mxu0
    %v3161 = vadd.f32 %v3158, %v1966
    %v3162 = vxor.u32 %v2738, 2147483648
    %v3163 = vmul.f32 %v3162, 1.442695
    %v3164 = vpow.pop %v3163
    %v3165 = vadd.f32 %v3164, 1.0
    %v3166 = vrcp.pop %v3165
    %v3167 = vmul.f32 1.0, %v3166
    %v3168 = vxor.u32 %v2879, 2147483648
    %v3169 = vmul.f32 %v3168, 1.442695
    %v3170 = vpow.pop %v3169
    %v3171 = vadd.f32 %v3170, 1.0
    %v3172 = vrcp.pop %v3171
    %v3173 = vmul.f32 1.0, %v3172
    %v3174 = vtanh.pop %v3020
    %v3175 = vxor.u32 %v3161, 2147483648
    %v3176 = vmul.f32 %v3175, 1.442695
    %v3177 = vpow.pop %v3176
    %v3178 = vadd.f32 %v3177, 1.0
    %v3179 = vrcp.pop %v3178
    %v3180 = vmul.f32 1.0, %v3179
    %v3181 = vmul.f32 %v3173, %v1990
    %v3182 = vmul.f32 %v3167, %v3174
    %v3183 = vadd.f32 %v3181, %v3182
    %v3184 = vtanh.pop %v3183
    %v3185 = vmul.f32 %v3180, %v3184
    %vm3186 = vcmp.eq.s32.totalorder %v165, 1
    %v3187 = vsel %vm3186, 1, 0
    %3188 = vset.pattern.permute.xlu0 0
    %3189 = vperm.xlu0 %3188, %v3187
    %v3190 = vpop.permute.xlu0 %3189
    %vm3191 = vcmp.eq.s32.totalorder %v3190, 1
    %v3192 = vsel %vm3191, %v3185, %v1999
    %v3194 = vsel %vm166, %v2594, 0
    %3196 = vmatprep.subr.mxu0 0.0
    %3197 = vmatpush1.msra.mxu0 0.0
    %3198 = vmatprep.subr.mxu0 0.0
    %3199 = vmatpush1.msra.mxu0 0.0
    %3200 = vmatprep.subr.mxu0 0.0
    %3201 = vmatpush1.msra.mxu0 0.0
    %3202 = vmatprep.subr.mxu0 0.0
    %3203 = vmatpush1.msra.mxu0 0.0
    %3204 = vmatprep.subr.mxu0 0.0
    %3205 = vmatpush1.msra.mxu0 0.0
    %3206 = vmatprep.subr.mxu0 0.0
    %3207 = vmatpush1.msra.mxu0 0.0
    %3208 = vmatprep.subr.mxu0 0.0
    %3209 = vmatpush1.msra.mxu0 0.0
    %3210 = vmatprep.subr.mxu0 0.0
    %3211 = vmatpush1.msra.mxu0 0.0
    %3212 = vmatprep.subr.mxu0 0.0
    %3213 = vmatpush1.msra.mxu0 0.0
    %3214 = vmatprep.subr.mxu0 0.0
    %3215 = vmatpush1.msra.mxu0 0.0
    %3216 = vmatprep.subr.mxu0 0.0
    %3217 = vmatpush1.msra.mxu0 0.0
    %3218 = vmatprep.subr.mxu0 0.0
    %3219 = vmatpush1.msra.mxu0 0.0
    %3220 = vmatprep.subr.mxu0 0.0
    %3221 = vmatpush1.msra.mxu0 %v92
    %3222 = vmatprep.subr.mxu0 0.0
    %3223 = vmatpush1.msra.mxu0 %v91
    %3224 = vmatprep.subr.mxu0 0.0
    %3225 = vmatpush1.msra.mxu0 %v90
    %3226 = vmatprep.subr.mxu0 0.0
    %3227 = vmatpush1.msra.mxu0 %v89
    %3228 = vmatprep.subr.mxu0 0.0
    %3229 = vmatpush2.msra.mxu0 0.0
    %3230 = vmatprep.subr.mxu0 0.0
    %3231 = vmatpush2.msra.mxu0 0.0
    %3232 = vmatprep.subr.mxu0 0.0
    %3233 = vmatpush2.msra.mxu0 0.0
    %3234 = vmatprep.subr.mxu0 0.0
    %3235 = vmatpush2.msra.mxu0 0.0
    %3236 = vmatprep.subr.mxu0 0.0
    %3237 = vmatpush2.msra.mxu0 0.0
    %3238 = vmatprep.subr.mxu0 0.0
    %3239 = vmatpush2.msra.mxu0 0.0
    %3240 = vmatprep.subr.mxu0 0.0
    %3241 = vmatpush2.msra.mxu0 0.0
    %3242 = vmatprep.subr.mxu0 0.0
    %3243 = vmatpush2.msra.mxu0 0.0
    %3244 = vmatprep.subr.mxu0 0.0
    %3245 = vmatpush2.msra.mxu0 0.0
    %3246 = vmatprep.subr.mxu0 0.0
    %3247 = vmatpush2.msra.mxu0 0.0
    %3248 = vmatprep.subr.mxu0 0.0
    %3249 = vmatpush2.msra.mxu0 0.0
    %3250 = vmatprep.subr.mxu0 0.0
    %3251 = vmatpush2.msra.mxu0 0.0
    %3252 = vmatprep.subr.mxu0 0.0
    %3253 = vmatpush2.msra.mxu0 0.0
    %3254 = vmatprep.subr.mxu0 0.0
    %3255 = vmatpush2.msra.mxu0 0.0
    %3256 = vmatprep.subr.mxu0 0.0
    %3257 = vmatpush2.msra.mxu0 0.0
    %3258 = vmatprep.subr.mxu0 0.0
    %3259 = vmatpush2.msra.mxu0 0.0
    %3260 = vmatprep.mubr.f32.mxu0 0.0
    %3261 = vmatmul.mubr.f32.gmra.mxu0 %v3194
    %v3262 = vpop.f32.mrf.mxu0
    %v3263 = vadd.f32 0.0, %v3262
    %v3264 = vpop.f32.mrf.mxu0
    %3265 = vdwg.mxu0
    %3266 = vrot.lane.b32.xlu0 %v81, 104
    %v3267 = vpop.permute.xlu0 %3266
    %v3268 = vsel %vm240, %v3267, 0
    %3270 = vmatprep.subr.mxu0 0.0
    %3271 = vmatpush1.msra.mxu0 0.0
    %3272 = vmatprep.subr.mxu0 0.0
    %3273 = vmatpush1.msra.mxu0 0.0
    %3274 = vmatprep.subr.mxu0 0.0
    %3275 = vmatpush1.msra.mxu0 0.0
    %3276 = vmatprep.subr.mxu0 0.0
    %3277 = vmatpush1.msra.mxu0 0.0
    %3278 = vmatprep.subr.mxu0 0.0
    %3279 = vmatpush1.msra.mxu0 0.0
    %3280 = vmatprep.subr.mxu0 0.0
    %3281 = vmatpush1.msra.mxu0 0.0
    %3282 = vmatprep.subr.mxu0 0.0
    %3283 = vmatpush1.msra.mxu0 0.0
    %3284 = vmatprep.subr.mxu0 0.0
    %3285 = vmatpush1.msra.mxu0 0.0
    %3286 = vmatprep.subr.mxu0 0.0
    %3287 = vmatpush1.msra.mxu0 0.0
    %3288 = vmatprep.subr.mxu0 0.0
    %3289 = vmatpush1.msra.mxu0 0.0
    %3290 = vmatprep.subr.mxu0 0.0
    %3291 = vmatpush1.msra.mxu0 0.0
    %3292 = vmatprep.subr.mxu0 0.0
    %3293 = vmatpush1.msra.mxu0 0.0
    %3294 = vmatprep.subr.mxu0 0.0
    %3295 = vmatpush1.msra.mxu0 0.0
    %3296 = vmatprep.subr.mxu0 0.0
    %3297 = vmatpush1.msra.mxu0 0.0
    %3298 = vmatprep.subr.mxu0 0.0
    %3299 = vmatpush1.msra.mxu0 0.0
    %3300 = vmatprep.subr.mxu0 0.0
    %3301 = vmatpush1.msra.mxu0 %v82
    %3302 = vmatprep.subr.mxu0 0.0
    %3303 = vmatpush2.msra.mxu0 0.0
    %3304 = vmatprep.subr.mxu0 0.0
    %3305 = vmatpush2.msra.mxu0 0.0
    %3306 = vmatprep.subr.mxu0 0.0
    %3307 = vmatpush2.msra.mxu0 0.0
    %3308 = vmatprep.subr.mxu0 0.0
    %3309 = vmatpush2.msra.mxu0 0.0
    %3310 = vmatprep.subr.mxu0 0.0
    %3311 = vmatpush2.msra.mxu0 0.0
    %3312 = vmatprep.subr.mxu0 0.0
    %3313 = vmatpush2.msra.mxu0 0.0
    %3314 = vmatprep.subr.mxu0 0.0
    %3315 = vmatpush2.msra.mxu0 0.0
    %3316 = vmatprep.subr.mxu0 0.0
    %3317 = vmatpush2.msra.mxu0 0.0
    %3318 = vmatprep.subr.mxu0 0.0
    %3319 = vmatpush2.msra.mxu0 0.0
    %3320 = vmatprep.subr.mxu0 0.0
    %3321 = vmatpush2.msra.mxu0 0.0
    %3322 = vmatprep.subr.mxu0 0.0
    %3323 = vmatpush2.msra.mxu0 0.0
    %3324 = vmatprep.subr.mxu0 0.0
    %3325 = vmatpush2.msra.mxu0 0.0
    %3326 = vmatprep.subr.mxu0 0.0
    %3327 = vmatpush2.msra.mxu0 0.0
    %3328 = vmatprep.subr.mxu0 0.0
    %3329 = vmatpush2.msra.mxu0 0.0
    %3330 = vmatprep.subr.mxu0 0.0
    %3331 = vmatpush2.msra.mxu0 0.0
    %3332 = vmatprep.subr.mxu0 0.0
    %3333 = vmatpush2.msra.mxu0 0.0
    %3334 = vmatprep.mubr.f32.mxu0 0.0
    %3335 = vmatmul.mubr.f32.gmra.mxu0 %v3268
    %v3336 = vpop.f32.mrf.mxu0
    %v3337 = vadd.f32 %v3263, %v3336
    %v3338 = vpop.f32.mrf.mxu0
    %3339 = vdwg.mxu0
    %v3340 = vadd.f32 %v3337, %v318
    %3341 = vmatprep.subr.mxu0 0.0
    %3342 = vmatpush1.msra.mxu0 0.0
    %3343 = vmatprep.subr.mxu0 0.0
    %3344 = vmatpush1.msra.mxu0 0.0
    %3345 = vmatprep.subr.mxu0 0.0
    %3346 = vmatpush1.msra.mxu0 0.0
    %3347 = vmatprep.subr.mxu0 0.0
    %3348 = vmatpush1.msra.mxu0 0.0
    %3349 = vmatprep.subr.mxu0 0.0
    %3350 = vmatpush1.msra.mxu0 0.0
    %3351 = vmatprep.subr.mxu0 0.0
    %3352 = vmatpush1.msra.mxu0 0.0
    %3353 = vmatprep.subr.mxu0 0.0
    %3354 = vmatpush1.msra.mxu0 0.0
    %3355 = vmatprep.subr.mxu0 0.0
    %3356 = vmatpush1.msra.mxu0 0.0
    %3357 = vmatprep.subr.mxu0 0.0
    %3358 = vmatpush1.msra.mxu0 0.0
    %3359 = vmatprep.subr.mxu0 0.0
    %3360 = vmatpush1.msra.mxu0 0.0
    %3361 = vmatprep.subr.mxu0 0.0
    %3362 = vmatpush1.msra.mxu0 0.0
    %3363 = vmatprep.subr.mxu0 0.0
    %3364 = vmatpush1.msra.mxu0 0.0
    %3365 = vmatprep.subr.mxu0 0.0
    %3366 = vmatpush1.msra.mxu0 %v97
    %3367 = vmatprep.subr.mxu0 0.0
    %3368 = vmatpush1.msra.mxu0 %v96
    %3369 = vmatprep.subr.mxu0 0.0
    %3370 = vmatpush1.msra.mxu0 %v95
    %3371 = vmatprep.subr.mxu0 0.0
    %3372 = vmatpush1.msra.mxu0 %v94
    %3373 = vmatprep.subr.mxu0 0.0
    %3374 = vmatpush2.msra.mxu0 0.0
    %3375 = vmatprep.subr.mxu0 0.0
    %3376 = vmatpush2.msra.mxu0 0.0
    %3377 = vmatprep.subr.mxu0 0.0
    %3378 = vmatpush2.msra.mxu0 0.0
    %3379 = vmatprep.subr.mxu0 0.0
    %3380 = vmatpush2.msra.mxu0 0.0
    %3381 = vmatprep.subr.mxu0 0.0
    %3382 = vmatpush2.msra.mxu0 0.0
    %3383 = vmatprep.subr.mxu0 0.0
    %3384 = vmatpush2.msra.mxu0 0.0
    %3385 = vmatprep.subr.mxu0 0.0
    %3386 = vmatpush2.msra.mxu0 0.0
    %3387 = vmatprep.subr.mxu0 0.0
    %3388 = vmatpush2.msra.mxu0 0.0
    %3389 = vmatprep.subr.mxu0 0.0
    %3390 = vmatpush2.msra.mxu0 0.0
    %3391 = vmatprep.subr.mxu0 0.0
    %3392 = vmatpush2.msra.mxu0 0.0
    %3393 = vmatprep.subr.mxu0 0.0
    %3394 = vmatpush2.msra.mxu0 0.0
    %3395 = vmatprep.subr.mxu0 0.0
    %3396 = vmatpush2.msra.mxu0 0.0
    %3397 = vmatprep.subr.mxu0 0.0
    %3398 = vmatpush2.msra.mxu0 0.0
    %3399 = vmatprep.subr.mxu0 0.0
    %3400 = vmatpush2.msra.mxu0 0.0
    %3401 = vmatprep.subr.mxu0 0.0
    %3402 = vmatpush2.msra.mxu0 0.0
    %3403 = vmatprep.subr.mxu0 0.0
    %3404 = vmatpush2.msra.mxu0 0.0
    %3405 = vmatprep.mubr.f32.mxu0 0.0
    %3406 = vmatmul.mubr.f32.gmra.mxu0 %v3194
    %v3407 = vpop.f32.mrf.mxu0
    %v3408 = vadd.f32 0.0, %v3407
    %v3409 = vpop.f32.mrf.mxu0
    %3410 = vdwg.mxu0
    %3411 = vmatprep.subr.mxu0 0.0
    %3412 = vmatpush1.msra.mxu0 0.0
    %3413 = vmatprep.subr.mxu0 0.0
    %3414 = vmatpush1.msra.mxu0 0.0
    %3415 = vmatprep.subr.mxu0 0.0
    %3416 = vmatpush1.msra.mxu0 0.0
    %3417 = vmatprep.subr.mxu0 0.0
    %3418 = vmatpush1.msra.mxu0 0.0
    %3419 = vmatprep.subr.mxu0 0.0
    %3420 = vmatpush1.msra.mxu0 0.0
    %3421 = vmatprep.subr.mxu0 0.0
    %3422 = vmatpush1.msra.mxu0 0.0
    %3423 = vmatprep.subr.mxu0 0.0
    %3424 = vmatpush1.msra.mxu0 0.0
    %3425 = vmatprep.subr.mxu0 0.0
    %3426 = vmatpush1.msra.mxu0 0.0
    %3427 = vmatprep.subr.mxu0 0.0
    %3428 = vmatpush1.msra.mxu0 0.0
    %3429 = vmatprep.subr.mxu0 0.0
    %3430 = vmatpush1.msra.mxu0 0.0
    %3431 = vmatprep.subr.mxu0 0.0
    %3432 = vmatpush1.msra.mxu0 0.0
    %3433 = vmatprep.subr.mxu0 0.0
    %3434 = vmatpush1.msra.mxu0 0.0
    %3435 = vmatprep.subr.mxu0 0.0
    %3436 = vmatpush1.msra.mxu0 0.0
    %3437 = vmatprep.subr.mxu0 0.0
    %3438 = vmatpush1.msra.mxu0 0.0
    %3439 = vmatprep.subr.mxu0 0.0
    %3440 = vmatpush1.msra.mxu0 0.0
    %3441 = vmatprep.subr.mxu0 0.0
    %3442 = vmatpush1.msra.mxu0 %v84
    %3443 = vmatprep.subr.mxu0 0.0
    %3444 = vmatpush2.msra.mxu0 0.0
    %3445 = vmatprep.subr.mxu0 0.0
    %3446 = vmatpush2.msra.mxu0 0.0
    %3447 = vmatprep.subr.mxu0 0.0
    %3448 = vmatpush2.msra.mxu0 0.0
    %3449 = vmatprep.subr.mxu0 0.0
    %3450 = vmatpush2.msra.mxu0 0.0
    %3451 = vmatprep.subr.mxu0 0.0
    %3452 = vmatpush2.msra.mxu0 0.0
    %3453 = vmatprep.subr.mxu0 0.0
    %3454 = vmatpush2.msra.mxu0 0.0
    %3455 = vmatprep.subr.mxu0 0.0
    %3456 = vmatpush2.msra.mxu0 0.0
    %3457 = vmatprep.subr.mxu0 0.0
    %3458 = vmatpush2.msra.mxu0 0.0
    %3459 = vmatprep.subr.mxu0 0.0
    %3460 = vmatpush2.msra.mxu0 0.0
    %3461 = vmatprep.subr.mxu0 0.0
    %3462 = vmatpush2.msra.mxu0 0.0
    %3463 = vmatprep.subr.mxu0 0.0
    %3464 = vmatpush2.msra.mxu0 0.0
    %3465 = vmatprep.subr.mxu0 0.0
    %3466 = vmatpush2.msra.mxu0 0.0
    %3467 = vmatprep.subr.mxu0 0.0
    %3468 = vmatpush2.msra.mxu0 0.0
    %3469 = vmatprep.subr.mxu0 0.0
    %3470 = vmatpush2.msra.mxu0 0.0
    %3471 = vmatprep.subr.mxu0 0.0
    %3472 = vmatpush2.msra.mxu0 0.0
    %3473 = vmatprep.subr.mxu0 0.0
    %3474 = vmatpush2.msra.mxu0 0.0
    %3475 = vmatprep.mubr.f32.mxu0 0.0
    %3476 = vmatmul.mubr.f32.gmra.mxu0 %v3268
    %v3477 = vpop.f32.mrf.mxu0
    %v3478 = vadd.f32 %v3408, %v3477
    %v3479 = vpop.f32.mrf.mxu0
    %3480 = vdwg.mxu0
    %v3481 = vadd.f32 %v3478, %v465
    %3482 = vmatprep.subr.mxu0 0.0
    %3483 = vmatpush1.msra.mxu0 0.0
    %3484 = vmatprep.subr.mxu0 0.0
    %3485 = vmatpush1.msra.mxu0 0.0
    %3486 = vmatprep.subr.mxu0 0.0
    %3487 = vmatpush1.msra.mxu0 0.0
    %3488 = vmatprep.subr.mxu0 0.0
    %3489 = vmatpush1.msra.mxu0 0.0
    %3490 = vmatprep.subr.mxu0 0.0
    %3491 = vmatpush1.msra.mxu0 0.0
    %3492 = vmatprep.subr.mxu0 0.0
    %3493 = vmatpush1.msra.mxu0 0.0
    %3494 = vmatprep.subr.mxu0 0.0
    %3495 = vmatpush1.msra.mxu0 0.0
    %3496 = vmatprep.subr.mxu0 0.0
    %3497 = vmatpush1.msra.mxu0 0.0
    %3498 = vmatprep.subr.mxu0 0.0
    %3499 = vmatpush1.msra.mxu0 0.0
    %3500 = vmatprep.subr.mxu0 0.0
    %3501 = vmatpush1.msra.mxu0 0.0
    %3502 = vmatprep.subr.mxu0 0.0
    %3503 = vmatpush1.msra.mxu0 0.0
    %3504 = vmatprep.subr.mxu0 0.0
    %3505 = vmatpush1.msra.mxu0 0.0
    %3506 = vmatprep.subr.mxu0 0.0
    %3507 = vmatpush1.msra.mxu0 %v102
    %3508 = vmatprep.subr.mxu0 0.0
    %3509 = vmatpush1.msra.mxu0 %v101
    %3510 = vmatprep.subr.mxu0 0.0
    %3511 = vmatpush1.msra.mxu0 %v100
    %3512 = vmatprep.subr.mxu0 0.0
    %3513 = vmatpush1.msra.mxu0 %v99
    %3514 = vmatprep.subr.mxu0 0.0
    %3515 = vmatpush2.msra.mxu0 0.0
    %3516 = vmatprep.subr.mxu0 0.0
    %3517 = vmatpush2.msra.mxu0 0.0
    %3518 = vmatprep.subr.mxu0 0.0
    %3519 = vmatpush2.msra.mxu0 0.0
    %3520 = vmatprep.subr.mxu0 0.0
    %3521 = vmatpush2.msra.mxu0 0.0
    %3522 = vmatprep.subr.mxu0 0.0
    %3523 = vmatpush2.msra.mxu0 0.0
    %3524 = vmatprep.subr.mxu0 0.0
    %3525 = vmatpush2.msra.mxu0 0.0
    %3526 = vmatprep.subr.mxu0 0.0
    %3527 = vmatpush2.msra.mxu0 0.0
    %3528 = vmatprep.subr.mxu0 0.0
    %3529 = vmatpush2.msra.mxu0 0.0
    %3530 = vmatprep.subr.mxu0 0.0
    %3531 = vmatpush2.msra.mxu0 0.0
    %3532 = vmatprep.subr.mxu0 0.0
    %3533 = vmatpush2.msra.mxu0 0.0
    %3534 = vmatprep.subr.mxu0 0.0
    %3535 = vmatpush2.msra.mxu0 0.0
    %3536 = vmatprep.subr.mxu0 0.0
    %3537 = vmatpush2.msra.mxu0 0.0
    %3538 = vmatprep.subr.mxu0 0.0
    %3539 = vmatpush2.msra.mxu0 0.0
    %3540 = vmatprep.subr.mxu0 0.0
    %3541 = vmatpush2.msra.mxu0 0.0
    %3542 = vmatprep.subr.mxu0 0.0
    %3543 = vmatpush2.msra.mxu0 0.0
    %3544 = vmatprep.subr.mxu0 0.0
    %3545 = vmatpush2.msra.mxu0 0.0
    %3546 = vmatprep.mubr.f32.mxu0 0.0
    %3547 = vmatmul.mubr.f32.gmra.mxu0 %v3194
    %v3548 = vpop.f32.mrf.mxu0
    %v3549 = vadd.f32 0.0, %v3548
    %v3550 = vpop.f32.mrf.mxu0
    %3551 = vdwg.mxu0
    %3552 = vmatprep.subr.mxu0 0.0
    %3553 = vmatpush1.msra.mxu0 0.0
    %3554 = vmatprep.subr.mxu0 0.0
    %3555 = vmatpush1.msra.mxu0 0.0
    %3556 = vmatprep.subr.mxu0 0.0
    %3557 = vmatpush1.msra.mxu0 0.0
    %3558 = vmatprep.subr.mxu0 0.0
    %3559 = vmatpush1.msra.mxu0 0.0
    %3560 = vmatprep.subr.mxu0 0.0
    %3561 = vmatpush1.msra.mxu0 0.0
    %3562 = vmatprep.subr.mxu0 0.0
    %3563 = vmatpush1.msra.mxu0 0.0
    %3564 = vmatprep.subr.mxu0 0.0
    %3565 = vmatpush1.msra.mxu0 0.0
    %3566 = vmatprep.subr.mxu0 0.0
    %3567 = vmatpush1.msra.mxu0 0.0
    %3568 = vmatprep.subr.mxu0 0.0
    %3569 = vmatpush1.msra.mxu0 0.0
    %3570 = vmatprep.subr.mxu0 0.0
    %3571 = vmatpush1.msra.mxu0 0.0
    %3572 = vmatprep.subr.mxu0 0.0
    %3573 = vmatpush1.msra.mxu0 0.0
    %3574 = vmatprep.subr.mxu0 0.0
    %3575 = vmatpush1.msra.mxu0 0.0
    %3576 = vmatprep.subr.mxu0 0.0
    %3577 = vmatpush1.msra.mxu0 0.0
    %3578 = vmatprep.subr.mxu0 0.0
    %3579 = vmatpush1.msra.mxu0 0.0
    %3580 = vmatprep.subr.mxu0 0.0
    %3581 = vmatpush1.msra.mxu0 0.0
    %3582 = vmatprep.subr.mxu0 0.0
    %3583 = vmatpush1.msra.mxu0 %v86
    %3584 = vmatprep.subr.mxu0 0.0
    %3585 = vmatpush2.msra.mxu0 0.0
    %3586 = vmatprep.subr.mxu0 0.0
    %3587 = vmatpush2.msra.mxu0 0.0
    %3588 = vmatprep.subr.mxu0 0.0
    %3589 = vmatpush2.msra.mxu0 0.0
    %3590 = vmatprep.subr.mxu0 0.0
    %3591 = vmatpush2.msra.mxu0 0.0
    %3592 = vmatprep.subr.mxu0 0.0
    %3593 = vmatpush2.msra.mxu0 0.0
    %3594 = vmatprep.subr.mxu0 0.0
    %3595 = vmatpush2.msra.mxu0 0.0
    %3596 = vmatprep.subr.mxu0 0.0
    %3597 = vmatpush2.msra.mxu0 0.0
    %3598 = vmatprep.subr.mxu0 0.0
    %3599 = vmatpush2.msra.mxu0 0.0
    %3600 = vmatprep.subr.mxu0 0.0
    %3601 = vmatpush2.msra.mxu0 0.0
    %3602 = vmatprep.subr.mxu0 0.0
    %3603 = vmatpush2.msra.mxu0 0.0
    %3604 = vmatprep.subr.mxu0 0.0
    %3605 = vmatpush2.msra.mxu0 0.0
    %3606 = vmatprep.subr.mxu0 0.0
    %3607 = vmatpush2.msra.mxu0 0.0
    %3608 = vmatprep.subr.mxu0 0.0
    %3609 = vmatpush2.msra.mxu0 0.0
    %3610 = vmatprep.subr.mxu0 0.0
    %3611 = vmatpush2.msra.mxu0 0.0
    %3612 = vmatprep.subr.mxu0 0.0
    %3613 = vmatpush2.msra.mxu0 0.0
    %3614 = vmatprep.subr.mxu0 0.0
    %3615 = vmatpush2.msra.mxu0 0.0
    %3616 = vmatprep.mubr.f32.mxu0 0.0
    %3617 = vmatmul.mubr.f32.gmra.mxu0 %v3268
    %v3618 = vpop.f32.mrf.mxu0
    %v3619 = vadd.f32 %v3549, %v3618
    %v3620 = vpop.f32.mrf.mxu0
    %3621 = vdwg.mxu0
    %v3622 = vadd.f32 %v3619, %v612
    %3623 = vmatprep.subr.mxu0 0.0
    %3624 = vmatpush1.msra.mxu0 0.0
    %3625 = vmatprep.subr.mxu0 0.0
    %3626 = vmatpush1.msra.mxu0 0.0
    %3627 = vmatprep.subr.mxu0 0.0
    %3628 = vmatpush1.msra.mxu0 0.0
    %3629 = vmatprep.subr.mxu0 0.0
    %3630 = vmatpush1.msra.mxu0 0.0
    %3631 = vmatprep.subr.mxu0 0.0
    %3632 = vmatpush1.msra.mxu0 0.0
    %3633 = vmatprep.subr.mxu0 0.0
    %3634 = vmatpush1.msra.mxu0 0.0
    %3635 = vmatprep.subr.mxu0 0.0
    %3636 = vmatpush1.msra.mxu0 0.0
    %3637 = vmatprep.subr.mxu0 0.0
    %3638 = vmatpush1.msra.mxu0 0.0
    %3639 = vmatprep.subr.mxu0 0.0
    %3640 = vmatpush1.msra.mxu0 0.0
    %3641 = vmatprep.subr.mxu0 0.0
    %3642 = vmatpush1.msra.mxu0 0.0
    %3643 = vmatprep.subr.mxu0 0.0
    %3644 = vmatpush1.msra.mxu0 0.0
    %3645 = vmatprep.subr.mxu0 0.0
    %3646 = vmatpush1.msra.mxu0 0.0
    %3647 = vmatprep.subr.mxu0 0.0
    %3648 = vmatpush1.msra.mxu0 %v107
    %3649 = vmatprep.subr.mxu0 0.0
    %3650 = vmatpush1.msra.mxu0 %v106
    %3651 = vmatprep.subr.mxu0 0.0
    %3652 = vmatpush1.msra.mxu0 %v105
    %3653 = vmatprep.subr.mxu0 0.0
    %3654 = vmatpush1.msra.mxu0 %v104
    %3655 = vmatprep.subr.mxu0 0.0
    %3656 = vmatpush2.msra.mxu0 0.0
    %3657 = vmatprep.subr.mxu0 0.0
    %3658 = vmatpush2.msra.mxu0 0.0
    %3659 = vmatprep.subr.mxu0 0.0
    %3660 = vmatpush2.msra.mxu0 0.0
    %3661 = vmatprep.subr.mxu0 0.0
    %3662 = vmatpush2.msra.mxu0 0.0
    %3663 = vmatprep.subr.mxu0 0.0
    %3664 = vmatpush2.msra.mxu0 0.0
    %3665 = vmatprep.subr.mxu0 0.0
    %3666 = vmatpush2.msra.mxu0 0.0
    %3667 = vmatprep.subr.mxu0 0.0
    %3668 = vmatpush2.msra.mxu0 0.0
    %3669 = vmatprep.subr.mxu0 0.0
    %3670 = vmatpush2.msra.mxu0 0.0
    %3671 = vmatprep.subr.mxu0 0.0
    %3672 = vmatpush2.msra.mxu0 0.0
    %3673 = vmatprep.subr.mxu0 0.0
    %3674 = vmatpush2.msra.mxu0 0.0
    %3675 = vmatprep.subr.mxu0 0.0
    %3676 = vmatpush2.msra.mxu0 0.0
    %3677 = vmatprep.subr.mxu0 0.0
    %3678 = vmatpush2.msra.mxu0 0.0
    %3679 = vmatprep.subr.mxu0 0.0
    %3680 = vmatpush2.msra.mxu0 0.0
    %3681 = vmatprep.subr.mxu0 0.0
    %3682 = vmatpush2.msra.mxu0 0.0
    %3683 = vmatprep.subr.mxu0 0.0
    %3684 = vmatpush2.msra.mxu0 0.0
    %3685 = vmatprep.subr.mxu0 0.0
    %3686 = vmatpush2.msra.mxu0 0.0
    %3687 = vmatprep.mubr.f32.mxu0 0.0
    %3688 = vmatmul.mubr.f32.gmra.mxu0 %v3194
    %v3689 = vpop.f32.mrf.mxu0
    %v3690 = vadd.f32 0.0, %v3689
    %v3691 = vpop.f32.mrf.mxu0
    %3692 = vdwg.mxu0
    %3693 = vmatprep.subr.mxu0 0.0
    %3694 = vmatpush1.msra.mxu0 0.0
    %3695 = vmatprep.subr.mxu0 0.0
    %3696 = vmatpush1.msra.mxu0 0.0
    %3697 = vmatprep.subr.mxu0 0.0
    %3698 = vmatpush1.msra.mxu0 0.0
    %3699 = vmatprep.subr.mxu0 0.0
    %3700 = vmatpush1.msra.mxu0 0.0
    %3701 = vmatprep.subr.mxu0 0.0
    %3702 = vmatpush1.msra.mxu0 0.0
    %3703 = vmatprep.subr.mxu0 0.0
    %3704 = vmatpush1.msra.mxu0 0.0
    %3705 = vmatprep.subr.mxu0 0.0
    %3706 = vmatpush1.msra.mxu0 0.0
    %3707 = vmatprep.subr.mxu0 0.0
    %3708 = vmatpush1.msra.mxu0 0.0
    %3709 = vmatprep.subr.mxu0 0.0
    %3710 = vmatpush1.msra.mxu0 0.0
    %3711 = vmatprep.subr.mxu0 0.0
    %3712 = vmatpush1.msra.mxu0 0.0
    %3713 = vmatprep.subr.mxu0 0.0
    %3714 = vmatpush1.msra.mxu0 0.0
    %3715 = vmatprep.subr.mxu0 0.0
    %3716 = vmatpush1.msra.mxu0 0.0
    %3717 = vmatprep.subr.mxu0 0.0
    %3718 = vmatpush1.msra.mxu0 0.0
    %3719 = vmatprep.subr.mxu0 0.0
    %3720 = vmatpush1.msra.mxu0 0.0
    %3721 = vmatprep.subr.mxu0 0.0
    %3722 = vmatpush1.msra.mxu0 0.0
    %3723 = vmatprep.subr.mxu0 0.0
    %3724 = vmatpush1.msra.mxu0 %v88
    %3725 = vmatprep.subr.mxu0 0.0
    %3726 = vmatpush2.msra.mxu0 0.0
    %3727 = vmatprep.subr.mxu0 0.0
    %3728 = vmatpush2.msra.mxu0 0.0
    %3729 = vmatprep.subr.mxu0 0.0
    %3730 = vmatpush2.msra.mxu0 0.0
    %3731 = vmatprep.subr.mxu0 0.0
    %3732 = vmatpush2.msra.mxu0 0.0
    %3733 = vmatprep.subr.mxu0 0.0
    %3734 = vmatpush2.msra.mxu0 0.0
    %3735 = vmatprep.subr.mxu0 0.0
    %3736 = vmatpush2.msra.mxu0 0.0
    %3737 = vmatprep.subr.mxu0 0.0
    %3738 = vmatpush2.msra.mxu0 0.0
    %3739 = vmatprep.subr.mxu0 0.0
    %3740 = vmatpush2.msra.mxu0 0.0
    %3741 = vmatprep.subr.mxu0 0.0
    %3742 = vmatpush2.msra.mxu0 0.0
    %3743 = vmatprep.subr.mxu0 0.0
    %3744 = vmatpush2.msra.mxu0 0.0
    %3745 = vmatprep.subr.mxu0 0.0
    %3746 = vmatpush2.msra.mxu0 0.0
    %3747 = vmatprep.subr.mxu0 0.0
    %3748 = vmatpush2.msra.mxu0 0.0
    %3749 = vmatprep.subr.mxu0 0.0
    %3750 = vmatpush2.msra.mxu0 0.0
    %3751 = vmatprep.subr.mxu0 0.0
    %3752 = vmatpush2.msra.mxu0 0.0
    %3753 = vmatprep.subr.mxu0 0.0
    %3754 = vmatpush2.msra.mxu0 0.0
    %3755 = vmatprep.subr.mxu0 0.0
    %3756 = vmatpush2.msra.mxu0 0.0
    %3757 = vmatprep.mubr.f32.mxu0 0.0
    %3758 = vmatmul.mubr.f32.gmra.mxu0 %v3268
    %v3759 = vpop.f32.mrf.mxu0
    %v3760 = vadd.f32 %v3690, %v3759
    %v3761 = vpop.f32.mrf.mxu0
    %3762 = vdwg.mxu0
    %v3763 = vadd.f32 %v3760, %v759
    %v3764 = vxor.u32 %v3340, 2147483648
    %v3765 = vmul.f32 %v3764, 1.442695
    %v3766 = vpow.pop %v3765
    %v3767 = vadd.f32 %v3766, 1.0
    %v3768 = vrcp.pop %v3767
    %v3769 = vmul.f32 1.0, %v3768
    %v3770 = vxor.u32 %v3481, 2147483648
    %v3771 = vmul.f32 %v3770, 1.442695
    %v3772 = vpow.pop %v3771
    %v3773 = vadd.f32 %v3772, 1.0
    %v3774 = vrcp.pop %v3773
    %v3775 = vmul.f32 1.0, %v3774
    %v3776 = vtanh.pop %v3622
    %v3777 = vxor.u32 %v3763, 2147483648
    %v3778 = vmul.f32 %v3777, 1.442695
    %v3779 = vpow.pop %v3778
    %v3780 = vadd.f32 %v3779, 1.0
    %v3781 = vrcp.pop %v3780
    %v3782 = vmul.f32 1.0, %v3781
    %v3783 = vmul.f32 %v3775, %v2592
    %v3784 = vmul.f32 %v3769, %v3776
    %v3785 = vadd.f32 %v3783, %v3784
    %v3786 = vtanh.pop %v3785
    %v3787 = vmul.f32 %v3782, %v3786
    %v3789 = vsel %vm166, %v3185, 0
    %3791 = vmatprep.subr.mxu0 0.0
    %3792 = vmatpush1.msra.mxu0 0.0
    %3793 = vmatprep.subr.mxu0 0.0
    %3794 = vmatpush1.msra.mxu0 0.0
    %3795 = vmatprep.subr.mxu0 0.0
    %3796 = vmatpush1.msra.mxu0 0.0
    %3797 = vmatprep.subr.mxu0 0.0
    %3798 = vmatpush1.msra.mxu0 0.0
    %3799 = vmatprep.subr.mxu0 0.0
    %3800 = vmatpush1.msra.mxu0 0.0
    %3801 = vmatprep.subr.mxu0 0.0
    %3802 = vmatpush1.msra.mxu0 0.0
    %3803 = vmatprep.subr.mxu0 0.0
    %3804 = vmatpush1.msra.mxu0 0.0
    %3805 = vmatprep.subr.mxu0 0.0
    %3806 = vmatpush1.msra.mxu0 0.0
    %3807 = vmatprep.subr.mxu0 0.0
    %3808 = vmatpush1.msra.mxu0 0.0
    %3809 = vmatprep.subr.mxu0 0.0
    %3810 = vmatpush1.msra.mxu0 0.0
    %3811 = vmatprep.subr.mxu0 0.0
    %3812 = vmatpush1.msra.mxu0 0.0
    %3813 = vmatprep.subr.mxu0 0.0
    %3814 = vmatpush1.msra.mxu0 0.0
    %3815 = vmatprep.subr.mxu0 0.0
    %3816 = vmatpush1.msra.mxu0 %v137
    %3817 = vmatprep.subr.mxu0 0.0
    %3818 = vmatpush1.msra.mxu0 %v136
    %3819 = vmatprep.subr.mxu0 0.0
    %3820 = vmatpush1.msra.mxu0 %v135
    %3821 = vmatprep.subr.mxu0 0.0
    %3822 = vmatpush1.msra.mxu0 %v134
    %3823 = vmatprep.subr.mxu0 0.0
    %3824 = vmatpush2.msra.mxu0 0.0
    %3825 = vmatprep.subr.mxu0 0.0
    %3826 = vmatpush2.msra.mxu0 0.0
    %3827 = vmatprep.subr.mxu0 0.0
    %3828 = vmatpush2.msra.mxu0 0.0
    %3829 = vmatprep.subr.mxu0 0.0
    %3830 = vmatpush2.msra.mxu0 0.0
    %3831 = vmatprep.subr.mxu0 0.0
    %3832 = vmatpush2.msra.mxu0 0.0
    %3833 = vmatprep.subr.mxu0 0.0
    %3834 = vmatpush2.msra.mxu0 0.0
    %3835 = vmatprep.subr.mxu0 0.0
    %3836 = vmatpush2.msra.mxu0 0.0
    %3837 = vmatprep.subr.mxu0 0.0
    %3838 = vmatpush2.msra.mxu0 0.0
    %3839 = vmatprep.subr.mxu0 0.0
    %3840 = vmatpush2.msra.mxu0 0.0
    %3841 = vmatprep.subr.mxu0 0.0
    %3842 = vmatpush2.msra.mxu0 0.0
    %3843 = vmatprep.subr.mxu0 0.0
    %3844 = vmatpush2.msra.mxu0 0.0
    %3845 = vmatprep.subr.mxu0 0.0
    %3846 = vmatpush2.msra.mxu0 0.0
    %3847 = vmatprep.subr.mxu0 0.0
    %3848 = vmatpush2.msra.mxu0 0.0
    %3849 = vmatprep.subr.mxu0 0.0
    %3850 = vmatpush2.msra.mxu0 0.0
    %3851 = vmatprep.subr.mxu0 0.0
    %3852 = vmatpush2.msra.mxu0 0.0
    %3853 = vmatprep.subr.mxu0 0.0
    %3854 = vmatpush2.msra.mxu0 0.0
    %3855 = vmatprep.mubr.f32.mxu0 0.0
    %3856 = vmatmul.mubr.f32.gmra.mxu0 %v3789
    %v3857 = vpop.f32.mrf.mxu0
    %v3858 = vadd.f32 0.0, %v3857
    %v3859 = vpop.f32.mrf.mxu0
    %3860 = vdwg.mxu0
    %3861 = vmatprep.subr.mxu0 0.0
    %3862 = vmatpush1.msra.mxu0 0.0
    %3863 = vmatprep.subr.mxu0 0.0
    %3864 = vmatpush1.msra.mxu0 0.0
    %3865 = vmatprep.subr.mxu0 0.0
    %3866 = vmatpush1.msra.mxu0 0.0
    %3867 = vmatprep.subr.mxu0 0.0
    %3868 = vmatpush1.msra.mxu0 0.0
    %3869 = vmatprep.subr.mxu0 0.0
    %3870 = vmatpush1.msra.mxu0 0.0
    %3871 = vmatprep.subr.mxu0 0.0
    %3872 = vmatpush1.msra.mxu0 0.0
    %3873 = vmatprep.subr.mxu0 0.0
    %3874 = vmatpush1.msra.mxu0 0.0
    %3875 = vmatprep.subr.mxu0 0.0
    %3876 = vmatpush1.msra.mxu0 0.0
    %3877 = vmatprep.subr.mxu0 0.0
    %3878 = vmatpush1.msra.mxu0 0.0
    %3879 = vmatprep.subr.mxu0 0.0
    %3880 = vmatpush1.msra.mxu0 0.0
    %3881 = vmatprep.subr.mxu0 0.0
    %3882 = vmatpush1.msra.mxu0 0.0
    %3883 = vmatprep.subr.mxu0 0.0
    %3884 = vmatpush1.msra.mxu0 0.0
    %3885 = vmatprep.subr.mxu0 0.0
    %3886 = vmatpush1.msra.mxu0 %v118
    %3887 = vmatprep.subr.mxu0 0.0
    %3888 = vmatpush1.msra.mxu0 %v117
    %3889 = vmatprep.subr.mxu0 0.0
    %3890 = vmatpush1.msra.mxu0 %v116
    %3891 = vmatprep.subr.mxu0 0.0
    %3892 = vmatpush1.msra.mxu0 %v115
    %3893 = vmatprep.subr.mxu0 0.0
    %3894 = vmatpush2.msra.mxu0 0.0
    %3895 = vmatprep.subr.mxu0 0.0
    %3896 = vmatpush2.msra.mxu0 0.0
    %3897 = vmatprep.subr.mxu0 0.0
    %3898 = vmatpush2.msra.mxu0 0.0
    %3899 = vmatprep.subr.mxu0 0.0
    %3900 = vmatpush2.msra.mxu0 0.0
    %3901 = vmatprep.subr.mxu0 0.0
    %3902 = vmatpush2.msra.mxu0 0.0
    %3903 = vmatprep.subr.mxu0 0.0
    %3904 = vmatpush2.msra.mxu0 0.0
    %3905 = vmatprep.subr.mxu0 0.0
    %3906 = vmatpush2.msra.mxu0 0.0
    %3907 = vmatprep.subr.mxu0 0.0
    %3908 = vmatpush2.msra.mxu0 0.0
    %3909 = vmatprep.subr.mxu0 0.0
    %3910 = vmatpush2.msra.mxu0 0.0
    %3911 = vmatprep.subr.mxu0 0.0
    %3912 = vmatpush2.msra.mxu0 0.0
    %3913 = vmatprep.subr.mxu0 0.0
    %3914 = vmatpush2.msra.mxu0 0.0
    %3915 = vmatprep.subr.mxu0 0.0
    %3916 = vmatpush2.msra.mxu0 0.0
    %3917 = vmatprep.subr.mxu0 0.0
    %3918 = vmatpush2.msra.mxu0 0.0
    %3919 = vmatprep.subr.mxu0 0.0
    %3920 = vmatpush2.msra.mxu0 0.0
    %3921 = vmatprep.subr.mxu0 0.0
    %3922 = vmatpush2.msra.mxu0 0.0
    %3923 = vmatprep.subr.mxu0 0.0
    %3924 = vmatpush2.msra.mxu0 0.0
    %3925 = vmatprep.mubr.f32.mxu0 0.0
    %3926 = vmatmul.mubr.f32.gmra.mxu0 %v3194
    %v3927 = vpop.f32.mrf.mxu0
    %v3928 = vadd.f32 %v3858, %v3927
    %v3929 = vpop.f32.mrf.mxu0
    %3930 = vdwg.mxu0
    %v3931 = vadd.f32 %v3928, %v1525
    %3932 = vmatprep.subr.mxu0 0.0
    %3933 = vmatpush1.msra.mxu0 0.0
    %3934 = vmatprep.subr.mxu0 0.0
    %3935 = vmatpush1.msra.mxu0 0.0
    %3936 = vmatprep.subr.mxu0 0.0
    %3937 = vmatpush1.msra.mxu0 0.0
    %3938 = vmatprep.subr.mxu0 0.0
    %3939 = vmatpush1.msra.mxu0 0.0
    %3940 = vmatprep.subr.mxu0 0.0
    %3941 = vmatpush1.msra.mxu0 0.0
    %3942 = vmatprep.subr.mxu0 0.0
    %3943 = vmatpush1.msra.mxu0 0.0
    %3944 = vmatprep.subr.mxu0 0.0
    %3945 = vmatpush1.msra.mxu0 0.0
    %3946 = vmatprep.subr.mxu0 0.0
    %3947 = vmatpush1.msra.mxu0 0.0
    %3948 = vmatprep.subr.mxu0 0.0
    %3949 = vmatpush1.msra.mxu0 0.0
    %3950 = vmatprep.subr.mxu0 0.0
    %3951 = vmatpush1.msra.mxu0 0.0
    %3952 = vmatprep.subr.mxu0 0.0
    %3953 = vmatpush1.msra.mxu0 0.0
    %3954 = vmatprep.subr.mxu0 0.0
    %3955 = vmatpush1.msra.mxu0 0.0
    %3956 = vmatprep.subr.mxu0 0.0
    %3957 = vmatpush1.msra.mxu0 %v142
    %3958 = vmatprep.subr.mxu0 0.0
    %3959 = vmatpush1.msra.mxu0 %v141
    %3960 = vmatprep.subr.mxu0 0.0
    %3961 = vmatpush1.msra.mxu0 %v140
    %3962 = vmatprep.subr.mxu0 0.0
    %3963 = vmatpush1.msra.mxu0 %v139
    %3964 = vmatprep.subr.mxu0 0.0
    %3965 = vmatpush2.msra.mxu0 0.0
    %3966 = vmatprep.subr.mxu0 0.0
    %3967 = vmatpush2.msra.mxu0 0.0
    %3968 = vmatprep.subr.mxu0 0.0
    %3969 = vmatpush2.msra.mxu0 0.0
    %3970 = vmatprep.subr.mxu0 0.0
    %3971 = vmatpush2.msra.mxu0 0.0
    %3972 = vmatprep.subr.mxu0 0.0
    %3973 = vmatpush2.msra.mxu0 0.0
    %3974 = vmatprep.subr.mxu0 0.0
    %3975 = vmatpush2.msra.mxu0 0.0
    %3976 = vmatprep.subr.mxu0 0.0
    %3977 = vmatpush2.msra.mxu0 0.0
    %3978 = vmatprep.subr.mxu0 0.0
    %3979 = vmatpush2.msra.mxu0 0.0
    %3980 = vmatprep.subr.mxu0 0.0
    %3981 = vmatpush2.msra.mxu0 0.0
    %3982 = vmatprep.subr.mxu0 0.0
    %3983 = vmatpush2.msra.mxu0 0.0
    %3984 = vmatprep.subr.mxu0 0.0
    %3985 = vmatpush2.msra.mxu0 0.0
    %3986 = vmatprep.subr.mxu0 0.0
    %3987 = vmatpush2.msra.mxu0 0.0
    %3988 = vmatprep.subr.mxu0 0.0
    %3989 = vmatpush2.msra.mxu0 0.0
    %3990 = vmatprep.subr.mxu0 0.0
    %3991 = vmatpush2.msra.mxu0 0.0
    %3992 = vmatprep.subr.mxu0 0.0
    %3993 = vmatpush2.msra.mxu0 0.0
    %3994 = vmatprep.subr.mxu0 0.0
    %3995 = vmatpush2.msra.mxu0 0.0
    %3996 = vmatprep.mubr.f32.mxu0 0.0
    %3997 = vmatmul.mubr.f32.gmra.mxu0 %v3789
    %v3998 = vpop.f32.mrf.mxu0
    %v3999 = vadd.f32 0.0, %v3998
    %v4000 = vpop.f32.mrf.mxu0
    %4001 = vdwg.mxu0
    %4002 = vmatprep.subr.mxu0 0.0
    %4003 = vmatpush1.msra.mxu0 0.0
    %4004 = vmatprep.subr.mxu0 0.0
    %4005 = vmatpush1.msra.mxu0 0.0
    %4006 = vmatprep.subr.mxu0 0.0
    %4007 = vmatpush1.msra.mxu0 0.0
    %4008 = vmatprep.subr.mxu0 0.0
    %4009 = vmatpush1.msra.mxu0 0.0
    %4010 = vmatprep.subr.mxu0 0.0
    %4011 = vmatpush1.msra.mxu0 0.0
    %4012 = vmatprep.subr.mxu0 0.0
    %4013 = vmatpush1.msra.mxu0 0.0
    %4014 = vmatprep.subr.mxu0 0.0
    %4015 = vmatpush1.msra.mxu0 0.0
    %4016 = vmatprep.subr.mxu0 0.0
    %4017 = vmatpush1.msra.mxu0 0.0
    %4018 = vmatprep.subr.mxu0 0.0
    %4019 = vmatpush1.msra.mxu0 0.0
    %4020 = vmatprep.subr.mxu0 0.0
    %4021 = vmatpush1.msra.mxu0 0.0
    %4022 = vmatprep.subr.mxu0 0.0
    %4023 = vmatpush1.msra.mxu0 0.0
    %4024 = vmatprep.subr.mxu0 0.0
    %4025 = vmatpush1.msra.mxu0 0.0
    %4026 = vmatprep.subr.mxu0 0.0
    %4027 = vmatpush1.msra.mxu0 %v123
    %4028 = vmatprep.subr.mxu0 0.0
    %4029 = vmatpush1.msra.mxu0 %v122
    %4030 = vmatprep.subr.mxu0 0.0
    %4031 = vmatpush1.msra.mxu0 %v121
    %4032 = vmatprep.subr.mxu0 0.0
    %4033 = vmatpush1.msra.mxu0 %v120
    %4034 = vmatprep.subr.mxu0 0.0
    %4035 = vmatpush2.msra.mxu0 0.0
    %4036 = vmatprep.subr.mxu0 0.0
    %4037 = vmatpush2.msra.mxu0 0.0
    %4038 = vmatprep.subr.mxu0 0.0
    %4039 = vmatpush2.msra.mxu0 0.0
    %4040 = vmatprep.subr.mxu0 0.0
    %4041 = vmatpush2.msra.mxu0 0.0
    %4042 = vmatprep.subr.mxu0 0.0
    %4043 = vmatpush2.msra.mxu0 0.0
    %4044 = vmatprep.subr.mxu0 0.0
    %4045 = vmatpush2.msra.mxu0 0.0
    %4046 = vmatprep.subr.mxu0 0.0
    %4047 = vmatpush2.msra.mxu0 0.0
    %4048 = vmatprep.subr.mxu0 0.0
    %4049 = vmatpush2.msra.mxu0 0.0
    %4050 = vmatprep.subr.mxu0 0.0
    %4051 = vmatpush2.msra.mxu0 0.0
    %4052 = vmatprep.subr.mxu0 0.0
    %4053 = vmatpush2.msra.mxu0 0.0
    %4054 = vmatprep.subr.mxu0 0.0
    %4055 = vmatpush2.msra.mxu0 0.0
    %4056 = vmatprep.subr.mxu0 0.0
    %4057 = vmatpush2.msra.mxu0 0.0
    %4058 = vmatprep.subr.mxu0 0.0
    %4059 = vmatpush2.msra.mxu0 0.0
    %4060 = vmatprep.subr.mxu0 0.0
    %4061 = vmatpush2.msra.mxu0 0.0
    %4062 = vmatprep.subr.mxu0 0.0
    %4063 = vmatpush2.msra.mxu0 0.0
    %4064 = vmatprep.subr.mxu0 0.0
    %4065 = vmatpush2.msra.mxu0 0.0
    %4066 = vmatprep.mubr.f32.mxu0 0.0
    %4067 = vmatmul.mubr.f32.gmra.mxu0 %v3194
    %v4068 = vpop.f32.mrf.mxu0
    %v4069 = vadd.f32 %v3999, %v4068
    %v4070 = vpop.f32.mrf.mxu0
    %4071 = vdwg.mxu0
    %v4072 = vadd.f32 %v4069, %v1672
    %4073 = vmatprep.subr.mxu0 0.0
    %4074 = vmatpush1.msra.mxu0 0.0
    %4075 = vmatprep.subr.mxu0 0.0
    %4076 = vmatpush1.msra.mxu0 0.0
    %4077 = vmatprep.subr.mxu0 0.0
    %4078 = vmatpush1.msra.mxu0 0.0
    %4079 = vmatprep.subr.mxu0 0.0
    %4080 = vmatpush1.msra.mxu0 0.0
    %4081 = vmatprep.subr.mxu0 0.0
    %4082 = vmatpush1.msra.mxu0 0.0
    %4083 = vmatprep.subr.mxu0 0.0
    %4084 = vmatpush1.msra.mxu0 0.0
    %4085 = vmatprep.subr.mxu0 0.0
    %4086 = vmatpush1.msra.mxu0 0.0
    %4087 = vmatprep.subr.mxu0 0.0
    %4088 = vmatpush1.msra.mxu0 0.0
    %4089 = vmatprep.subr.mxu0 0.0
    %4090 = vmatpush1.msra.mxu0 0.0
    %4091 = vmatprep.subr.mxu0 0.0
    %4092 = vmatpush1.msra.mxu0 0.0
    %4093 = vmatprep.subr.mxu0 0.0
    %4094 = vmatpush1.msra.mxu0 0.0
    %4095 = vmatprep.subr.mxu0 0.0
    %4096 = vmatpush1.msra.mxu0 0.0
    %4097 = vmatprep.subr.mxu0 0.0
    %4098 = vmatpush1.msra.mxu0 %v147
    %4099 = vmatprep.subr.mxu0 0.0
    %4100 = vmatpush1.msra.mxu0 %v146
    %4101 = vmatprep.subr.mxu0 0.0
    %4102 = vmatpush1.msra.mxu0 %v145
    %4103 = vmatprep.subr.mxu0 0.0
    %4104 = vmatpush1.msra.mxu0 %v144
    %4105 = vmatprep.subr.mxu0 0.0
    %4106 = vmatpush2.msra.mxu0 0.0
    %4107 = vmatprep.subr.mxu0 0.0
    %4108 = vmatpush2.msra.mxu0 0.0
    %4109 = vmatprep.subr.mxu0 0.0
    %4110 = vmatpush2.msra.mxu0 0.0
    %4111 = vmatprep.subr.mxu0 0.0
    %4112 = vmatpush2.msra.mxu0 0.0
    %4113 = vmatprep.subr.mxu0 0.0
    %4114 = vmatpush2.msra.mxu0 0.0
    %4115 = vmatprep.subr.mxu0 0.0
    %4116 = vmatpush2.msra.mxu0 0.0
    %4117 = vmatprep.subr.mxu0 0.0
    %4118 = vmatpush2.msra.mxu0 0.0
    %4119 = vmatprep.subr.mxu0 0.0
    %4120 = vmatpush2.msra.mxu0 0.0
    %4121 = vmatprep.subr.mxu0 0.0
    %4122 = vmatpush2.msra.mxu0 0.0
    %4123 = vmatprep.subr.mxu0 0.0
    %4124 = vmatpush2.msra.mxu0 0.0
    %4125 = vmatprep.subr.mxu0 0.0
    %4126 = vmatpush2.msra.mxu0 0.0
    %4127 = vmatprep.subr.mxu0 0.0
    %4128 = vmatpush2.msra.mxu0 0.0
    %4129 = vmatprep.subr.mxu0 0.0
    %4130 = vmatpush2.msra.mxu0 0.0
    %4131 = vmatprep.subr.mxu0 0.0
    %4132 = vmatpush2.msra.mxu0 0.0
    %4133 = vmatprep.subr.mxu0 0.0
    %4134 = vmatpush2.msra.mxu0 0.0
    %4135 = vmatprep.subr.mxu0 0.0
    %4136 = vmatpush2.msra.mxu0 0.0
    %4137 = vmatprep.mubr.f32.mxu0 0.0
    %4138 = vmatmul.mubr.f32.gmra.mxu0 %v3789
    %v4139 = vpop.f32.mrf.mxu0
    %v4140 = vadd.f32 0.0, %v4139
    %v4141 = vpop.f32.mrf.mxu0
    %4142 = vdwg.mxu0
    %4143 = vmatprep.subr.mxu0 0.0
    %4144 = vmatpush1.msra.mxu0 0.0
    %4145 = vmatprep.subr.mxu0 0.0
    %4146 = vmatpush1.msra.mxu0 0.0
    %4147 = vmatprep.subr.mxu0 0.0
    %4148 = vmatpush1.msra.mxu0 0.0
    %4149 = vmatprep.subr.mxu0 0.0
    %4150 = vmatpush1.msra.mxu0 0.0
    %4151 = vmatprep.subr.mxu0 0.0
    %4152 = vmatpush1.msra.mxu0 0.0
    %4153 = vmatprep.subr.mxu0 0.0
    %4154 = vmatpush1.msra.mxu0 0.0
    %4155 = vmatprep.subr.mxu0 0.0
    %4156 = vmatpush1.msra.mxu0 0.0
    %4157 = vmatprep.subr.mxu0 0.0
    %4158 = vmatpush1.msra.mxu0 0.0
    %4159 = vmatprep.subr.mxu0 0.0
    %4160 = vmatpush1.msra.mxu0 0.0
    %4161 = vmatprep.subr.mxu0 0.0
    %4162 = vmatpush1.msra.mxu0 0.0
    %4163 = vmatprep.subr.mxu0 0.0
    %4164 = vmatpush1.msra.mxu0 0.0
    %4165 = vmatprep.subr.mxu0 0.0
    %4166 = vmatpush1.msra.mxu0 0.0
    %4167 = vmatprep.subr.mxu0 0.0
    %4168 = vmatpush1.msra.mxu0 %v128
    %4169 = vmatprep.subr.mxu0 0.0
    %4170 = vmatpush1.msra.mxu0 %v127
    %4171 = vmatprep.subr.mxu0 0.0
    %4172 = vmatpush1.msra.mxu0 %v126
    %4173 = vmatprep.subr.mxu0 0.0
    %4174 = vmatpush1.msra.mxu0 %v125
    %4175 = vmatprep.subr.mxu0 0.0
    %4176 = vmatpush2.msra.mxu0 0.0
    %4177 = vmatprep.subr.mxu0 0.0
    %4178 = vmatpush2.msra.mxu0 0.0
    %4179 = vmatprep.subr.mxu0 0.0
    %4180 = vmatpush2.msra.mxu0 0.0
    %4181 = vmatprep.subr.mxu0 0.0
    %4182 = vmatpush2.msra.mxu0 0.0
    %4183 = vmatprep.subr.mxu0 0.0
    %4184 = vmatpush2.msra.mxu0 0.0
    %4185 = vmatprep.subr.mxu0 0.0
    %4186 = vmatpush2.msra.mxu0 0.0
    %4187 = vmatprep.subr.mxu0 0.0
    %4188 = vmatpush2.msra.mxu0 0.0
    %4189 = vmatprep.subr.mxu0 0.0
    %4190 = vmatpush2.msra.mxu0 0.0
    %4191 = vmatprep.subr.mxu0 0.0
    %4192 = vmatpush2.msra.mxu0 0.0
    %4193 = vmatprep.subr.mxu0 0.0
    %4194 = vmatpush2.msra.mxu0 0.0
    %4195 = vmatprep.subr.mxu0 0.0
    %4196 = vmatpush2.msra.mxu0 0.0
    %4197 = vmatprep.subr.mxu0 0.0
    %4198 = vmatpush2.msra.mxu0 0.0
    %4199 = vmatprep.subr.mxu0 0.0
    %4200 = vmatpush2.msra.mxu0 0.0
    %4201 = vmatprep.subr.mxu0 0.0
    %4202 = vmatpush2.msra.mxu0 0.0
    %4203 = vmatprep.subr.mxu0 0.0
    %4204 = vmatpush2.msra.mxu0 0.0
    %4205 = vmatprep.subr.mxu0 0.0
    %4206 = vmatpush2.msra.mxu0 0.0
    %4207 = vmatprep.mubr.f32.mxu0 0.0
    %4208 = vmatmul.mubr.f32.gmra.mxu0 %v3194
    %v4209 = vpop.f32.mrf.mxu0
    %v4210 = vadd.f32 %v4140, %v4209
    %v4211 = vpop.f32.mrf.mxu0
    %4212 = vdwg.mxu0
    %v4213 = vadd.f32 %v4210, %v1819
    %4214 = vmatprep.subr.mxu0 0.0
    %4215 = vmatpush1.msra.mxu0 0.0
    %4216 = vmatprep.subr.mxu0 0.0
    %4217 = vmatpush1.msra.mxu0 0.0
    %4218 = vmatprep.subr.mxu0 0.0
    %4219 = vmatpush1.msra.mxu0 0.0
    %4220 = vmatprep.subr.mxu0 0.0
    %4221 = vmatpush1.msra.mxu0 0.0
    %4222 = vmatprep.subr.mxu0 0.0
    %4223 = vmatpush1.msra.mxu0 0.0
    %4224 = vmatprep.subr.mxu0 0.0
    %4225 = vmatpush1.msra.mxu0 0.0
    %4226 = vmatprep.subr.mxu0 0.0
    %4227 = vmatpush1.msra.mxu0 0.0
    %4228 = vmatprep.subr.mxu0 0.0
    %4229 = vmatpush1.msra.mxu0 0.0
    %4230 = vmatprep.subr.mxu0 0.0
    %4231 = vmatpush1.msra.mxu0 0.0
    %4232 = vmatprep.subr.mxu0 0.0
    %4233 = vmatpush1.msra.mxu0 0.0
    %4234 = vmatprep.subr.mxu0 0.0
    %4235 = vmatpush1.msra.mxu0 0.0
    %4236 = vmatprep.subr.mxu0 0.0
    %4237 = vmatpush1.msra.mxu0 0.0
    %4238 = vmatprep.subr.mxu0 0.0
    %4239 = vmatpush1.msra.mxu0 %v152
    %4240 = vmatprep.subr.mxu0 0.0
    %4241 = vmatpush1.msra.mxu0 %v151
    %4242 = vmatprep.subr.mxu0 0.0
    %4243 = vmatpush1.msra.mxu0 %v150
    %4244 = vmatprep.subr.mxu0 0.0
    %4245 = vmatpush1.msra.mxu0 %v149
    %4246 = vmatprep.subr.mxu0 0.0
    %4247 = vmatpush2.msra.mxu0 0.0
    %4248 = vmatprep.subr.mxu0 0.0
    %4249 = vmatpush2.msra.mxu0 0.0
    %4250 = vmatprep.subr.mxu0 0.0
    %4251 = vmatpush2.msra.mxu0 0.0
    %4252 = vmatprep.subr.mxu0 0.0
    %4253 = vmatpush2.msra.mxu0 0.0
    %4254 = vmatprep.subr.mxu0 0.0
    %4255 = vmatpush2.msra.mxu0 0.0
    %4256 = vmatprep.subr.mxu0 0.0
    %4257 = vmatpush2.msra.mxu0 0.0
    %4258 = vmatprep.subr.mxu0 0.0
    %4259 = vmatpush2.msra.mxu0 0.0
    %4260 = vmatprep.subr.mxu0 0.0
    %4261 = vmatpush2.msra.mxu0 0.0
    %4262 = vmatprep.subr.mxu0 0.0
    %4263 = vmatpush2.msra.mxu0 0.0
    %4264 = vmatprep.subr.mxu0 0.0
    %4265 = vmatpush2.msra.mxu0 0.0
    %4266 = vmatprep.subr.mxu0 0.0
    %4267 = vmatpush2.msra.mxu0 0.0
    %4268 = vmatprep.subr.mxu0 0.0
    %4269 = vmatpush2.msra.mxu0 0.0
    %4270 = vmatprep.subr.mxu0 0.0
    %4271 = vmatpush2.msra.mxu0 0.0
    %4272 = vmatprep.subr.mxu0 0.0
    %4273 = vmatpush2.msra.mxu0 0.0
    %4274 = vmatprep.subr.mxu0 0.0
    %4275 = vmatpush2.msra.mxu0 0.0
    %4276 = vmatprep.subr.mxu0 0.0
    %4277 = vmatpush2.msra.mxu0 0.0
    %4278 = vmatprep.mubr.f32.mxu0 0.0
    %4279 = vmatmul.mubr.f32.gmra.mxu0 %v3789
    %v4280 = vpop.f32.mrf.mxu0
    %v4281 = vadd.f32 0.0, %v4280
    %v4282 = vpop.f32.mrf.mxu0
    %4283 = vdwg.mxu0
    %4284 = vmatprep.subr.mxu0 0.0
    %4285 = vmatpush1.msra.mxu0 0.0
    %4286 = vmatprep.subr.mxu0 0.0
    %4287 = vmatpush1.msra.mxu0 0.0
    %4288 = vmatprep.subr.mxu0 0.0
    %4289 = vmatpush1.msra.mxu0 0.0
    %4290 = vmatprep.subr.mxu0 0.0
    %4291 = vmatpush1.msra.mxu0 0.0
    %4292 = vmatprep.subr.mxu0 0.0
    %4293 = vmatpush1.msra.mxu0 0.0
    %4294 = vmatprep.subr.mxu0 0.0
    %4295 = vmatpush1.msra.mxu0 0.0
    %4296 = vmatprep.subr.mxu0 0.0
    %4297 = vmatpush1.msra.mxu0 0.0
    %4298 = vmatprep.subr.mxu0 0.0
    %4299 = vmatpush1.msra.mxu0 0.0
    %4300 = vmatprep.subr.mxu0 0.0
    %4301 = vmatpush1.msra.mxu0 0.0
    %4302 = vmatprep.subr.mxu0 0.0
    %4303 = vmatpush1.msra.mxu0 0.0
    %4304 = vmatprep.subr.mxu0 0.0
    %4305 = vmatpush1.msra.mxu0 0.0
    %4306 = vmatprep.subr.mxu0 0.0
    %4307 = vmatpush1.msra.mxu0 0.0
    %4308 = vmatprep.subr.mxu0 0.0
    %4309 = vmatpush1.msra.mxu0 %v133
    %4310 = vmatprep.subr.mxu0 0.0
    %4311 = vmatpush1.msra.mxu0 %v132
    %4312 = vmatprep.subr.mxu0 0.0
    %4313 = vmatpush1.msra.mxu0 %v131
    %4314 = vmatprep.subr.mxu0 0.0
    %4315 = vmatpush1.msra.mxu0 %v130
    %4316 = vmatprep.subr.mxu0 0.0
    %4317 = vmatpush2.msra.mxu0 0.0
    %4318 = vmatprep.subr.mxu0 0.0
    %4319 = vmatpush2.msra.mxu0 0.0
    %4320 = vmatprep.subr.mxu0 0.0
    %4321 = vmatpush2.msra.mxu0 0.0
    %4322 = vmatprep.subr.mxu0 0.0
    %4323 = vmatpush2.msra.mxu0 0.0
    %4324 = vmatprep.subr.mxu0 0.0
    %4325 = vmatpush2.msra.mxu0 0.0
    %4326 = vmatprep.subr.mxu0 0.0
    %4327 = vmatpush2.msra.mxu0 0.0
    %4328 = vmatprep.subr.mxu0 0.0
    %4329 = vmatpush2.msra.mxu0 0.0
    %4330 = vmatprep.subr.mxu0 0.0
    %4331 = vmatpush2.msra.mxu0 0.0
    %4332 = vmatprep.subr.mxu0 0.0
    %4333 = vmatpush2.msra.mxu0 0.0
    %4334 = vmatprep.subr.mxu0 0.0
    %4335 = vmatpush2.msra.mxu0 0.0
    %4336 = vmatprep.subr.mxu0 0.0
    %4337 = vmatpush2.msra.mxu0 0.0
    %4338 = vmatprep.subr.mxu0 0.0
    %4339 = vmatpush2.msra.mxu0 0.0
    %4340 = vmatprep.subr.mxu0 0.0
    %4341 = vmatpush2.msra.mxu0 0.0
    %4342 = vmatprep.subr.mxu0 0.0
    %4343 = vmatpush2.msra.mxu0 0.0
    %4344 = vmatprep.subr.mxu0 0.0
    %4345 = vmatpush2.msra.mxu0 0.0
    %4346 = vmatprep.subr.mxu0 0.0
    %4347 = vmatpush2.msra.mxu0 0.0
    %4348 = vmatprep.mubr.f32.mxu0 0.0
    %4349 = vmatmul.mubr.f32.gmra.mxu0 %v3194
    %v4350 = vpop.f32.mrf.mxu0
    %v4351 = vadd.f32 %v4281, %v4350
    %v4352 = vpop.f32.mrf.mxu0
    %4353 = vdwg.mxu0
    %v4354 = vadd.f32 %v4351, %v1966
    %v4355 = vxor.u32 %v3931, 2147483648
    %v4356 = vmul.f32 %v4355, 1.442695
    %v4357 = vpow.pop %v4356
    %v4358 = vadd.f32 %v4357, 1.0
    %v4359 = vrcp.pop %v4358
    %v4360 = vmul.f32 1.0, %v4359
    %v4361 = vxor.u32 %v4072, 2147483648
    %v4362 = vmul.f32 %v4361, 1.442695
    %v4363 = vpow.pop %v4362
    %v4364 = vadd.f32 %v4363, 1.0
    %v4365 = vrcp.pop %v4364
    %v4366 = vmul.f32 1.0, %v4365
    %v4367 = vtanh.pop %v4213
    %v4368 = vxor.u32 %v4354, 2147483648
    %v4369 = vmul.f32 %v4368, 1.442695
    %v4370 = vpow.pop %v4369
    %v4371 = vadd.f32 %v4370, 1.0
    %v4372 = vrcp.pop %v4371
    %v4373 = vmul.f32 1.0, %v4372
    %v4374 = vmul.f32 %v4366, %v3183
    %v4375 = vmul.f32 %v4360, %v4367
    %v4376 = vadd.f32 %v4374, %v4375
    %v4377 = vtanh.pop %v4376
    %v4378 = vmul.f32 %v4373, %v4377
    %vm4379 = vcmp.eq.s32.totalorder %v165, 2
    %v4380 = vsel %vm4379, 1, 0
    %4381 = vset.pattern.permute.xlu0 0
    %4382 = vperm.xlu0 %4381, %v4380
    %v4383 = vpop.permute.xlu0 %4382
    %vm4384 = vcmp.eq.s32.totalorder %v4383, 1
    %v4385 = vsel %vm4384, %v4378, %v3192
    %v4387 = vsel %vm166, %v3787, 0
    %4389 = vmatprep.subr.mxu0 0.0
    %4390 = vmatpush1.msra.mxu0 0.0
    %4391 = vmatprep.subr.mxu0 0.0
    %4392 = vmatpush1.msra.mxu0 0.0
    %4393 = vmatprep.subr.mxu0 0.0
    %4394 = vmatpush1.msra.mxu0 0.0
    %4395 = vmatprep.subr.mxu0 0.0
    %4396 = vmatpush1.msra.mxu0 0.0
    %4397 = vmatprep.subr.mxu0 0.0
    %4398 = vmatpush1.msra.mxu0 0.0
    %4399 = vmatprep.subr.mxu0 0.0
    %4400 = vmatpush1.msra.mxu0 0.0
    %4401 = vmatprep.subr.mxu0 0.0
    %4402 = vmatpush1.msra.mxu0 0.0
    %4403 = vmatprep.subr.mxu0 0.0
    %4404 = vmatpush1.msra.mxu0 0.0
    %4405 = vmatprep.subr.mxu0 0.0
    %4406 = vmatpush1.msra.mxu0 0.0
    %4407 = vmatprep.subr.mxu0 0.0
    %4408 = vmatpush1.msra.mxu0 0.0
    %4409 = vmatprep.subr.mxu0 0.0
    %4410 = vmatpush1.msra.mxu0 0.0
    %4411 = vmatprep.subr.mxu0 0.0
    %4412 = vmatpush1.msra.mxu0 0.0
    %4413 = vmatprep.subr.mxu0 0.0
    %4414 = vmatpush1.msra.mxu0 %v92
    %4415 = vmatprep.subr.mxu0 0.0
    %4416 = vmatpush1.msra.mxu0 %v91
    %4417 = vmatprep.subr.mxu0 0.0
    %4418 = vmatpush1.msra.mxu0 %v90
    %4419 = vmatprep.subr.mxu0 0.0
    %4420 = vmatpush1.msra.mxu0 %v89
    %4421 = vmatprep.subr.mxu0 0.0
    %4422 = vmatpush2.msra.mxu0 0.0
    %4423 = vmatprep.subr.mxu0 0.0
    %4424 = vmatpush2.msra.mxu0 0.0
    %4425 = vmatprep.subr.mxu0 0.0
    %4426 = vmatpush2.msra.mxu0 0.0
    %4427 = vmatprep.subr.mxu0 0.0
    %4428 = vmatpush2.msra.mxu0 0.0
    %4429 = vmatprep.subr.mxu0 0.0
    %4430 = vmatpush2.msra.mxu0 0.0
    %4431 = vmatprep.subr.mxu0 0.0
    %4432 = vmatpush2.msra.mxu0 0.0
    %4433 = vmatprep.subr.mxu0 0.0
    %4434 = vmatpush2.msra.mxu0 0.0
    %4435 = vmatprep.subr.mxu0 0.0
    %4436 = vmatpush2.msra.mxu0 0.0
    %4437 = vmatprep.subr.mxu0 0.0
    %4438 = vmatpush2.msra.mxu0 0.0
    %4439 = vmatprep.subr.mxu0 0.0
    %4440 = vmatpush2.msra.mxu0 0.0
    %4441 = vmatprep.subr.mxu0 0.0
    %4442 = vmatpush2.msra.mxu0 0.0
    %4443 = vmatprep.subr.mxu0 0.0
    %4444 = vmatpush2.msra.mxu0 0.0
    %4445 = vmatprep.subr.mxu0 0.0
    %4446 = vmatpush2.msra.mxu0 0.0
    %4447 = vmatprep.subr.mxu0 0.0
    %4448 = vmatpush2.msra.mxu0 0.0
    %4449 = vmatprep.subr.mxu0 0.0
    %4450 = vmatpush2.msra.mxu0 0.0
    %4451 = vmatprep.subr.mxu0 0.0
    %4452 = vmatpush2.msra.mxu0 0.0
    %4453 = vmatprep.mubr.f32.mxu0 0.0
    %4454 = vmatmul.mubr.f32.gmra.mxu0 %v4387
    %v4455 = vpop.f32.mrf.mxu0
    %v4456 = vadd.f32 0.0, %v4455
    %v4457 = vpop.f32.mrf.mxu0
    %4458 = vdwg.mxu0
    %4459 = vrot.lane.b32.xlu0 %v81, 96
    %v4460 = vpop.permute.xlu0 %4459
    %v4461 = vsel %vm240, %v4460, 0
    %4463 = vmatprep.subr.mxu0 0.0
    %4464 = vmatpush1.msra.mxu0 0.0
    %4465 = vmatprep.subr.mxu0 0.0
    %4466 = vmatpush1.msra.mxu0 0.0
    %4467 = vmatprep.subr.mxu0 0.0
    %4468 = vmatpush1.msra.mxu0 0.0
    %4469 = vmatprep.subr.mxu0 0.0
    %4470 = vmatpush1.msra.mxu0 0.0
    %4471 = vmatprep.subr.mxu0 0.0
    %4472 = vmatpush1.msra.mxu0 0.0
    %4473 = vmatprep.subr.mxu0 0.0
    %4474 = vmatpush1.msra.mxu0 0.0
    %4475 = vmatprep.subr.mxu0 0.0
    %4476 = vmatpush1.msra.mxu0 0.0
    %4477 = vmatprep.subr.mxu0 0.0
    %4478 = vmatpush1.msra.mxu0 0.0
    %4479 = vmatprep.subr.mxu0 0.0
    %4480 = vmatpush1.msra.mxu0 0.0
    %4481 = vmatprep.subr.mxu0 0.0
    %4482 = vmatpush1.msra.mxu0 0.0
    %4483 = vmatprep.subr.mxu0 0.0
    %4484 = vmatpush1.msra.mxu0 0.0
    %4485 = vmatprep.subr.mxu0 0.0
    %4486 = vmatpush1.msra.mxu0 0.0
    %4487 = vmatprep.subr.mxu0 0.0
    %4488 = vmatpush1.msra.mxu0 0.0
    %4489 = vmatprep.subr.mxu0 0.0
    %4490 = vmatpush1.msra.mxu0 0.0
    %4491 = vmatprep.subr.mxu0 0.0
    %4492 = vmatpush1.msra.mxu0 0.0
    %4493 = vmatprep.subr.mxu0 0.0
    %4494 = vmatpush1.msra.mxu0 %v82
    %4495 = vmatprep.subr.mxu0 0.0
    %4496 = vmatpush2.msra.mxu0 0.0
    %4497 = vmatprep.subr.mxu0 0.0
    %4498 = vmatpush2.msra.mxu0 0.0
    %4499 = vmatprep.subr.mxu0 0.0
    %4500 = vmatpush2.msra.mxu0 0.0
    %4501 = vmatprep.subr.mxu0 0.0
    %4502 = vmatpush2.msra.mxu0 0.0
    %4503 = vmatprep.subr.mxu0 0.0
    %4504 = vmatpush2.msra.mxu0 0.0
    %4505 = vmatprep.subr.mxu0 0.0
    %4506 = vmatpush2.msra.mxu0 0.0
    %4507 = vmatprep.subr.mxu0 0.0
    %4508 = vmatpush2.msra.mxu0 0.0
    %4509 = vmatprep.subr.mxu0 0.0
    %4510 = vmatpush2.msra.mxu0 0.0
    %4511 = vmatprep.subr.mxu0 0.0
    %4512 = vmatpush2.msra.mxu0 0.0
    %4513 = vmatprep.subr.mxu0 0.0
    %4514 = vmatpush2.msra.mxu0 0.0
    %4515 = vmatprep.subr.mxu0 0.0
    %4516 = vmatpush2.msra.mxu0 0.0
    %4517 = vmatprep.subr.mxu0 0.0
    %4518 = vmatpush2.msra.mxu0 0.0
    %4519 = vmatprep.subr.mxu0 0.0
    %4520 = vmatpush2.msra.mxu0 0.0
    %4521 = vmatprep.subr.mxu0 0.0
    %4522 = vmatpush2.msra.mxu0 0.0
    %4523 = vmatprep.subr.mxu0 0.0
    %4524 = vmatpush2.msra.mxu0 0.0
    %4525 = vmatprep.subr.mxu0 0.0
    %4526 = vmatpush2.msra.mxu0 0.0
    %4527 = vmatprep.mubr.f32.mxu0 0.0
    %4528 = vmatmul.mubr.f32.gmra.mxu0 %v4461
    %v4529 = vpop.f32.mrf.mxu0
    %v4530 = vadd.f32 %v4456, %v4529
    %v4531 = vpop.f32.mrf.mxu0
    %4532 = vdwg.mxu0
    %v4533 = vadd.f32 %v4530, %v318
    %4534 = vmatprep.subr.mxu0 0.0
    %4535 = vmatpush1.msra.mxu0 0.0
    %4536 = vmatprep.subr.mxu0 0.0
    %4537 = vmatpush1.msra.mxu0 0.0
    %4538 = vmatprep.subr.mxu0 0.0
    %4539 = vmatpush1.msra.mxu0 0.0
    %4540 = vmatprep.subr.mxu0 0.0
    %4541 = vmatpush1.msra.mxu0 0.0
    %4542 = vmatprep.subr.mxu0 0.0
    %4543 = vmatpush1.msra.mxu0 0.0
    %4544 = vmatprep.subr.mxu0 0.0
    %4545 = vmatpush1.msra.mxu0 0.0
    %4546 = vmatprep.subr.mxu0 0.0
    %4547 = vmatpush1.msra.mxu0 0.0
    %4548 = vmatprep.subr.mxu0 0.0
    %4549 = vmatpush1.msra.mxu0 0.0
    %4550 = vmatprep.subr.mxu0 0.0
    %4551 = vmatpush1.msra.mxu0 0.0
    %4552 = vmatprep.subr.mxu0 0.0
    %4553 = vmatpush1.msra.mxu0 0.0
    %4554 = vmatprep.subr.mxu0 0.0
    %4555 = vmatpush1.msra.mxu0 0.0
    %4556 = vmatprep.subr.mxu0 0.0
    %4557 = vmatpush1.msra.mxu0 0.0
    %4558 = vmatprep.subr.mxu0 0.0
    %4559 = vmatpush1.msra.mxu0 %v97
    %4560 = vmatprep.subr.mxu0 0.0
    %4561 = vmatpush1.msra.mxu0 %v96
    %4562 = vmatprep.subr.mxu0 0.0
    %4563 = vmatpush1.msra.mxu0 %v95
    %4564 = vmatprep.subr.mxu0 0.0
    %4565 = vmatpush1.msra.mxu0 %v94
    %4566 = vmatprep.subr.mxu0 0.0
    %4567 = vmatpush2.msra.mxu0 0.0
    %4568 = vmatprep.subr.mxu0 0.0
    %4569 = vmatpush2.msra.mxu0 0.0
    %4570 = vmatprep.subr.mxu0 0.0
    %4571 = vmatpush2.msra.mxu0 0.0
    %4572 = vmatprep.subr.mxu0 0.0
    %4573 = vmatpush2.msra.mxu0 0.0
    %4574 = vmatprep.subr.mxu0 0.0
    %4575 = vmatpush2.msra.mxu0 0.0
    %4576 = vmatprep.subr.mxu0 0.0
    %4577 = vmatpush2.msra.mxu0 0.0
    %4578 = vmatprep.subr.mxu0 0.0
    %4579 = vmatpush2.msra.mxu0 0.0
    %4580 = vmatprep.subr.mxu0 0.0
    %4581 = vmatpush2.msra.mxu0 0.0
    %4582 = vmatprep.subr.mxu0 0.0
    %4583 = vmatpush2.msra.mxu0 0.0
    %4584 = vmatprep.subr.mxu0 0.0
    %4585 = vmatpush2.msra.mxu0 0.0
    %4586 = vmatprep.subr.mxu0 0.0
    %4587 = vmatpush2.msra.mxu0 0.0
    %4588 = vmatprep.subr.mxu0 0.0
    %4589 = vmatpush2.msra.mxu0 0.0
    %4590 = vmatprep.subr.mxu0 0.0
    %4591 = vmatpush2.msra.mxu0 0.0
    %4592 = vmatprep.subr.mxu0 0.0
    %4593 = vmatpush2.msra.mxu0 0.0
    %4594 = vmatprep.subr.mxu0 0.0
    %4595 = vmatpush2.msra.mxu0 0.0
    %4596 = vmatprep.subr.mxu0 0.0
    %4597 = vmatpush2.msra.mxu0 0.0
    %4598 = vmatprep.mubr.f32.mxu0 0.0
    %4599 = vmatmul.mubr.f32.gmra.mxu0 %v4387
    %v4600 = vpop.f32.mrf.mxu0
    %v4601 = vadd.f32 0.0, %v4600
    %v4602 = vpop.f32.mrf.mxu0
    %4603 = vdwg.mxu0
    %4604 = vmatprep.subr.mxu0 0.0
    %4605 = vmatpush1.msra.mxu0 0.0
    %4606 = vmatprep.subr.mxu0 0.0
    %4607 = vmatpush1.msra.mxu0 0.0
    %4608 = vmatprep.subr.mxu0 0.0
    %4609 = vmatpush1.msra.mxu0 0.0
    %4610 = vmatprep.subr.mxu0 0.0
    %4611 = vmatpush1.msra.mxu0 0.0
    %4612 = vmatprep.subr.mxu0 0.0
    %4613 = vmatpush1.msra.mxu0 0.0
    %4614 = vmatprep.subr.mxu0 0.0
    %4615 = vmatpush1.msra.mxu0 0.0
    %4616 = vmatprep.subr.mxu0 0.0
    %4617 = vmatpush1.msra.mxu0 0.0
    %4618 = vmatprep.subr.mxu0 0.0
    %4619 = vmatpush1.msra.mxu0 0.0
    %4620 = vmatprep.subr.mxu0 0.0
    %4621 = vmatpush1.msra.mxu0 0.0
    %4622 = vmatprep.subr.mxu0 0.0
    %4623 = vmatpush1.msra.mxu0 0.0
    %4624 = vmatprep.subr.mxu0 0.0
    %4625 = vmatpush1.msra.mxu0 0.0
    %4626 = vmatprep.subr.mxu0 0.0
    %4627 = vmatpush1.msra.mxu0 0.0
    %4628 = vmatprep.subr.mxu0 0.0
    %4629 = vmatpush1.msra.mxu0 0.0
    %4630 = vmatprep.subr.mxu0 0.0
    %4631 = vmatpush1.msra.mxu0 0.0
    %4632 = vmatprep.subr.mxu0 0.0
    %4633 = vmatpush1.msra.mxu0 0.0
    %4634 = vmatprep.subr.mxu0 0.0
    %4635 = vmatpush1.msra.mxu0 %v84
    %4636 = vmatprep.subr.mxu0 0.0
    %4637 = vmatpush2.msra.mxu0 0.0
    %4638 = vmatprep.subr.mxu0 0.0
    %4639 = vmatpush2.msra.mxu0 0.0
    %4640 = vmatprep.subr.mxu0 0.0
    %4641 = vmatpush2.msra.mxu0 0.0
    %4642 = vmatprep.subr.mxu0 0.0
    %4643 = vmatpush2.msra.mxu0 0.0
    %4644 = vmatprep.subr.mxu0 0.0
    %4645 = vmatpush2.msra.mxu0 0.0
    %4646 = vmatprep.subr.mxu0 0.0
    %4647 = vmatpush2.msra.mxu0 0.0
    %4648 = vmatprep.subr.mxu0 0.0
    %4649 = vmatpush2.msra.mxu0 0.0
    %4650 = vmatprep.subr.mxu0 0.0
    %4651 = vmatpush2.msra.mxu0 0.0
    %4652 = vmatprep.subr.mxu0 0.0
    %4653 = vmatpush2.msra.mxu0 0.0
    %4654 = vmatprep.subr.mxu0 0.0
    %4655 = vmatpush2.msra.mxu0 0.0
    %4656 = vmatprep.subr.mxu0 0.0
    %4657 = vmatpush2.msra.mxu0 0.0
    %4658 = vmatprep.subr.mxu0 0.0
    %4659 = vmatpush2.msra.mxu0 0.0
    %4660 = vmatprep.subr.mxu0 0.0
    %4661 = vmatpush2.msra.mxu0 0.0
    %4662 = vmatprep.subr.mxu0 0.0
    %4663 = vmatpush2.msra.mxu0 0.0
    %4664 = vmatprep.subr.mxu0 0.0
    %4665 = vmatpush2.msra.mxu0 0.0
    %4666 = vmatprep.subr.mxu0 0.0
    %4667 = vmatpush2.msra.mxu0 0.0
    %4668 = vmatprep.mubr.f32.mxu0 0.0
    %4669 = vmatmul.mubr.f32.gmra.mxu0 %v4461
    %v4670 = vpop.f32.mrf.mxu0
    %v4671 = vadd.f32 %v4601, %v4670
    %v4672 = vpop.f32.mrf.mxu0
    %4673 = vdwg.mxu0
    %v4674 = vadd.f32 %v4671, %v465
    %4675 = vmatprep.subr.mxu0 0.0
    %4676 = vmatpush1.msra.mxu0 0.0
    %4677 = vmatprep.subr.mxu0 0.0
    %4678 = vmatpush1.msra.mxu0 0.0
    %4679 = vmatprep.subr.mxu0 0.0
    %4680 = vmatpush1.msra.mxu0 0.0
    %4681 = vmatprep.subr.mxu0 0.0
    %4682 = vmatpush1.msra.mxu0 0.0
    %4683 = vmatprep.subr.mxu0 0.0
    %4684 = vmatpush1.msra.mxu0 0.0
    %4685 = vmatprep.subr.mxu0 0.0
    %4686 = vmatpush1.msra.mxu0 0.0
    %4687 = vmatprep.subr.mxu0 0.0
    %4688 = vmatpush1.msra.mxu0 0.0
    %4689 = vmatprep.subr.mxu0 0.0
    %4690 = vmatpush1.msra.mxu0 0.0
    %4691 = vmatprep.subr.mxu0 0.0
    %4692 = vmatpush1.msra.mxu0 0.0
    %4693 = vmatprep.subr.mxu0 0.0
    %4694 = vmatpush1.msra.mxu0 0.0
    %4695 = vmatprep.subr.mxu0 0.0
    %4696 = vmatpush1.msra.mxu0 0.0
    %4697 = vmatprep.subr.mxu0 0.0
    %4698 = vmatpush1.msra.mxu0 0.0
    %4699 = vmatprep.subr.mxu0 0.0
    %4700 = vmatpush1.msra.mxu0 %v102
    %4701 = vmatprep.subr.mxu0 0.0
    %4702 = vmatpush1.msra.mxu0 %v101
    %4703 = vmatprep.subr.mxu0 0.0
    %4704 = vmatpush1.msra.mxu0 %v100
    %4705 = vmatprep.subr.mxu0 0.0
    %4706 = vmatpush1.msra.mxu0 %v99
    %4707 = vmatprep.subr.mxu0 0.0
    %4708 = vmatpush2.msra.mxu0 0.0
    %4709 = vmatprep.subr.mxu0 0.0
    %4710 = vmatpush2.msra.mxu0 0.0
    %4711 = vmatprep.subr.mxu0 0.0
    %4712 = vmatpush2.msra.mxu0 0.0
    %4713 = vmatprep.subr.mxu0 0.0
    %4714 = vmatpush2.msra.mxu0 0.0
    %4715 = vmatprep.subr.mxu0 0.0
    %4716 = vmatpush2.msra.mxu0 0.0
    %4717 = vmatprep.subr.mxu0 0.0
    %4718 = vmatpush2.msra.mxu0 0.0
    %4719 = vmatprep.subr.mxu0 0.0
    %4720 = vmatpush2.msra.mxu0 0.0
    %4721 = vmatprep.subr.mxu0 0.0
    %4722 = vmatpush2.msra.mxu0 0.0
    %4723 = vmatprep.subr.mxu0 0.0
    %4724 = vmatpush2.msra.mxu0 0.0
    %4725 = vmatprep.subr.mxu0 0.0
    %4726 = vmatpush2.msra.mxu0 0.0
    %4727 = vmatprep.subr.mxu0 0.0
    %4728 = vmatpush2.msra.mxu0 0.0
    %4729 = vmatprep.subr.mxu0 0.0
    %4730 = vmatpush2.msra.mxu0 0.0
    %4731 = vmatprep.subr.mxu0 0.0
    %4732 = vmatpush2.msra.mxu0 0.0
    %4733 = vmatprep.subr.mxu0 0.0
    %4734 = vmatpush2.msra.mxu0 0.0
    %4735 = vmatprep.subr.mxu0 0.0
    %4736 = vmatpush2.msra.mxu0 0.0
    %4737 = vmatprep.subr.mxu0 0.0
    %4738 = vmatpush2.msra.mxu0 0.0
    %4739 = vmatprep.mubr.f32.mxu0 0.0
    %4740 = vmatmul.mubr.f32.gmra.mxu0 %v4387
    %v4741 = vpop.f32.mrf.mxu0
    %v4742 = vadd.f32 0.0, %v4741
    %v4743 = vpop.f32.mrf.mxu0
    %4744 = vdwg.mxu0
    %4745 = vmatprep.subr.mxu0 0.0
    %4746 = vmatpush1.msra.mxu0 0.0
    %4747 = vmatprep.subr.mxu0 0.0
    %4748 = vmatpush1.msra.mxu0 0.0
    %4749 = vmatprep.subr.mxu0 0.0
    %4750 = vmatpush1.msra.mxu0 0.0
    %4751 = vmatprep.subr.mxu0 0.0
    %4752 = vmatpush1.msra.mxu0 0.0
    %4753 = vmatprep.subr.mxu0 0.0
    %4754 = vmatpush1.msra.mxu0 0.0
    %4755 = vmatprep.subr.mxu0 0.0
    %4756 = vmatpush1.msra.mxu0 0.0
    %4757 = vmatprep.subr.mxu0 0.0
    %4758 = vmatpush1.msra.mxu0 0.0
    %4759 = vmatprep.subr.mxu0 0.0
    %4760 = vmatpush1.msra.mxu0 0.0
    %4761 = vmatprep.subr.mxu0 0.0
    %4762 = vmatpush1.msra.mxu0 0.0
    %4763 = vmatprep.subr.mxu0 0.0
    %4764 = vmatpush1.msra.mxu0 0.0
    %4765 = vmatprep.subr.mxu0 0.0
    %4766 = vmatpush1.msra.mxu0 0.0
    %4767 = vmatprep.subr.mxu0 0.0
    %4768 = vmatpush1.msra.mxu0 0.0
    %4769 = vmatprep.subr.mxu0 0.0
    %4770 = vmatpush1.msra.mxu0 0.0
    %4771 = vmatprep.subr.mxu0 0.0
    %4772 = vmatpush1.msra.mxu0 0.0
    %4773 = vmatprep.subr.mxu0 0.0
    %4774 = vmatpush1.msra.mxu0 0.0
    %4775 = vmatprep.subr.mxu0 0.0
    %4776 = vmatpush1.msra.mxu0 %v86
    %4777 = vmatprep.subr.mxu0 0.0
    %4778 = vmatpush2.msra.mxu0 0.0
    %4779 = vmatprep.subr.mxu0 0.0
    %4780 = vmatpush2.msra.mxu0 0.0
    %4781 = vmatprep.subr.mxu0 0.0
    %4782 = vmatpush2.msra.mxu0 0.0
    %4783 = vmatprep.subr.mxu0 0.0
    %4784 = vmatpush2.msra.mxu0 0.0
    %4785 = vmatprep.subr.mxu0 0.0
    %4786 = vmatpush2.msra.mxu0 0.0
    %4787 = vmatprep.subr.mxu0 0.0
    %4788 = vmatpush2.msra.mxu0 0.0
    %4789 = vmatprep.subr.mxu0 0.0
    %4790 = vmatpush2.msra.mxu0 0.0
    %4791 = vmatprep.subr.mxu0 0.0
    %4792 = vmatpush2.msra.mxu0 0.0
    %4793 = vmatprep.subr.mxu0 0.0
    %4794 = vmatpush2.msra.mxu0 0.0
    %4795 = vmatprep.subr.mxu0 0.0
    %4796 = vmatpush2.msra.mxu0 0.0
    %4797 = vmatprep.subr.mxu0 0.0
    %4798 = vmatpush2.msra.mxu0 0.0
    %4799 = vmatprep.subr.mxu0 0.0
    %4800 = vmatpush2.msra.mxu0 0.0
    %4801 = vmatprep.subr.mxu0 0.0
    %4802 = vmatpush2.msra.mxu0 0.0
    %4803 = vmatprep.subr.mxu0 0.0
    %4804 = vmatpush2.msra.mxu0 0.0
    %4805 = vmatprep.subr.mxu0 0.0
    %4806 = vmatpush2.msra.mxu0 0.0
    %4807 = vmatprep.subr.mxu0 0.0
    %4808 = vmatpush2.msra.mxu0 0.0
    %4809 = vmatprep.mubr.f32.mxu0 0.0
    %4810 = vmatmul.mubr.f32.gmra.mxu0 %v4461
    %v4811 = vpop.f32.mrf.mxu0
    %v4812 = vadd.f32 %v4742, %v4811
    %v4813 = vpop.f32.mrf.mxu0
    %4814 = vdwg.mxu0
    %v4815 = vadd.f32 %v4812, %v612
    %4816 = vmatprep.subr.mxu0 0.0
    %4817 = vmatpush1.msra.mxu0 0.0
    %4818 = vmatprep.subr.mxu0 0.0
    %4819 = vmatpush1.msra.mxu0 0.0
    %4820 = vmatprep.subr.mxu0 0.0
    %4821 = vmatpush1.msra.mxu0 0.0
    %4822 = vmatprep.subr.mxu0 0.0
    %4823 = vmatpush1.msra.mxu0 0.0
    %4824 = vmatprep.subr.mxu0 0.0
    %4825 = vmatpush1.msra.mxu0 0.0
    %4826 = vmatprep.subr.mxu0 0.0
    %4827 = vmatpush1.msra.mxu0 0.0
    %4828 = vmatprep.subr.mxu0 0.0
    %4829 = vmatpush1.msra.mxu0 0.0
    %4830 = vmatprep.subr.mxu0 0.0
    %4831 = vmatpush1.msra.mxu0 0.0
    %4832 = vmatprep.subr.mxu0 0.0
    %4833 = vmatpush1.msra.mxu0 0.0
    %4834 = vmatprep.subr.mxu0 0.0
    %4835 = vmatpush1.msra.mxu0 0.0
    %4836 = vmatprep.subr.mxu0 0.0
    %4837 = vmatpush1.msra.mxu0 0.0
    %4838 = vmatprep.subr.mxu0 0.0
    %4839 = vmatpush1.msra.mxu0 0.0
    %4840 = vmatprep.subr.mxu0 0.0
    %4841 = vmatpush1.msra.mxu0 %v107
    %4842 = vmatprep.subr.mxu0 0.0
    %4843 = vmatpush1.msra.mxu0 %v106
    %4844 = vmatprep.subr.mxu0 0.0
    %4845 = vmatpush1.msra.mxu0 %v105
    %4846 = vmatprep.subr.mxu0 0.0
    %4847 = vmatpush1.msra.mxu0 %v104
    %4848 = vmatprep.subr.mxu0 0.0
    %4849 = vmatpush2.msra.mxu0 0.0
    %4850 = vmatprep.subr.mxu0 0.0
    %4851 = vmatpush2.msra.mxu0 0.0
    %4852 = vmatprep.subr.mxu0 0.0
    %4853 = vmatpush2.msra.mxu0 0.0
    %4854 = vmatprep.subr.mxu0 0.0
    %4855 = vmatpush2.msra.mxu0 0.0
    %4856 = vmatprep.subr.mxu0 0.0
    %4857 = vmatpush2.msra.mxu0 0.0
    %4858 = vmatprep.subr.mxu0 0.0
    %4859 = vmatpush2.msra.mxu0 0.0
    %4860 = vmatprep.subr.mxu0 0.0
    %4861 = vmatpush2.msra.mxu0 0.0
    %4862 = vmatprep.subr.mxu0 0.0
    %4863 = vmatpush2.msra.mxu0 0.0
    %4864 = vmatprep.subr.mxu0 0.0
    %4865 = vmatpush2.msra.mxu0 0.0
    %4866 = vmatprep.subr.mxu0 0.0
    %4867 = vmatpush2.msra.mxu0 0.0
    %4868 = vmatprep.subr.mxu0 0.0
    %4869 = vmatpush2.msra.mxu0 0.0
    %4870 = vmatprep.subr.mxu0 0.0
    %4871 = vmatpush2.msra.mxu0 0.0
    %4872 = vmatprep.subr.mxu0 0.0
    %4873 = vmatpush2.msra.mxu0 0.0
    %4874 = vmatprep.subr.mxu0 0.0
    %4875 = vmatpush2.msra.mxu0 0.0
    %4876 = vmatprep.subr.mxu0 0.0
    %4877 = vmatpush2.msra.mxu0 0.0
    %4878 = vmatprep.subr.mxu0 0.0
    %4879 = vmatpush2.msra.mxu0 0.0
    %4880 = vmatprep.mubr.f32.mxu0 0.0
    %4881 = vmatmul.mubr.f32.gmra.mxu0 %v4387
    %v4882 = vpop.f32.mrf.mxu0
    %v4883 = vadd.f32 0.0, %v4882
    %v4884 = vpop.f32.mrf.mxu0
    %4885 = vdwg.mxu0
    %4886 = vmatprep.subr.mxu0 0.0
    %4887 = vmatpush1.msra.mxu0 0.0
    %4888 = vmatprep.subr.mxu0 0.0
    %4889 = vmatpush1.msra.mxu0 0.0
    %4890 = vmatprep.subr.mxu0 0.0
    %4891 = vmatpush1.msra.mxu0 0.0
    %4892 = vmatprep.subr.mxu0 0.0
    %4893 = vmatpush1.msra.mxu0 0.0
    %4894 = vmatprep.subr.mxu0 0.0
    %4895 = vmatpush1.msra.mxu0 0.0
    %4896 = vmatprep.subr.mxu0 0.0
    %4897 = vmatpush1.msra.mxu0 0.0
    %4898 = vmatprep.subr.mxu0 0.0
    %4899 = vmatpush1.msra.mxu0 0.0
    %4900 = vmatprep.subr.mxu0 0.0
    %4901 = vmatpush1.msra.mxu0 0.0
    %4902 = vmatprep.subr.mxu0 0.0
    %4903 = vmatpush1.msra.mxu0 0.0
    %4904 = vmatprep.subr.mxu0 0.0
    %4905 = vmatpush1.msra.mxu0 0.0
    %4906 = vmatprep.subr.mxu0 0.0
    %4907 = vmatpush1.msra.mxu0 0.0
    %4908 = vmatprep.subr.mxu0 0.0
    %4909 = vmatpush1.msra.mxu0 0.0
    %4910 = vmatprep.subr.mxu0 0.0
    %4911 = vmatpush1.msra.mxu0 0.0
    %4912 = vmatprep.subr.mxu0 0.0
    %4913 = vmatpush1.msra.mxu0 0.0
    %4914 = vmatprep.subr.mxu0 0.0
    %4915 = vmatpush1.msra.mxu0 0.0
    %4916 = vmatprep.subr.mxu0 0.0
    %4917 = vmatpush1.msra.mxu0 %v88
    %4918 = vmatprep.subr.mxu0 0.0
    %4919 = vmatpush2.msra.mxu0 0.0
    %4920 = vmatprep.subr.mxu0 0.0
    %4921 = vmatpush2.msra.mxu0 0.0
    %4922 = vmatprep.subr.mxu0 0.0
    %4923 = vmatpush2.msra.mxu0 0.0
    %4924 = vmatprep.subr.mxu0 0.0
    %4925 = vmatpush2.msra.mxu0 0.0
    %4926 = vmatprep.subr.mxu0 0.0
    %4927 = vmatpush2.msra.mxu0 0.0
    %4928 = vmatprep.subr.mxu0 0.0
    %4929 = vmatpush2.msra.mxu0 0.0
    %4930 = vmatprep.subr.mxu0 0.0
    %4931 = vmatpush2.msra.mxu0 0.0
    %4932 = vmatprep.subr.mxu0 0.0
    %4933 = vmatpush2.msra.mxu0 0.0
    %4934 = vmatprep.subr.mxu0 0.0
    %4935 = vmatpush2.msra.mxu0 0.0
    %4936 = vmatprep.subr.mxu0 0.0
    %4937 = vmatpush2.msra.mxu0 0.0
    %4938 = vmatprep.subr.mxu0 0.0
    %4939 = vmatpush2.msra.mxu0 0.0
    %4940 = vmatprep.subr.mxu0 0.0
    %4941 = vmatpush2.msra.mxu0 0.0
    %4942 = vmatprep.subr.mxu0 0.0
    %4943 = vmatpush2.msra.mxu0 0.0
    %4944 = vmatprep.subr.mxu0 0.0
    %4945 = vmatpush2.msra.mxu0 0.0
    %4946 = vmatprep.subr.mxu0 0.0
    %4947 = vmatpush2.msra.mxu0 0.0
    %4948 = vmatprep.subr.mxu0 0.0
    %4949 = vmatpush2.msra.mxu0 0.0
    %4950 = vmatprep.mubr.f32.mxu0 0.0
    %4951 = vmatmul.mubr.f32.gmra.mxu0 %v4461
    %v4952 = vpop.f32.mrf.mxu0
    %v4953 = vadd.f32 %v4883, %v4952
    %v4954 = vpop.f32.mrf.mxu0
    %4955 = vdwg.mxu0
    %v4956 = vadd.f32 %v4953, %v759
    %v4957 = vxor.u32 %v4533, 2147483648
    %v4958 = vmul.f32 %v4957, 1.442695
    %v4959 = vpow.pop %v4958
    %v4960 = vadd.f32 %v4959, 1.0
    %v4961 = vrcp.pop %v4960
    %v4962 = vmul.f32 1.0, %v4961
    %v4963 = vxor.u32 %v4674, 2147483648
    %v4964 = vmul.f32 %v4963, 1.442695
    %v4965 = vpow.pop %v4964
    %v4966 = vadd.f32 %v4965, 1.0
    %v4967 = vrcp.pop %v4966
    %v4968 = vmul.f32 1.0, %v4967
    %v4969 = vtanh.pop %v4815
    %v4970 = vxor.u32 %v4956, 2147483648
    %v4971 = vmul.f32 %v4970, 1.442695
    %v4972 = vpow.pop %v4971
    %v4973 = vadd.f32 %v4972, 1.0
    %v4974 = vrcp.pop %v4973
    %v4975 = vmul.f32 1.0, %v4974
    %v4976 = vmul.f32 %v4968, %v3785
    %v4977 = vmul.f32 %v4962, %v4969
    %v4978 = vadd.f32 %v4976, %v4977
    %v4979 = vtanh.pop %v4978
    %v4980 = vmul.f32 %v4975, %v4979
    %v4982 = vsel %vm166, %v4378, 0
    %4984 = vmatprep.subr.mxu0 0.0
    %4985 = vmatpush1.msra.mxu0 0.0
    %4986 = vmatprep.subr.mxu0 0.0
    %4987 = vmatpush1.msra.mxu0 0.0
    %4988 = vmatprep.subr.mxu0 0.0
    %4989 = vmatpush1.msra.mxu0 0.0
    %4990 = vmatprep.subr.mxu0 0.0
    %4991 = vmatpush1.msra.mxu0 0.0
    %4992 = vmatprep.subr.mxu0 0.0
    %4993 = vmatpush1.msra.mxu0 0.0
    %4994 = vmatprep.subr.mxu0 0.0
    %4995 = vmatpush1.msra.mxu0 0.0
    %4996 = vmatprep.subr.mxu0 0.0
    %4997 = vmatpush1.msra.mxu0 0.0
    %4998 = vmatprep.subr.mxu0 0.0
    %4999 = vmatpush1.msra.mxu0 0.0
    %5000 = vmatprep.subr.mxu0 0.0
    %5001 = vmatpush1.msra.mxu0 0.0
    %5002 = vmatprep.subr.mxu0 0.0
    %5003 = vmatpush1.msra.mxu0 0.0
    %5004 = vmatprep.subr.mxu0 0.0
    %5005 = vmatpush1.msra.mxu0 0.0
    %5006 = vmatprep.subr.mxu0 0.0
    %5007 = vmatpush1.msra.mxu0 0.0
    %5008 = vmatprep.subr.mxu0 0.0
    %5009 = vmatpush1.msra.mxu0 %v137
    %5010 = vmatprep.subr.mxu0 0.0
    %5011 = vmatpush1.msra.mxu0 %v136
    %5012 = vmatprep.subr.mxu0 0.0
    %5013 = vmatpush1.msra.mxu0 %v135
    %5014 = vmatprep.subr.mxu0 0.0
    %5015 = vmatpush1.msra.mxu0 %v134
    %5016 = vmatprep.subr.mxu0 0.0
    %5017 = vmatpush2.msra.mxu0 0.0
    %5018 = vmatprep.subr.mxu0 0.0
    %5019 = vmatpush2.msra.mxu0 0.0
    %5020 = vmatprep.subr.mxu0 0.0
    %5021 = vmatpush2.msra.mxu0 0.0
    %5022 = vmatprep.subr.mxu0 0.0
    %5023 = vmatpush2.msra.mxu0 0.0
    %5024 = vmatprep.subr.mxu0 0.0
    %5025 = vmatpush2.msra.mxu0 0.0
    %5026 = vmatprep.subr.mxu0 0.0
    %5027 = vmatpush2.msra.mxu0 0.0
    %5028 = vmatprep.subr.mxu0 0.0
    %5029 = vmatpush2.msra.mxu0 0.0
    %5030 = vmatprep.subr.mxu0 0.0
    %5031 = vmatpush2.msra.mxu0 0.0
    %5032 = vmatprep.subr.mxu0 0.0
    %5033 = vmatpush2.msra.mxu0 0.0
    %5034 = vmatprep.subr.mxu0 0.0
    %5035 = vmatpush2.msra.mxu0 0.0
    %5036 = vmatprep.subr.mxu0 0.0
    %5037 = vmatpush2.msra.mxu0 0.0
    %5038 = vmatprep.subr.mxu0 0.0
    %5039 = vmatpush2.msra.mxu0 0.0
    %5040 = vmatprep.subr.mxu0 0.0
    %5041 = vmatpush2.msra.mxu0 0.0
    %5042 = vmatprep.subr.mxu0 0.0
    %5043 = vmatpush2.msra.mxu0 0.0
    %5044 = vmatprep.subr.mxu0 0.0
    %5045 = vmatpush2.msra.mxu0 0.0
    %5046 = vmatprep.subr.mxu0 0.0
    %5047 = vmatpush2.msra.mxu0 0.0
    %5048 = vmatprep.mubr.f32.mxu0 0.0
    %5049 = vmatmul.mubr.f32.gmra.mxu0 %v4982
    %v5050 = vpop.f32.mrf.mxu0
    %v5051 = vadd.f32 0.0, %v5050
    %v5052 = vpop.f32.mrf.mxu0
    %5053 = vdwg.mxu0
    %5054 = vmatprep.subr.mxu0 0.0
    %5055 = vmatpush1.msra.mxu0 0.0
    %5056 = vmatprep.subr.mxu0 0.0
    %5057 = vmatpush1.msra.mxu0 0.0
    %5058 = vmatprep.subr.mxu0 0.0
    %5059 = vmatpush1.msra.mxu0 0.0
    %5060 = vmatprep.subr.mxu0 0.0
    %5061 = vmatpush1.msra.mxu0 0.0
    %5062 = vmatprep.subr.mxu0 0.0
    %5063 = vmatpush1.msra.mxu0 0.0
    %5064 = vmatprep.subr.mxu0 0.0
    %5065 = vmatpush1.msra.mxu0 0.0
    %5066 = vmatprep.subr.mxu0 0.0
    %5067 = vmatpush1.msra.mxu0 0.0
    %5068 = vmatprep.subr.mxu0 0.0
    %5069 = vmatpush1.msra.mxu0 0.0
    %5070 = vmatprep.subr.mxu0 0.0
    %5071 = vmatpush1.msra.mxu0 0.0
    %5072 = vmatprep.subr.mxu0 0.0
    %5073 = vmatpush1.msra.mxu0 0.0
    %5074 = vmatprep.subr.mxu0 0.0
    %5075 = vmatpush1.msra.mxu0 0.0
    %5076 = vmatprep.subr.mxu0 0.0
    %5077 = vmatpush1.msra.mxu0 0.0
    %5078 = vmatprep.subr.mxu0 0.0
    %5079 = vmatpush1.msra.mxu0 %v118
    %5080 = vmatprep.subr.mxu0 0.0
    %5081 = vmatpush1.msra.mxu0 %v117
    %5082 = vmatprep.subr.mxu0 0.0
    %5083 = vmatpush1.msra.mxu0 %v116
    %5084 = vmatprep.subr.mxu0 0.0
    %5085 = vmatpush1.msra.mxu0 %v115
    %5086 = vmatprep.subr.mxu0 0.0
    %5087 = vmatpush2.msra.mxu0 0.0
    %5088 = vmatprep.subr.mxu0 0.0
    %5089 = vmatpush2.msra.mxu0 0.0
    %5090 = vmatprep.subr.mxu0 0.0
    %5091 = vmatpush2.msra.mxu0 0.0
    %5092 = vmatprep.subr.mxu0 0.0
    %5093 = vmatpush2.msra.mxu0 0.0
    %5094 = vmatprep.subr.mxu0 0.0
    %5095 = vmatpush2.msra.mxu0 0.0
    %5096 = vmatprep.subr.mxu0 0.0
    %5097 = vmatpush2.msra.mxu0 0.0
    %5098 = vmatprep.subr.mxu0 0.0
    %5099 = vmatpush2.msra.mxu0 0.0
    %5100 = vmatprep.subr.mxu0 0.0
    %5101 = vmatpush2.msra.mxu0 0.0
    %5102 = vmatprep.subr.mxu0 0.0
    %5103 = vmatpush2.msra.mxu0 0.0
    %5104 = vmatprep.subr.mxu0 0.0
    %5105 = vmatpush2.msra.mxu0 0.0
    %5106 = vmatprep.subr.mxu0 0.0
    %5107 = vmatpush2.msra.mxu0 0.0
    %5108 = vmatprep.subr.mxu0 0.0
    %5109 = vmatpush2.msra.mxu0 0.0
    %5110 = vmatprep.subr.mxu0 0.0
    %5111 = vmatpush2.msra.mxu0 0.0
    %5112 = vmatprep.subr.mxu0 0.0
    %5113 = vmatpush2.msra.mxu0 0.0
    %5114 = vmatprep.subr.mxu0 0.0
    %5115 = vmatpush2.msra.mxu0 0.0
    %5116 = vmatprep.subr.mxu0 0.0
    %5117 = vmatpush2.msra.mxu0 0.0
    %5118 = vmatprep.mubr.f32.mxu0 0.0
    %5119 = vmatmul.mubr.f32.gmra.mxu0 %v4387
    %v5120 = vpop.f32.mrf.mxu0
    %v5121 = vadd.f32 %v5051, %v5120
    %v5122 = vpop.f32.mrf.mxu0
    %5123 = vdwg.mxu0
    %v5124 = vadd.f32 %v5121, %v1525
    %5125 = vmatprep.subr.mxu0 0.0
    %5126 = vmatpush1.msra.mxu0 0.0
    %5127 = vmatprep.subr.mxu0 0.0
    %5128 = vmatpush1.msra.mxu0 0.0
    %5129 = vmatprep.subr.mxu0 0.0
    %5130 = vmatpush1.msra.mxu0 0.0
    %5131 = vmatprep.subr.mxu0 0.0
    %5132 = vmatpush1.msra.mxu0 0.0
    %5133 = vmatprep.subr.mxu0 0.0
    %5134 = vmatpush1.msra.mxu0 0.0
    %5135 = vmatprep.subr.mxu0 0.0
    %5136 = vmatpush1.msra.mxu0 0.0
    %5137 = vmatprep.subr.mxu0 0.0
    %5138 = vmatpush1.msra.mxu0 0.0
    %5139 = vmatprep.subr.mxu0 0.0
    %5140 = vmatpush1.msra.mxu0 0.0
    %5141 = vmatprep.subr.mxu0 0.0
    %5142 = vmatpush1.msra.mxu0 0.0
    %5143 = vmatprep.subr.mxu0 0.0
    %5144 = vmatpush1.msra.mxu0 0.0
    %5145 = vmatprep.subr.mxu0 0.0
    %5146 = vmatpush1.msra.mxu0 0.0
    %5147 = vmatprep.subr.mxu0 0.0
    %5148 = vmatpush1.msra.mxu0 0.0
    %5149 = vmatprep.subr.mxu0 0.0
    %5150 = vmatpush1.msra.mxu0 %v142
    %5151 = vmatprep.subr.mxu0 0.0
    %5152 = vmatpush1.msra.mxu0 %v141
    %5153 = vmatprep.subr.mxu0 0.0
    %5154 = vmatpush1.msra.mxu0 %v140
    %5155 = vmatprep.subr.mxu0 0.0
    %5156 = vmatpush1.msra.mxu0 %v139
    %5157 = vmatprep.subr.mxu0 0.0
    %5158 = vmatpush2.msra.mxu0 0.0
    %5159 = vmatprep.subr.mxu0 0.0
    %5160 = vmatpush2.msra.mxu0 0.0
    %5161 = vmatprep.subr.mxu0 0.0
    %5162 = vmatpush2.msra.mxu0 0.0
    %5163 = vmatprep.subr.mxu0 0.0
    %5164 = vmatpush2.msra.mxu0 0.0
    %5165 = vmatprep.subr.mxu0 0.0
    %5166 = vmatpush2.msra.mxu0 0.0
    %5167 = vmatprep.subr.mxu0 0.0
    %5168 = vmatpush2.msra.mxu0 0.0
    %5169 = vmatprep.subr.mxu0 0.0
    %5170 = vmatpush2.msra.mxu0 0.0
    %5171 = vmatprep.subr.mxu0 0.0
    %5172 = vmatpush2.msra.mxu0 0.0
    %5173 = vmatprep.subr.mxu0 0.0
    %5174 = vmatpush2.msra.mxu0 0.0
    %5175 = vmatprep.subr.mxu0 0.0
    %5176 = vmatpush2.msra.mxu0 0.0
    %5177 = vmatprep.subr.mxu0 0.0
    %5178 = vmatpush2.msra.mxu0 0.0
    %5179 = vmatprep.subr.mxu0 0.0
    %5180 = vmatpush2.msra.mxu0 0.0
    %5181 = vmatprep.subr.mxu0 0.0
    %5182 = vmatpush2.msra.mxu0 0.0
    %5183 = vmatprep.subr.mxu0 0.0
    %5184 = vmatpush2.msra.mxu0 0.0
    %5185 = vmatprep.subr.mxu0 0.0
    %5186 = vmatpush2.msra.mxu0 0.0
    %5187 = vmatprep.subr.mxu0 0.0
    %5188 = vmatpush2.msra.mxu0 0.0
    %5189 = vmatprep.mubr.f32.mxu0 0.0
    %5190 = vmatmul.mubr.f32.gmra.mxu0 %v4982
    %v5191 = vpop.f32.mrf.mxu0
    %v5192 = vadd.f32 0.0, %v5191
    %v5193 = vpop.f32.mrf.mxu0
    %5194 = vdwg.mxu0
    %5195 = vmatprep.subr.mxu0 0.0
    %5196 = vmatpush1.msra.mxu0 0.0
    %5197 = vmatprep.subr.mxu0 0.0
    %5198 = vmatpush1.msra.mxu0 0.0
    %5199 = vmatprep.subr.mxu0 0.0
    %5200 = vmatpush1.msra.mxu0 0.0
    %5201 = vmatprep.subr.mxu0 0.0
    %5202 = vmatpush1.msra.mxu0 0.0
    %5203 = vmatprep.subr.mxu0 0.0
    %5204 = vmatpush1.msra.mxu0 0.0
    %5205 = vmatprep.subr.mxu0 0.0
    %5206 = vmatpush1.msra.mxu0 0.0
    %5207 = vmatprep.subr.mxu0 0.0
    %5208 = vmatpush1.msra.mxu0 0.0
    %5209 = vmatprep.subr.mxu0 0.0
    %5210 = vmatpush1.msra.mxu0 0.0
    %5211 = vmatprep.subr.mxu0 0.0
    %5212 = vmatpush1.msra.mxu0 0.0
    %5213 = vmatprep.subr.mxu0 0.0
    %5214 = vmatpush1.msra.mxu0 0.0
    %5215 = vmatprep.subr.mxu0 0.0
    %5216 = vmatpush1.msra.mxu0 0.0
    %5217 = vmatprep.subr.mxu0 0.0
    %5218 = vmatpush1.msra.mxu0 0.0
    %5219 = vmatprep.subr.mxu0 0.0
    %5220 = vmatpush1.msra.mxu0 %v123
    %5221 = vmatprep.subr.mxu0 0.0
    %5222 = vmatpush1.msra.mxu0 %v122
    %5223 = vmatprep.subr.mxu0 0.0
    %5224 = vmatpush1.msra.mxu0 %v121
    %5225 = vmatprep.subr.mxu0 0.0
    %5226 = vmatpush1.msra.mxu0 %v120
    %5227 = vmatprep.subr.mxu0 0.0
    %5228 = vmatpush2.msra.mxu0 0.0
    %5229 = vmatprep.subr.mxu0 0.0
    %5230 = vmatpush2.msra.mxu0 0.0
    %5231 = vmatprep.subr.mxu0 0.0
    %5232 = vmatpush2.msra.mxu0 0.0
    %5233 = vmatprep.subr.mxu0 0.0
    %5234 = vmatpush2.msra.mxu0 0.0
    %5235 = vmatprep.subr.mxu0 0.0
    %5236 = vmatpush2.msra.mxu0 0.0
    %5237 = vmatprep.subr.mxu0 0.0
    %5238 = vmatpush2.msra.mxu0 0.0
    %5239 = vmatprep.subr.mxu0 0.0
    %5240 = vmatpush2.msra.mxu0 0.0
    %5241 = vmatprep.subr.mxu0 0.0
    %5242 = vmatpush2.msra.mxu0 0.0
    %5243 = vmatprep.subr.mxu0 0.0
    %5244 = vmatpush2.msra.mxu0 0.0
    %5245 = vmatprep.subr.mxu0 0.0
    %5246 = vmatpush2.msra.mxu0 0.0
    %5247 = vmatprep.subr.mxu0 0.0
    %5248 = vmatpush2.msra.mxu0 0.0
    %5249 = vmatprep.subr.mxu0 0.0
    %5250 = vmatpush2.msra.mxu0 0.0
    %5251 = vmatprep.subr.mxu0 0.0
    %5252 = vmatpush2.msra.mxu0 0.0
    %5253 = vmatprep.subr.mxu0 0.0
    %5254 = vmatpush2.msra.mxu0 0.0
    %5255 = vmatprep.subr.mxu0 0.0
    %5256 = vmatpush2.msra.mxu0 0.0
    %5257 = vmatprep.subr.mxu0 0.0
    %5258 = vmatpush2.msra.mxu0 0.0
    %5259 = vmatprep.mubr.f32.mxu0 0.0
    %5260 = vmatmul.mubr.f32.gmra.mxu0 %v4387
    %v5261 = vpop.f32.mrf.mxu0
    %v5262 = vadd.f32 %v5192, %v5261
    %v5263 = vpop.f32.mrf.mxu0
    %5264 = vdwg.mxu0
    %v5265 = vadd.f32 %v5262, %v1672
    %5266 = vmatprep.subr.mxu0 0.0
    %5267 = vmatpush1.msra.mxu0 0.0
    %5268 = vmatprep.subr.mxu0 0.0
    %5269 = vmatpush1.msra.mxu0 0.0
    %5270 = vmatprep.subr.mxu0 0.0
    %5271 = vmatpush1.msra.mxu0 0.0
    %5272 = vmatprep.subr.mxu0 0.0
    %5273 = vmatpush1.msra.mxu0 0.0
    %5274 = vmatprep.subr.mxu0 0.0
    %5275 = vmatpush1.msra.mxu0 0.0
    %5276 = vmatprep.subr.mxu0 0.0
    %5277 = vmatpush1.msra.mxu0 0.0
    %5278 = vmatprep.subr.mxu0 0.0
    %5279 = vmatpush1.msra.mxu0 0.0
    %5280 = vmatprep.subr.mxu0 0.0
    %5281 = vmatpush1.msra.mxu0 0.0
    %5282 = vmatprep.subr.mxu0 0.0
    %5283 = vmatpush1.msra.mxu0 0.0
    %5284 = vmatprep.subr.mxu0 0.0
    %5285 = vmatpush1.msra.mxu0 0.0
    %5286 = vmatprep.subr.mxu0 0.0
    %5287 = vmatpush1.msra.mxu0 0.0
    %5288 = vmatprep.subr.mxu0 0.0
    %5289 = vmatpush1.msra.mxu0 0.0
    %5290 = vmatprep.subr.mxu0 0.0
    %5291 = vmatpush1.msra.mxu0 %v147
    %5292 = vmatprep.subr.mxu0 0.0
    %5293 = vmatpush1.msra.mxu0 %v146
    %5294 = vmatprep.subr.mxu0 0.0
    %5295 = vmatpush1.msra.mxu0 %v145
    %5296 = vmatprep.subr.mxu0 0.0
    %5297 = vmatpush1.msra.mxu0 %v144
    %5298 = vmatprep.subr.mxu0 0.0
    %5299 = vmatpush2.msra.mxu0 0.0
    %5300 = vmatprep.subr.mxu0 0.0
    %5301 = vmatpush2.msra.mxu0 0.0
    %5302 = vmatprep.subr.mxu0 0.0
    %5303 = vmatpush2.msra.mxu0 0.0
    %5304 = vmatprep.subr.mxu0 0.0
    %5305 = vmatpush2.msra.mxu0 0.0
    %5306 = vmatprep.subr.mxu0 0.0
    %5307 = vmatpush2.msra.mxu0 0.0
    %5308 = vmatprep.subr.mxu0 0.0
    %5309 = vmatpush2.msra.mxu0 0.0
    %5310 = vmatprep.subr.mxu0 0.0
    %5311 = vmatpush2.msra.mxu0 0.0
    %5312 = vmatprep.subr.mxu0 0.0
    %5313 = vmatpush2.msra.mxu0 0.0
    %5314 = vmatprep.subr.mxu0 0.0
    %5315 = vmatpush2.msra.mxu0 0.0
    %5316 = vmatprep.subr.mxu0 0.0
    %5317 = vmatpush2.msra.mxu0 0.0
    %5318 = vmatprep.subr.mxu0 0.0
    %5319 = vmatpush2.msra.mxu0 0.0
    %5320 = vmatprep.subr.mxu0 0.0
    %5321 = vmatpush2.msra.mxu0 0.0
    %5322 = vmatprep.subr.mxu0 0.0
    %5323 = vmatpush2.msra.mxu0 0.0
    %5324 = vmatprep.subr.mxu0 0.0
    %5325 = vmatpush2.msra.mxu0 0.0
    %5326 = vmatprep.subr.mxu0 0.0
    %5327 = vmatpush2.msra.mxu0 0.0
    %5328 = vmatprep.subr.mxu0 0.0
    %5329 = vmatpush2.msra.mxu0 0.0
    %5330 = vmatprep.mubr.f32.mxu0 0.0
    %5331 = vmatmul.mubr.f32.gmra.mxu0 %v4982
    %v5332 = vpop.f32.mrf.mxu0
    %v5333 = vadd.f32 0.0, %v5332
    %v5334 = vpop.f32.mrf.mxu0
    %5335 = vdwg.mxu0
    %5336 = vmatprep.subr.mxu0 0.0
    %5337 = vmatpush1.msra.mxu0 0.0
    %5338 = vmatprep.subr.mxu0 0.0
    %5339 = vmatpush1.msra.mxu0 0.0
    %5340 = vmatprep.subr.mxu0 0.0
    %5341 = vmatpush1.msra.mxu0 0.0
    %5342 = vmatprep.subr.mxu0 0.0
    %5343 = vmatpush1.msra.mxu0 0.0
    %5344 = vmatprep.subr.mxu0 0.0
    %5345 = vmatpush1.msra.mxu0 0.0
    %5346 = vmatprep.subr.mxu0 0.0
    %5347 = vmatpush1.msra.mxu0 0.0
    %5348 = vmatprep.subr.mxu0 0.0
    %5349 = vmatpush1.msra.mxu0 0.0
    %5350 = vmatprep.subr.mxu0 0.0
    %5351 = vmatpush1.msra.mxu0 0.0
    %5352 = vmatprep.subr.mxu0 0.0
    %5353 = vmatpush1.msra.mxu0 0.0
    %5354 = vmatprep.subr.mxu0 0.0
    %5355 = vmatpush1.msra.mxu0 0.0
    %5356 = vmatprep.subr.mxu0 0.0
    %5357 = vmatpush1.msra.mxu0 0.0
    %5358 = vmatprep.subr.mxu0 0.0
    %5359 = vmatpush1.msra.mxu0 0.0
    %5360 = vmatprep.subr.mxu0 0.0
    %5361 = vmatpush1.msra.mxu0 %v128
    %5362 = vmatprep.subr.mxu0 0.0
    %5363 = vmatpush1.msra.mxu0 %v127
    %5364 = vmatprep.subr.mxu0 0.0
    %5365 = vmatpush1.msra.mxu0 %v126
    %5366 = vmatprep.subr.mxu0 0.0
    %5367 = vmatpush1.msra.mxu0 %v125
    %5368 = vmatprep.subr.mxu0 0.0
    %5369 = vmatpush2.msra.mxu0 0.0
    %5370 = vmatprep.subr.mxu0 0.0
    %5371 = vmatpush2.msra.mxu0 0.0
    %5372 = vmatprep.subr.mxu0 0.0
    %5373 = vmatpush2.msra.mxu0 0.0
    %5374 = vmatprep.subr.mxu0 0.0
    %5375 = vmatpush2.msra.mxu0 0.0
    %5376 = vmatprep.subr.mxu0 0.0
    %5377 = vmatpush2.msra.mxu0 0.0
    %5378 = vmatprep.subr.mxu0 0.0
    %5379 = vmatpush2.msra.mxu0 0.0
    %5380 = vmatprep.subr.mxu0 0.0
    %5381 = vmatpush2.msra.mxu0 0.0
    %5382 = vmatprep.subr.mxu0 0.0
    %5383 = vmatpush2.msra.mxu0 0.0
    %5384 = vmatprep.subr.mxu0 0.0
    %5385 = vmatpush2.msra.mxu0 0.0
    %5386 = vmatprep.subr.mxu0 0.0
    %5387 = vmatpush2.msra.mxu0 0.0
    %5388 = vmatprep.subr.mxu0 0.0
    %5389 = vmatpush2.msra.mxu0 0.0
    %5390 = vmatprep.subr.mxu0 0.0
    %5391 = vmatpush2.msra.mxu0 0.0
    %5392 = vmatprep.subr.mxu0 0.0
    %5393 = vmatpush2.msra.mxu0 0.0
    %5394 = vmatprep.subr.mxu0 0.0
    %5395 = vmatpush2.msra.mxu0 0.0
    %5396 = vmatprep.subr.mxu0 0.0
    %5397 = vmatpush2.msra.mxu0 0.0
    %5398 = vmatprep.subr.mxu0 0.0
    %5399 = vmatpush2.msra.mxu0 0.0
    %5400 = vmatprep.mubr.f32.mxu0 0.0
    %5401 = vmatmul.mubr.f32.gmra.mxu0 %v4387
    %v5402 = vpop.f32.mrf.mxu0
    %v5403 = vadd.f32 %v5333, %v5402
    %v5404 = vpop.f32.mrf.mxu0
    %5405 = vdwg.mxu0
    %v5406 = vadd.f32 %v5403, %v1819
    %5407 = vmatprep.subr.mxu0 0.0
    %5408 = vmatpush1.msra.mxu0 0.0
    %5409 = vmatprep.subr.mxu0 0.0
    %5410 = vmatpush1.msra.mxu0 0.0
    %5411 = vmatprep.subr.mxu0 0.0
    %5412 = vmatpush1.msra.mxu0 0.0
    %5413 = vmatprep.subr.mxu0 0.0
    %5414 = vmatpush1.msra.mxu0 0.0
    %5415 = vmatprep.subr.mxu0 0.0
    %5416 = vmatpush1.msra.mxu0 0.0
    %5417 = vmatprep.subr.mxu0 0.0
    %5418 = vmatpush1.msra.mxu0 0.0
    %5419 = vmatprep.subr.mxu0 0.0
    %5420 = vmatpush1.msra.mxu0 0.0
    %5421 = vmatprep.subr.mxu0 0.0
    %5422 = vmatpush1.msra.mxu0 0.0
    %5423 = vmatprep.subr.mxu0 0.0
    %5424 = vmatpush1.msra.mxu0 0.0
    %5425 = vmatprep.subr.mxu0 0.0
    %5426 = vmatpush1.msra.mxu0 0.0
    %5427 = vmatprep.subr.mxu0 0.0
    %5428 = vmatpush1.msra.mxu0 0.0
    %5429 = vmatprep.subr.mxu0 0.0
    %5430 = vmatpush1.msra.mxu0 0.0
    %5431 = vmatprep.subr.mxu0 0.0
    %5432 = vmatpush1.msra.mxu0 %v152
    %5433 = vmatprep.subr.mxu0 0.0
    %5434 = vmatpush1.msra.mxu0 %v151
    %5435 = vmatprep.subr.mxu0 0.0
    %5436 = vmatpush1.msra.mxu0 %v150
    %5437 = vmatprep.subr.mxu0 0.0
    %5438 = vmatpush1.msra.mxu0 %v149
    %5439 = vmatprep.subr.mxu0 0.0
    %5440 = vmatpush2.msra.mxu0 0.0
    %5441 = vmatprep.subr.mxu0 0.0
    %5442 = vmatpush2.msra.mxu0 0.0
    %5443 = vmatprep.subr.mxu0 0.0
    %5444 = vmatpush2.msra.mxu0 0.0
    %5445 = vmatprep.subr.mxu0 0.0
    %5446 = vmatpush2.msra.mxu0 0.0
    %5447 = vmatprep.subr.mxu0 0.0
    %5448 = vmatpush2.msra.mxu0 0.0
    %5449 = vmatprep.subr.mxu0 0.0
    %5450 = vmatpush2.msra.mxu0 0.0
    %5451 = vmatprep.subr.mxu0 0.0
    %5452 = vmatpush2.msra.mxu0 0.0
    %5453 = vmatprep.subr.mxu0 0.0
    %5454 = vmatpush2.msra.mxu0 0.0
    %5455 = vmatprep.subr.mxu0 0.0
    %5456 = vmatpush2.msra.mxu0 0.0
    %5457 = vmatprep.subr.mxu0 0.0
    %5458 = vmatpush2.msra.mxu0 0.0
    %5459 = vmatprep.subr.mxu0 0.0
    %5460 = vmatpush2.msra.mxu0 0.0
    %5461 = vmatprep.subr.mxu0 0.0
    %5462 = vmatpush2.msra.mxu0 0.0
    %5463 = vmatprep.subr.mxu0 0.0
    %5464 = vmatpush2.msra.mxu0 0.0
    %5465 = vmatprep.subr.mxu0 0.0
    %5466 = vmatpush2.msra.mxu0 0.0
    %5467 = vmatprep.subr.mxu0 0.0
    %5468 = vmatpush2.msra.mxu0 0.0
    %5469 = vmatprep.subr.mxu0 0.0
    %5470 = vmatpush2.msra.mxu0 0.0
    %5471 = vmatprep.mubr.f32.mxu0 0.0
    %5472 = vmatmul.mubr.f32.gmra.mxu0 %v4982
    %v5473 = vpop.f32.mrf.mxu0
    %v5474 = vadd.f32 0.0, %v5473
    %v5475 = vpop.f32.mrf.mxu0
    %5476 = vdwg.mxu0
    %5477 = vmatprep.subr.mxu0 0.0
    %5478 = vmatpush1.msra.mxu0 0.0
    %5479 = vmatprep.subr.mxu0 0.0
    %5480 = vmatpush1.msra.mxu0 0.0
    %5481 = vmatprep.subr.mxu0 0.0
    %5482 = vmatpush1.msra.mxu0 0.0
    %5483 = vmatprep.subr.mxu0 0.0
    %5484 = vmatpush1.msra.mxu0 0.0
    %5485 = vmatprep.subr.mxu0 0.0
    %5486 = vmatpush1.msra.mxu0 0.0
    %5487 = vmatprep.subr.mxu0 0.0
    %5488 = vmatpush1.msra.mxu0 0.0
    %5489 = vmatprep.subr.mxu0 0.0
    %5490 = vmatpush1.msra.mxu0 0.0
    %5491 = vmatprep.subr.mxu0 0.0
    %5492 = vmatpush1.msra.mxu0 0.0
    %5493 = vmatprep.subr.mxu0 0.0
    %5494 = vmatpush1.msra.mxu0 0.0
    %5495 = vmatprep.subr.mxu0 0.0
    %5496 = vmatpush1.msra.mxu0 0.0
    %5497 = vmatprep.subr.mxu0 0.0
    %5498 = vmatpush1.msra.mxu0 0.0
    %5499 = vmatprep.subr.mxu0 0.0
    %5500 = vmatpush1.msra.mxu0 0.0
    %5501 = vmatprep.subr.mxu0 0.0
    %5502 = vmatpush1.msra.mxu0 %v133
    %5503 = vmatprep.subr.mxu0 0.0
    %5504 = vmatpush1.msra.mxu0 %v132
    %5505 = vmatprep.subr.mxu0 0.0
    %5506 = vmatpush1.msra.mxu0 %v131
    %5507 = vmatprep.subr.mxu0 0.0
    %5508 = vmatpush1.msra.mxu0 %v130
    %5509 = vmatprep.subr.mxu0 0.0
    %5510 = vmatpush2.msra.mxu0 0.0
    %5511 = vmatprep.subr.mxu0 0.0
    %5512 = vmatpush2.msra.mxu0 0.0
    %5513 = vmatprep.subr.mxu0 0.0
    %5514 = vmatpush2.msra.mxu0 0.0
    %5515 = vmatprep.subr.mxu0 0.0
    %5516 = vmatpush2.msra.mxu0 0.0
    %5517 = vmatprep.subr.mxu0 0.0
    %5518 = vmatpush2.msra.mxu0 0.0
    %5519 = vmatprep.subr.mxu0 0.0
    %5520 = vmatpush2.msra.mxu0 0.0
    %5521 = vmatprep.subr.mxu0 0.0
    %5522 = vmatpush2.msra.mxu0 0.0
    %5523 = vmatprep.subr.mxu0 0.0
    %5524 = vmatpush2.msra.mxu0 0.0
    %5525 = vmatprep.subr.mxu0 0.0
    %5526 = vmatpush2.msra.mxu0 0.0
    %5527 = vmatprep.subr.mxu0 0.0
    %5528 = vmatpush2.msra.mxu0 0.0
    %5529 = vmatprep.subr.mxu0 0.0
    %5530 = vmatpush2.msra.mxu0 0.0
    %5531 = vmatprep.subr.mxu0 0.0
    %5532 = vmatpush2.msra.mxu0 0.0
    %5533 = vmatprep.subr.mxu0 0.0
    %5534 = vmatpush2.msra.mxu0 0.0
    %5535 = vmatprep.subr.mxu0 0.0
    %5536 = vmatpush2.msra.mxu0 0.0
    %5537 = vmatprep.subr.mxu0 0.0
    %5538 = vmatpush2.msra.mxu0 0.0
    %5539 = vmatprep.subr.mxu0 0.0
    %5540 = vmatpush2.msra.mxu0 0.0
    %5541 = vmatprep.mubr.f32.mxu0 0.0
    %5542 = vmatmul.mubr.f32.gmra.mxu0 %v4387
    %v5543 = vpop.f32.mrf.mxu0
    %v5544 = vadd.f32 %v5474, %v5543
    %v5545 = vpop.f32.mrf.mxu0
    %5546 = vdwg.mxu0
    %v5547 = vadd.f32 %v5544, %v1966
    %v5548 = vxor.u32 %v5124, 2147483648
    %v5549 = vmul.f32 %v5548, 1.442695
    %v5550 = vpow.pop %v5549
    %v5551 = vadd.f32 %v5550, 1.0
    %v5552 = vrcp.pop %v5551
    %v5553 = vmul.f32 1.0, %v5552
    %v5554 = vxor.u32 %v5265, 2147483648
    %v5555 = vmul.f32 %v5554, 1.442695
    %v5556 = vpow.pop %v5555
    %v5557 = vadd.f32 %v5556, 1.0
    %v5558 = vrcp.pop %v5557
    %v5559 = vmul.f32 1.0, %v5558
    %v5560 = vtanh.pop %v5406
    %v5561 = vxor.u32 %v5547, 2147483648
    %v5562 = vmul.f32 %v5561, 1.442695
    %v5563 = vpow.pop %v5562
    %v5564 = vadd.f32 %v5563, 1.0
    %v5565 = vrcp.pop %v5564
    %v5566 = vmul.f32 1.0, %v5565
    %v5567 = vmul.f32 %v5559, %v4376
    %v5568 = vmul.f32 %v5553, %v5560
    %v5569 = vadd.f32 %v5567, %v5568
    %v5570 = vtanh.pop %v5569
    %v5571 = vmul.f32 %v5566, %v5570
    %vm5572 = vcmp.eq.s32.totalorder %v165, 3
    %v5573 = vsel %vm5572, 1, 0
    %5574 = vset.pattern.permute.xlu0 0
    %5575 = vperm.xlu0 %5574, %v5573
    %v5576 = vpop.permute.xlu0 %5575
    %vm5577 = vcmp.eq.s32.totalorder %v5576, 1
    %v5578 = vsel %vm5577, %v5571, %v4385
    %v5580 = vsel %vm166, %v4980, 0
    %5582 = vmatprep.subr.mxu0 0.0
    %5583 = vmatpush1.msra.mxu0 0.0
    %5584 = vmatprep.subr.mxu0 0.0
    %5585 = vmatpush1.msra.mxu0 0.0
    %5586 = vmatprep.subr.mxu0 0.0
    %5587 = vmatpush1.msra.mxu0 0.0
    %5588 = vmatprep.subr.mxu0 0.0
    %5589 = vmatpush1.msra.mxu0 0.0
    %5590 = vmatprep.subr.mxu0 0.0
    %5591 = vmatpush1.msra.mxu0 0.0
    %5592 = vmatprep.subr.mxu0 0.0
    %5593 = vmatpush1.msra.mxu0 0.0
    %5594 = vmatprep.subr.mxu0 0.0
    %5595 = vmatpush1.msra.mxu0 0.0
    %5596 = vmatprep.subr.mxu0 0.0
    %5597 = vmatpush1.msra.mxu0 0.0
    %5598 = vmatprep.subr.mxu0 0.0
    %5599 = vmatpush1.msra.mxu0 0.0
    %5600 = vmatprep.subr.mxu0 0.0
    %5601 = vmatpush1.msra.mxu0 0.0
    %5602 = vmatprep.subr.mxu0 0.0
    %5603 = vmatpush1.msra.mxu0 0.0
    %5604 = vmatprep.subr.mxu0 0.0
    %5605 = vmatpush1.msra.mxu0 0.0
    %5606 = vmatprep.subr.mxu0 0.0
    %5607 = vmatpush1.msra.mxu0 %v92
    %5608 = vmatprep.subr.mxu0 0.0
    %5609 = vmatpush1.msra.mxu0 %v91
    %5610 = vmatprep.subr.mxu0 0.0
    %5611 = vmatpush1.msra.mxu0 %v90
    %5612 = vmatprep.subr.mxu0 0.0
    %5613 = vmatpush1.msra.mxu0 %v89
    %5614 = vmatprep.subr.mxu0 0.0
    %5615 = vmatpush2.msra.mxu0 0.0
    %5616 = vmatprep.subr.mxu0 0.0
    %5617 = vmatpush2.msra.mxu0 0.0
    %5618 = vmatprep.subr.mxu0 0.0
    %5619 = vmatpush2.msra.mxu0 0.0
    %5620 = vmatprep.subr.mxu0 0.0
    %5621 = vmatpush2.msra.mxu0 0.0
    %5622 = vmatprep.subr.mxu0 0.0
    %5623 = vmatpush2.msra.mxu0 0.0
    %5624 = vmatprep.subr.mxu0 0.0
    %5625 = vmatpush2.msra.mxu0 0.0
    %5626 = vmatprep.subr.mxu0 0.0
    %5627 = vmatpush2.msra.mxu0 0.0
    %5628 = vmatprep.subr.mxu0 0.0
    %5629 = vmatpush2.msra.mxu0 0.0
    %5630 = vmatprep.subr.mxu0 0.0
    %5631 = vmatpush2.msra.mxu0 0.0
    %5632 = vmatprep.subr.mxu0 0.0
    %5633 = vmatpush2.msra.mxu0 0.0
    %5634 = vmatprep.subr.mxu0 0.0
    %5635 = vmatpush2.msra.mxu0 0.0
    %5636 = vmatprep.subr.mxu0 0.0
    %5637 = vmatpush2.msra.mxu0 0.0
    %5638 = vmatprep.subr.mxu0 0.0
    %5639 = vmatpush2.msra.mxu0 0.0
    %5640 = vmatprep.subr.mxu0 0.0
    %5641 = vmatpush2.msra.mxu0 0.0
    %5642 = vmatprep.subr.mxu0 0.0
    %5643 = vmatpush2.msra.mxu0 0.0
    %5644 = vmatprep.subr.mxu0 0.0
    %5645 = vmatpush2.msra.mxu0 0.0
    %5646 = vmatprep.mubr.f32.mxu0 0.0
    %5647 = vmatmul.mubr.f32.gmra.mxu0 %v5580
    %v5648 = vpop.f32.mrf.mxu0
    %v5649 = vadd.f32 0.0, %v5648
    %v5650 = vpop.f32.mrf.mxu0
    %5651 = vdwg.mxu0
    %5652 = vrot.lane.b32.xlu0 %v81, 88
    %v5653 = vpop.permute.xlu0 %5652
    %v5654 = vsel %vm240, %v5653, 0
    %5656 = vmatprep.subr.mxu0 0.0
    %5657 = vmatpush1.msra.mxu0 0.0
    %5658 = vmatprep.subr.mxu0 0.0
    %5659 = vmatpush1.msra.mxu0 0.0
    %5660 = vmatprep.subr.mxu0 0.0
    %5661 = vmatpush1.msra.mxu0 0.0
    %5662 = vmatprep.subr.mxu0 0.0
    %5663 = vmatpush1.msra.mxu0 0.0
    %5664 = vmatprep.subr.mxu0 0.0
    %5665 = vmatpush1.msra.mxu0 0.0
    %5666 = vmatprep.subr.mxu0 0.0
    %5667 = vmatpush1.msra.mxu0 0.0
    %5668 = vmatprep.subr.mxu0 0.0
    %5669 = vmatpush1.msra.mxu0 0.0
    %5670 = vmatprep.subr.mxu0 0.0
    %5671 = vmatpush1.msra.mxu0 0.0
    %5672 = vmatprep.subr.mxu0 0.0
    %5673 = vmatpush1.msra.mxu0 0.0
    %5674 = vmatprep.subr.mxu0 0.0
    %5675 = vmatpush1.msra.mxu0 0.0
    %5676 = vmatprep.subr.mxu0 0.0
    %5677 = vmatpush1.msra.mxu0 0.0
    %5678 = vmatprep.subr.mxu0 0.0
    %5679 = vmatpush1.msra.mxu0 0.0
    %5680 = vmatprep.subr.mxu0 0.0
    %5681 = vmatpush1.msra.mxu0 0.0
    %5682 = vmatprep.subr.mxu0 0.0
    %5683 = vmatpush1.msra.mxu0 0.0
    %5684 = vmatprep.subr.mxu0 0.0
    %5685 = vmatpush1.msra.mxu0 0.0
    %5686 = vmatprep.subr.mxu0 0.0
    %5687 = vmatpush1.msra.mxu0 %v82
    %5688 = vmatprep.subr.mxu0 0.0
    %5689 = vmatpush2.msra.mxu0 0.0
    %5690 = vmatprep.subr.mxu0 0.0
    %5691 = vmatpush2.msra.mxu0 0.0
    %5692 = vmatprep.subr.mxu0 0.0
    %5693 = vmatpush2.msra.mxu0 0.0
    %5694 = vmatprep.subr.mxu0 0.0
    %5695 = vmatpush2.msra.mxu0 0.0
    %5696 = vmatprep.subr.mxu0 0.0
    %5697 = vmatpush2.msra.mxu0 0.0
    %5698 = vmatprep.subr.mxu0 0.0
    %5699 = vmatpush2.msra.mxu0 0.0
    %5700 = vmatprep.subr.mxu0 0.0
    %5701 = vmatpush2.msra.mxu0 0.0
    %5702 = vmatprep.subr.mxu0 0.0
    %5703 = vmatpush2.msra.mxu0 0.0
    %5704 = vmatprep.subr.mxu0 0.0
    %5705 = vmatpush2.msra.mxu0 0.0
    %5706 = vmatprep.subr.mxu0 0.0
    %5707 = vmatpush2.msra.mxu0 0.0
    %5708 = vmatprep.subr.mxu0 0.0
    %5709 = vmatpush2.msra.mxu0 0.0
    %5710 = vmatprep.subr.mxu0 0.0
    %5711 = vmatpush2.msra.mxu0 0.0
    %5712 = vmatprep.subr.mxu0 0.0
    %5713 = vmatpush2.msra.mxu0 0.0
    %5714 = vmatprep.subr.mxu0 0.0
    %5715 = vmatpush2.msra.mxu0 0.0
    %5716 = vmatprep.subr.mxu0 0.0
    %5717 = vmatpush2.msra.mxu0 0.0
    %5718 = vmatprep.subr.mxu0 0.0
    %5719 = vmatpush2.msra.mxu0 0.0
    %5720 = vmatprep.mubr.f32.mxu0 0.0
    %5721 = vmatmul.mubr.f32.gmra.mxu0 %v5654
    %v5722 = vpop.f32.mrf.mxu0
    %v5723 = vadd.f32 %v5649, %v5722
    %v5724 = vpop.f32.mrf.mxu0
    %5725 = vdwg.mxu0
    %v5726 = vadd.f32 %v5723, %v318
    %5727 = vmatprep.subr.mxu0 0.0
    %5728 = vmatpush1.msra.mxu0 0.0
    %5729 = vmatprep.subr.mxu0 0.0
    %5730 = vmatpush1.msra.mxu0 0.0
    %5731 = vmatprep.subr.mxu0 0.0
    %5732 = vmatpush1.msra.mxu0 0.0
    %5733 = vmatprep.subr.mxu0 0.0
    %5734 = vmatpush1.msra.mxu0 0.0
    %5735 = vmatprep.subr.mxu0 0.0
    %5736 = vmatpush1.msra.mxu0 0.0
    %5737 = vmatprep.subr.mxu0 0.0
    %5738 = vmatpush1.msra.mxu0 0.0
    %5739 = vmatprep.subr.mxu0 0.0
    %5740 = vmatpush1.msra.mxu0 0.0
    %5741 = vmatprep.subr.mxu0 0.0
    %5742 = vmatpush1.msra.mxu0 0.0
    %5743 = vmatprep.subr.mxu0 0.0
    %5744 = vmatpush1.msra.mxu0 0.0
    %5745 = vmatprep.subr.mxu0 0.0
    %5746 = vmatpush1.msra.mxu0 0.0
    %5747 = vmatprep.subr.mxu0 0.0
    %5748 = vmatpush1.msra.mxu0 0.0
    %5749 = vmatprep.subr.mxu0 0.0
    %5750 = vmatpush1.msra.mxu0 0.0
    %5751 = vmatprep.subr.mxu0 0.0
    %5752 = vmatpush1.msra.mxu0 %v97
    %5753 = vmatprep.subr.mxu0 0.0
    %5754 = vmatpush1.msra.mxu0 %v96
    %5755 = vmatprep.subr.mxu0 0.0
    %5756 = vmatpush1.msra.mxu0 %v95
    %5757 = vmatprep.subr.mxu0 0.0
    %5758 = vmatpush1.msra.mxu0 %v94
    %5759 = vmatprep.subr.mxu0 0.0
    %5760 = vmatpush2.msra.mxu0 0.0
    %5761 = vmatprep.subr.mxu0 0.0
    %5762 = vmatpush2.msra.mxu0 0.0
    %5763 = vmatprep.subr.mxu0 0.0
    %5764 = vmatpush2.msra.mxu0 0.0
    %5765 = vmatprep.subr.mxu0 0.0
    %5766 = vmatpush2.msra.mxu0 0.0
    %5767 = vmatprep.subr.mxu0 0.0
    %5768 = vmatpush2.msra.mxu0 0.0
    %5769 = vmatprep.subr.mxu0 0.0
    %5770 = vmatpush2.msra.mxu0 0.0
    %5771 = vmatprep.subr.mxu0 0.0
    %5772 = vmatpush2.msra.mxu0 0.0
    %5773 = vmatprep.subr.mxu0 0.0
    %5774 = vmatpush2.msra.mxu0 0.0
    %5775 = vmatprep.subr.mxu0 0.0
    %5776 = vmatpush2.msra.mxu0 0.0
    %5777 = vmatprep.subr.mxu0 0.0
    %5778 = vmatpush2.msra.mxu0 0.0
    %5779 = vmatprep.subr.mxu0 0.0
    %5780 = vmatpush2.msra.mxu0 0.0
    %5781 = vmatprep.subr.mxu0 0.0
    %5782 = vmatpush2.msra.mxu0 0.0
    %5783 = vmatprep.subr.mxu0 0.0
    %5784 = vmatpush2.msra.mxu0 0.0
    %5785 = vmatprep.subr.mxu0 0.0
    %5786 = vmatpush2.msra.mxu0 0.0
    %5787 = vmatprep.subr.mxu0 0.0
    %5788 = vmatpush2.msra.mxu0 0.0
    %5789 = vmatprep.subr.mxu0 0.0
    %5790 = vmatpush2.msra.mxu0 0.0
    %5791 = vmatprep.mubr.f32.mxu0 0.0
    %5792 = vmatmul.mubr.f32.gmra.mxu0 %v5580
    %v5793 = vpop.f32.mrf.mxu0
    %v5794 = vadd.f32 0.0, %v5793
    %v5795 = vpop.f32.mrf.mxu0
    %5796 = vdwg.mxu0
    %5797 = vmatprep.subr.mxu0 0.0
    %5798 = vmatpush1.msra.mxu0 0.0
    %5799 = vmatprep.subr.mxu0 0.0
    %5800 = vmatpush1.msra.mxu0 0.0
    %5801 = vmatprep.subr.mxu0 0.0
    %5802 = vmatpush1.msra.mxu0 0.0
    %5803 = vmatprep.subr.mxu0 0.0
    %5804 = vmatpush1.msra.mxu0 0.0
    %5805 = vmatprep.subr.mxu0 0.0
    %5806 = vmatpush1.msra.mxu0 0.0
    %5807 = vmatprep.subr.mxu0 0.0
    %5808 = vmatpush1.msra.mxu0 0.0
    %5809 = vmatprep.subr.mxu0 0.0
    %5810 = vmatpush1.msra.mxu0 0.0
    %5811 = vmatprep.subr.mxu0 0.0
    %5812 = vmatpush1.msra.mxu0 0.0
    %5813 = vmatprep.subr.mxu0 0.0
    %5814 = vmatpush1.msra.mxu0 0.0
    %5815 = vmatprep.subr.mxu0 0.0
    %5816 = vmatpush1.msra.mxu0 0.0
    %5817 = vmatprep.subr.mxu0 0.0
    %5818 = vmatpush1.msra.mxu0 0.0
    %5819 = vmatprep.subr.mxu0 0.0
    %5820 = vmatpush1.msra.mxu0 0.0
    %5821 = vmatprep.subr.mxu0 0.0
    %5822 = vmatpush1.msra.mxu0 0.0
    %5823 = vmatprep.subr.mxu0 0.0
    %5824 = vmatpush1.msra.mxu0 0.0
    %5825 = vmatprep.subr.mxu0 0.0
    %5826 = vmatpush1.msra.mxu0 0.0
    %5827 = vmatprep.subr.mxu0 0.0
    %5828 = vmatpush1.msra.mxu0 %v84
    %5829 = vmatprep.subr.mxu0 0.0
    %5830 = vmatpush2.msra.mxu0 0.0
    %5831 = vmatprep.subr.mxu0 0.0
    %5832 = vmatpush2.msra.mxu0 0.0
    %5833 = vmatprep.subr.mxu0 0.0
    %5834 = vmatpush2.msra.mxu0 0.0
    %5835 = vmatprep.subr.mxu0 0.0
    %5836 = vmatpush2.msra.mxu0 0.0
    %5837 = vmatprep.subr.mxu0 0.0
    %5838 = vmatpush2.msra.mxu0 0.0
    %5839 = vmatprep.subr.mxu0 0.0
    %5840 = vmatpush2.msra.mxu0 0.0
    %5841 = vmatprep.subr.mxu0 0.0
    %5842 = vmatpush2.msra.mxu0 0.0
    %5843 = vmatprep.subr.mxu0 0.0
    %5844 = vmatpush2.msra.mxu0 0.0
    %5845 = vmatprep.subr.mxu0 0.0
    %5846 = vmatpush2.msra.mxu0 0.0
    %5847 = vmatprep.subr.mxu0 0.0
    %5848 = vmatpush2.msra.mxu0 0.0
    %5849 = vmatprep.subr.mxu0 0.0
    %5850 = vmatpush2.msra.mxu0 0.0
    %5851 = vmatprep.subr.mxu0 0.0
    %5852 = vmatpush2.msra.mxu0 0.0
    %5853 = vmatprep.subr.mxu0 0.0
    %5854 = vmatpush2.msra.mxu0 0.0
    %5855 = vmatprep.subr.mxu0 0.0
    %5856 = vmatpush2.msra.mxu0 0.0
    %5857 = vmatprep.subr.mxu0 0.0
    %5858 = vmatpush2.msra.mxu0 0.0
    %5859 = vmatprep.subr.mxu0 0.0
    %5860 = vmatpush2.msra.mxu0 0.0
    %5861 = vmatprep.mubr.f32.mxu0 0.0
    %5862 = vmatmul.mubr.f32.gmra.mxu0 %v5654
    %v5863 = vpop.f32.mrf.mxu0
    %v5864 = vadd.f32 %v5794, %v5863
    %v5865 = vpop.f32.mrf.mxu0
    %5866 = vdwg.mxu0
    %v5867 = vadd.f32 %v5864, %v465
    %5868 = vmatprep.subr.mxu0 0.0
    %5869 = vmatpush1.msra.mxu0 0.0
    %5870 = vmatprep.subr.mxu0 0.0
    %5871 = vmatpush1.msra.mxu0 0.0
    %5872 = vmatprep.subr.mxu0 0.0
    %5873 = vmatpush1.msra.mxu0 0.0
    %5874 = vmatprep.subr.mxu0 0.0
    %5875 = vmatpush1.msra.mxu0 0.0
    %5876 = vmatprep.subr.mxu0 0.0
    %5877 = vmatpush1.msra.mxu0 0.0
    %5878 = vmatprep.subr.mxu0 0.0
    %5879 = vmatpush1.msra.mxu0 0.0
    %5880 = vmatprep.subr.mxu0 0.0
    %5881 = vmatpush1.msra.mxu0 0.0
    %5882 = vmatprep.subr.mxu0 0.0
    %5883 = vmatpush1.msra.mxu0 0.0
    %5884 = vmatprep.subr.mxu0 0.0
    %5885 = vmatpush1.msra.mxu0 0.0
    %5886 = vmatprep.subr.mxu0 0.0
    %5887 = vmatpush1.msra.mxu0 0.0
    %5888 = vmatprep.subr.mxu0 0.0
    %5889 = vmatpush1.msra.mxu0 0.0
    %5890 = vmatprep.subr.mxu0 0.0
    %5891 = vmatpush1.msra.mxu0 0.0
    %5892 = vmatprep.subr.mxu0 0.0
    %5893 = vmatpush1.msra.mxu0 %v102
    %5894 = vmatprep.subr.mxu0 0.0
    %5895 = vmatpush1.msra.mxu0 %v101
    %5896 = vmatprep.subr.mxu0 0.0
    %5897 = vmatpush1.msra.mxu0 %v100
    %5898 = vmatprep.subr.mxu0 0.0
    %5899 = vmatpush1.msra.mxu0 %v99
    %5900 = vmatprep.subr.mxu0 0.0
    %5901 = vmatpush2.msra.mxu0 0.0
    %5902 = vmatprep.subr.mxu0 0.0
    %5903 = vmatpush2.msra.mxu0 0.0
    %5904 = vmatprep.subr.mxu0 0.0
    %5905 = vmatpush2.msra.mxu0 0.0
    %5906 = vmatprep.subr.mxu0 0.0
    %5907 = vmatpush2.msra.mxu0 0.0
    %5908 = vmatprep.subr.mxu0 0.0
    %5909 = vmatpush2.msra.mxu0 0.0
    %5910 = vmatprep.subr.mxu0 0.0
    %5911 = vmatpush2.msra.mxu0 0.0
    %5912 = vmatprep.subr.mxu0 0.0
    %5913 = vmatpush2.msra.mxu0 0.0
    %5914 = vmatprep.subr.mxu0 0.0
    %5915 = vmatpush2.msra.mxu0 0.0
    %5916 = vmatprep.subr.mxu0 0.0
    %5917 = vmatpush2.msra.mxu0 0.0
    %5918 = vmatprep.subr.mxu0 0.0
    %5919 = vmatpush2.msra.mxu0 0.0
    %5920 = vmatprep.subr.mxu0 0.0
    %5921 = vmatpush2.msra.mxu0 0.0
    %5922 = vmatprep.subr.mxu0 0.0
    %5923 = vmatpush2.msra.mxu0 0.0
    %5924 = vmatprep.subr.mxu0 0.0
    %5925 = vmatpush2.msra.mxu0 0.0
    %5926 = vmatprep.subr.mxu0 0.0
    %5927 = vmatpush2.msra.mxu0 0.0
    %5928 = vmatprep.subr.mxu0 0.0
    %5929 = vmatpush2.msra.mxu0 0.0
    %5930 = vmatprep.subr.mxu0 0.0
    %5931 = vmatpush2.msra.mxu0 0.0
    %5932 = vmatprep.mubr.f32.mxu0 0.0
    %5933 = vmatmul.mubr.f32.gmra.mxu0 %v5580
    %v5934 = vpop.f32.mrf.mxu0
    %v5935 = vadd.f32 0.0, %v5934
    %v5936 = vpop.f32.mrf.mxu0
    %5937 = vdwg.mxu0
    %5938 = vmatprep.subr.mxu0 0.0
    %5939 = vmatpush1.msra.mxu0 0.0
    %5940 = vmatprep.subr.mxu0 0.0
    %5941 = vmatpush1.msra.mxu0 0.0
    %5942 = vmatprep.subr.mxu0 0.0
    %5943 = vmatpush1.msra.mxu0 0.0
    %5944 = vmatprep.subr.mxu0 0.0
    %5945 = vmatpush1.msra.mxu0 0.0
    %5946 = vmatprep.subr.mxu0 0.0
    %5947 = vmatpush1.msra.mxu0 0.0
    %5948 = vmatprep.subr.mxu0 0.0
    %5949 = vmatpush1.msra.mxu0 0.0
    %5950 = vmatprep.subr.mxu0 0.0
    %5951 = vmatpush1.msra.mxu0 0.0
    %5952 = vmatprep.subr.mxu0 0.0
    %5953 = vmatpush1.msra.mxu0 0.0
    %5954 = vmatprep.subr.mxu0 0.0
    %5955 = vmatpush1.msra.mxu0 0.0
    %5956 = vmatprep.subr.mxu0 0.0
    %5957 = vmatpush1.msra.mxu0 0.0
    %5958 = vmatprep.subr.mxu0 0.0
    %5959 = vmatpush1.msra.mxu0 0.0
    %5960 = vmatprep.subr.mxu0 0.0
    %5961 = vmatpush1.msra.mxu0 0.0
    %5962 = vmatprep.subr.mxu0 0.0
    %5963 = vmatpush1.msra.mxu0 0.0
    %5964 = vmatprep.subr.mxu0 0.0
    %5965 = vmatpush1.msra.mxu0 0.0
    %5966 = vmatprep.subr.mxu0 0.0
    %5967 = vmatpush1.msra.mxu0 0.0
    %5968 = vmatprep.subr.mxu0 0.0
    %5969 = vmatpush1.msra.mxu0 %v86
    %5970 = vmatprep.subr.mxu0 0.0
    %5971 = vmatpush2.msra.mxu0 0.0
    %5972 = vmatprep.subr.mxu0 0.0
    %5973 = vmatpush2.msra.mxu0 0.0
    %5974 = vmatprep.subr.mxu0 0.0
    %5975 = vmatpush2.msra.mxu0 0.0
    %5976 = vmatprep.subr.mxu0 0.0
    %5977 = vmatpush2.msra.mxu0 0.0
    %5978 = vmatprep.subr.mxu0 0.0
    %5979 = vmatpush2.msra.mxu0 0.0
    %5980 = vmatprep.subr.mxu0 0.0
    %5981 = vmatpush2.msra.mxu0 0.0
    %5982 = vmatprep.subr.mxu0 0.0
    %5983 = vmatpush2.msra.mxu0 0.0
    %5984 = vmatprep.subr.mxu0 0.0
    %5985 = vmatpush2.msra.mxu0 0.0
    %5986 = vmatprep.subr.mxu0 0.0
    %5987 = vmatpush2.msra.mxu0 0.0
    %5988 = vmatprep.subr.mxu0 0.0
    %5989 = vmatpush2.msra.mxu0 0.0
    %5990 = vmatprep.subr.mxu0 0.0
    %5991 = vmatpush2.msra.mxu0 0.0
    %5992 = vmatprep.subr.mxu0 0.0
    %5993 = vmatpush2.msra.mxu0 0.0
    %5994 = vmatprep.subr.mxu0 0.0
    %5995 = vmatpush2.msra.mxu0 0.0
    %5996 = vmatprep.subr.mxu0 0.0
    %5997 = vmatpush2.msra.mxu0 0.0
    %5998 = vmatprep.subr.mxu0 0.0
    %5999 = vmatpush2.msra.mxu0 0.0
    %6000 = vmatprep.subr.mxu0 0.0
    %6001 = vmatpush2.msra.mxu0 0.0
    %6002 = vmatprep.mubr.f32.mxu0 0.0
    %6003 = vmatmul.mubr.f32.gmra.mxu0 %v5654
    %v6004 = vpop.f32.mrf.mxu0
    %v6005 = vadd.f32 %v5935, %v6004
    %v6006 = vpop.f32.mrf.mxu0
    %6007 = vdwg.mxu0
    %v6008 = vadd.f32 %v6005, %v612
    %6009 = vmatprep.subr.mxu0 0.0
    %6010 = vmatpush1.msra.mxu0 0.0
    %6011 = vmatprep.subr.mxu0 0.0
    %6012 = vmatpush1.msra.mxu0 0.0
    %6013 = vmatprep.subr.mxu0 0.0
    %6014 = vmatpush1.msra.mxu0 0.0
    %6015 = vmatprep.subr.mxu0 0.0
    %6016 = vmatpush1.msra.mxu0 0.0
    %6017 = vmatprep.subr.mxu0 0.0
    %6018 = vmatpush1.msra.mxu0 0.0
    %6019 = vmatprep.subr.mxu0 0.0
    %6020 = vmatpush1.msra.mxu0 0.0
    %6021 = vmatprep.subr.mxu0 0.0
    %6022 = vmatpush1.msra.mxu0 0.0
    %6023 = vmatprep.subr.mxu0 0.0
    %6024 = vmatpush1.msra.mxu0 0.0
    %6025 = vmatprep.subr.mxu0 0.0
    %6026 = vmatpush1.msra.mxu0 0.0
    %6027 = vmatprep.subr.mxu0 0.0
    %6028 = vmatpush1.msra.mxu0 0.0
    %6029 = vmatprep.subr.mxu0 0.0
    %6030 = vmatpush1.msra.mxu0 0.0
    %6031 = vmatprep.subr.mxu0 0.0
    %6032 = vmatpush1.msra.mxu0 0.0
    %6033 = vmatprep.subr.mxu0 0.0
    %6034 = vmatpush1.msra.mxu0 %v107
    %6035 = vmatprep.subr.mxu0 0.0
    %6036 = vmatpush1.msra.mxu0 %v106
    %6037 = vmatprep.subr.mxu0 0.0
    %6038 = vmatpush1.msra.mxu0 %v105
    %6039 = vmatprep.subr.mxu0 0.0
    %6040 = vmatpush1.msra.mxu0 %v104
    %6041 = vmatprep.subr.mxu0 0.0
    %6042 = vmatpush2.msra.mxu0 0.0
    %6043 = vmatprep.subr.mxu0 0.0
    %6044 = vmatpush2.msra.mxu0 0.0
    %6045 = vmatprep.subr.mxu0 0.0
    %6046 = vmatpush2.msra.mxu0 0.0
    %6047 = vmatprep.subr.mxu0 0.0
    %6048 = vmatpush2.msra.mxu0 0.0
    %6049 = vmatprep.subr.mxu0 0.0
    %6050 = vmatpush2.msra.mxu0 0.0
    %6051 = vmatprep.subr.mxu0 0.0
    %6052 = vmatpush2.msra.mxu0 0.0
    %6053 = vmatprep.subr.mxu0 0.0
    %6054 = vmatpush2.msra.mxu0 0.0
    %6055 = vmatprep.subr.mxu0 0.0
    %6056 = vmatpush2.msra.mxu0 0.0
    %6057 = vmatprep.subr.mxu0 0.0
    %6058 = vmatpush2.msra.mxu0 0.0
    %6059 = vmatprep.subr.mxu0 0.0
    %6060 = vmatpush2.msra.mxu0 0.0
    %6061 = vmatprep.subr.mxu0 0.0
    %6062 = vmatpush2.msra.mxu0 0.0
    %6063 = vmatprep.subr.mxu0 0.0
    %6064 = vmatpush2.msra.mxu0 0.0
    %6065 = vmatprep.subr.mxu0 0.0
    %6066 = vmatpush2.msra.mxu0 0.0
    %6067 = vmatprep.subr.mxu0 0.0
    %6068 = vmatpush2.msra.mxu0 0.0
    %6069 = vmatprep.subr.mxu0 0.0
    %6070 = vmatpush2.msra.mxu0 0.0
    %6071 = vmatprep.subr.mxu0 0.0
    %6072 = vmatpush2.msra.mxu0 0.0
    %6073 = vmatprep.mubr.f32.mxu0 0.0
    %6074 = vmatmul.mubr.f32.gmra.mxu0 %v5580
    %v6075 = vpop.f32.mrf.mxu0
    %v6076 = vadd.f32 0.0, %v6075
    %v6077 = vpop.f32.mrf.mxu0
    %6078 = vdwg.mxu0
    %6079 = vmatprep.subr.mxu0 0.0
    %6080 = vmatpush1.msra.mxu0 0.0
    %6081 = vmatprep.subr.mxu0 0.0
    %6082 = vmatpush1.msra.mxu0 0.0
    %6083 = vmatprep.subr.mxu0 0.0
    %6084 = vmatpush1.msra.mxu0 0.0
    %6085 = vmatprep.subr.mxu0 0.0
    %6086 = vmatpush1.msra.mxu0 0.0
    %6087 = vmatprep.subr.mxu0 0.0
    %6088 = vmatpush1.msra.mxu0 0.0
    %6089 = vmatprep.subr.mxu0 0.0
    %6090 = vmatpush1.msra.mxu0 0.0
    %6091 = vmatprep.subr.mxu0 0.0
    %6092 = vmatpush1.msra.mxu0 0.0
    %6093 = vmatprep.subr.mxu0 0.0
    %6094 = vmatpush1.msra.mxu0 0.0
    %6095 = vmatprep.subr.mxu0 0.0
    %6096 = vmatpush1.msra.mxu0 0.0
    %6097 = vmatprep.subr.mxu0 0.0
    %6098 = vmatpush1.msra.mxu0 0.0
    %6099 = vmatprep.subr.mxu0 0.0
    %6100 = vmatpush1.msra.mxu0 0.0
    %6101 = vmatprep.subr.mxu0 0.0
    %6102 = vmatpush1.msra.mxu0 0.0
    %6103 = vmatprep.subr.mxu0 0.0
    %6104 = vmatpush1.msra.mxu0 0.0
    %6105 = vmatprep.subr.mxu0 0.0
    %6106 = vmatpush1.msra.mxu0 0.0
    %6107 = vmatprep.subr.mxu0 0.0
    %6108 = vmatpush1.msra.mxu0 0.0
    %6109 = vmatprep.subr.mxu0 0.0
    %6110 = vmatpush1.msra.mxu0 %v88
    %6111 = vmatprep.subr.mxu0 0.0
    %6112 = vmatpush2.msra.mxu0 0.0
    %6113 = vmatprep.subr.mxu0 0.0
    %6114 = vmatpush2.msra.mxu0 0.0
    %6115 = vmatprep.subr.mxu0 0.0
    %6116 = vmatpush2.msra.mxu0 0.0
    %6117 = vmatprep.subr.mxu0 0.0
    %6118 = vmatpush2.msra.mxu0 0.0
    %6119 = vmatprep.subr.mxu0 0.0
    %6120 = vmatpush2.msra.mxu0 0.0
    %6121 = vmatprep.subr.mxu0 0.0
    %6122 = vmatpush2.msra.mxu0 0.0
    %6123 = vmatprep.subr.mxu0 0.0
    %6124 = vmatpush2.msra.mxu0 0.0
    %6125 = vmatprep.subr.mxu0 0.0
    %6126 = vmatpush2.msra.mxu0 0.0
    %6127 = vmatprep.subr.mxu0 0.0
    %6128 = vmatpush2.msra.mxu0 0.0
    %6129 = vmatprep.subr.mxu0 0.0
    %6130 = vmatpush2.msra.mxu0 0.0
    %6131 = vmatprep.subr.mxu0 0.0
    %6132 = vmatpush2.msra.mxu0 0.0
    %6133 = vmatprep.subr.mxu0 0.0
    %6134 = vmatpush2.msra.mxu0 0.0
    %6135 = vmatprep.subr.mxu0 0.0
    %6136 = vmatpush2.msra.mxu0 0.0
    %6137 = vmatprep.subr.mxu0 0.0
    %6138 = vmatpush2.msra.mxu0 0.0
    %6139 = vmatprep.subr.mxu0 0.0
    %6140 = vmatpush2.msra.mxu0 0.0
    %6141 = vmatprep.subr.mxu0 0.0
    %6142 = vmatpush2.msra.mxu0 0.0
    %6143 = vmatprep.mubr.f32.mxu0 0.0
    %6144 = vmatmul.mubr.f32.gmra.mxu0 %v5654
    %v6145 = vpop.f32.mrf.mxu0
    %v6146 = vadd.f32 %v6076, %v6145
    %v6147 = vpop.f32.mrf.mxu0
    %6148 = vdwg.mxu0
    %v6149 = vadd.f32 %v6146, %v759
    %v6150 = vxor.u32 %v5726, 2147483648
    %v6151 = vmul.f32 %v6150, 1.442695
    %v6152 = vpow.pop %v6151
    %v6153 = vadd.f32 %v6152, 1.0
    %v6154 = vrcp.pop %v6153
    %v6155 = vmul.f32 1.0, %v6154
    %v6156 = vxor.u32 %v5867, 2147483648
    %v6157 = vmul.f32 %v6156, 1.442695
    %v6158 = vpow.pop %v6157
    %v6159 = vadd.f32 %v6158, 1.0
    %v6160 = vrcp.pop %v6159
    %v6161 = vmul.f32 1.0, %v6160
    %v6162 = vtanh.pop %v6008
    %v6163 = vxor.u32 %v6149, 2147483648
    %v6164 = vmul.f32 %v6163, 1.442695
    %v6165 = vpow.pop %v6164
    %v6166 = vadd.f32 %v6165, 1.0
    %v6167 = vrcp.pop %v6166
    %v6168 = vmul.f32 1.0, %v6167
    %v6169 = vmul.f32 %v6161, %v4978
    %v6170 = vmul.f32 %v6155, %v6162
    %v6171 = vadd.f32 %v6169, %v6170
    %v6172 = vtanh.pop %v6171
    %v6173 = vmul.f32 %v6168, %v6172
    %v6175 = vsel %vm166, %v5571, 0
    %6177 = vmatprep.subr.mxu0 0.0
    %6178 = vmatpush1.msra.mxu0 0.0
    %6179 = vmatprep.subr.mxu0 0.0
    %6180 = vmatpush1.msra.mxu0 0.0
    %6181 = vmatprep.subr.mxu0 0.0
    %6182 = vmatpush1.msra.mxu0 0.0
    %6183 = vmatprep.subr.mxu0 0.0
    %6184 = vmatpush1.msra.mxu0 0.0
    %6185 = vmatprep.subr.mxu0 0.0
    %6186 = vmatpush1.msra.mxu0 0.0
    %6187 = vmatprep.subr.mxu0 0.0
    %6188 = vmatpush1.msra.mxu0 0.0
    %6189 = vmatprep.subr.mxu0 0.0
    %6190 = vmatpush1.msra.mxu0 0.0
    %6191 = vmatprep.subr.mxu0 0.0
    %6192 = vmatpush1.msra.mxu0 0.0
    %6193 = vmatprep.subr.mxu0 0.0
    %6194 = vmatpush1.msra.mxu0 0.0
    %6195 = vmatprep.subr.mxu0 0.0
    %6196 = vmatpush1.msra.mxu0 0.0
    %6197 = vmatprep.subr.mxu0 0.0
    %6198 = vmatpush1.msra.mxu0 0.0
    %6199 = vmatprep.subr.mxu0 0.0
    %6200 = vmatpush1.msra.mxu0 0.0
    %6201 = vmatprep.subr.mxu0 0.0
    %6202 = vmatpush1.msra.mxu0 %v137
    %6203 = vmatprep.subr.mxu0 0.0
    %6204 = vmatpush1.msra.mxu0 %v136
    %6205 = vmatprep.subr.mxu0 0.0
    %6206 = vmatpush1.msra.mxu0 %v135
    %6207 = vmatprep.subr.mxu0 0.0
    %6208 = vmatpush1.msra.mxu0 %v134
    %6209 = vmatprep.subr.mxu0 0.0
    %6210 = vmatpush2.msra.mxu0 0.0
    %6211 = vmatprep.subr.mxu0 0.0
    %6212 = vmatpush2.msra.mxu0 0.0
    %6213 = vmatprep.subr.mxu0 0.0
    %6214 = vmatpush2.msra.mxu0 0.0
    %6215 = vmatprep.subr.mxu0 0.0
    %6216 = vmatpush2.msra.mxu0 0.0
    %6217 = vmatprep.subr.mxu0 0.0
    %6218 = vmatpush2.msra.mxu0 0.0
    %6219 = vmatprep.subr.mxu0 0.0
    %6220 = vmatpush2.msra.mxu0 0.0
    %6221 = vmatprep.subr.mxu0 0.0
    %6222 = vmatpush2.msra.mxu0 0.0
    %6223 = vmatprep.subr.mxu0 0.0
    %6224 = vmatpush2.msra.mxu0 0.0
    %6225 = vmatprep.subr.mxu0 0.0
    %6226 = vmatpush2.msra.mxu0 0.0
    %6227 = vmatprep.subr.mxu0 0.0
    %6228 = vmatpush2.msra.mxu0 0.0
    %6229 = vmatprep.subr.mxu0 0.0
    %6230 = vmatpush2.msra.mxu0 0.0
    %6231 = vmatprep.subr.mxu0 0.0
    %6232 = vmatpush2.msra.mxu0 0.0
    %6233 = vmatprep.subr.mxu0 0.0
    %6234 = vmatpush2.msra.mxu0 0.0
    %6235 = vmatprep.subr.mxu0 0.0
    %6236 = vmatpush2.msra.mxu0 0.0
    %6237 = vmatprep.subr.mxu0 0.0
    %6238 = vmatpush2.msra.mxu0 0.0
    %6239 = vmatprep.subr.mxu0 0.0
    %6240 = vmatpush2.msra.mxu0 0.0
    %6241 = vmatprep.mubr.f32.mxu0 0.0
    %6242 = vmatmul.mubr.f32.gmra.mxu0 %v6175
    %v6243 = vpop.f32.mrf.mxu0
    %v6244 = vadd.f32 0.0, %v6243
    %v6245 = vpop.f32.mrf.mxu0
    %6246 = vdwg.mxu0
    %6247 = vmatprep.subr.mxu0 0.0
    %6248 = vmatpush1.msra.mxu0 0.0
    %6249 = vmatprep.subr.mxu0 0.0
    %6250 = vmatpush1.msra.mxu0 0.0
    %6251 = vmatprep.subr.mxu0 0.0
    %6252 = vmatpush1.msra.mxu0 0.0
    %6253 = vmatprep.subr.mxu0 0.0
    %6254 = vmatpush1.msra.mxu0 0.0
    %6255 = vmatprep.subr.mxu0 0.0
    %6256 = vmatpush1.msra.mxu0 0.0
    %6257 = vmatprep.subr.mxu0 0.0
    %6258 = vmatpush1.msra.mxu0 0.0
    %6259 = vmatprep.subr.mxu0 0.0
    %6260 = vmatpush1.msra.mxu0 0.0
    %6261 = vmatprep.subr.mxu0 0.0
    %6262 = vmatpush1.msra.mxu0 0.0
    %6263 = vmatprep.subr.mxu0 0.0
    %6264 = vmatpush1.msra.mxu0 0.0
    %6265 = vmatprep.subr.mxu0 0.0
    %6266 = vmatpush1.msra.mxu0 0.0
    %6267 = vmatprep.subr.mxu0 0.0
    %6268 = vmatpush1.msra.mxu0 0.0
    %6269 = vmatprep.subr.mxu0 0.0
    %6270 = vmatpush1.msra.mxu0 0.0
    %6271 = vmatprep.subr.mxu0 0.0
    %6272 = vmatpush1.msra.mxu0 %v118
    %6273 = vmatprep.subr.mxu0 0.0
    %6274 = vmatpush1.msra.mxu0 %v117
    %6275 = vmatprep.subr.mxu0 0.0
    %6276 = vmatpush1.msra.mxu0 %v116
    %6277 = vmatprep.subr.mxu0 0.0
    %6278 = vmatpush1.msra.mxu0 %v115
    %6279 = vmatprep.subr.mxu0 0.0
    %6280 = vmatpush2.msra.mxu0 0.0
    %6281 = vmatprep.subr.mxu0 0.0
    %6282 = vmatpush2.msra.mxu0 0.0
    %6283 = vmatprep.subr.mxu0 0.0
    %6284 = vmatpush2.msra.mxu0 0.0
    %6285 = vmatprep.subr.mxu0 0.0
    %6286 = vmatpush2.msra.mxu0 0.0
    %6287 = vmatprep.subr.mxu0 0.0
    %6288 = vmatpush2.msra.mxu0 0.0
    %6289 = vmatprep.subr.mxu0 0.0
    %6290 = vmatpush2.msra.mxu0 0.0
    %6291 = vmatprep.subr.mxu0 0.0
    %6292 = vmatpush2.msra.mxu0 0.0
    %6293 = vmatprep.subr.mxu0 0.0
    %6294 = vmatpush2.msra.mxu0 0.0
    %6295 = vmatprep.subr.mxu0 0.0
    %6296 = vmatpush2.msra.mxu0 0.0
    %6297 = vmatprep.subr.mxu0 0.0
    %6298 = vmatpush2.msra.mxu0 0.0
    %6299 = vmatprep.subr.mxu0 0.0
    %6300 = vmatpush2.msra.mxu0 0.0
    %6301 = vmatprep.subr.mxu0 0.0
    %6302 = vmatpush2.msra.mxu0 0.0
    %6303 = vmatprep.subr.mxu0 0.0
    %6304 = vmatpush2.msra.mxu0 0.0
    %6305 = vmatprep.subr.mxu0 0.0
    %6306 = vmatpush2.msra.mxu0 0.0
    %6307 = vmatprep.subr.mxu0 0.0
    %6308 = vmatpush2.msra.mxu0 0.0
    %6309 = vmatprep.subr.mxu0 0.0
    %6310 = vmatpush2.msra.mxu0 0.0
    %6311 = vmatprep.mubr.f32.mxu0 0.0
    %6312 = vmatmul.mubr.f32.gmra.mxu0 %v5580
    %v6313 = vpop.f32.mrf.mxu0
    %v6314 = vadd.f32 %v6244, %v6313
    %v6315 = vpop.f32.mrf.mxu0
    %6316 = vdwg.mxu0
    %v6317 = vadd.f32 %v6314, %v1525
    %6318 = vmatprep.subr.mxu0 0.0
    %6319 = vmatpush1.msra.mxu0 0.0
    %6320 = vmatprep.subr.mxu0 0.0
    %6321 = vmatpush1.msra.mxu0 0.0
    %6322 = vmatprep.subr.mxu0 0.0
    %6323 = vmatpush1.msra.mxu0 0.0
    %6324 = vmatprep.subr.mxu0 0.0
    %6325 = vmatpush1.msra.mxu0 0.0
    %6326 = vmatprep.subr.mxu0 0.0
    %6327 = vmatpush1.msra.mxu0 0.0
    %6328 = vmatprep.subr.mxu0 0.0
    %6329 = vmatpush1.msra.mxu0 0.0
    %6330 = vmatprep.subr.mxu0 0.0
    %6331 = vmatpush1.msra.mxu0 0.0
    %6332 = vmatprep.subr.mxu0 0.0
    %6333 = vmatpush1.msra.mxu0 0.0
    %6334 = vmatprep.subr.mxu0 0.0
    %6335 = vmatpush1.msra.mxu0 0.0
    %6336 = vmatprep.subr.mxu0 0.0
    %6337 = vmatpush1.msra.mxu0 0.0
    %6338 = vmatprep.subr.mxu0 0.0
    %6339 = vmatpush1.msra.mxu0 0.0
    %6340 = vmatprep.subr.mxu0 0.0
    %6341 = vmatpush1.msra.mxu0 0.0
    %6342 = vmatprep.subr.mxu0 0.0
    %6343 = vmatpush1.msra.mxu0 %v142
    %6344 = vmatprep.subr.mxu0 0.0
    %6345 = vmatpush1.msra.mxu0 %v141
    %6346 = vmatprep.subr.mxu0 0.0
    %6347 = vmatpush1.msra.mxu0 %v140
    %6348 = vmatprep.subr.mxu0 0.0
    %6349 = vmatpush1.msra.mxu0 %v139
    %6350 = vmatprep.subr.mxu0 0.0
    %6351 = vmatpush2.msra.mxu0 0.0
    %6352 = vmatprep.subr.mxu0 0.0
    %6353 = vmatpush2.msra.mxu0 0.0
    %6354 = vmatprep.subr.mxu0 0.0
    %6355 = vmatpush2.msra.mxu0 0.0
    %6356 = vmatprep.subr.mxu0 0.0
    %6357 = vmatpush2.msra.mxu0 0.0
    %6358 = vmatprep.subr.mxu0 0.0
    %6359 = vmatpush2.msra.mxu0 0.0
    %6360 = vmatprep.subr.mxu0 0.0
    %6361 = vmatpush2.msra.mxu0 0.0
    %6362 = vmatprep.subr.mxu0 0.0
    %6363 = vmatpush2.msra.mxu0 0.0
    %6364 = vmatprep.subr.mxu0 0.0
    %6365 = vmatpush2.msra.mxu0 0.0
    %6366 = vmatprep.subr.mxu0 0.0
    %6367 = vmatpush2.msra.mxu0 0.0
    %6368 = vmatprep.subr.mxu0 0.0
    %6369 = vmatpush2.msra.mxu0 0.0
    %6370 = vmatprep.subr.mxu0 0.0
    %6371 = vmatpush2.msra.mxu0 0.0
    %6372 = vmatprep.subr.mxu0 0.0
    %6373 = vmatpush2.msra.mxu0 0.0
    %6374 = vmatprep.subr.mxu0 0.0
    %6375 = vmatpush2.msra.mxu0 0.0
    %6376 = vmatprep.subr.mxu0 0.0
    %6377 = vmatpush2.msra.mxu0 0.0
    %6378 = vmatprep.subr.mxu0 0.0
    %6379 = vmatpush2.msra.mxu0 0.0
    %6380 = vmatprep.subr.mxu0 0.0
    %6381 = vmatpush2.msra.mxu0 0.0
    %6382 = vmatprep.mubr.f32.mxu0 0.0
    %6383 = vmatmul.mubr.f32.gmra.mxu0 %v6175
    %v6384 = vpop.f32.mrf.mxu0
    %v6385 = vadd.f32 0.0, %v6384
    %v6386 = vpop.f32.mrf.mxu0
    %6387 = vdwg.mxu0
    %6388 = vmatprep.subr.mxu0 0.0
    %6389 = vmatpush1.msra.mxu0 0.0
    %6390 = vmatprep.subr.mxu0 0.0
    %6391 = vmatpush1.msra.mxu0 0.0
    %6392 = vmatprep.subr.mxu0 0.0
    %6393 = vmatpush1.msra.mxu0 0.0
    %6394 = vmatprep.subr.mxu0 0.0
    %6395 = vmatpush1.msra.mxu0 0.0
    %6396 = vmatprep.subr.mxu0 0.0
    %6397 = vmatpush1.msra.mxu0 0.0
    %6398 = vmatprep.subr.mxu0 0.0
    %6399 = vmatpush1.msra.mxu0 0.0
    %6400 = vmatprep.subr.mxu0 0.0
    %6401 = vmatpush1.msra.mxu0 0.0
    %6402 = vmatprep.subr.mxu0 0.0
    %6403 = vmatpush1.msra.mxu0 0.0
    %6404 = vmatprep.subr.mxu0 0.0
    %6405 = vmatpush1.msra.mxu0 0.0
    %6406 = vmatprep.subr.mxu0 0.0
    %6407 = vmatpush1.msra.mxu0 0.0
    %6408 = vmatprep.subr.mxu0 0.0
    %6409 = vmatpush1.msra.mxu0 0.0
    %6410 = vmatprep.subr.mxu0 0.0
    %6411 = vmatpush1.msra.mxu0 0.0
    %6412 = vmatprep.subr.mxu0 0.0
    %6413 = vmatpush1.msra.mxu0 %v123
    %6414 = vmatprep.subr.mxu0 0.0
    %6415 = vmatpush1.msra.mxu0 %v122
    %6416 = vmatprep.subr.mxu0 0.0
    %6417 = vmatpush1.msra.mxu0 %v121
    %6418 = vmatprep.subr.mxu0 0.0
    %6419 = vmatpush1.msra.mxu0 %v120
    %6420 = vmatprep.subr.mxu0 0.0
    %6421 = vmatpush2.msra.mxu0 0.0
    %6422 = vmatprep.subr.mxu0 0.0
    %6423 = vmatpush2.msra.mxu0 0.0
    %6424 = vmatprep.subr.mxu0 0.0
    %6425 = vmatpush2.msra.mxu0 0.0
    %6426 = vmatprep.subr.mxu0 0.0
    %6427 = vmatpush2.msra.mxu0 0.0
    %6428 = vmatprep.subr.mxu0 0.0
    %6429 = vmatpush2.msra.mxu0 0.0
    %6430 = vmatprep.subr.mxu0 0.0
    %6431 = vmatpush2.msra.mxu0 0.0
    %6432 = vmatprep.subr.mxu0 0.0
    %6433 = vmatpush2.msra.mxu0 0.0
    %6434 = vmatprep.subr.mxu0 0.0
    %6435 = vmatpush2.msra.mxu0 0.0
    %6436 = vmatprep.subr.mxu0 0.0
    %6437 = vmatpush2.msra.mxu0 0.0
    %6438 = vmatprep.subr.mxu0 0.0
    %6439 = vmatpush2.msra.mxu0 0.0
    %6440 = vmatprep.subr.mxu0 0.0
    %6441 = vmatpush2.msra.mxu0 0.0
    %6442 = vmatprep.subr.mxu0 0.0
    %6443 = vmatpush2.msra.mxu0 0.0
    %6444 = vmatprep.subr.mxu0 0.0
    %6445 = vmatpush2.msra.mxu0 0.0
    %6446 = vmatprep.subr.mxu0 0.0
    %6447 = vmatpush2.msra.mxu0 0.0
    %6448 = vmatprep.subr.mxu0 0.0
    %6449 = vmatpush2.msra.mxu0 0.0
    %6450 = vmatprep.subr.mxu0 0.0
    %6451 = vmatpush2.msra.mxu0 0.0
    %6452 = vmatprep.mubr.f32.mxu0 0.0
    %6453 = vmatmul.mubr.f32.gmra.mxu0 %v5580
    %v6454 = vpop.f32.mrf.mxu0
    %v6455 = vadd.f32 %v6385, %v6454
    %v6456 = vpop.f32.mrf.mxu0
    %6457 = vdwg.mxu0
    %v6458 = vadd.f32 %v6455, %v1672
    %6459 = vmatprep.subr.mxu0 0.0
    %6460 = vmatpush1.msra.mxu0 0.0
    %6461 = vmatprep.subr.mxu0 0.0
    %6462 = vmatpush1.msra.mxu0 0.0
    %6463 = vmatprep.subr.mxu0 0.0
    %6464 = vmatpush1.msra.mxu0 0.0
    %6465 = vmatprep.subr.mxu0 0.0
    %6466 = vmatpush1.msra.mxu0 0.0
    %6467 = vmatprep.subr.mxu0 0.0
    %6468 = vmatpush1.msra.mxu0 0.0
    %6469 = vmatprep.subr.mxu0 0.0
    %6470 = vmatpush1.msra.mxu0 0.0
    %6471 = vmatprep.subr.mxu0 0.0
    %6472 = vmatpush1.msra.mxu0 0.0
    %6473 = vmatprep.subr.mxu0 0.0
    %6474 = vmatpush1.msra.mxu0 0.0
    %6475 = vmatprep.subr.mxu0 0.0
    %6476 = vmatpush1.msra.mxu0 0.0
    %6477 = vmatprep.subr.mxu0 0.0
    %6478 = vmatpush1.msra.mxu0 0.0
    %6479 = vmatprep.subr.mxu0 0.0
    %6480 = vmatpush1.msra.mxu0 0.0
    %6481 = vmatprep.subr.mxu0 0.0
    %6482 = vmatpush1.msra.mxu0 0.0
    %6483 = vmatprep.subr.mxu0 0.0
    %6484 = vmatpush1.msra.mxu0 %v147
    %6485 = vmatprep.subr.mxu0 0.0
    %6486 = vmatpush1.msra.mxu0 %v146
    %6487 = vmatprep.subr.mxu0 0.0
    %6488 = vmatpush1.msra.mxu0 %v145
    %6489 = vmatprep.subr.mxu0 0.0
    %6490 = vmatpush1.msra.mxu0 %v144
    %6491 = vmatprep.subr.mxu0 0.0
    %6492 = vmatpush2.msra.mxu0 0.0
    %6493 = vmatprep.subr.mxu0 0.0
    %6494 = vmatpush2.msra.mxu0 0.0
    %6495 = vmatprep.subr.mxu0 0.0
    %6496 = vmatpush2.msra.mxu0 0.0
    %6497 = vmatprep.subr.mxu0 0.0
    %6498 = vmatpush2.msra.mxu0 0.0
    %6499 = vmatprep.subr.mxu0 0.0
    %6500 = vmatpush2.msra.mxu0 0.0
    %6501 = vmatprep.subr.mxu0 0.0
    %6502 = vmatpush2.msra.mxu0 0.0
    %6503 = vmatprep.subr.mxu0 0.0
    %6504 = vmatpush2.msra.mxu0 0.0
    %6505 = vmatprep.subr.mxu0 0.0
    %6506 = vmatpush2.msra.mxu0 0.0
    %6507 = vmatprep.subr.mxu0 0.0
    %6508 = vmatpush2.msra.mxu0 0.0
    %6509 = vmatprep.subr.mxu0 0.0
    %6510 = vmatpush2.msra.mxu0 0.0
    %6511 = vmatprep.subr.mxu0 0.0
    %6512 = vmatpush2.msra.mxu0 0.0
    %6513 = vmatprep.subr.mxu0 0.0
    %6514 = vmatpush2.msra.mxu0 0.0
    %6515 = vmatprep.subr.mxu0 0.0
    %6516 = vmatpush2.msra.mxu0 0.0
    %6517 = vmatprep.subr.mxu0 0.0
    %6518 = vmatpush2.msra.mxu0 0.0
    %6519 = vmatprep.subr.mxu0 0.0
    %6520 = vmatpush2.msra.mxu0 0.0
    %6521 = vmatprep.subr.mxu0 0.0
    %6522 = vmatpush2.msra.mxu0 0.0
    %6523 = vmatprep.mubr.f32.mxu0 0.0
    %6524 = vmatmul.mubr.f32.gmra.mxu0 %v6175
    %v6525 = vpop.f32.mrf.mxu0
    %v6526 = vadd.f32 0.0, %v6525
    %v6527 = vpop.f32.mrf.mxu0
    %6528 = vdwg.mxu0
    %6529 = vmatprep.subr.mxu0 0.0
    %6530 = vmatpush1.msra.mxu0 0.0
    %6531 = vmatprep.subr.mxu0 0.0
    %6532 = vmatpush1.msra.mxu0 0.0
    %6533 = vmatprep.subr.mxu0 0.0
    %6534 = vmatpush1.msra.mxu0 0.0
    %6535 = vmatprep.subr.mxu0 0.0
    %6536 = vmatpush1.msra.mxu0 0.0
    %6537 = vmatprep.subr.mxu0 0.0
    %6538 = vmatpush1.msra.mxu0 0.0
    %6539 = vmatprep.subr.mxu0 0.0
    %6540 = vmatpush1.msra.mxu0 0.0
    %6541 = vmatprep.subr.mxu0 0.0
    %6542 = vmatpush1.msra.mxu0 0.0
    %6543 = vmatprep.subr.mxu0 0.0
    %6544 = vmatpush1.msra.mxu0 0.0
    %6545 = vmatprep.subr.mxu0 0.0
    %6546 = vmatpush1.msra.mxu0 0.0
    %6547 = vmatprep.subr.mxu0 0.0
    %6548 = vmatpush1.msra.mxu0 0.0
    %6549 = vmatprep.subr.mxu0 0.0
    %6550 = vmatpush1.msra.mxu0 0.0
    %6551 = vmatprep.subr.mxu0 0.0
    %6552 = vmatpush1.msra.mxu0 0.0
    %6553 = vmatprep.subr.mxu0 0.0
    %6554 = vmatpush1.msra.mxu0 %v128
    %6555 = vmatprep.subr.mxu0 0.0
    %6556 = vmatpush1.msra.mxu0 %v127
    %6557 = vmatprep.subr.mxu0 0.0
    %6558 = vmatpush1.msra.mxu0 %v126
    %6559 = vmatprep.subr.mxu0 0.0
    %6560 = vmatpush1.msra.mxu0 %v125
    %6561 = vmatprep.subr.mxu0 0.0
    %6562 = vmatpush2.msra.mxu0 0.0
    %6563 = vmatprep.subr.mxu0 0.0
    %6564 = vmatpush2.msra.mxu0 0.0
    %6565 = vmatprep.subr.mxu0 0.0
    %6566 = vmatpush2.msra.mxu0 0.0
    %6567 = vmatprep.subr.mxu0 0.0
    %6568 = vmatpush2.msra.mxu0 0.0
    %6569 = vmatprep.subr.mxu0 0.0
    %6570 = vmatpush2.msra.mxu0 0.0
    %6571 = vmatprep.subr.mxu0 0.0
    %6572 = vmatpush2.msra.mxu0 0.0
    %6573 = vmatprep.subr.mxu0 0.0
    %6574 = vmatpush2.msra.mxu0 0.0
    %6575 = vmatprep.subr.mxu0 0.0
    %6576 = vmatpush2.msra.mxu0 0.0
    %6577 = vmatprep.subr.mxu0 0.0
    %6578 = vmatpush2.msra.mxu0 0.0
    %6579 = vmatprep.subr.mxu0 0.0
    %6580 = vmatpush2.msra.mxu0 0.0
    %6581 = vmatprep.subr.mxu0 0.0
    %6582 = vmatpush2.msra.mxu0 0.0
    %6583 = vmatprep.subr.mxu0 0.0
    %6584 = vmatpush2.msra.mxu0 0.0
    %6585 = vmatprep.subr.mxu0 0.0
    %6586 = vmatpush2.msra.mxu0 0.0
    %6587 = vmatprep.subr.mxu0 0.0
    %6588 = vmatpush2.msra.mxu0 0.0
    %6589 = vmatprep.subr.mxu0 0.0
    %6590 = vmatpush2.msra.mxu0 0.0
    %6591 = vmatprep.subr.mxu0 0.0
    %6592 = vmatpush2.msra.mxu0 0.0
    %6593 = vmatprep.mubr.f32.mxu0 0.0
    %6594 = vmatmul.mubr.f32.gmra.mxu0 %v5580
    %v6595 = vpop.f32.mrf.mxu0
    %v6596 = vadd.f32 %v6526, %v6595
    %v6597 = vpop.f32.mrf.mxu0
    %6598 = vdwg.mxu0
    %v6599 = vadd.f32 %v6596, %v1819
    %6600 = vmatprep.subr.mxu0 0.0
    %6601 = vmatpush1.msra.mxu0 0.0
    %6602 = vmatprep.subr.mxu0 0.0
    %6603 = vmatpush1.msra.mxu0 0.0
    %6604 = vmatprep.subr.mxu0 0.0
    %6605 = vmatpush1.msra.mxu0 0.0
    %6606 = vmatprep.subr.mxu0 0.0
    %6607 = vmatpush1.msra.mxu0 0.0
    %6608 = vmatprep.subr.mxu0 0.0
    %6609 = vmatpush1.msra.mxu0 0.0
    %6610 = vmatprep.subr.mxu0 0.0
    %6611 = vmatpush1.msra.mxu0 0.0
    %6612 = vmatprep.subr.mxu0 0.0
    %6613 = vmatpush1.msra.mxu0 0.0
    %6614 = vmatprep.subr.mxu0 0.0
    %6615 = vmatpush1.msra.mxu0 0.0
    %6616 = vmatprep.subr.mxu0 0.0
    %6617 = vmatpush1.msra.mxu0 0.0
    %6618 = vmatprep.subr.mxu0 0.0
    %6619 = vmatpush1.msra.mxu0 0.0
    %6620 = vmatprep.subr.mxu0 0.0
    %6621 = vmatpush1.msra.mxu0 0.0
    %6622 = vmatprep.subr.mxu0 0.0
    %6623 = vmatpush1.msra.mxu0 0.0
    %6624 = vmatprep.subr.mxu0 0.0
    %6625 = vmatpush1.msra.mxu0 %v152
    %6626 = vmatprep.subr.mxu0 0.0
    %6627 = vmatpush1.msra.mxu0 %v151
    %6628 = vmatprep.subr.mxu0 0.0
    %6629 = vmatpush1.msra.mxu0 %v150
    %6630 = vmatprep.subr.mxu0 0.0
    %6631 = vmatpush1.msra.mxu0 %v149
    %6632 = vmatprep.subr.mxu0 0.0
    %6633 = vmatpush2.msra.mxu0 0.0
    %6634 = vmatprep.subr.mxu0 0.0
    %6635 = vmatpush2.msra.mxu0 0.0
    %6636 = vmatprep.subr.mxu0 0.0
    %6637 = vmatpush2.msra.mxu0 0.0
    %6638 = vmatprep.subr.mxu0 0.0
    %6639 = vmatpush2.msra.mxu0 0.0
    %6640 = vmatprep.subr.mxu0 0.0
    %6641 = vmatpush2.msra.mxu0 0.0
    %6642 = vmatprep.subr.mxu0 0.0
    %6643 = vmatpush2.msra.mxu0 0.0
    %6644 = vmatprep.subr.mxu0 0.0
    %6645 = vmatpush2.msra.mxu0 0.0
    %6646 = vmatprep.subr.mxu0 0.0
    %6647 = vmatpush2.msra.mxu0 0.0
    %6648 = vmatprep.subr.mxu0 0.0
    %6649 = vmatpush2.msra.mxu0 0.0
    %6650 = vmatprep.subr.mxu0 0.0
    %6651 = vmatpush2.msra.mxu0 0.0
    %6652 = vmatprep.subr.mxu0 0.0
    %6653 = vmatpush2.msra.mxu0 0.0
    %6654 = vmatprep.subr.mxu0 0.0
    %6655 = vmatpush2.msra.mxu0 0.0
    %6656 = vmatprep.subr.mxu0 0.0
    %6657 = vmatpush2.msra.mxu0 0.0
    %6658 = vmatprep.subr.mxu0 0.0
    %6659 = vmatpush2.msra.mxu0 0.0
    %6660 = vmatprep.subr.mxu0 0.0
    %6661 = vmatpush2.msra.mxu0 0.0
    %6662 = vmatprep.subr.mxu0 0.0
    %6663 = vmatpush2.msra.mxu0 0.0
    %6664 = vmatprep.mubr.f32.mxu0 0.0
    %6665 = vmatmul.mubr.f32.gmra.mxu0 %v6175
    %v6666 = vpop.f32.mrf.mxu0
    %v6667 = vadd.f32 0.0, %v6666
    %v6668 = vpop.f32.mrf.mxu0
    %6669 = vdwg.mxu0
    %6670 = vmatprep.subr.mxu0 0.0
    %6671 = vmatpush1.msra.mxu0 0.0
    %6672 = vmatprep.subr.mxu0 0.0
    %6673 = vmatpush1.msra.mxu0 0.0
    %6674 = vmatprep.subr.mxu0 0.0
    %6675 = vmatpush1.msra.mxu0 0.0
    %6676 = vmatprep.subr.mxu0 0.0
    %6677 = vmatpush1.msra.mxu0 0.0
    %6678 = vmatprep.subr.mxu0 0.0
    %6679 = vmatpush1.msra.mxu0 0.0
    %6680 = vmatprep.subr.mxu0 0.0
    %6681 = vmatpush1.msra.mxu0 0.0
    %6682 = vmatprep.subr.mxu0 0.0
    %6683 = vmatpush1.msra.mxu0 0.0
    %6684 = vmatprep.subr.mxu0 0.0
    %6685 = vmatpush1.msra.mxu0 0.0
    %6686 = vmatprep.subr.mxu0 0.0
    %6687 = vmatpush1.msra.mxu0 0.0
    %6688 = vmatprep.subr.mxu0 0.0
    %6689 = vmatpush1.msra.mxu0 0.0
    %6690 = vmatprep.subr.mxu0 0.0
    %6691 = vmatpush1.msra.mxu0 0.0
    %6692 = vmatprep.subr.mxu0 0.0
    %6693 = vmatpush1.msra.mxu0 0.0
    %6694 = vmatprep.subr.mxu0 0.0
    %6695 = vmatpush1.msra.mxu0 %v133
    %6696 = vmatprep.subr.mxu0 0.0
    %6697 = vmatpush1.msra.mxu0 %v132
    %6698 = vmatprep.subr.mxu0 0.0
    %6699 = vmatpush1.msra.mxu0 %v131
    %6700 = vmatprep.subr.mxu0 0.0
    %6701 = vmatpush1.msra.mxu0 %v130
    %6702 = vmatprep.subr.mxu0 0.0
    %6703 = vmatpush2.msra.mxu0 0.0
    %6704 = vmatprep.subr.mxu0 0.0
    %6705 = vmatpush2.msra.mxu0 0.0
    %6706 = vmatprep.subr.mxu0 0.0
    %6707 = vmatpush2.msra.mxu0 0.0
    %6708 = vmatprep.subr.mxu0 0.0
    %6709 = vmatpush2.msra.mxu0 0.0
    %6710 = vmatprep.subr.mxu0 0.0
    %6711 = vmatpush2.msra.mxu0 0.0
    %6712 = vmatprep.subr.mxu0 0.0
    %6713 = vmatpush2.msra.mxu0 0.0
    %6714 = vmatprep.subr.mxu0 0.0
    %6715 = vmatpush2.msra.mxu0 0.0
    %6716 = vmatprep.subr.mxu0 0.0
    %6717 = vmatpush2.msra.mxu0 0.0
    %6718 = vmatprep.subr.mxu0 0.0
    %6719 = vmatpush2.msra.mxu0 0.0
    %6720 = vmatprep.subr.mxu0 0.0
    %6721 = vmatpush2.msra.mxu0 0.0
    %6722 = vmatprep.subr.mxu0 0.0
    %6723 = vmatpush2.msra.mxu0 0.0
    %6724 = vmatprep.subr.mxu0 0.0
    %6725 = vmatpush2.msra.mxu0 0.0
    %6726 = vmatprep.subr.mxu0 0.0
    %6727 = vmatpush2.msra.mxu0 0.0
    %6728 = vmatprep.subr.mxu0 0.0
    %6729 = vmatpush2.msra.mxu0 0.0
    %6730 = vmatprep.subr.mxu0 0.0
    %6731 = vmatpush2.msra.mxu0 0.0
    %6732 = vmatprep.subr.mxu0 0.0
    %6733 = vmatpush2.msra.mxu0 0.0
    %6734 = vmatprep.mubr.f32.mxu0 0.0
    %6735 = vmatmul.mubr.f32.gmra.mxu0 %v5580
    %v6736 = vpop.f32.mrf.mxu0
    %v6737 = vadd.f32 %v6667, %v6736
    %v6738 = vpop.f32.mrf.mxu0
    %6739 = vdwg.mxu0
    %v6740 = vadd.f32 %v6737, %v1966
    %v6741 = vxor.u32 %v6317, 2147483648
    %v6742 = vmul.f32 %v6741, 1.442695
    %v6743 = vpow.pop %v6742
    %v6744 = vadd.f32 %v6743, 1.0
    %v6745 = vrcp.pop %v6744
    %v6746 = vmul.f32 1.0, %v6745
    %v6747 = vxor.u32 %v6458, 2147483648
    %v6748 = vmul.f32 %v6747, 1.442695
    %v6749 = vpow.pop %v6748
    %v6750 = vadd.f32 %v6749, 1.0
    %v6751 = vrcp.pop %v6750
    %v6752 = vmul.f32 1.0, %v6751
    %v6753 = vtanh.pop %v6599
    %v6754 = vxor.u32 %v6740, 2147483648
    %v6755 = vmul.f32 %v6754, 1.442695
    %v6756 = vpow.pop %v6755
    %v6757 = vadd.f32 %v6756, 1.0
    %v6758 = vrcp.pop %v6757
    %v6759 = vmul.f32 1.0, %v6758
    %v6760 = vmul.f32 %v6752, %v5569
    %v6761 = vmul.f32 %v6746, %v6753
    %v6762 = vadd.f32 %v6760, %v6761
    %v6763 = vtanh.pop %v6762
    %v6764 = vmul.f32 %v6759, %v6763
    %vm6765 = vcmp.eq.s32.totalorder %v165, 4
    %v6766 = vsel %vm6765, 1, 0
    %6767 = vset.pattern.permute.xlu0 0
    %6768 = vperm.xlu0 %6767, %v6766
    %v6769 = vpop.permute.xlu0 %6768
    %vm6770 = vcmp.eq.s32.totalorder %v6769, 1
    %v6771 = vsel %vm6770, %v6764, %v5578
    %v6773 = vsel %vm166, %v6173, 0
    %6775 = vmatprep.subr.mxu0 0.0
    %6776 = vmatpush1.msra.mxu0 0.0
    %6777 = vmatprep.subr.mxu0 0.0
    %6778 = vmatpush1.msra.mxu0 0.0
    %6779 = vmatprep.subr.mxu0 0.0
    %6780 = vmatpush1.msra.mxu0 0.0
    %6781 = vmatprep.subr.mxu0 0.0
    %6782 = vmatpush1.msra.mxu0 0.0
    %6783 = vmatprep.subr.mxu0 0.0
    %6784 = vmatpush1.msra.mxu0 0.0
    %6785 = vmatprep.subr.mxu0 0.0
    %6786 = vmatpush1.msra.mxu0 0.0
    %6787 = vmatprep.subr.mxu0 0.0
    %6788 = vmatpush1.msra.mxu0 0.0
    %6789 = vmatprep.subr.mxu0 0.0
    %6790 = vmatpush1.msra.mxu0 0.0
    %6791 = vmatprep.subr.mxu0 0.0
    %6792 = vmatpush1.msra.mxu0 0.0
    %6793 = vmatprep.subr.mxu0 0.0
    %6794 = vmatpush1.msra.mxu0 0.0
    %6795 = vmatprep.subr.mxu0 0.0
    %6796 = vmatpush1.msra.mxu0 0.0
    %6797 = vmatprep.subr.mxu0 0.0
    %6798 = vmatpush1.msra.mxu0 0.0
    %6799 = vmatprep.subr.mxu0 0.0
    %6800 = vmatpush1.msra.mxu0 %v92
    %6801 = vmatprep.subr.mxu0 0.0
    %6802 = vmatpush1.msra.mxu0 %v91
    %6803 = vmatprep.subr.mxu0 0.0
    %6804 = vmatpush1.msra.mxu0 %v90
    %6805 = vmatprep.subr.mxu0 0.0
    %6806 = vmatpush1.msra.mxu0 %v89
    %6807 = vmatprep.subr.mxu0 0.0
    %6808 = vmatpush2.msra.mxu0 0.0
    %6809 = vmatprep.subr.mxu0 0.0
    %6810 = vmatpush2.msra.mxu0 0.0
    %6811 = vmatprep.subr.mxu0 0.0
    %6812 = vmatpush2.msra.mxu0 0.0
    %6813 = vmatprep.subr.mxu0 0.0
    %6814 = vmatpush2.msra.mxu0 0.0
    %6815 = vmatprep.subr.mxu0 0.0
    %6816 = vmatpush2.msra.mxu0 0.0
    %6817 = vmatprep.subr.mxu0 0.0
    %6818 = vmatpush2.msra.mxu0 0.0
    %6819 = vmatprep.subr.mxu0 0.0
    %6820 = vmatpush2.msra.mxu0 0.0
    %6821 = vmatprep.subr.mxu0 0.0
    %6822 = vmatpush2.msra.mxu0 0.0
    %6823 = vmatprep.subr.mxu0 0.0
    %6824 = vmatpush2.msra.mxu0 0.0
    %6825 = vmatprep.subr.mxu0 0.0
    %6826 = vmatpush2.msra.mxu0 0.0
    %6827 = vmatprep.subr.mxu0 0.0
    %6828 = vmatpush2.msra.mxu0 0.0
    %6829 = vmatprep.subr.mxu0 0.0
    %6830 = vmatpush2.msra.mxu0 0.0
    %6831 = vmatprep.subr.mxu0 0.0
    %6832 = vmatpush2.msra.mxu0 0.0
    %6833 = vmatprep.subr.mxu0 0.0
    %6834 = vmatpush2.msra.mxu0 0.0
    %6835 = vmatprep.subr.mxu0 0.0
    %6836 = vmatpush2.msra.mxu0 0.0
    %6837 = vmatprep.subr.mxu0 0.0
    %6838 = vmatpush2.msra.mxu0 0.0
    %6839 = vmatprep.mubr.f32.mxu0 0.0
    %6840 = vmatmul.mubr.f32.gmra.mxu0 %v6773
    %v6841 = vpop.f32.mrf.mxu0
    %v6842 = vadd.f32 0.0, %v6841
    %v6843 = vpop.f32.mrf.mxu0
    %6844 = vdwg.mxu0
    %6845 = vrot.lane.b32.xlu0 %v81, 80
    %v6846 = vpop.permute.xlu0 %6845
    %v6847 = vsel %vm240, %v6846, 0
    %6849 = vmatprep.subr.mxu0 0.0
    %6850 = vmatpush1.msra.mxu0 0.0
    %6851 = vmatprep.subr.mxu0 0.0
    %6852 = vmatpush1.msra.mxu0 0.0
    %6853 = vmatprep.subr.mxu0 0.0
    %6854 = vmatpush1.msra.mxu0 0.0
    %6855 = vmatprep.subr.mxu0 0.0
    %6856 = vmatpush1.msra.mxu0 0.0
    %6857 = vmatprep.subr.mxu0 0.0
    %6858 = vmatpush1.msra.mxu0 0.0
    %6859 = vmatprep.subr.mxu0 0.0
    %6860 = vmatpush1.msra.mxu0 0.0
    %6861 = vmatprep.subr.mxu0 0.0
    %6862 = vmatpush1.msra.mxu0 0.0
    %6863 = vmatprep.subr.mxu0 0.0
    %6864 = vmatpush1.msra.mxu0 0.0
    %6865 = vmatprep.subr.mxu0 0.0
    %6866 = vmatpush1.msra.mxu0 0.0
    %6867 = vmatprep.subr.mxu0 0.0
    %6868 = vmatpush1.msra.mxu0 0.0
    %6869 = vmatprep.subr.mxu0 0.0
    %6870 = vmatpush1.msra.mxu0 0.0
    %6871 = vmatprep.subr.mxu0 0.0
    %6872 = vmatpush1.msra.mxu0 0.0
    %6873 = vmatprep.subr.mxu0 0.0
    %6874 = vmatpush1.msra.mxu0 0.0
    %6875 = vmatprep.subr.mxu0 0.0
    %6876 = vmatpush1.msra.mxu0 0.0
    %6877 = vmatprep.subr.mxu0 0.0
    %6878 = vmatpush1.msra.mxu0 0.0
    %6879 = vmatprep.subr.mxu0 0.0
    %6880 = vmatpush1.msra.mxu0 %v82
    %6881 = vmatprep.subr.mxu0 0.0
    %6882 = vmatpush2.msra.mxu0 0.0
    %6883 = vmatprep.subr.mxu0 0.0
    %6884 = vmatpush2.msra.mxu0 0.0
    %6885 = vmatprep.subr.mxu0 0.0
    %6886 = vmatpush2.msra.mxu0 0.0
    %6887 = vmatprep.subr.mxu0 0.0
    %6888 = vmatpush2.msra.mxu0 0.0
    %6889 = vmatprep.subr.mxu0 0.0
    %6890 = vmatpush2.msra.mxu0 0.0
    %6891 = vmatprep.subr.mxu0 0.0
    %6892 = vmatpush2.msra.mxu0 0.0
    %6893 = vmatprep.subr.mxu0 0.0
    %6894 = vmatpush2.msra.mxu0 0.0
    %6895 = vmatprep.subr.mxu0 0.0
    %6896 = vmatpush2.msra.mxu0 0.0
    %6897 = vmatprep.subr.mxu0 0.0
    %6898 = vmatpush2.msra.mxu0 0.0
    %6899 = vmatprep.subr.mxu0 0.0
    %6900 = vmatpush2.msra.mxu0 0.0
    %6901 = vmatprep.subr.mxu0 0.0
    %6902 = vmatpush2.msra.mxu0 0.0
    %6903 = vmatprep.subr.mxu0 0.0
    %6904 = vmatpush2.msra.mxu0 0.0
    %6905 = vmatprep.subr.mxu0 0.0
    %6906 = vmatpush2.msra.mxu0 0.0
    %6907 = vmatprep.subr.mxu0 0.0
    %6908 = vmatpush2.msra.mxu0 0.0
    %6909 = vmatprep.subr.mxu0 0.0
    %6910 = vmatpush2.msra.mxu0 0.0
    %6911 = vmatprep.subr.mxu0 0.0
    %6912 = vmatpush2.msra.mxu0 0.0
    %6913 = vmatprep.mubr.f32.mxu0 0.0
    %6914 = vmatmul.mubr.f32.gmra.mxu0 %v6847
    %v6915 = vpop.f32.mrf.mxu0
    %v6916 = vadd.f32 %v6842, %v6915
    %v6917 = vpop.f32.mrf.mxu0
    %6918 = vdwg.mxu0
    %v6919 = vadd.f32 %v6916, %v318
    %6920 = vmatprep.subr.mxu0 0.0
    %6921 = vmatpush1.msra.mxu0 0.0
    %6922 = vmatprep.subr.mxu0 0.0
    %6923 = vmatpush1.msra.mxu0 0.0
    %6924 = vmatprep.subr.mxu0 0.0
    %6925 = vmatpush1.msra.mxu0 0.0
    %6926 = vmatprep.subr.mxu0 0.0
    %6927 = vmatpush1.msra.mxu0 0.0
    %6928 = vmatprep.subr.mxu0 0.0
    %6929 = vmatpush1.msra.mxu0 0.0
    %6930 = vmatprep.subr.mxu0 0.0
    %6931 = vmatpush1.msra.mxu0 0.0
    %6932 = vmatprep.subr.mxu0 0.0
    %6933 = vmatpush1.msra.mxu0 0.0
    %6934 = vmatprep.subr.mxu0 0.0
    %6935 = vmatpush1.msra.mxu0 0.0
    %6936 = vmatprep.subr.mxu0 0.0
    %6937 = vmatpush1.msra.mxu0 0.0
    %6938 = vmatprep.subr.mxu0 0.0
    %6939 = vmatpush1.msra.mxu0 0.0
    %6940 = vmatprep.subr.mxu0 0.0
    %6941 = vmatpush1.msra.mxu0 0.0
    %6942 = vmatprep.subr.mxu0 0.0
    %6943 = vmatpush1.msra.mxu0 0.0
    %6944 = vmatprep.subr.mxu0 0.0
    %6945 = vmatpush1.msra.mxu0 %v97
    %6946 = vmatprep.subr.mxu0 0.0
    %6947 = vmatpush1.msra.mxu0 %v96
    %6948 = vmatprep.subr.mxu0 0.0
    %6949 = vmatpush1.msra.mxu0 %v95
    %6950 = vmatprep.subr.mxu0 0.0
    %6951 = vmatpush1.msra.mxu0 %v94
    %6952 = vmatprep.subr.mxu0 0.0
    %6953 = vmatpush2.msra.mxu0 0.0
    %6954 = vmatprep.subr.mxu0 0.0
    %6955 = vmatpush2.msra.mxu0 0.0
    %6956 = vmatprep.subr.mxu0 0.0
    %6957 = vmatpush2.msra.mxu0 0.0
    %6958 = vmatprep.subr.mxu0 0.0
    %6959 = vmatpush2.msra.mxu0 0.0
    %6960 = vmatprep.subr.mxu0 0.0
    %6961 = vmatpush2.msra.mxu0 0.0
    %6962 = vmatprep.subr.mxu0 0.0
    %6963 = vmatpush2.msra.mxu0 0.0
    %6964 = vmatprep.subr.mxu0 0.0
    %6965 = vmatpush2.msra.mxu0 0.0
    %6966 = vmatprep.subr.mxu0 0.0
    %6967 = vmatpush2.msra.mxu0 0.0
    %6968 = vmatprep.subr.mxu0 0.0
    %6969 = vmatpush2.msra.mxu0 0.0
    %6970 = vmatprep.subr.mxu0 0.0
    %6971 = vmatpush2.msra.mxu0 0.0
    %6972 = vmatprep.subr.mxu0 0.0
    %6973 = vmatpush2.msra.mxu0 0.0
    %6974 = vmatprep.subr.mxu0 0.0
    %6975 = vmatpush2.msra.mxu0 0.0
    %6976 = vmatprep.subr.mxu0 0.0
    %6977 = vmatpush2.msra.mxu0 0.0
    %6978 = vmatprep.subr.mxu0 0.0
    %6979 = vmatpush2.msra.mxu0 0.0
    %6980 = vmatprep.subr.mxu0 0.0
    %6981 = vmatpush2.msra.mxu0 0.0
    %6982 = vmatprep.subr.mxu0 0.0
    %6983 = vmatpush2.msra.mxu0 0.0
    %6984 = vmatprep.mubr.f32.mxu0 0.0
    %6985 = vmatmul.mubr.f32.gmra.mxu0 %v6773
    %v6986 = vpop.f32.mrf.mxu0
    %v6987 = vadd.f32 0.0, %v6986
    %v6988 = vpop.f32.mrf.mxu0
    %6989 = vdwg.mxu0
    %6990 = vmatprep.subr.mxu0 0.0
    %6991 = vmatpush1.msra.mxu0 0.0
    %6992 = vmatprep.subr.mxu0 0.0
    %6993 = vmatpush1.msra.mxu0 0.0
    %6994 = vmatprep.subr.mxu0 0.0
    %6995 = vmatpush1.msra.mxu0 0.0
    %6996 = vmatprep.subr.mxu0 0.0
    %6997 = vmatpush1.msra.mxu0 0.0
    %6998 = vmatprep.subr.mxu0 0.0
    %6999 = vmatpush1.msra.mxu0 0.0
    %7000 = vmatprep.subr.mxu0 0.0
    %7001 = vmatpush1.msra.mxu0 0.0
    %7002 = vmatprep.subr.mxu0 0.0
    %7003 = vmatpush1.msra.mxu0 0.0
    %7004 = vmatprep.subr.mxu0 0.0
    %7005 = vmatpush1.msra.mxu0 0.0
    %7006 = vmatprep.subr.mxu0 0.0
    %7007 = vmatpush1.msra.mxu0 0.0
    %7008 = vmatprep.subr.mxu0 0.0
    %7009 = vmatpush1.msra.mxu0 0.0
    %7010 = vmatprep.subr.mxu0 0.0
    %7011 = vmatpush1.msra.mxu0 0.0
    %7012 = vmatprep.subr.mxu0 0.0
    %7013 = vmatpush1.msra.mxu0 0.0
    %7014 = vmatprep.subr.mxu0 0.0
    %7015 = vmatpush1.msra.mxu0 0.0
    %7016 = vmatprep.subr.mxu0 0.0
    %7017 = vmatpush1.msra.mxu0 0.0
    %7018 = vmatprep.subr.mxu0 0.0
    %7019 = vmatpush1.msra.mxu0 0.0
    %7020 = vmatprep.subr.mxu0 0.0
    %7021 = vmatpush1.msra.mxu0 %v84
    %7022 = vmatprep.subr.mxu0 0.0
    %7023 = vmatpush2.msra.mxu0 0.0
    %7024 = vmatprep.subr.mxu0 0.0
    %7025 = vmatpush2.msra.mxu0 0.0
    %7026 = vmatprep.subr.mxu0 0.0
    %7027 = vmatpush2.msra.mxu0 0.0
    %7028 = vmatprep.subr.mxu0 0.0
    %7029 = vmatpush2.msra.mxu0 0.0
    %7030 = vmatprep.subr.mxu0 0.0
    %7031 = vmatpush2.msra.mxu0 0.0
    %7032 = vmatprep.subr.mxu0 0.0
    %7033 = vmatpush2.msra.mxu0 0.0
    %7034 = vmatprep.subr.mxu0 0.0
    %7035 = vmatpush2.msra.mxu0 0.0
    %7036 = vmatprep.subr.mxu0 0.0
    %7037 = vmatpush2.msra.mxu0 0.0
    %7038 = vmatprep.subr.mxu0 0.0
    %7039 = vmatpush2.msra.mxu0 0.0
    %7040 = vmatprep.subr.mxu0 0.0
    %7041 = vmatpush2.msra.mxu0 0.0
    %7042 = vmatprep.subr.mxu0 0.0
    %7043 = vmatpush2.msra.mxu0 0.0
    %7044 = vmatprep.subr.mxu0 0.0
    %7045 = vmatpush2.msra.mxu0 0.0
    %7046 = vmatprep.subr.mxu0 0.0
    %7047 = vmatpush2.msra.mxu0 0.0
    %7048 = vmatprep.subr.mxu0 0.0
    %7049 = vmatpush2.msra.mxu0 0.0
    %7050 = vmatprep.subr.mxu0 0.0
    %7051 = vmatpush2.msra.mxu0 0.0
    %7052 = vmatprep.subr.mxu0 0.0
    %7053 = vmatpush2.msra.mxu0 0.0
    %7054 = vmatprep.mubr.f32.mxu0 0.0
    %7055 = vmatmul.mubr.f32.gmra.mxu0 %v6847
    %v7056 = vpop.f32.mrf.mxu0
    %v7057 = vadd.f32 %v6987, %v7056
    %v7058 = vpop.f32.mrf.mxu0
    %7059 = vdwg.mxu0
    %v7060 = vadd.f32 %v7057, %v465
    %7061 = vmatprep.subr.mxu0 0.0
    %7062 = vmatpush1.msra.mxu0 0.0
    %7063 = vmatprep.subr.mxu0 0.0
    %7064 = vmatpush1.msra.mxu0 0.0
    %7065 = vmatprep.subr.mxu0 0.0
    %7066 = vmatpush1.msra.mxu0 0.0
    %7067 = vmatprep.subr.mxu0 0.0
    %7068 = vmatpush1.msra.mxu0 0.0
    %7069 = vmatprep.subr.mxu0 0.0
    %7070 = vmatpush1.msra.mxu0 0.0
    %7071 = vmatprep.subr.mxu0 0.0
    %7072 = vmatpush1.msra.mxu0 0.0
    %7073 = vmatprep.subr.mxu0 0.0
    %7074 = vmatpush1.msra.mxu0 0.0
    %7075 = vmatprep.subr.mxu0 0.0
    %7076 = vmatpush1.msra.mxu0 0.0
    %7077 = vmatprep.subr.mxu0 0.0
    %7078 = vmatpush1.msra.mxu0 0.0
    %7079 = vmatprep.subr.mxu0 0.0
    %7080 = vmatpush1.msra.mxu0 0.0
    %7081 = vmatprep.subr.mxu0 0.0
    %7082 = vmatpush1.msra.mxu0 0.0
    %7083 = vmatprep.subr.mxu0 0.0
    %7084 = vmatpush1.msra.mxu0 0.0
    %7085 = vmatprep.subr.mxu0 0.0
    %7086 = vmatpush1.msra.mxu0 %v102
    %7087 = vmatprep.subr.mxu0 0.0
    %7088 = vmatpush1.msra.mxu0 %v101
    %7089 = vmatprep.subr.mxu0 0.0
    %7090 = vmatpush1.msra.mxu0 %v100
    %7091 = vmatprep.subr.mxu0 0.0
    %7092 = vmatpush1.msra.mxu0 %v99
    %7093 = vmatprep.subr.mxu0 0.0
    %7094 = vmatpush2.msra.mxu0 0.0
    %7095 = vmatprep.subr.mxu0 0.0
    %7096 = vmatpush2.msra.mxu0 0.0
    %7097 = vmatprep.subr.mxu0 0.0
    %7098 = vmatpush2.msra.mxu0 0.0
    %7099 = vmatprep.subr.mxu0 0.0
    %7100 = vmatpush2.msra.mxu0 0.0
    %7101 = vmatprep.subr.mxu0 0.0
    %7102 = vmatpush2.msra.mxu0 0.0
    %7103 = vmatprep.subr.mxu0 0.0
    %7104 = vmatpush2.msra.mxu0 0.0
    %7105 = vmatprep.subr.mxu0 0.0
    %7106 = vmatpush2.msra.mxu0 0.0
    %7107 = vmatprep.subr.mxu0 0.0
    %7108 = vmatpush2.msra.mxu0 0.0
    %7109 = vmatprep.subr.mxu0 0.0
    %7110 = vmatpush2.msra.mxu0 0.0
    %7111 = vmatprep.subr.mxu0 0.0
    %7112 = vmatpush2.msra.mxu0 0.0
    %7113 = vmatprep.subr.mxu0 0.0
    %7114 = vmatpush2.msra.mxu0 0.0
    %7115 = vmatprep.subr.mxu0 0.0
    %7116 = vmatpush2.msra.mxu0 0.0
    %7117 = vmatprep.subr.mxu0 0.0
    %7118 = vmatpush2.msra.mxu0 0.0
    %7119 = vmatprep.subr.mxu0 0.0
    %7120 = vmatpush2.msra.mxu0 0.0
    %7121 = vmatprep.subr.mxu0 0.0
    %7122 = vmatpush2.msra.mxu0 0.0
    %7123 = vmatprep.subr.mxu0 0.0
    %7124 = vmatpush2.msra.mxu0 0.0
    %7125 = vmatprep.mubr.f32.mxu0 0.0
    %7126 = vmatmul.mubr.f32.gmra.mxu0 %v6773
    %v7127 = vpop.f32.mrf.mxu0
    %v7128 = vadd.f32 0.0, %v7127
    %v7129 = vpop.f32.mrf.mxu0
    %7130 = vdwg.mxu0
    %7131 = vmatprep.subr.mxu0 0.0
    %7132 = vmatpush1.msra.mxu0 0.0
    %7133 = vmatprep.subr.mxu0 0.0
    %7134 = vmatpush1.msra.mxu0 0.0
    %7135 = vmatprep.subr.mxu0 0.0
    %7136 = vmatpush1.msra.mxu0 0.0
    %7137 = vmatprep.subr.mxu0 0.0
    %7138 = vmatpush1.msra.mxu0 0.0
    %7139 = vmatprep.subr.mxu0 0.0
    %7140 = vmatpush1.msra.mxu0 0.0
    %7141 = vmatprep.subr.mxu0 0.0
    %7142 = vmatpush1.msra.mxu0 0.0
    %7143 = vmatprep.subr.mxu0 0.0
    %7144 = vmatpush1.msra.mxu0 0.0
    %7145 = vmatprep.subr.mxu0 0.0
    %7146 = vmatpush1.msra.mxu0 0.0
    %7147 = vmatprep.subr.mxu0 0.0
    %7148 = vmatpush1.msra.mxu0 0.0
    %7149 = vmatprep.subr.mxu0 0.0
    %7150 = vmatpush1.msra.mxu0 0.0
    %7151 = vmatprep.subr.mxu0 0.0
    %7152 = vmatpush1.msra.mxu0 0.0
    %7153 = vmatprep.subr.mxu0 0.0
    %7154 = vmatpush1.msra.mxu0 0.0
    %7155 = vmatprep.subr.mxu0 0.0
    %7156 = vmatpush1.msra.mxu0 0.0
    %7157 = vmatprep.subr.mxu0 0.0
    %7158 = vmatpush1.msra.mxu0 0.0
    %7159 = vmatprep.subr.mxu0 0.0
    %7160 = vmatpush1.msra.mxu0 0.0
    %7161 = vmatprep.subr.mxu0 0.0
    %7162 = vmatpush1.msra.mxu0 %v86
    %7163 = vmatprep.subr.mxu0 0.0
    %7164 = vmatpush2.msra.mxu0 0.0
    %7165 = vmatprep.subr.mxu0 0.0
    %7166 = vmatpush2.msra.mxu0 0.0
    %7167 = vmatprep.subr.mxu0 0.0
    %7168 = vmatpush2.msra.mxu0 0.0
    %7169 = vmatprep.subr.mxu0 0.0
    %7170 = vmatpush2.msra.mxu0 0.0
    %7171 = vmatprep.subr.mxu0 0.0
    %7172 = vmatpush2.msra.mxu0 0.0
    %7173 = vmatprep.subr.mxu0 0.0
    %7174 = vmatpush2.msra.mxu0 0.0
    %7175 = vmatprep.subr.mxu0 0.0
    %7176 = vmatpush2.msra.mxu0 0.0
    %7177 = vmatprep.subr.mxu0 0.0
    %7178 = vmatpush2.msra.mxu0 0.0
    %7179 = vmatprep.subr.mxu0 0.0
    %7180 = vmatpush2.msra.mxu0 0.0
    %7181 = vmatprep.subr.mxu0 0.0
    %7182 = vmatpush2.msra.mxu0 0.0
    %7183 = vmatprep.subr.mxu0 0.0
    %7184 = vmatpush2.msra.mxu0 0.0
    %7185 = vmatprep.subr.mxu0 0.0
    %7186 = vmatpush2.msra.mxu0 0.0
    %7187 = vmatprep.subr.mxu0 0.0
    %7188 = vmatpush2.msra.mxu0 0.0
    %7189 = vmatprep.subr.mxu0 0.0
    %7190 = vmatpush2.msra.mxu0 0.0
    %7191 = vmatprep.subr.mxu0 0.0
    %7192 = vmatpush2.msra.mxu0 0.0
    %7193 = vmatprep.subr.mxu0 0.0
    %7194 = vmatpush2.msra.mxu0 0.0
    %7195 = vmatprep.mubr.f32.mxu0 0.0
    %7196 = vmatmul.mubr.f32.gmra.mxu0 %v6847
    %v7197 = vpop.f32.mrf.mxu0
    %v7198 = vadd.f32 %v7128, %v7197
    %v7199 = vpop.f32.mrf.mxu0
    %7200 = vdwg.mxu0
    %v7201 = vadd.f32 %v7198, %v612
    %7202 = vmatprep.subr.mxu0 0.0
    %7203 = vmatpush1.msra.mxu0 0.0
    %7204 = vmatprep.subr.mxu0 0.0
    %7205 = vmatpush1.msra.mxu0 0.0
    %7206 = vmatprep.subr.mxu0 0.0
    %7207 = vmatpush1.msra.mxu0 0.0
    %7208 = vmatprep.subr.mxu0 0.0
    %7209 = vmatpush1.msra.mxu0 0.0
    %7210 = vmatprep.subr.mxu0 0.0
    %7211 = vmatpush1.msra.mxu0 0.0
    %7212 = vmatprep.subr.mxu0 0.0
    %7213 = vmatpush1.msra.mxu0 0.0
    %7214 = vmatprep.subr.mxu0 0.0
    %7215 = vmatpush1.msra.mxu0 0.0
    %7216 = vmatprep.subr.mxu0 0.0
    %7217 = vmatpush1.msra.mxu0 0.0
    %7218 = vmatprep.subr.mxu0 0.0
    %7219 = vmatpush1.msra.mxu0 0.0
    %7220 = vmatprep.subr.mxu0 0.0
    %7221 = vmatpush1.msra.mxu0 0.0
    %7222 = vmatprep.subr.mxu0 0.0
    %7223 = vmatpush1.msra.mxu0 0.0
    %7224 = vmatprep.subr.mxu0 0.0
    %7225 = vmatpush1.msra.mxu0 0.0
    %7226 = vmatprep.subr.mxu0 0.0
    %7227 = vmatpush1.msra.mxu0 %v107
    %7228 = vmatprep.subr.mxu0 0.0
    %7229 = vmatpush1.msra.mxu0 %v106
    %7230 = vmatprep.subr.mxu0 0.0
    %7231 = vmatpush1.msra.mxu0 %v105
    %7232 = vmatprep.subr.mxu0 0.0
    %7233 = vmatpush1.msra.mxu0 %v104
    %7234 = vmatprep.subr.mxu0 0.0
    %7235 = vmatpush2.msra.mxu0 0.0
    %7236 = vmatprep.subr.mxu0 0.0
    %7237 = vmatpush2.msra.mxu0 0.0
    %7238 = vmatprep.subr.mxu0 0.0
    %7239 = vmatpush2.msra.mxu0 0.0
    %7240 = vmatprep.subr.mxu0 0.0
    %7241 = vmatpush2.msra.mxu0 0.0
    %7242 = vmatprep.subr.mxu0 0.0
    %7243 = vmatpush2.msra.mxu0 0.0
    %7244 = vmatprep.subr.mxu0 0.0
    %7245 = vmatpush2.msra.mxu0 0.0
    %7246 = vmatprep.subr.mxu0 0.0
    %7247 = vmatpush2.msra.mxu0 0.0
    %7248 = vmatprep.subr.mxu0 0.0
    %7249 = vmatpush2.msra.mxu0 0.0
    %7250 = vmatprep.subr.mxu0 0.0
    %7251 = vmatpush2.msra.mxu0 0.0
    %7252 = vmatprep.subr.mxu0 0.0
    %7253 = vmatpush2.msra.mxu0 0.0
    %7254 = vmatprep.subr.mxu0 0.0
    %7255 = vmatpush2.msra.mxu0 0.0
    %7256 = vmatprep.subr.mxu0 0.0
    %7257 = vmatpush2.msra.mxu0 0.0
    %7258 = vmatprep.subr.mxu0 0.0
    %7259 = vmatpush2.msra.mxu0 0.0
    %7260 = vmatprep.subr.mxu0 0.0
    %7261 = vmatpush2.msra.mxu0 0.0
    %7262 = vmatprep.subr.mxu0 0.0
    %7263 = vmatpush2.msra.mxu0 0.0
    %7264 = vmatprep.subr.mxu0 0.0
    %7265 = vmatpush2.msra.mxu0 0.0
    %7266 = vmatprep.mubr.f32.mxu0 0.0
    %7267 = vmatmul.mubr.f32.gmra.mxu0 %v6773
    %v7268 = vpop.f32.mrf.mxu0
    %v7269 = vadd.f32 0.0, %v7268
    %v7270 = vpop.f32.mrf.mxu0
    %7271 = vdwg.mxu0
    %7272 = vmatprep.subr.mxu0 0.0
    %7273 = vmatpush1.msra.mxu0 0.0
    %7274 = vmatprep.subr.mxu0 0.0
    %7275 = vmatpush1.msra.mxu0 0.0
    %7276 = vmatprep.subr.mxu0 0.0
    %7277 = vmatpush1.msra.mxu0 0.0
    %7278 = vmatprep.subr.mxu0 0.0
    %7279 = vmatpush1.msra.mxu0 0.0
    %7280 = vmatprep.subr.mxu0 0.0
    %7281 = vmatpush1.msra.mxu0 0.0
    %7282 = vmatprep.subr.mxu0 0.0
    %7283 = vmatpush1.msra.mxu0 0.0
    %7284 = vmatprep.subr.mxu0 0.0
    %7285 = vmatpush1.msra.mxu0 0.0
    %7286 = vmatprep.subr.mxu0 0.0
    %7287 = vmatpush1.msra.mxu0 0.0
    %7288 = vmatprep.subr.mxu0 0.0
    %7289 = vmatpush1.msra.mxu0 0.0
    %7290 = vmatprep.subr.mxu0 0.0
    %7291 = vmatpush1.msra.mxu0 0.0
    %7292 = vmatprep.subr.mxu0 0.0
    %7293 = vmatpush1.msra.mxu0 0.0
    %7294 = vmatprep.subr.mxu0 0.0
    %7295 = vmatpush1.msra.mxu0 0.0
    %7296 = vmatprep.subr.mxu0 0.0
    %7297 = vmatpush1.msra.mxu0 0.0
    %7298 = vmatprep.subr.mxu0 0.0
    %7299 = vmatpush1.msra.mxu0 0.0
    %7300 = vmatprep.subr.mxu0 0.0
    %7301 = vmatpush1.msra.mxu0 0.0
    %7302 = vmatprep.subr.mxu0 0.0
    %7303 = vmatpush1.msra.mxu0 %v88
    %7304 = vmatprep.subr.mxu0 0.0
    %7305 = vmatpush2.msra.mxu0 0.0
    %7306 = vmatprep.subr.mxu0 0.0
    %7307 = vmatpush2.msra.mxu0 0.0
    %7308 = vmatprep.subr.mxu0 0.0
    %7309 = vmatpush2.msra.mxu0 0.0
    %7310 = vmatprep.subr.mxu0 0.0
    %7311 = vmatpush2.msra.mxu0 0.0
    %7312 = vmatprep.subr.mxu0 0.0
    %7313 = vmatpush2.msra.mxu0 0.0
    %7314 = vmatprep.subr.mxu0 0.0
    %7315 = vmatpush2.msra.mxu0 0.0
    %7316 = vmatprep.subr.mxu0 0.0
    %7317 = vmatpush2.msra.mxu0 0.0
    %7318 = vmatprep.subr.mxu0 0.0
    %7319 = vmatpush2.msra.mxu0 0.0
    %7320 = vmatprep.subr.mxu0 0.0
    %7321 = vmatpush2.msra.mxu0 0.0
    %7322 = vmatprep.subr.mxu0 0.0
    %7323 = vmatpush2.msra.mxu0 0.0
    %7324 = vmatprep.subr.mxu0 0.0
    %7325 = vmatpush2.msra.mxu0 0.0
    %7326 = vmatprep.subr.mxu0 0.0
    %7327 = vmatpush2.msra.mxu0 0.0
    %7328 = vmatprep.subr.mxu0 0.0
    %7329 = vmatpush2.msra.mxu0 0.0
    %7330 = vmatprep.subr.mxu0 0.0
    %7331 = vmatpush2.msra.mxu0 0.0
    %7332 = vmatprep.subr.mxu0 0.0
    %7333 = vmatpush2.msra.mxu0 0.0
    %7334 = vmatprep.subr.mxu0 0.0
    %7335 = vmatpush2.msra.mxu0 0.0
    %7336 = vmatprep.mubr.f32.mxu0 0.0
    %7337 = vmatmul.mubr.f32.gmra.mxu0 %v6847
    %v7338 = vpop.f32.mrf.mxu0
    %v7339 = vadd.f32 %v7269, %v7338
    %v7340 = vpop.f32.mrf.mxu0
    %7341 = vdwg.mxu0
    %v7342 = vadd.f32 %v7339, %v759
    %v7343 = vxor.u32 %v6919, 2147483648
    %v7344 = vmul.f32 %v7343, 1.442695
    %v7345 = vpow.pop %v7344
    %v7346 = vadd.f32 %v7345, 1.0
    %v7347 = vrcp.pop %v7346
    %v7348 = vmul.f32 1.0, %v7347
    %v7349 = vxor.u32 %v7060, 2147483648
    %v7350 = vmul.f32 %v7349, 1.442695
    %v7351 = vpow.pop %v7350
    %v7352 = vadd.f32 %v7351, 1.0
    %v7353 = vrcp.pop %v7352
    %v7354 = vmul.f32 1.0, %v7353
    %v7355 = vtanh.pop %v7201
    %v7356 = vxor.u32 %v7342, 2147483648
    %v7357 = vmul.f32 %v7356, 1.442695
    %v7358 = vpow.pop %v7357
    %v7359 = vadd.f32 %v7358, 1.0
    %v7360 = vrcp.pop %v7359
    %v7361 = vmul.f32 1.0, %v7360
    %v7362 = vmul.f32 %v7354, %v6171
    %v7363 = vmul.f32 %v7348, %v7355
    %v7364 = vadd.f32 %v7362, %v7363
    %v7365 = vtanh.pop %v7364
    %v7366 = vmul.f32 %v7361, %v7365
    %v7368 = vsel %vm166, %v6764, 0
    %7370 = vmatprep.subr.mxu0 0.0
    %7371 = vmatpush1.msra.mxu0 0.0
    %7372 = vmatprep.subr.mxu0 0.0
    %7373 = vmatpush1.msra.mxu0 0.0
    %7374 = vmatprep.subr.mxu0 0.0
    %7375 = vmatpush1.msra.mxu0 0.0
    %7376 = vmatprep.subr.mxu0 0.0
    %7377 = vmatpush1.msra.mxu0 0.0
    %7378 = vmatprep.subr.mxu0 0.0
    %7379 = vmatpush1.msra.mxu0 0.0
    %7380 = vmatprep.subr.mxu0 0.0
    %7381 = vmatpush1.msra.mxu0 0.0
    %7382 = vmatprep.subr.mxu0 0.0
    %7383 = vmatpush1.msra.mxu0 0.0
    %7384 = vmatprep.subr.mxu0 0.0
    %7385 = vmatpush1.msra.mxu0 0.0
    %7386 = vmatprep.subr.mxu0 0.0
    %7387 = vmatpush1.msra.mxu0 0.0
    %7388 = vmatprep.subr.mxu0 0.0
    %7389 = vmatpush1.msra.mxu0 0.0
    %7390 = vmatprep.subr.mxu0 0.0
    %7391 = vmatpush1.msra.mxu0 0.0
    %7392 = vmatprep.subr.mxu0 0.0
    %7393 = vmatpush1.msra.mxu0 0.0
    %7394 = vmatprep.subr.mxu0 0.0
    %7395 = vmatpush1.msra.mxu0 %v137
    %7396 = vmatprep.subr.mxu0 0.0
    %7397 = vmatpush1.msra.mxu0 %v136
    %7398 = vmatprep.subr.mxu0 0.0
    %7399 = vmatpush1.msra.mxu0 %v135
    %7400 = vmatprep.subr.mxu0 0.0
    %7401 = vmatpush1.msra.mxu0 %v134
    %7402 = vmatprep.subr.mxu0 0.0
    %7403 = vmatpush2.msra.mxu0 0.0
    %7404 = vmatprep.subr.mxu0 0.0
    %7405 = vmatpush2.msra.mxu0 0.0
    %7406 = vmatprep.subr.mxu0 0.0
    %7407 = vmatpush2.msra.mxu0 0.0
    %7408 = vmatprep.subr.mxu0 0.0
    %7409 = vmatpush2.msra.mxu0 0.0
    %7410 = vmatprep.subr.mxu0 0.0
    %7411 = vmatpush2.msra.mxu0 0.0
    %7412 = vmatprep.subr.mxu0 0.0
    %7413 = vmatpush2.msra.mxu0 0.0
    %7414 = vmatprep.subr.mxu0 0.0
    %7415 = vmatpush2.msra.mxu0 0.0
    %7416 = vmatprep.subr.mxu0 0.0
    %7417 = vmatpush2.msra.mxu0 0.0
    %7418 = vmatprep.subr.mxu0 0.0
    %7419 = vmatpush2.msra.mxu0 0.0
    %7420 = vmatprep.subr.mxu0 0.0
    %7421 = vmatpush2.msra.mxu0 0.0
    %7422 = vmatprep.subr.mxu0 0.0
    %7423 = vmatpush2.msra.mxu0 0.0
    %7424 = vmatprep.subr.mxu0 0.0
    %7425 = vmatpush2.msra.mxu0 0.0
    %7426 = vmatprep.subr.mxu0 0.0
    %7427 = vmatpush2.msra.mxu0 0.0
    %7428 = vmatprep.subr.mxu0 0.0
    %7429 = vmatpush2.msra.mxu0 0.0
    %7430 = vmatprep.subr.mxu0 0.0
    %7431 = vmatpush2.msra.mxu0 0.0
    %7432 = vmatprep.subr.mxu0 0.0
    %7433 = vmatpush2.msra.mxu0 0.0
    %7434 = vmatprep.mubr.f32.mxu0 0.0
    %7435 = vmatmul.mubr.f32.gmra.mxu0 %v7368
    %v7436 = vpop.f32.mrf.mxu0
    %v7437 = vadd.f32 0.0, %v7436
    %v7438 = vpop.f32.mrf.mxu0
    %7439 = vdwg.mxu0
    %7440 = vmatprep.subr.mxu0 0.0
    %7441 = vmatpush1.msra.mxu0 0.0
    %7442 = vmatprep.subr.mxu0 0.0
    %7443 = vmatpush1.msra.mxu0 0.0
    %7444 = vmatprep.subr.mxu0 0.0
    %7445 = vmatpush1.msra.mxu0 0.0
    %7446 = vmatprep.subr.mxu0 0.0
    %7447 = vmatpush1.msra.mxu0 0.0
    %7448 = vmatprep.subr.mxu0 0.0
    %7449 = vmatpush1.msra.mxu0 0.0
    %7450 = vmatprep.subr.mxu0 0.0
    %7451 = vmatpush1.msra.mxu0 0.0
    %7452 = vmatprep.subr.mxu0 0.0
    %7453 = vmatpush1.msra.mxu0 0.0
    %7454 = vmatprep.subr.mxu0 0.0
    %7455 = vmatpush1.msra.mxu0 0.0
    %7456 = vmatprep.subr.mxu0 0.0
    %7457 = vmatpush1.msra.mxu0 0.0
    %7458 = vmatprep.subr.mxu0 0.0
    %7459 = vmatpush1.msra.mxu0 0.0
    %7460 = vmatprep.subr.mxu0 0.0
    %7461 = vmatpush1.msra.mxu0 0.0
    %7462 = vmatprep.subr.mxu0 0.0
    %7463 = vmatpush1.msra.mxu0 0.0
    %7464 = vmatprep.subr.mxu0 0.0
    %7465 = vmatpush1.msra.mxu0 %v118
    %7466 = vmatprep.subr.mxu0 0.0
    %7467 = vmatpush1.msra.mxu0 %v117
    %7468 = vmatprep.subr.mxu0 0.0
    %7469 = vmatpush1.msra.mxu0 %v116
    %7470 = vmatprep.subr.mxu0 0.0
    %7471 = vmatpush1.msra.mxu0 %v115
    %7472 = vmatprep.subr.mxu0 0.0
    %7473 = vmatpush2.msra.mxu0 0.0
    %7474 = vmatprep.subr.mxu0 0.0
    %7475 = vmatpush2.msra.mxu0 0.0
    %7476 = vmatprep.subr.mxu0 0.0
    %7477 = vmatpush2.msra.mxu0 0.0
    %7478 = vmatprep.subr.mxu0 0.0
    %7479 = vmatpush2.msra.mxu0 0.0
    %7480 = vmatprep.subr.mxu0 0.0
    %7481 = vmatpush2.msra.mxu0 0.0
    %7482 = vmatprep.subr.mxu0 0.0
    %7483 = vmatpush2.msra.mxu0 0.0
    %7484 = vmatprep.subr.mxu0 0.0
    %7485 = vmatpush2.msra.mxu0 0.0
    %7486 = vmatprep.subr.mxu0 0.0
    %7487 = vmatpush2.msra.mxu0 0.0
    %7488 = vmatprep.subr.mxu0 0.0
    %7489 = vmatpush2.msra.mxu0 0.0
    %7490 = vmatprep.subr.mxu0 0.0
    %7491 = vmatpush2.msra.mxu0 0.0
    %7492 = vmatprep.subr.mxu0 0.0
    %7493 = vmatpush2.msra.mxu0 0.0
    %7494 = vmatprep.subr.mxu0 0.0
    %7495 = vmatpush2.msra.mxu0 0.0
    %7496 = vmatprep.subr.mxu0 0.0
    %7497 = vmatpush2.msra.mxu0 0.0
    %7498 = vmatprep.subr.mxu0 0.0
    %7499 = vmatpush2.msra.mxu0 0.0
    %7500 = vmatprep.subr.mxu0 0.0
    %7501 = vmatpush2.msra.mxu0 0.0
    %7502 = vmatprep.subr.mxu0 0.0
    %7503 = vmatpush2.msra.mxu0 0.0
    %7504 = vmatprep.mubr.f32.mxu0 0.0
    %7505 = vmatmul.mubr.f32.gmra.mxu0 %v6773
    %v7506 = vpop.f32.mrf.mxu0
    %v7507 = vadd.f32 %v7437, %v7506
    %v7508 = vpop.f32.mrf.mxu0
    %7509 = vdwg.mxu0
    %v7510 = vadd.f32 %v7507, %v1525
    %7511 = vmatprep.subr.mxu0 0.0
    %7512 = vmatpush1.msra.mxu0 0.0
    %7513 = vmatprep.subr.mxu0 0.0
    %7514 = vmatpush1.msra.mxu0 0.0
    %7515 = vmatprep.subr.mxu0 0.0
    %7516 = vmatpush1.msra.mxu0 0.0
    %7517 = vmatprep.subr.mxu0 0.0
    %7518 = vmatpush1.msra.mxu0 0.0
    %7519 = vmatprep.subr.mxu0 0.0
    %7520 = vmatpush1.msra.mxu0 0.0
    %7521 = vmatprep.subr.mxu0 0.0
    %7522 = vmatpush1.msra.mxu0 0.0
    %7523 = vmatprep.subr.mxu0 0.0
    %7524 = vmatpush1.msra.mxu0 0.0
    %7525 = vmatprep.subr.mxu0 0.0
    %7526 = vmatpush1.msra.mxu0 0.0
    %7527 = vmatprep.subr.mxu0 0.0
    %7528 = vmatpush1.msra.mxu0 0.0
    %7529 = vmatprep.subr.mxu0 0.0
    %7530 = vmatpush1.msra.mxu0 0.0
    %7531 = vmatprep.subr.mxu0 0.0
    %7532 = vmatpush1.msra.mxu0 0.0
    %7533 = vmatprep.subr.mxu0 0.0
    %7534 = vmatpush1.msra.mxu0 0.0
    %7535 = vmatprep.subr.mxu0 0.0
    %7536 = vmatpush1.msra.mxu0 %v142
    %7537 = vmatprep.subr.mxu0 0.0
    %7538 = vmatpush1.msra.mxu0 %v141
    %7539 = vmatprep.subr.mxu0 0.0
    %7540 = vmatpush1.msra.mxu0 %v140
    %7541 = vmatprep.subr.mxu0 0.0
    %7542 = vmatpush1.msra.mxu0 %v139
    %7543 = vmatprep.subr.mxu0 0.0
    %7544 = vmatpush2.msra.mxu0 0.0
    %7545 = vmatprep.subr.mxu0 0.0
    %7546 = vmatpush2.msra.mxu0 0.0
    %7547 = vmatprep.subr.mxu0 0.0
    %7548 = vmatpush2.msra.mxu0 0.0
    %7549 = vmatprep.subr.mxu0 0.0
    %7550 = vmatpush2.msra.mxu0 0.0
    %7551 = vmatprep.subr.mxu0 0.0
    %7552 = vmatpush2.msra.mxu0 0.0
    %7553 = vmatprep.subr.mxu0 0.0
    %7554 = vmatpush2.msra.mxu0 0.0
    %7555 = vmatprep.subr.mxu0 0.0
    %7556 = vmatpush2.msra.mxu0 0.0
    %7557 = vmatprep.subr.mxu0 0.0
    %7558 = vmatpush2.msra.mxu0 0.0
    %7559 = vmatprep.subr.mxu0 0.0
    %7560 = vmatpush2.msra.mxu0 0.0
    %7561 = vmatprep.subr.mxu0 0.0
    %7562 = vmatpush2.msra.mxu0 0.0
    %7563 = vmatprep.subr.mxu0 0.0
    %7564 = vmatpush2.msra.mxu0 0.0
    %7565 = vmatprep.subr.mxu0 0.0
    %7566 = vmatpush2.msra.mxu0 0.0
    %7567 = vmatprep.subr.mxu0 0.0
    %7568 = vmatpush2.msra.mxu0 0.0
    %7569 = vmatprep.subr.mxu0 0.0
    %7570 = vmatpush2.msra.mxu0 0.0
    %7571 = vmatprep.subr.mxu0 0.0
    %7572 = vmatpush2.msra.mxu0 0.0
    %7573 = vmatprep.subr.mxu0 0.0
    %7574 = vmatpush2.msra.mxu0 0.0
    %7575 = vmatprep.mubr.f32.mxu0 0.0
    %7576 = vmatmul.mubr.f32.gmra.mxu0 %v7368
    %v7577 = vpop.f32.mrf.mxu0
    %v7578 = vadd.f32 0.0, %v7577
    %v7579 = vpop.f32.mrf.mxu0
    %7580 = vdwg.mxu0
    %7581 = vmatprep.subr.mxu0 0.0
    %7582 = vmatpush1.msra.mxu0 0.0
    %7583 = vmatprep.subr.mxu0 0.0
    %7584 = vmatpush1.msra.mxu0 0.0
    %7585 = vmatprep.subr.mxu0 0.0
    %7586 = vmatpush1.msra.mxu0 0.0
    %7587 = vmatprep.subr.mxu0 0.0
    %7588 = vmatpush1.msra.mxu0 0.0
    %7589 = vmatprep.subr.mxu0 0.0
    %7590 = vmatpush1.msra.mxu0 0.0
    %7591 = vmatprep.subr.mxu0 0.0
    %7592 = vmatpush1.msra.mxu0 0.0
    %7593 = vmatprep.subr.mxu0 0.0
    %7594 = vmatpush1.msra.mxu0 0.0
    %7595 = vmatprep.subr.mxu0 0.0
    %7596 = vmatpush1.msra.mxu0 0.0
    %7597 = vmatprep.subr.mxu0 0.0
    %7598 = vmatpush1.msra.mxu0 0.0
    %7599 = vmatprep.subr.mxu0 0.0
    %7600 = vmatpush1.msra.mxu0 0.0
    %7601 = vmatprep.subr.mxu0 0.0
    %7602 = vmatpush1.msra.mxu0 0.0
    %7603 = vmatprep.subr.mxu0 0.0
    %7604 = vmatpush1.msra.mxu0 0.0
    %7605 = vmatprep.subr.mxu0 0.0
    %7606 = vmatpush1.msra.mxu0 %v123
    %7607 = vmatprep.subr.mxu0 0.0
    %7608 = vmatpush1.msra.mxu0 %v122
    %7609 = vmatprep.subr.mxu0 0.0
    %7610 = vmatpush1.msra.mxu0 %v121
    %7611 = vmatprep.subr.mxu0 0.0
    %7612 = vmatpush1.msra.mxu0 %v120
    %7613 = vmatprep.subr.mxu0 0.0
    %7614 = vmatpush2.msra.mxu0 0.0
    %7615 = vmatprep.subr.mxu0 0.0
    %7616 = vmatpush2.msra.mxu0 0.0
    %7617 = vmatprep.subr.mxu0 0.0
    %7618 = vmatpush2.msra.mxu0 0.0
    %7619 = vmatprep.subr.mxu0 0.0
    %7620 = vmatpush2.msra.mxu0 0.0
    %7621 = vmatprep.subr.mxu0 0.0
    %7622 = vmatpush2.msra.mxu0 0.0
    %7623 = vmatprep.subr.mxu0 0.0
    %7624 = vmatpush2.msra.mxu0 0.0
    %7625 = vmatprep.subr.mxu0 0.0
    %7626 = vmatpush2.msra.mxu0 0.0
    %7627 = vmatprep.subr.mxu0 0.0
    %7628 = vmatpush2.msra.mxu0 0.0
    %7629 = vmatprep.subr.mxu0 0.0
    %7630 = vmatpush2.msra.mxu0 0.0
    %7631 = vmatprep.subr.mxu0 0.0
    %7632 = vmatpush2.msra.mxu0 0.0
    %7633 = vmatprep.subr.mxu0 0.0
    %7634 = vmatpush2.msra.mxu0 0.0
    %7635 = vmatprep.subr.mxu0 0.0
    %7636 = vmatpush2.msra.mxu0 0.0
    %7637 = vmatprep.subr.mxu0 0.0
    %7638 = vmatpush2.msra.mxu0 0.0
    %7639 = vmatprep.subr.mxu0 0.0
    %7640 = vmatpush2.msra.mxu0 0.0
    %7641 = vmatprep.subr.mxu0 0.0
    %7642 = vmatpush2.msra.mxu0 0.0
    %7643 = vmatprep.subr.mxu0 0.0
    %7644 = vmatpush2.msra.mxu0 0.0
    %7645 = vmatprep.mubr.f32.mxu0 0.0
    %7646 = vmatmul.mubr.f32.gmra.mxu0 %v6773
    %v7647 = vpop.f32.mrf.mxu0
    %v7648 = vadd.f32 %v7578, %v7647
    %v7649 = vpop.f32.mrf.mxu0
    %7650 = vdwg.mxu0
    %v7651 = vadd.f32 %v7648, %v1672
    %7652 = vmatprep.subr.mxu0 0.0
    %7653 = vmatpush1.msra.mxu0 0.0
    %7654 = vmatprep.subr.mxu0 0.0
    %7655 = vmatpush1.msra.mxu0 0.0
    %7656 = vmatprep.subr.mxu0 0.0
    %7657 = vmatpush1.msra.mxu0 0.0
    %7658 = vmatprep.subr.mxu0 0.0
    %7659 = vmatpush1.msra.mxu0 0.0
    %7660 = vmatprep.subr.mxu0 0.0
    %7661 = vmatpush1.msra.mxu0 0.0
    %7662 = vmatprep.subr.mxu0 0.0
    %7663 = vmatpush1.msra.mxu0 0.0
    %7664 = vmatprep.subr.mxu0 0.0
    %7665 = vmatpush1.msra.mxu0 0.0
    %7666 = vmatprep.subr.mxu0 0.0
    %7667 = vmatpush1.msra.mxu0 0.0
    %7668 = vmatprep.subr.mxu0 0.0
    %7669 = vmatpush1.msra.mxu0 0.0
    %7670 = vmatprep.subr.mxu0 0.0
    %7671 = vmatpush1.msra.mxu0 0.0
    %7672 = vmatprep.subr.mxu0 0.0
    %7673 = vmatpush1.msra.mxu0 0.0
    %7674 = vmatprep.subr.mxu0 0.0
    %7675 = vmatpush1.msra.mxu0 0.0
    %7676 = vmatprep.subr.mxu0 0.0
    %7677 = vmatpush1.msra.mxu0 %v147
    %7678 = vmatprep.subr.mxu0 0.0
    %7679 = vmatpush1.msra.mxu0 %v146
    %7680 = vmatprep.subr.mxu0 0.0
    %7681 = vmatpush1.msra.mxu0 %v145
    %7682 = vmatprep.subr.mxu0 0.0
    %7683 = vmatpush1.msra.mxu0 %v144
    %7684 = vmatprep.subr.mxu0 0.0
    %7685 = vmatpush2.msra.mxu0 0.0
    %7686 = vmatprep.subr.mxu0 0.0
    %7687 = vmatpush2.msra.mxu0 0.0
    %7688 = vmatprep.subr.mxu0 0.0
    %7689 = vmatpush2.msra.mxu0 0.0
    %7690 = vmatprep.subr.mxu0 0.0
    %7691 = vmatpush2.msra.mxu0 0.0
    %7692 = vmatprep.subr.mxu0 0.0
    %7693 = vmatpush2.msra.mxu0 0.0
    %7694 = vmatprep.subr.mxu0 0.0
    %7695 = vmatpush2.msra.mxu0 0.0
    %7696 = vmatprep.subr.mxu0 0.0
    %7697 = vmatpush2.msra.mxu0 0.0
    %7698 = vmatprep.subr.mxu0 0.0
    %7699 = vmatpush2.msra.mxu0 0.0
    %7700 = vmatprep.subr.mxu0 0.0
    %7701 = vmatpush2.msra.mxu0 0.0
    %7702 = vmatprep.subr.mxu0 0.0
    %7703 = vmatpush2.msra.mxu0 0.0
    %7704 = vmatprep.subr.mxu0 0.0
    %7705 = vmatpush2.msra.mxu0 0.0
    %7706 = vmatprep.subr.mxu0 0.0
    %7707 = vmatpush2.msra.mxu0 0.0
    %7708 = vmatprep.subr.mxu0 0.0
    %7709 = vmatpush2.msra.mxu0 0.0
    %7710 = vmatprep.subr.mxu0 0.0
    %7711 = vmatpush2.msra.mxu0 0.0
    %7712 = vmatprep.subr.mxu0 0.0
    %7713 = vmatpush2.msra.mxu0 0.0
    %7714 = vmatprep.subr.mxu0 0.0
    %7715 = vmatpush2.msra.mxu0 0.0
    %7716 = vmatprep.mubr.f32.mxu0 0.0
    %7717 = vmatmul.mubr.f32.gmra.mxu0 %v7368
    %v7718 = vpop.f32.mrf.mxu0
    %v7719 = vadd.f32 0.0, %v7718
    %v7720 = vpop.f32.mrf.mxu0
    %7721 = vdwg.mxu0
    %7722 = vmatprep.subr.mxu0 0.0
    %7723 = vmatpush1.msra.mxu0 0.0
    %7724 = vmatprep.subr.mxu0 0.0
    %7725 = vmatpush1.msra.mxu0 0.0
    %7726 = vmatprep.subr.mxu0 0.0
    %7727 = vmatpush1.msra.mxu0 0.0
    %7728 = vmatprep.subr.mxu0 0.0
    %7729 = vmatpush1.msra.mxu0 0.0
    %7730 = vmatprep.subr.mxu0 0.0
    %7731 = vmatpush1.msra.mxu0 0.0
    %7732 = vmatprep.subr.mxu0 0.0
    %7733 = vmatpush1.msra.mxu0 0.0
    %7734 = vmatprep.subr.mxu0 0.0
    %7735 = vmatpush1.msra.mxu0 0.0
    %7736 = vmatprep.subr.mxu0 0.0
    %7737 = vmatpush1.msra.mxu0 0.0
    %7738 = vmatprep.subr.mxu0 0.0
    %7739 = vmatpush1.msra.mxu0 0.0
    %7740 = vmatprep.subr.mxu0 0.0
    %7741 = vmatpush1.msra.mxu0 0.0
    %7742 = vmatprep.subr.mxu0 0.0
    %7743 = vmatpush1.msra.mxu0 0.0
    %7744 = vmatprep.subr.mxu0 0.0
    %7745 = vmatpush1.msra.mxu0 0.0
    %7746 = vmatprep.subr.mxu0 0.0
    %7747 = vmatpush1.msra.mxu0 %v128
    %7748 = vmatprep.subr.mxu0 0.0
    %7749 = vmatpush1.msra.mxu0 %v127
    %7750 = vmatprep.subr.mxu0 0.0
    %7751 = vmatpush1.msra.mxu0 %v126
    %7752 = vmatprep.subr.mxu0 0.0
    %7753 = vmatpush1.msra.mxu0 %v125
    %7754 = vmatprep.subr.mxu0 0.0
    %7755 = vmatpush2.msra.mxu0 0.0
    %7756 = vmatprep.subr.mxu0 0.0
    %7757 = vmatpush2.msra.mxu0 0.0
    %7758 = vmatprep.subr.mxu0 0.0
    %7759 = vmatpush2.msra.mxu0 0.0
    %7760 = vmatprep.subr.mxu0 0.0
    %7761 = vmatpush2.msra.mxu0 0.0
    %7762 = vmatprep.subr.mxu0 0.0
    %7763 = vmatpush2.msra.mxu0 0.0
    %7764 = vmatprep.subr.mxu0 0.0
    %7765 = vmatpush2.msra.mxu0 0.0
    %7766 = vmatprep.subr.mxu0 0.0
    %7767 = vmatpush2.msra.mxu0 0.0
    %7768 = vmatprep.subr.mxu0 0.0
    %7769 = vmatpush2.msra.mxu0 0.0
    %7770 = vmatprep.subr.mxu0 0.0
    %7771 = vmatpush2.msra.mxu0 0.0
    %7772 = vmatprep.subr.mxu0 0.0
    %7773 = vmatpush2.msra.mxu0 0.0
    %7774 = vmatprep.subr.mxu0 0.0
    %7775 = vmatpush2.msra.mxu0 0.0
    %7776 = vmatprep.subr.mxu0 0.0
    %7777 = vmatpush2.msra.mxu0 0.0
    %7778 = vmatprep.subr.mxu0 0.0
    %7779 = vmatpush2.msra.mxu0 0.0
    %7780 = vmatprep.subr.mxu0 0.0
    %7781 = vmatpush2.msra.mxu0 0.0
    %7782 = vmatprep.subr.mxu0 0.0
    %7783 = vmatpush2.msra.mxu0 0.0
    %7784 = vmatprep.subr.mxu0 0.0
    %7785 = vmatpush2.msra.mxu0 0.0
    %7786 = vmatprep.mubr.f32.mxu0 0.0
    %7787 = vmatmul.mubr.f32.gmra.mxu0 %v6773
    %v7788 = vpop.f32.mrf.mxu0
    %v7789 = vadd.f32 %v7719, %v7788
    %v7790 = vpop.f32.mrf.mxu0
    %7791 = vdwg.mxu0
    %v7792 = vadd.f32 %v7789, %v1819
    %7793 = vmatprep.subr.mxu0 0.0
    %7794 = vmatpush1.msra.mxu0 0.0
    %7795 = vmatprep.subr.mxu0 0.0
    %7796 = vmatpush1.msra.mxu0 0.0
    %7797 = vmatprep.subr.mxu0 0.0
    %7798 = vmatpush1.msra.mxu0 0.0
    %7799 = vmatprep.subr.mxu0 0.0
    %7800 = vmatpush1.msra.mxu0 0.0
    %7801 = vmatprep.subr.mxu0 0.0
    %7802 = vmatpush1.msra.mxu0 0.0
    %7803 = vmatprep.subr.mxu0 0.0
    %7804 = vmatpush1.msra.mxu0 0.0
    %7805 = vmatprep.subr.mxu0 0.0
    %7806 = vmatpush1.msra.mxu0 0.0
    %7807 = vmatprep.subr.mxu0 0.0
    %7808 = vmatpush1.msra.mxu0 0.0
    %7809 = vmatprep.subr.mxu0 0.0
    %7810 = vmatpush1.msra.mxu0 0.0
    %7811 = vmatprep.subr.mxu0 0.0
    %7812 = vmatpush1.msra.mxu0 0.0
    %7813 = vmatprep.subr.mxu0 0.0
    %7814 = vmatpush1.msra.mxu0 0.0
    %7815 = vmatprep.subr.mxu0 0.0
    %7816 = vmatpush1.msra.mxu0 0.0
    %7817 = vmatprep.subr.mxu0 0.0
    %7818 = vmatpush1.msra.mxu0 %v152
    %7819 = vmatprep.subr.mxu0 0.0
    %7820 = vmatpush1.msra.mxu0 %v151
    %7821 = vmatprep.subr.mxu0 0.0
    %7822 = vmatpush1.msra.mxu0 %v150
    %7823 = vmatprep.subr.mxu0 0.0
    %7824 = vmatpush1.msra.mxu0 %v149
    %7825 = vmatprep.subr.mxu0 0.0
    %7826 = vmatpush2.msra.mxu0 0.0
    %7827 = vmatprep.subr.mxu0 0.0
    %7828 = vmatpush2.msra.mxu0 0.0
    %7829 = vmatprep.subr.mxu0 0.0
    %7830 = vmatpush2.msra.mxu0 0.0
    %7831 = vmatprep.subr.mxu0 0.0
    %7832 = vmatpush2.msra.mxu0 0.0
    %7833 = vmatprep.subr.mxu0 0.0
    %7834 = vmatpush2.msra.mxu0 0.0
    %7835 = vmatprep.subr.mxu0 0.0
    %7836 = vmatpush2.msra.mxu0 0.0
    %7837 = vmatprep.subr.mxu0 0.0
    %7838 = vmatpush2.msra.mxu0 0.0
    %7839 = vmatprep.subr.mxu0 0.0
    %7840 = vmatpush2.msra.mxu0 0.0
    %7841 = vmatprep.subr.mxu0 0.0
    %7842 = vmatpush2.msra.mxu0 0.0
    %7843 = vmatprep.subr.mxu0 0.0
    %7844 = vmatpush2.msra.mxu0 0.0
    %7845 = vmatprep.subr.mxu0 0.0
    %7846 = vmatpush2.msra.mxu0 0.0
    %7847 = vmatprep.subr.mxu0 0.0
    %7848 = vmatpush2.msra.mxu0 0.0
    %7849 = vmatprep.subr.mxu0 0.0
    %7850 = vmatpush2.msra.mxu0 0.0
    %7851 = vmatprep.subr.mxu0 0.0
    %7852 = vmatpush2.msra.mxu0 0.0
    %7853 = vmatprep.subr.mxu0 0.0
    %7854 = vmatpush2.msra.mxu0 0.0
    %7855 = vmatprep.subr.mxu0 0.0
    %7856 = vmatpush2.msra.mxu0 0.0
    %7857 = vmatprep.mubr.f32.mxu0 0.0
    %7858 = vmatmul.mubr.f32.gmra.mxu0 %v7368
    %v7859 = vpop.f32.mrf.mxu0
    %v7860 = vadd.f32 0.0, %v7859
    %v7861 = vpop.f32.mrf.mxu0
    %7862 = vdwg.mxu0
    %7863 = vmatprep.subr.mxu0 0.0
    %7864 = vmatpush1.msra.mxu0 0.0
    %7865 = vmatprep.subr.mxu0 0.0
    %7866 = vmatpush1.msra.mxu0 0.0
    %7867 = vmatprep.subr.mxu0 0.0
    %7868 = vmatpush1.msra.mxu0 0.0
    %7869 = vmatprep.subr.mxu0 0.0
    %7870 = vmatpush1.msra.mxu0 0.0
    %7871 = vmatprep.subr.mxu0 0.0
    %7872 = vmatpush1.msra.mxu0 0.0
    %7873 = vmatprep.subr.mxu0 0.0
    %7874 = vmatpush1.msra.mxu0 0.0
    %7875 = vmatprep.subr.mxu0 0.0
    %7876 = vmatpush1.msra.mxu0 0.0
    %7877 = vmatprep.subr.mxu0 0.0
    %7878 = vmatpush1.msra.mxu0 0.0
    %7879 = vmatprep.subr.mxu0 0.0
    %7880 = vmatpush1.msra.mxu0 0.0
    %7881 = vmatprep.subr.mxu0 0.0
    %7882 = vmatpush1.msra.mxu0 0.0
    %7883 = vmatprep.subr.mxu0 0.0
    %7884 = vmatpush1.msra.mxu0 0.0
    %7885 = vmatprep.subr.mxu0 0.0
    %7886 = vmatpush1.msra.mxu0 0.0
    %7887 = vmatprep.subr.mxu0 0.0
    %7888 = vmatpush1.msra.mxu0 %v133
    %7889 = vmatprep.subr.mxu0 0.0
    %7890 = vmatpush1.msra.mxu0 %v132
    %7891 = vmatprep.subr.mxu0 0.0
    %7892 = vmatpush1.msra.mxu0 %v131
    %7893 = vmatprep.subr.mxu0 0.0
    %7894 = vmatpush1.msra.mxu0 %v130
    %7895 = vmatprep.subr.mxu0 0.0
    %7896 = vmatpush2.msra.mxu0 0.0
    %7897 = vmatprep.subr.mxu0 0.0
    %7898 = vmatpush2.msra.mxu0 0.0
    %7899 = vmatprep.subr.mxu0 0.0
    %7900 = vmatpush2.msra.mxu0 0.0
    %7901 = vmatprep.subr.mxu0 0.0
    %7902 = vmatpush2.msra.mxu0 0.0
    %7903 = vmatprep.subr.mxu0 0.0
    %7904 = vmatpush2.msra.mxu0 0.0
    %7905 = vmatprep.subr.mxu0 0.0
    %7906 = vmatpush2.msra.mxu0 0.0
    %7907 = vmatprep.subr.mxu0 0.0
    %7908 = vmatpush2.msra.mxu0 0.0
    %7909 = vmatprep.subr.mxu0 0.0
    %7910 = vmatpush2.msra.mxu0 0.0
    %7911 = vmatprep.subr.mxu0 0.0
    %7912 = vmatpush2.msra.mxu0 0.0
    %7913 = vmatprep.subr.mxu0 0.0
    %7914 = vmatpush2.msra.mxu0 0.0
    %7915 = vmatprep.subr.mxu0 0.0
    %7916 = vmatpush2.msra.mxu0 0.0
    %7917 = vmatprep.subr.mxu0 0.0
    %7918 = vmatpush2.msra.mxu0 0.0
    %7919 = vmatprep.subr.mxu0 0.0
    %7920 = vmatpush2.msra.mxu0 0.0
    %7921 = vmatprep.subr.mxu0 0.0
    %7922 = vmatpush2.msra.mxu0 0.0
    %7923 = vmatprep.subr.mxu0 0.0
    %7924 = vmatpush2.msra.mxu0 0.0
    %7925 = vmatprep.subr.mxu0 0.0
    %7926 = vmatpush2.msra.mxu0 0.0
    %7927 = vmatprep.mubr.f32.mxu0 0.0
    %7928 = vmatmul.mubr.f32.gmra.mxu0 %v6773
    %v7929 = vpop.f32.mrf.mxu0
    %v7930 = vadd.f32 %v7860, %v7929
    %v7931 = vpop.f32.mrf.mxu0
    %7932 = vdwg.mxu0
    %v7933 = vadd.f32 %v7930, %v1966
    %v7934 = vxor.u32 %v7510, 2147483648
    %v7935 = vmul.f32 %v7934, 1.442695
    %v7936 = vpow.pop %v7935
    %v7937 = vadd.f32 %v7936, 1.0
    %v7938 = vrcp.pop %v7937
    %v7939 = vmul.f32 1.0, %v7938
    %v7940 = vxor.u32 %v7651, 2147483648
    %v7941 = vmul.f32 %v7940, 1.442695
    %v7942 = vpow.pop %v7941
    %v7943 = vadd.f32 %v7942, 1.0
    %v7944 = vrcp.pop %v7943
    %v7945 = vmul.f32 1.0, %v7944
    %v7946 = vtanh.pop %v7792
    %v7947 = vxor.u32 %v7933, 2147483648
    %v7948 = vmul.f32 %v7947, 1.442695
    %v7949 = vpow.pop %v7948
    %v7950 = vadd.f32 %v7949, 1.0
    %v7951 = vrcp.pop %v7950
    %v7952 = vmul.f32 1.0, %v7951
    %v7953 = vmul.f32 %v7945, %v6762
    %v7954 = vmul.f32 %v7939, %v7946
    %v7955 = vadd.f32 %v7953, %v7954
    %v7956 = vtanh.pop %v7955
    %v7957 = vmul.f32 %v7952, %v7956
    %vm7958 = vcmp.eq.s32.totalorder %v165, 5
    %v7959 = vsel %vm7958, 1, 0
    %7960 = vset.pattern.permute.xlu0 0
    %7961 = vperm.xlu0 %7960, %v7959
    %v7962 = vpop.permute.xlu0 %7961
    %vm7963 = vcmp.eq.s32.totalorder %v7962, 1
    %v7964 = vsel %vm7963, %v7957, %v6771
    %v7966 = vsel %vm166, %v7366, 0
    %7968 = vmatprep.subr.mxu0 0.0
    %7969 = vmatpush1.msra.mxu0 0.0
    %7970 = vmatprep.subr.mxu0 0.0
    %7971 = vmatpush1.msra.mxu0 0.0
    %7972 = vmatprep.subr.mxu0 0.0
    %7973 = vmatpush1.msra.mxu0 0.0
    %7974 = vmatprep.subr.mxu0 0.0
    %7975 = vmatpush1.msra.mxu0 0.0
    %7976 = vmatprep.subr.mxu0 0.0
    %7977 = vmatpush1.msra.mxu0 0.0
    %7978 = vmatprep.subr.mxu0 0.0
    %7979 = vmatpush1.msra.mxu0 0.0
    %7980 = vmatprep.subr.mxu0 0.0
    %7981 = vmatpush1.msra.mxu0 0.0
    %7982 = vmatprep.subr.mxu0 0.0
    %7983 = vmatpush1.msra.mxu0 0.0
    %7984 = vmatprep.subr.mxu0 0.0
    %7985 = vmatpush1.msra.mxu0 0.0
    %7986 = vmatprep.subr.mxu0 0.0
    %7987 = vmatpush1.msra.mxu0 0.0
    %7988 = vmatprep.subr.mxu0 0.0
    %7989 = vmatpush1.msra.mxu0 0.0
    %7990 = vmatprep.subr.mxu0 0.0
    %7991 = vmatpush1.msra.mxu0 0.0
    %7992 = vmatprep.subr.mxu0 0.0
    %7993 = vmatpush1.msra.mxu0 %v92
    %7994 = vmatprep.subr.mxu0 0.0
    %7995 = vmatpush1.msra.mxu0 %v91
    %7996 = vmatprep.subr.mxu0 0.0
    %7997 = vmatpush1.msra.mxu0 %v90
    %7998 = vmatprep.subr.mxu0 0.0
    %7999 = vmatpush1.msra.mxu0 %v89
    %8000 = vmatprep.subr.mxu0 0.0
    %8001 = vmatpush2.msra.mxu0 0.0
    %8002 = vmatprep.subr.mxu0 0.0
    %8003 = vmatpush2.msra.mxu0 0.0
    %8004 = vmatprep.subr.mxu0 0.0
    %8005 = vmatpush2.msra.mxu0 0.0
    %8006 = vmatprep.subr.mxu0 0.0
    %8007 = vmatpush2.msra.mxu0 0.0
    %8008 = vmatprep.subr.mxu0 0.0
    %8009 = vmatpush2.msra.mxu0 0.0
    %8010 = vmatprep.subr.mxu0 0.0
    %8011 = vmatpush2.msra.mxu0 0.0
    %8012 = vmatprep.subr.mxu0 0.0
    %8013 = vmatpush2.msra.mxu0 0.0
    %8014 = vmatprep.subr.mxu0 0.0
    %8015 = vmatpush2.msra.mxu0 0.0
    %8016 = vmatprep.subr.mxu0 0.0
    %8017 = vmatpush2.msra.mxu0 0.0
    %8018 = vmatprep.subr.mxu0 0.0
    %8019 = vmatpush2.msra.mxu0 0.0
    %8020 = vmatprep.subr.mxu0 0.0
    %8021 = vmatpush2.msra.mxu0 0.0
    %8022 = vmatprep.subr.mxu0 0.0
    %8023 = vmatpush2.msra.mxu0 0.0
    %8024 = vmatprep.subr.mxu0 0.0
    %8025 = vmatpush2.msra.mxu0 0.0
    %8026 = vmatprep.subr.mxu0 0.0
    %8027 = vmatpush2.msra.mxu0 0.0
    %8028 = vmatprep.subr.mxu0 0.0
    %8029 = vmatpush2.msra.mxu0 0.0
    %8030 = vmatprep.subr.mxu0 0.0
    %8031 = vmatpush2.msra.mxu0 0.0
    %8032 = vmatprep.mubr.f32.mxu0 0.0
    %8033 = vmatmul.mubr.f32.gmra.mxu0 %v7966
    %v8034 = vpop.f32.mrf.mxu0
    %v8035 = vadd.f32 0.0, %v8034
    %v8036 = vpop.f32.mrf.mxu0
    %8037 = vdwg.mxu0
    %8038 = vrot.lane.b32.xlu0 %v81, 72
    %v8039 = vpop.permute.xlu0 %8038
    %v8040 = vsel %vm240, %v8039, 0
    %8042 = vmatprep.subr.mxu0 0.0
    %8043 = vmatpush1.msra.mxu0 0.0
    %8044 = vmatprep.subr.mxu0 0.0
    %8045 = vmatpush1.msra.mxu0 0.0
    %8046 = vmatprep.subr.mxu0 0.0
    %8047 = vmatpush1.msra.mxu0 0.0
    %8048 = vmatprep.subr.mxu0 0.0
    %8049 = vmatpush1.msra.mxu0 0.0
    %8050 = vmatprep.subr.mxu0 0.0
    %8051 = vmatpush1.msra.mxu0 0.0
    %8052 = vmatprep.subr.mxu0 0.0
    %8053 = vmatpush1.msra.mxu0 0.0
    %8054 = vmatprep.subr.mxu0 0.0
    %8055 = vmatpush1.msra.mxu0 0.0
    %8056 = vmatprep.subr.mxu0 0.0
    %8057 = vmatpush1.msra.mxu0 0.0
    %8058 = vmatprep.subr.mxu0 0.0
    %8059 = vmatpush1.msra.mxu0 0.0
    %8060 = vmatprep.subr.mxu0 0.0
    %8061 = vmatpush1.msra.mxu0 0.0
    %8062 = vmatprep.subr.mxu0 0.0
    %8063 = vmatpush1.msra.mxu0 0.0
    %8064 = vmatprep.subr.mxu0 0.0
    %8065 = vmatpush1.msra.mxu0 0.0
    %8066 = vmatprep.subr.mxu0 0.0
    %8067 = vmatpush1.msra.mxu0 0.0
    %8068 = vmatprep.subr.mxu0 0.0
    %8069 = vmatpush1.msra.mxu0 0.0
    %8070 = vmatprep.subr.mxu0 0.0
    %8071 = vmatpush1.msra.mxu0 0.0
    %8072 = vmatprep.subr.mxu0 0.0
    %8073 = vmatpush1.msra.mxu0 %v82
    %8074 = vmatprep.subr.mxu0 0.0
    %8075 = vmatpush2.msra.mxu0 0.0
    %8076 = vmatprep.subr.mxu0 0.0
    %8077 = vmatpush2.msra.mxu0 0.0
    %8078 = vmatprep.subr.mxu0 0.0
    %8079 = vmatpush2.msra.mxu0 0.0
    %8080 = vmatprep.subr.mxu0 0.0
    %8081 = vmatpush2.msra.mxu0 0.0
    %8082 = vmatprep.subr.mxu0 0.0
    %8083 = vmatpush2.msra.mxu0 0.0
    %8084 = vmatprep.subr.mxu0 0.0
    %8085 = vmatpush2.msra.mxu0 0.0
    %8086 = vmatprep.subr.mxu0 0.0
    %8087 = vmatpush2.msra.mxu0 0.0
    %8088 = vmatprep.subr.mxu0 0.0
    %8089 = vmatpush2.msra.mxu0 0.0
    %8090 = vmatprep.subr.mxu0 0.0
    %8091 = vmatpush2.msra.mxu0 0.0
    %8092 = vmatprep.subr.mxu0 0.0
    %8093 = vmatpush2.msra.mxu0 0.0
    %8094 = vmatprep.subr.mxu0 0.0
    %8095 = vmatpush2.msra.mxu0 0.0
    %8096 = vmatprep.subr.mxu0 0.0
    %8097 = vmatpush2.msra.mxu0 0.0
    %8098 = vmatprep.subr.mxu0 0.0
    %8099 = vmatpush2.msra.mxu0 0.0
    %8100 = vmatprep.subr.mxu0 0.0
    %8101 = vmatpush2.msra.mxu0 0.0
    %8102 = vmatprep.subr.mxu0 0.0
    %8103 = vmatpush2.msra.mxu0 0.0
    %8104 = vmatprep.subr.mxu0 0.0
    %8105 = vmatpush2.msra.mxu0 0.0
    %8106 = vmatprep.mubr.f32.mxu0 0.0
    %8107 = vmatmul.mubr.f32.gmra.mxu0 %v8040
    %v8108 = vpop.f32.mrf.mxu0
    %v8109 = vadd.f32 %v8035, %v8108
    %v8110 = vpop.f32.mrf.mxu0
    %8111 = vdwg.mxu0
    %v8112 = vadd.f32 %v8109, %v318
    %8113 = vmatprep.subr.mxu0 0.0
    %8114 = vmatpush1.msra.mxu0 0.0
    %8115 = vmatprep.subr.mxu0 0.0
    %8116 = vmatpush1.msra.mxu0 0.0
    %8117 = vmatprep.subr.mxu0 0.0
    %8118 = vmatpush1.msra.mxu0 0.0
    %8119 = vmatprep.subr.mxu0 0.0
    %8120 = vmatpush1.msra.mxu0 0.0
    %8121 = vmatprep.subr.mxu0 0.0
    %8122 = vmatpush1.msra.mxu0 0.0
    %8123 = vmatprep.subr.mxu0 0.0
    %8124 = vmatpush1.msra.mxu0 0.0
    %8125 = vmatprep.subr.mxu0 0.0
    %8126 = vmatpush1.msra.mxu0 0.0
    %8127 = vmatprep.subr.mxu0 0.0
    %8128 = vmatpush1.msra.mxu0 0.0
    %8129 = vmatprep.subr.mxu0 0.0
    %8130 = vmatpush1.msra.mxu0 0.0
    %8131 = vmatprep.subr.mxu0 0.0
    %8132 = vmatpush1.msra.mxu0 0.0
    %8133 = vmatprep.subr.mxu0 0.0
    %8134 = vmatpush1.msra.mxu0 0.0
    %8135 = vmatprep.subr.mxu0 0.0
    %8136 = vmatpush1.msra.mxu0 0.0
    %8137 = vmatprep.subr.mxu0 0.0
    %8138 = vmatpush1.msra.mxu0 %v97
    %8139 = vmatprep.subr.mxu0 0.0
    %8140 = vmatpush1.msra.mxu0 %v96
    %8141 = vmatprep.subr.mxu0 0.0
    %8142 = vmatpush1.msra.mxu0 %v95
    %8143 = vmatprep.subr.mxu0 0.0
    %8144 = vmatpush1.msra.mxu0 %v94
    %8145 = vmatprep.subr.mxu0 0.0
    %8146 = vmatpush2.msra.mxu0 0.0
    %8147 = vmatprep.subr.mxu0 0.0
    %8148 = vmatpush2.msra.mxu0 0.0
    %8149 = vmatprep.subr.mxu0 0.0
    %8150 = vmatpush2.msra.mxu0 0.0
    %8151 = vmatprep.subr.mxu0 0.0
    %8152 = vmatpush2.msra.mxu0 0.0
    %8153 = vmatprep.subr.mxu0 0.0
    %8154 = vmatpush2.msra.mxu0 0.0
    %8155 = vmatprep.subr.mxu0 0.0
    %8156 = vmatpush2.msra.mxu0 0.0
    %8157 = vmatprep.subr.mxu0 0.0
    %8158 = vmatpush2.msra.mxu0 0.0
    %8159 = vmatprep.subr.mxu0 0.0
    %8160 = vmatpush2.msra.mxu0 0.0
    %8161 = vmatprep.subr.mxu0 0.0
    %8162 = vmatpush2.msra.mxu0 0.0
    %8163 = vmatprep.subr.mxu0 0.0
    %8164 = vmatpush2.msra.mxu0 0.0
    %8165 = vmatprep.subr.mxu0 0.0
    %8166 = vmatpush2.msra.mxu0 0.0
    %8167 = vmatprep.subr.mxu0 0.0
    %8168 = vmatpush2.msra.mxu0 0.0
    %8169 = vmatprep.subr.mxu0 0.0
    %8170 = vmatpush2.msra.mxu0 0.0
    %8171 = vmatprep.subr.mxu0 0.0
    %8172 = vmatpush2.msra.mxu0 0.0
    %8173 = vmatprep.subr.mxu0 0.0
    %8174 = vmatpush2.msra.mxu0 0.0
    %8175 = vmatprep.subr.mxu0 0.0
    %8176 = vmatpush2.msra.mxu0 0.0
    %8177 = vmatprep.mubr.f32.mxu0 0.0
    %8178 = vmatmul.mubr.f32.gmra.mxu0 %v7966
    %v8179 = vpop.f32.mrf.mxu0
    %v8180 = vadd.f32 0.0, %v8179
    %v8181 = vpop.f32.mrf.mxu0
    %8182 = vdwg.mxu0
    %8183 = vmatprep.subr.mxu0 0.0
    %8184 = vmatpush1.msra.mxu0 0.0
    %8185 = vmatprep.subr.mxu0 0.0
    %8186 = vmatpush1.msra.mxu0 0.0
    %8187 = vmatprep.subr.mxu0 0.0
    %8188 = vmatpush1.msra.mxu0 0.0
    %8189 = vmatprep.subr.mxu0 0.0
    %8190 = vmatpush1.msra.mxu0 0.0
    %8191 = vmatprep.subr.mxu0 0.0
    %8192 = vmatpush1.msra.mxu0 0.0
    %8193 = vmatprep.subr.mxu0 0.0
    %8194 = vmatpush1.msra.mxu0 0.0
    %8195 = vmatprep.subr.mxu0 0.0
    %8196 = vmatpush1.msra.mxu0 0.0
    %8197 = vmatprep.subr.mxu0 0.0
    %8198 = vmatpush1.msra.mxu0 0.0
    %8199 = vmatprep.subr.mxu0 0.0
    %8200 = vmatpush1.msra.mxu0 0.0
    %8201 = vmatprep.subr.mxu0 0.0
    %8202 = vmatpush1.msra.mxu0 0.0
    %8203 = vmatprep.subr.mxu0 0.0
    %8204 = vmatpush1.msra.mxu0 0.0
    %8205 = vmatprep.subr.mxu0 0.0
    %8206 = vmatpush1.msra.mxu0 0.0
    %8207 = vmatprep.subr.mxu0 0.0
    %8208 = vmatpush1.msra.mxu0 0.0
    %8209 = vmatprep.subr.mxu0 0.0
    %8210 = vmatpush1.msra.mxu0 0.0
    %8211 = vmatprep.subr.mxu0 0.0
    %8212 = vmatpush1.msra.mxu0 0.0
    %8213 = vmatprep.subr.mxu0 0.0
    %8214 = vmatpush1.msra.mxu0 %v84
    %8215 = vmatprep.subr.mxu0 0.0
    %8216 = vmatpush2.msra.mxu0 0.0
    %8217 = vmatprep.subr.mxu0 0.0
    %8218 = vmatpush2.msra.mxu0 0.0
    %8219 = vmatprep.subr.mxu0 0.0
    %8220 = vmatpush2.msra.mxu0 0.0
    %8221 = vmatprep.subr.mxu0 0.0
    %8222 = vmatpush2.msra.mxu0 0.0
    %8223 = vmatprep.subr.mxu0 0.0
    %8224 = vmatpush2.msra.mxu0 0.0
    %8225 = vmatprep.subr.mxu0 0.0
    %8226 = vmatpush2.msra.mxu0 0.0
    %8227 = vmatprep.subr.mxu0 0.0
    %8228 = vmatpush2.msra.mxu0 0.0
    %8229 = vmatprep.subr.mxu0 0.0
    %8230 = vmatpush2.msra.mxu0 0.0
    %8231 = vmatprep.subr.mxu0 0.0
    %8232 = vmatpush2.msra.mxu0 0.0
    %8233 = vmatprep.subr.mxu0 0.0
    %8234 = vmatpush2.msra.mxu0 0.0
    %8235 = vmatprep.subr.mxu0 0.0
    %8236 = vmatpush2.msra.mxu0 0.0
    %8237 = vmatprep.subr.mxu0 0.0
    %8238 = vmatpush2.msra.mxu0 0.0
    %8239 = vmatprep.subr.mxu0 0.0
    %8240 = vmatpush2.msra.mxu0 0.0
    %8241 = vmatprep.subr.mxu0 0.0
    %8242 = vmatpush2.msra.mxu0 0.0
    %8243 = vmatprep.subr.mxu0 0.0
    %8244 = vmatpush2.msra.mxu0 0.0
    %8245 = vmatprep.subr.mxu0 0.0
    %8246 = vmatpush2.msra.mxu0 0.0
    %8247 = vmatprep.mubr.f32.mxu0 0.0
    %8248 = vmatmul.mubr.f32.gmra.mxu0 %v8040
    %v8249 = vpop.f32.mrf.mxu0
    %v8250 = vadd.f32 %v8180, %v8249
    %v8251 = vpop.f32.mrf.mxu0
    %8252 = vdwg.mxu0
    %v8253 = vadd.f32 %v8250, %v465
    %8254 = vmatprep.subr.mxu0 0.0
    %8255 = vmatpush1.msra.mxu0 0.0
    %8256 = vmatprep.subr.mxu0 0.0
    %8257 = vmatpush1.msra.mxu0 0.0
    %8258 = vmatprep.subr.mxu0 0.0
    %8259 = vmatpush1.msra.mxu0 0.0
    %8260 = vmatprep.subr.mxu0 0.0
    %8261 = vmatpush1.msra.mxu0 0.0
    %8262 = vmatprep.subr.mxu0 0.0
    %8263 = vmatpush1.msra.mxu0 0.0
    %8264 = vmatprep.subr.mxu0 0.0
    %8265 = vmatpush1.msra.mxu0 0.0
    %8266 = vmatprep.subr.mxu0 0.0
    %8267 = vmatpush1.msra.mxu0 0.0
    %8268 = vmatprep.subr.mxu0 0.0
    %8269 = vmatpush1.msra.mxu0 0.0
    %8270 = vmatprep.subr.mxu0 0.0
    %8271 = vmatpush1.msra.mxu0 0.0
    %8272 = vmatprep.subr.mxu0 0.0
    %8273 = vmatpush1.msra.mxu0 0.0
    %8274 = vmatprep.subr.mxu0 0.0
    %8275 = vmatpush1.msra.mxu0 0.0
    %8276 = vmatprep.subr.mxu0 0.0
    %8277 = vmatpush1.msra.mxu0 0.0
    %8278 = vmatprep.subr.mxu0 0.0
    %8279 = vmatpush1.msra.mxu0 %v102
    %8280 = vmatprep.subr.mxu0 0.0
    %8281 = vmatpush1.msra.mxu0 %v101
    %8282 = vmatprep.subr.mxu0 0.0
    %8283 = vmatpush1.msra.mxu0 %v100
    %8284 = vmatprep.subr.mxu0 0.0
    %8285 = vmatpush1.msra.mxu0 %v99
    %8286 = vmatprep.subr.mxu0 0.0
    %8287 = vmatpush2.msra.mxu0 0.0
    %8288 = vmatprep.subr.mxu0 0.0
    %8289 = vmatpush2.msra.mxu0 0.0
    %8290 = vmatprep.subr.mxu0 0.0
    %8291 = vmatpush2.msra.mxu0 0.0
    %8292 = vmatprep.subr.mxu0 0.0
    %8293 = vmatpush2.msra.mxu0 0.0
    %8294 = vmatprep.subr.mxu0 0.0
    %8295 = vmatpush2.msra.mxu0 0.0
    %8296 = vmatprep.subr.mxu0 0.0
    %8297 = vmatpush2.msra.mxu0 0.0
    %8298 = vmatprep.subr.mxu0 0.0
    %8299 = vmatpush2.msra.mxu0 0.0
    %8300 = vmatprep.subr.mxu0 0.0
    %8301 = vmatpush2.msra.mxu0 0.0
    %8302 = vmatprep.subr.mxu0 0.0
    %8303 = vmatpush2.msra.mxu0 0.0
    %8304 = vmatprep.subr.mxu0 0.0
    %8305 = vmatpush2.msra.mxu0 0.0
    %8306 = vmatprep.subr.mxu0 0.0
    %8307 = vmatpush2.msra.mxu0 0.0
    %8308 = vmatprep.subr.mxu0 0.0
    %8309 = vmatpush2.msra.mxu0 0.0
    %8310 = vmatprep.subr.mxu0 0.0
    %8311 = vmatpush2.msra.mxu0 0.0
    %8312 = vmatprep.subr.mxu0 0.0
    %8313 = vmatpush2.msra.mxu0 0.0
    %8314 = vmatprep.subr.mxu0 0.0
    %8315 = vmatpush2.msra.mxu0 0.0
    %8316 = vmatprep.subr.mxu0 0.0
    %8317 = vmatpush2.msra.mxu0 0.0
    %8318 = vmatprep.mubr.f32.mxu0 0.0
    %8319 = vmatmul.mubr.f32.gmra.mxu0 %v7966
    %v8320 = vpop.f32.mrf.mxu0
    %v8321 = vadd.f32 0.0, %v8320
    %v8322 = vpop.f32.mrf.mxu0
    %8323 = vdwg.mxu0
    %8324 = vmatprep.subr.mxu0 0.0
    %8325 = vmatpush1.msra.mxu0 0.0
    %8326 = vmatprep.subr.mxu0 0.0
    %8327 = vmatpush1.msra.mxu0 0.0
    %8328 = vmatprep.subr.mxu0 0.0
    %8329 = vmatpush1.msra.mxu0 0.0
    %8330 = vmatprep.subr.mxu0 0.0
    %8331 = vmatpush1.msra.mxu0 0.0
    %8332 = vmatprep.subr.mxu0 0.0
    %8333 = vmatpush1.msra.mxu0 0.0
    %8334 = vmatprep.subr.mxu0 0.0
    %8335 = vmatpush1.msra.mxu0 0.0
    %8336 = vmatprep.subr.mxu0 0.0
    %8337 = vmatpush1.msra.mxu0 0.0
    %8338 = vmatprep.subr.mxu0 0.0
    %8339 = vmatpush1.msra.mxu0 0.0
    %8340 = vmatprep.subr.mxu0 0.0
    %8341 = vmatpush1.msra.mxu0 0.0
    %8342 = vmatprep.subr.mxu0 0.0
    %8343 = vmatpush1.msra.mxu0 0.0
    %8344 = vmatprep.subr.mxu0 0.0
    %8345 = vmatpush1.msra.mxu0 0.0
    %8346 = vmatprep.subr.mxu0 0.0
    %8347 = vmatpush1.msra.mxu0 0.0
    %8348 = vmatprep.subr.mxu0 0.0
    %8349 = vmatpush1.msra.mxu0 0.0
    %8350 = vmatprep.subr.mxu0 0.0
    %8351 = vmatpush1.msra.mxu0 0.0
    %8352 = vmatprep.subr.mxu0 0.0
    %8353 = vmatpush1.msra.mxu0 0.0
    %8354 = vmatprep.subr.mxu0 0.0
    %8355 = vmatpush1.msra.mxu0 %v86
    %8356 = vmatprep.subr.mxu0 0.0
    %8357 = vmatpush2.msra.mxu0 0.0
    %8358 = vmatprep.subr.mxu0 0.0
    %8359 = vmatpush2.msra.mxu0 0.0
    %8360 = vmatprep.subr.mxu0 0.0
    %8361 = vmatpush2.msra.mxu0 0.0
    %8362 = vmatprep.subr.mxu0 0.0
    %8363 = vmatpush2.msra.mxu0 0.0
    %8364 = vmatprep.subr.mxu0 0.0
    %8365 = vmatpush2.msra.mxu0 0.0
    %8366 = vmatprep.subr.mxu0 0.0
    %8367 = vmatpush2.msra.mxu0 0.0
    %8368 = vmatprep.subr.mxu0 0.0
    %8369 = vmatpush2.msra.mxu0 0.0
    %8370 = vmatprep.subr.mxu0 0.0
    %8371 = vmatpush2.msra.mxu0 0.0
    %8372 = vmatprep.subr.mxu0 0.0
    %8373 = vmatpush2.msra.mxu0 0.0
    %8374 = vmatprep.subr.mxu0 0.0
    %8375 = vmatpush2.msra.mxu0 0.0
    %8376 = vmatprep.subr.mxu0 0.0
    %8377 = vmatpush2.msra.mxu0 0.0
    %8378 = vmatprep.subr.mxu0 0.0
    %8379 = vmatpush2.msra.mxu0 0.0
    %8380 = vmatprep.subr.mxu0 0.0
    %8381 = vmatpush2.msra.mxu0 0.0
    %8382 = vmatprep.subr.mxu0 0.0
    %8383 = vmatpush2.msra.mxu0 0.0
    %8384 = vmatprep.subr.mxu0 0.0
    %8385 = vmatpush2.msra.mxu0 0.0
    %8386 = vmatprep.subr.mxu0 0.0
    %8387 = vmatpush2.msra.mxu0 0.0
    %8388 = vmatprep.mubr.f32.mxu0 0.0
    %8389 = vmatmul.mubr.f32.gmra.mxu0 %v8040
    %v8390 = vpop.f32.mrf.mxu0
    %v8391 = vadd.f32 %v8321, %v8390
    %v8392 = vpop.f32.mrf.mxu0
    %8393 = vdwg.mxu0
    %v8394 = vadd.f32 %v8391, %v612
    %8395 = vmatprep.subr.mxu0 0.0
    %8396 = vmatpush1.msra.mxu0 0.0
    %8397 = vmatprep.subr.mxu0 0.0
    %8398 = vmatpush1.msra.mxu0 0.0
    %8399 = vmatprep.subr.mxu0 0.0
    %8400 = vmatpush1.msra.mxu0 0.0
    %8401 = vmatprep.subr.mxu0 0.0
    %8402 = vmatpush1.msra.mxu0 0.0
    %8403 = vmatprep.subr.mxu0 0.0
    %8404 = vmatpush1.msra.mxu0 0.0
    %8405 = vmatprep.subr.mxu0 0.0
    %8406 = vmatpush1.msra.mxu0 0.0
    %8407 = vmatprep.subr.mxu0 0.0
    %8408 = vmatpush1.msra.mxu0 0.0
    %8409 = vmatprep.subr.mxu0 0.0
    %8410 = vmatpush1.msra.mxu0 0.0
    %8411 = vmatprep.subr.mxu0 0.0
    %8412 = vmatpush1.msra.mxu0 0.0
    %8413 = vmatprep.subr.mxu0 0.0
    %8414 = vmatpush1.msra.mxu0 0.0
    %8415 = vmatprep.subr.mxu0 0.0
    %8416 = vmatpush1.msra.mxu0 0.0
    %8417 = vmatprep.subr.mxu0 0.0
    %8418 = vmatpush1.msra.mxu0 0.0
    %8419 = vmatprep.subr.mxu0 0.0
    %8420 = vmatpush1.msra.mxu0 %v107
    %8421 = vmatprep.subr.mxu0 0.0
    %8422 = vmatpush1.msra.mxu0 %v106
    %8423 = vmatprep.subr.mxu0 0.0
    %8424 = vmatpush1.msra.mxu0 %v105
    %8425 = vmatprep.subr.mxu0 0.0
    %8426 = vmatpush1.msra.mxu0 %v104
    %8427 = vmatprep.subr.mxu0 0.0
    %8428 = vmatpush2.msra.mxu0 0.0
    %8429 = vmatprep.subr.mxu0 0.0
    %8430 = vmatpush2.msra.mxu0 0.0
    %8431 = vmatprep.subr.mxu0 0.0
    %8432 = vmatpush2.msra.mxu0 0.0
    %8433 = vmatprep.subr.mxu0 0.0
    %8434 = vmatpush2.msra.mxu0 0.0
    %8435 = vmatprep.subr.mxu0 0.0
    %8436 = vmatpush2.msra.mxu0 0.0
    %8437 = vmatprep.subr.mxu0 0.0
    %8438 = vmatpush2.msra.mxu0 0.0
    %8439 = vmatprep.subr.mxu0 0.0
    %8440 = vmatpush2.msra.mxu0 0.0
    %8441 = vmatprep.subr.mxu0 0.0
    %8442 = vmatpush2.msra.mxu0 0.0
    %8443 = vmatprep.subr.mxu0 0.0
    %8444 = vmatpush2.msra.mxu0 0.0
    %8445 = vmatprep.subr.mxu0 0.0
    %8446 = vmatpush2.msra.mxu0 0.0
    %8447 = vmatprep.subr.mxu0 0.0
    %8448 = vmatpush2.msra.mxu0 0.0
    %8449 = vmatprep.subr.mxu0 0.0
    %8450 = vmatpush2.msra.mxu0 0.0
    %8451 = vmatprep.subr.mxu0 0.0
    %8452 = vmatpush2.msra.mxu0 0.0
    %8453 = vmatprep.subr.mxu0 0.0
    %8454 = vmatpush2.msra.mxu0 0.0
    %8455 = vmatprep.subr.mxu0 0.0
    %8456 = vmatpush2.msra.mxu0 0.0
    %8457 = vmatprep.subr.mxu0 0.0
    %8458 = vmatpush2.msra.mxu0 0.0
    %8459 = vmatprep.mubr.f32.mxu0 0.0
    %8460 = vmatmul.mubr.f32.gmra.mxu0 %v7966
    %v8461 = vpop.f32.mrf.mxu0
    %v8462 = vadd.f32 0.0, %v8461
    %v8463 = vpop.f32.mrf.mxu0
    %8464 = vdwg.mxu0
    %8465 = vmatprep.subr.mxu0 0.0
    %8466 = vmatpush1.msra.mxu0 0.0
    %8467 = vmatprep.subr.mxu0 0.0
    %8468 = vmatpush1.msra.mxu0 0.0
    %8469 = vmatprep.subr.mxu0 0.0
    %8470 = vmatpush1.msra.mxu0 0.0
    %8471 = vmatprep.subr.mxu0 0.0
    %8472 = vmatpush1.msra.mxu0 0.0
    %8473 = vmatprep.subr.mxu0 0.0
    %8474 = vmatpush1.msra.mxu0 0.0
    %8475 = vmatprep.subr.mxu0 0.0
    %8476 = vmatpush1.msra.mxu0 0.0
    %8477 = vmatprep.subr.mxu0 0.0
    %8478 = vmatpush1.msra.mxu0 0.0
    %8479 = vmatprep.subr.mxu0 0.0
    %8480 = vmatpush1.msra.mxu0 0.0
    %8481 = vmatprep.subr.mxu0 0.0
    %8482 = vmatpush1.msra.mxu0 0.0
    %8483 = vmatprep.subr.mxu0 0.0
    %8484 = vmatpush1.msra.mxu0 0.0
    %8485 = vmatprep.subr.mxu0 0.0
    %8486 = vmatpush1.msra.mxu0 0.0
    %8487 = vmatprep.subr.mxu0 0.0
    %8488 = vmatpush1.msra.mxu0 0.0
    %8489 = vmatprep.subr.mxu0 0.0
    %8490 = vmatpush1.msra.mxu0 0.0
    %8491 = vmatprep.subr.mxu0 0.0
    %8492 = vmatpush1.msra.mxu0 0.0
    %8493 = vmatprep.subr.mxu0 0.0
    %8494 = vmatpush1.msra.mxu0 0.0
    %8495 = vmatprep.subr.mxu0 0.0
    %8496 = vmatpush1.msra.mxu0 %v88
    %8497 = vmatprep.subr.mxu0 0.0
    %8498 = vmatpush2.msra.mxu0 0.0
    %8499 = vmatprep.subr.mxu0 0.0
    %8500 = vmatpush2.msra.mxu0 0.0
    %8501 = vmatprep.subr.mxu0 0.0
    %8502 = vmatpush2.msra.mxu0 0.0
    %8503 = vmatprep.subr.mxu0 0.0
    %8504 = vmatpush2.msra.mxu0 0.0
    %8505 = vmatprep.subr.mxu0 0.0
    %8506 = vmatpush2.msra.mxu0 0.0
    %8507 = vmatprep.subr.mxu0 0.0
    %8508 = vmatpush2.msra.mxu0 0.0
    %8509 = vmatprep.subr.mxu0 0.0
    %8510 = vmatpush2.msra.mxu0 0.0
    %8511 = vmatprep.subr.mxu0 0.0
    %8512 = vmatpush2.msra.mxu0 0.0
    %8513 = vmatprep.subr.mxu0 0.0
    %8514 = vmatpush2.msra.mxu0 0.0
    %8515 = vmatprep.subr.mxu0 0.0
    %8516 = vmatpush2.msra.mxu0 0.0
    %8517 = vmatprep.subr.mxu0 0.0
    %8518 = vmatpush2.msra.mxu0 0.0
    %8519 = vmatprep.subr.mxu0 0.0
    %8520 = vmatpush2.msra.mxu0 0.0
    %8521 = vmatprep.subr.mxu0 0.0
    %8522 = vmatpush2.msra.mxu0 0.0
    %8523 = vmatprep.subr.mxu0 0.0
    %8524 = vmatpush2.msra.mxu0 0.0
    %8525 = vmatprep.subr.mxu0 0.0
    %8526 = vmatpush2.msra.mxu0 0.0
    %8527 = vmatprep.subr.mxu0 0.0
    %8528 = vmatpush2.msra.mxu0 0.0
    %8529 = vmatprep.mubr.f32.mxu0 0.0
    %8530 = vmatmul.mubr.f32.gmra.mxu0 %v8040
    %v8531 = vpop.f32.mrf.mxu0
    %v8532 = vadd.f32 %v8462, %v8531
    %v8533 = vpop.f32.mrf.mxu0
    %8534 = vdwg.mxu0
    %v8535 = vadd.f32 %v8532, %v759
    %v8536 = vxor.u32 %v8112, 2147483648
    %v8537 = vmul.f32 %v8536, 1.442695
    %v8538 = vpow.pop %v8537
    %v8539 = vadd.f32 %v8538, 1.0
    %v8540 = vrcp.pop %v8539
    %v8541 = vmul.f32 1.0, %v8540
    %v8542 = vxor.u32 %v8253, 2147483648
    %v8543 = vmul.f32 %v8542, 1.442695
    %v8544 = vpow.pop %v8543
    %v8545 = vadd.f32 %v8544, 1.0
    %v8546 = vrcp.pop %v8545
    %v8547 = vmul.f32 1.0, %v8546
    %v8548 = vtanh.pop %v8394
    %v8549 = vxor.u32 %v8535, 2147483648
    %v8550 = vmul.f32 %v8549, 1.442695
    %v8551 = vpow.pop %v8550
    %v8552 = vadd.f32 %v8551, 1.0
    %v8553 = vrcp.pop %v8552
    %v8554 = vmul.f32 1.0, %v8553
    %v8555 = vmul.f32 %v8547, %v7364
    %v8556 = vmul.f32 %v8541, %v8548
    %v8557 = vadd.f32 %v8555, %v8556
    %v8558 = vtanh.pop %v8557
    %v8559 = vmul.f32 %v8554, %v8558
    %v8561 = vsel %vm166, %v7957, 0
    %8563 = vmatprep.subr.mxu0 0.0
    %8564 = vmatpush1.msra.mxu0 0.0
    %8565 = vmatprep.subr.mxu0 0.0
    %8566 = vmatpush1.msra.mxu0 0.0
    %8567 = vmatprep.subr.mxu0 0.0
    %8568 = vmatpush1.msra.mxu0 0.0
    %8569 = vmatprep.subr.mxu0 0.0
    %8570 = vmatpush1.msra.mxu0 0.0
    %8571 = vmatprep.subr.mxu0 0.0
    %8572 = vmatpush1.msra.mxu0 0.0
    %8573 = vmatprep.subr.mxu0 0.0
    %8574 = vmatpush1.msra.mxu0 0.0
    %8575 = vmatprep.subr.mxu0 0.0
    %8576 = vmatpush1.msra.mxu0 0.0
    %8577 = vmatprep.subr.mxu0 0.0
    %8578 = vmatpush1.msra.mxu0 0.0
    %8579 = vmatprep.subr.mxu0 0.0
    %8580 = vmatpush1.msra.mxu0 0.0
    %8581 = vmatprep.subr.mxu0 0.0
    %8582 = vmatpush1.msra.mxu0 0.0
    %8583 = vmatprep.subr.mxu0 0.0
    %8584 = vmatpush1.msra.mxu0 0.0
    %8585 = vmatprep.subr.mxu0 0.0
    %8586 = vmatpush1.msra.mxu0 0.0
    %8587 = vmatprep.subr.mxu0 0.0
    %8588 = vmatpush1.msra.mxu0 %v137
    %8589 = vmatprep.subr.mxu0 0.0
    %8590 = vmatpush1.msra.mxu0 %v136
    %8591 = vmatprep.subr.mxu0 0.0
    %8592 = vmatpush1.msra.mxu0 %v135
    %8593 = vmatprep.subr.mxu0 0.0
    %8594 = vmatpush1.msra.mxu0 %v134
    %8595 = vmatprep.subr.mxu0 0.0
    %8596 = vmatpush2.msra.mxu0 0.0
    %8597 = vmatprep.subr.mxu0 0.0
    %8598 = vmatpush2.msra.mxu0 0.0
    %8599 = vmatprep.subr.mxu0 0.0
    %8600 = vmatpush2.msra.mxu0 0.0
    %8601 = vmatprep.subr.mxu0 0.0
    %8602 = vmatpush2.msra.mxu0 0.0
    %8603 = vmatprep.subr.mxu0 0.0
    %8604 = vmatpush2.msra.mxu0 0.0
    %8605 = vmatprep.subr.mxu0 0.0
    %8606 = vmatpush2.msra.mxu0 0.0
    %8607 = vmatprep.subr.mxu0 0.0
    %8608 = vmatpush2.msra.mxu0 0.0
    %8609 = vmatprep.subr.mxu0 0.0
    %8610 = vmatpush2.msra.mxu0 0.0
    %8611 = vmatprep.subr.mxu0 0.0
    %8612 = vmatpush2.msra.mxu0 0.0
    %8613 = vmatprep.subr.mxu0 0.0
    %8614 = vmatpush2.msra.mxu0 0.0
    %8615 = vmatprep.subr.mxu0 0.0
    %8616 = vmatpush2.msra.mxu0 0.0
    %8617 = vmatprep.subr.mxu0 0.0
    %8618 = vmatpush2.msra.mxu0 0.0
    %8619 = vmatprep.subr.mxu0 0.0
    %8620 = vmatpush2.msra.mxu0 0.0
    %8621 = vmatprep.subr.mxu0 0.0
    %8622 = vmatpush2.msra.mxu0 0.0
    %8623 = vmatprep.subr.mxu0 0.0
    %8624 = vmatpush2.msra.mxu0 0.0
    %8625 = vmatprep.subr.mxu0 0.0
    %8626 = vmatpush2.msra.mxu0 0.0
    %8627 = vmatprep.mubr.f32.mxu0 0.0
    %8628 = vmatmul.mubr.f32.gmra.mxu0 %v8561
    %v8629 = vpop.f32.mrf.mxu0
    %v8630 = vadd.f32 0.0, %v8629
    %v8631 = vpop.f32.mrf.mxu0
    %8632 = vdwg.mxu0
    %8633 = vmatprep.subr.mxu0 0.0
    %8634 = vmatpush1.msra.mxu0 0.0
    %8635 = vmatprep.subr.mxu0 0.0
    %8636 = vmatpush1.msra.mxu0 0.0
    %8637 = vmatprep.subr.mxu0 0.0
    %8638 = vmatpush1.msra.mxu0 0.0
    %8639 = vmatprep.subr.mxu0 0.0
    %8640 = vmatpush1.msra.mxu0 0.0
    %8641 = vmatprep.subr.mxu0 0.0
    %8642 = vmatpush1.msra.mxu0 0.0
    %8643 = vmatprep.subr.mxu0 0.0
    %8644 = vmatpush1.msra.mxu0 0.0
    %8645 = vmatprep.subr.mxu0 0.0
    %8646 = vmatpush1.msra.mxu0 0.0
    %8647 = vmatprep.subr.mxu0 0.0
    %8648 = vmatpush1.msra.mxu0 0.0
    %8649 = vmatprep.subr.mxu0 0.0
    %8650 = vmatpush1.msra.mxu0 0.0
    %8651 = vmatprep.subr.mxu0 0.0
    %8652 = vmatpush1.msra.mxu0 0.0
    %8653 = vmatprep.subr.mxu0 0.0
    %8654 = vmatpush1.msra.mxu0 0.0
    %8655 = vmatprep.subr.mxu0 0.0
    %8656 = vmatpush1.msra.mxu0 0.0
    %8657 = vmatprep.subr.mxu0 0.0
    %8658 = vmatpush1.msra.mxu0 %v118
    %8659 = vmatprep.subr.mxu0 0.0
    %8660 = vmatpush1.msra.mxu0 %v117
    %8661 = vmatprep.subr.mxu0 0.0
    %8662 = vmatpush1.msra.mxu0 %v116
    %8663 = vmatprep.subr.mxu0 0.0
    %8664 = vmatpush1.msra.mxu0 %v115
    %8665 = vmatprep.subr.mxu0 0.0
    %8666 = vmatpush2.msra.mxu0 0.0
    %8667 = vmatprep.subr.mxu0 0.0
    %8668 = vmatpush2.msra.mxu0 0.0
    %8669 = vmatprep.subr.mxu0 0.0
    %8670 = vmatpush2.msra.mxu0 0.0
    %8671 = vmatprep.subr.mxu0 0.0
    %8672 = vmatpush2.msra.mxu0 0.0
    %8673 = vmatprep.subr.mxu0 0.0
    %8674 = vmatpush2.msra.mxu0 0.0
    %8675 = vmatprep.subr.mxu0 0.0
    %8676 = vmatpush2.msra.mxu0 0.0
    %8677 = vmatprep.subr.mxu0 0.0
    %8678 = vmatpush2.msra.mxu0 0.0
    %8679 = vmatprep.subr.mxu0 0.0
    %8680 = vmatpush2.msra.mxu0 0.0
    %8681 = vmatprep.subr.mxu0 0.0
    %8682 = vmatpush2.msra.mxu0 0.0
    %8683 = vmatprep.subr.mxu0 0.0
    %8684 = vmatpush2.msra.mxu0 0.0
    %8685 = vmatprep.subr.mxu0 0.0
    %8686 = vmatpush2.msra.mxu0 0.0
    %8687 = vmatprep.subr.mxu0 0.0
    %8688 = vmatpush2.msra.mxu0 0.0
    %8689 = vmatprep.subr.mxu0 0.0
    %8690 = vmatpush2.msra.mxu0 0.0
    %8691 = vmatprep.subr.mxu0 0.0
    %8692 = vmatpush2.msra.mxu0 0.0
    %8693 = vmatprep.subr.mxu0 0.0
    %8694 = vmatpush2.msra.mxu0 0.0
    %8695 = vmatprep.subr.mxu0 0.0
    %8696 = vmatpush2.msra.mxu0 0.0
    %8697 = vmatprep.mubr.f32.mxu0 0.0
    %8698 = vmatmul.mubr.f32.gmra.mxu0 %v7966
    %v8699 = vpop.f32.mrf.mxu0
    %v8700 = vadd.f32 %v8630, %v8699
    %v8701 = vpop.f32.mrf.mxu0
    %8702 = vdwg.mxu0
    %v8703 = vadd.f32 %v8700, %v1525
    %8704 = vmatprep.subr.mxu0 0.0
    %8705 = vmatpush1.msra.mxu0 0.0
    %8706 = vmatprep.subr.mxu0 0.0
    %8707 = vmatpush1.msra.mxu0 0.0
    %8708 = vmatprep.subr.mxu0 0.0
    %8709 = vmatpush1.msra.mxu0 0.0
    %8710 = vmatprep.subr.mxu0 0.0
    %8711 = vmatpush1.msra.mxu0 0.0
    %8712 = vmatprep.subr.mxu0 0.0
    %8713 = vmatpush1.msra.mxu0 0.0
    %8714 = vmatprep.subr.mxu0 0.0
    %8715 = vmatpush1.msra.mxu0 0.0
    %8716 = vmatprep.subr.mxu0 0.0
    %8717 = vmatpush1.msra.mxu0 0.0
    %8718 = vmatprep.subr.mxu0 0.0
    %8719 = vmatpush1.msra.mxu0 0.0
    %8720 = vmatprep.subr.mxu0 0.0
    %8721 = vmatpush1.msra.mxu0 0.0
    %8722 = vmatprep.subr.mxu0 0.0
    %8723 = vmatpush1.msra.mxu0 0.0
    %8724 = vmatprep.subr.mxu0 0.0
    %8725 = vmatpush1.msra.mxu0 0.0
    %8726 = vmatprep.subr.mxu0 0.0
    %8727 = vmatpush1.msra.mxu0 0.0
    %8728 = vmatprep.subr.mxu0 0.0
    %8729 = vmatpush1.msra.mxu0 %v142
    %8730 = vmatprep.subr.mxu0 0.0
    %8731 = vmatpush1.msra.mxu0 %v141
    %8732 = vmatprep.subr.mxu0 0.0
    %8733 = vmatpush1.msra.mxu0 %v140
    %8734 = vmatprep.subr.mxu0 0.0
    %8735 = vmatpush1.msra.mxu0 %v139
    %8736 = vmatprep.subr.mxu0 0.0
    %8737 = vmatpush2.msra.mxu0 0.0
    %8738 = vmatprep.subr.mxu0 0.0
    %8739 = vmatpush2.msra.mxu0 0.0
    %8740 = vmatprep.subr.mxu0 0.0
    %8741 = vmatpush2.msra.mxu0 0.0
    %8742 = vmatprep.subr.mxu0 0.0
    %8743 = vmatpush2.msra.mxu0 0.0
    %8744 = vmatprep.subr.mxu0 0.0
    %8745 = vmatpush2.msra.mxu0 0.0
    %8746 = vmatprep.subr.mxu0 0.0
    %8747 = vmatpush2.msra.mxu0 0.0
    %8748 = vmatprep.subr.mxu0 0.0
    %8749 = vmatpush2.msra.mxu0 0.0
    %8750 = vmatprep.subr.mxu0 0.0
    %8751 = vmatpush2.msra.mxu0 0.0
    %8752 = vmatprep.subr.mxu0 0.0
    %8753 = vmatpush2.msra.mxu0 0.0
    %8754 = vmatprep.subr.mxu0 0.0
    %8755 = vmatpush2.msra.mxu0 0.0
    %8756 = vmatprep.subr.mxu0 0.0
    %8757 = vmatpush2.msra.mxu0 0.0
    %8758 = vmatprep.subr.mxu0 0.0
    %8759 = vmatpush2.msra.mxu0 0.0
    %8760 = vmatprep.subr.mxu0 0.0
    %8761 = vmatpush2.msra.mxu0 0.0
    %8762 = vmatprep.subr.mxu0 0.0
    %8763 = vmatpush2.msra.mxu0 0.0
    %8764 = vmatprep.subr.mxu0 0.0
    %8765 = vmatpush2.msra.mxu0 0.0
    %8766 = vmatprep.subr.mxu0 0.0
    %8767 = vmatpush2.msra.mxu0 0.0
    %8768 = vmatprep.mubr.f32.mxu0 0.0
    %8769 = vmatmul.mubr.f32.gmra.mxu0 %v8561
    %v8770 = vpop.f32.mrf.mxu0
    %v8771 = vadd.f32 0.0, %v8770
    %v8772 = vpop.f32.mrf.mxu0
    %8773 = vdwg.mxu0
    %8774 = vmatprep.subr.mxu0 0.0
    %8775 = vmatpush1.msra.mxu0 0.0
    %8776 = vmatprep.subr.mxu0 0.0
    %8777 = vmatpush1.msra.mxu0 0.0
    %8778 = vmatprep.subr.mxu0 0.0
    %8779 = vmatpush1.msra.mxu0 0.0
    %8780 = vmatprep.subr.mxu0 0.0
    %8781 = vmatpush1.msra.mxu0 0.0
    %8782 = vmatprep.subr.mxu0 0.0
    %8783 = vmatpush1.msra.mxu0 0.0
    %8784 = vmatprep.subr.mxu0 0.0
    %8785 = vmatpush1.msra.mxu0 0.0
    %8786 = vmatprep.subr.mxu0 0.0
    %8787 = vmatpush1.msra.mxu0 0.0
    %8788 = vmatprep.subr.mxu0 0.0
    %8789 = vmatpush1.msra.mxu0 0.0
    %8790 = vmatprep.subr.mxu0 0.0
    %8791 = vmatpush1.msra.mxu0 0.0
    %8792 = vmatprep.subr.mxu0 0.0
    %8793 = vmatpush1.msra.mxu0 0.0
    %8794 = vmatprep.subr.mxu0 0.0
    %8795 = vmatpush1.msra.mxu0 0.0
    %8796 = vmatprep.subr.mxu0 0.0
    %8797 = vmatpush1.msra.mxu0 0.0
    %8798 = vmatprep.subr.mxu0 0.0
    %8799 = vmatpush1.msra.mxu0 %v123
    %8800 = vmatprep.subr.mxu0 0.0
    %8801 = vmatpush1.msra.mxu0 %v122
    %8802 = vmatprep.subr.mxu0 0.0
    %8803 = vmatpush1.msra.mxu0 %v121
    %8804 = vmatprep.subr.mxu0 0.0
    %8805 = vmatpush1.msra.mxu0 %v120
    %8806 = vmatprep.subr.mxu0 0.0
    %8807 = vmatpush2.msra.mxu0 0.0
    %8808 = vmatprep.subr.mxu0 0.0
    %8809 = vmatpush2.msra.mxu0 0.0
    %8810 = vmatprep.subr.mxu0 0.0
    %8811 = vmatpush2.msra.mxu0 0.0
    %8812 = vmatprep.subr.mxu0 0.0
    %8813 = vmatpush2.msra.mxu0 0.0
    %8814 = vmatprep.subr.mxu0 0.0
    %8815 = vmatpush2.msra.mxu0 0.0
    %8816 = vmatprep.subr.mxu0 0.0
    %8817 = vmatpush2.msra.mxu0 0.0
    %8818 = vmatprep.subr.mxu0 0.0
    %8819 = vmatpush2.msra.mxu0 0.0
    %8820 = vmatprep.subr.mxu0 0.0
    %8821 = vmatpush2.msra.mxu0 0.0
    %8822 = vmatprep.subr.mxu0 0.0
    %8823 = vmatpush2.msra.mxu0 0.0
    %8824 = vmatprep.subr.mxu0 0.0
    %8825 = vmatpush2.msra.mxu0 0.0
    %8826 = vmatprep.subr.mxu0 0.0
    %8827 = vmatpush2.msra.mxu0 0.0
    %8828 = vmatprep.subr.mxu0 0.0
    %8829 = vmatpush2.msra.mxu0 0.0
    %8830 = vmatprep.subr.mxu0 0.0
    %8831 = vmatpush2.msra.mxu0 0.0
    %8832 = vmatprep.subr.mxu0 0.0
    %8833 = vmatpush2.msra.mxu0 0.0
    %8834 = vmatprep.subr.mxu0 0.0
    %8835 = vmatpush2.msra.mxu0 0.0
    %8836 = vmatprep.subr.mxu0 0.0
    %8837 = vmatpush2.msra.mxu0 0.0
    %8838 = vmatprep.mubr.f32.mxu0 0.0
    %8839 = vmatmul.mubr.f32.gmra.mxu0 %v7966
    %v8840 = vpop.f32.mrf.mxu0
    %v8841 = vadd.f32 %v8771, %v8840
    %v8842 = vpop.f32.mrf.mxu0
    %8843 = vdwg.mxu0
    %v8844 = vadd.f32 %v8841, %v1672
    %8845 = vmatprep.subr.mxu0 0.0
    %8846 = vmatpush1.msra.mxu0 0.0
    %8847 = vmatprep.subr.mxu0 0.0
    %8848 = vmatpush1.msra.mxu0 0.0
    %8849 = vmatprep.subr.mxu0 0.0
    %8850 = vmatpush1.msra.mxu0 0.0
    %8851 = vmatprep.subr.mxu0 0.0
    %8852 = vmatpush1.msra.mxu0 0.0
    %8853 = vmatprep.subr.mxu0 0.0
    %8854 = vmatpush1.msra.mxu0 0.0
    %8855 = vmatprep.subr.mxu0 0.0
    %8856 = vmatpush1.msra.mxu0 0.0
    %8857 = vmatprep.subr.mxu0 0.0
    %8858 = vmatpush1.msra.mxu0 0.0
    %8859 = vmatprep.subr.mxu0 0.0
    %8860 = vmatpush1.msra.mxu0 0.0
    %8861 = vmatprep.subr.mxu0 0.0
    %8862 = vmatpush1.msra.mxu0 0.0
    %8863 = vmatprep.subr.mxu0 0.0
    %8864 = vmatpush1.msra.mxu0 0.0
    %8865 = vmatprep.subr.mxu0 0.0
    %8866 = vmatpush1.msra.mxu0 0.0
    %8867 = vmatprep.subr.mxu0 0.0
    %8868 = vmatpush1.msra.mxu0 0.0
    %8869 = vmatprep.subr.mxu0 0.0
    %8870 = vmatpush1.msra.mxu0 %v147
    %8871 = vmatprep.subr.mxu0 0.0
    %8872 = vmatpush1.msra.mxu0 %v146
    %8873 = vmatprep.subr.mxu0 0.0
    %8874 = vmatpush1.msra.mxu0 %v145
    %8875 = vmatprep.subr.mxu0 0.0
    %8876 = vmatpush1.msra.mxu0 %v144
    %8877 = vmatprep.subr.mxu0 0.0
    %8878 = vmatpush2.msra.mxu0 0.0
    %8879 = vmatprep.subr.mxu0 0.0
    %8880 = vmatpush2.msra.mxu0 0.0
    %8881 = vmatprep.subr.mxu0 0.0
    %8882 = vmatpush2.msra.mxu0 0.0
    %8883 = vmatprep.subr.mxu0 0.0
    %8884 = vmatpush2.msra.mxu0 0.0
    %8885 = vmatprep.subr.mxu0 0.0
    %8886 = vmatpush2.msra.mxu0 0.0
    %8887 = vmatprep.subr.mxu0 0.0
    %8888 = vmatpush2.msra.mxu0 0.0
    %8889 = vmatprep.subr.mxu0 0.0
    %8890 = vmatpush2.msra.mxu0 0.0
    %8891 = vmatprep.subr.mxu0 0.0
    %8892 = vmatpush2.msra.mxu0 0.0
    %8893 = vmatprep.subr.mxu0 0.0
    %8894 = vmatpush2.msra.mxu0 0.0
    %8895 = vmatprep.subr.mxu0 0.0
    %8896 = vmatpush2.msra.mxu0 0.0
    %8897 = vmatprep.subr.mxu0 0.0
    %8898 = vmatpush2.msra.mxu0 0.0
    %8899 = vmatprep.subr.mxu0 0.0
    %8900 = vmatpush2.msra.mxu0 0.0
    %8901 = vmatprep.subr.mxu0 0.0
    %8902 = vmatpush2.msra.mxu0 0.0
    %8903 = vmatprep.subr.mxu0 0.0
    %8904 = vmatpush2.msra.mxu0 0.0
    %8905 = vmatprep.subr.mxu0 0.0
    %8906 = vmatpush2.msra.mxu0 0.0
    %8907 = vmatprep.subr.mxu0 0.0
    %8908 = vmatpush2.msra.mxu0 0.0
    %8909 = vmatprep.mubr.f32.mxu0 0.0
    %8910 = vmatmul.mubr.f32.gmra.mxu0 %v8561
    %v8911 = vpop.f32.mrf.mxu0
    %v8912 = vadd.f32 0.0, %v8911
    %v8913 = vpop.f32.mrf.mxu0
    %8914 = vdwg.mxu0
    %8915 = vmatprep.subr.mxu0 0.0
    %8916 = vmatpush1.msra.mxu0 0.0
    %8917 = vmatprep.subr.mxu0 0.0
    %8918 = vmatpush1.msra.mxu0 0.0
    %8919 = vmatprep.subr.mxu0 0.0
    %8920 = vmatpush1.msra.mxu0 0.0
    %8921 = vmatprep.subr.mxu0 0.0
    %8922 = vmatpush1.msra.mxu0 0.0
    %8923 = vmatprep.subr.mxu0 0.0
    %8924 = vmatpush1.msra.mxu0 0.0
    %8925 = vmatprep.subr.mxu0 0.0
    %8926 = vmatpush1.msra.mxu0 0.0
    %8927 = vmatprep.subr.mxu0 0.0
    %8928 = vmatpush1.msra.mxu0 0.0
    %8929 = vmatprep.subr.mxu0 0.0
    %8930 = vmatpush1.msra.mxu0 0.0
    %8931 = vmatprep.subr.mxu0 0.0
    %8932 = vmatpush1.msra.mxu0 0.0
    %8933 = vmatprep.subr.mxu0 0.0
    %8934 = vmatpush1.msra.mxu0 0.0
    %8935 = vmatprep.subr.mxu0 0.0
    %8936 = vmatpush1.msra.mxu0 0.0
    %8937 = vmatprep.subr.mxu0 0.0
    %8938 = vmatpush1.msra.mxu0 0.0
    %8939 = vmatprep.subr.mxu0 0.0
    %8940 = vmatpush1.msra.mxu0 %v128
    %8941 = vmatprep.subr.mxu0 0.0
    %8942 = vmatpush1.msra.mxu0 %v127
    %8943 = vmatprep.subr.mxu0 0.0
    %8944 = vmatpush1.msra.mxu0 %v126
    %8945 = vmatprep.subr.mxu0 0.0
    %8946 = vmatpush1.msra.mxu0 %v125
    %8947 = vmatprep.subr.mxu0 0.0
    %8948 = vmatpush2.msra.mxu0 0.0
    %8949 = vmatprep.subr.mxu0 0.0
    %8950 = vmatpush2.msra.mxu0 0.0
    %8951 = vmatprep.subr.mxu0 0.0
    %8952 = vmatpush2.msra.mxu0 0.0
    %8953 = vmatprep.subr.mxu0 0.0
    %8954 = vmatpush2.msra.mxu0 0.0
    %8955 = vmatprep.subr.mxu0 0.0
    %8956 = vmatpush2.msra.mxu0 0.0
    %8957 = vmatprep.subr.mxu0 0.0
    %8958 = vmatpush2.msra.mxu0 0.0
    %8959 = vmatprep.subr.mxu0 0.0
    %8960 = vmatpush2.msra.mxu0 0.0
    %8961 = vmatprep.subr.mxu0 0.0
    %8962 = vmatpush2.msra.mxu0 0.0
    %8963 = vmatprep.subr.mxu0 0.0
    %8964 = vmatpush2.msra.mxu0 0.0
    %8965 = vmatprep.subr.mxu0 0.0
    %8966 = vmatpush2.msra.mxu0 0.0
    %8967 = vmatprep.subr.mxu0 0.0
    %8968 = vmatpush2.msra.mxu0 0.0
    %8969 = vmatprep.subr.mxu0 0.0
    %8970 = vmatpush2.msra.mxu0 0.0
    %8971 = vmatprep.subr.mxu0 0.0
    %8972 = vmatpush2.msra.mxu0 0.0
    %8973 = vmatprep.subr.mxu0 0.0
    %8974 = vmatpush2.msra.mxu0 0.0
    %8975 = vmatprep.subr.mxu0 0.0
    %8976 = vmatpush2.msra.mxu0 0.0
    %8977 = vmatprep.subr.mxu0 0.0
    %8978 = vmatpush2.msra.mxu0 0.0
    %8979 = vmatprep.mubr.f32.mxu0 0.0
    %8980 = vmatmul.mubr.f32.gmra.mxu0 %v7966
    %v8981 = vpop.f32.mrf.mxu0
    %v8982 = vadd.f32 %v8912, %v8981
    %v8983 = vpop.f32.mrf.mxu0
    %8984 = vdwg.mxu0
    %v8985 = vadd.f32 %v8982, %v1819
    %8986 = vmatprep.subr.mxu0 0.0
    %8987 = vmatpush1.msra.mxu0 0.0
    %8988 = vmatprep.subr.mxu0 0.0
    %8989 = vmatpush1.msra.mxu0 0.0
    %8990 = vmatprep.subr.mxu0 0.0
    %8991 = vmatpush1.msra.mxu0 0.0
    %8992 = vmatprep.subr.mxu0 0.0
    %8993 = vmatpush1.msra.mxu0 0.0
    %8994 = vmatprep.subr.mxu0 0.0
    %8995 = vmatpush1.msra.mxu0 0.0
    %8996 = vmatprep.subr.mxu0 0.0
    %8997 = vmatpush1.msra.mxu0 0.0
    %8998 = vmatprep.subr.mxu0 0.0
    %8999 = vmatpush1.msra.mxu0 0.0
    %9000 = vmatprep.subr.mxu0 0.0
    %9001 = vmatpush1.msra.mxu0 0.0
    %9002 = vmatprep.subr.mxu0 0.0
    %9003 = vmatpush1.msra.mxu0 0.0
    %9004 = vmatprep.subr.mxu0 0.0
    %9005 = vmatpush1.msra.mxu0 0.0
    %9006 = vmatprep.subr.mxu0 0.0
    %9007 = vmatpush1.msra.mxu0 0.0
    %9008 = vmatprep.subr.mxu0 0.0
    %9009 = vmatpush1.msra.mxu0 0.0
    %9010 = vmatprep.subr.mxu0 0.0
    %9011 = vmatpush1.msra.mxu0 %v152
    %9012 = vmatprep.subr.mxu0 0.0
    %9013 = vmatpush1.msra.mxu0 %v151
    %9014 = vmatprep.subr.mxu0 0.0
    %9015 = vmatpush1.msra.mxu0 %v150
    %9016 = vmatprep.subr.mxu0 0.0
    %9017 = vmatpush1.msra.mxu0 %v149
    %9018 = vmatprep.subr.mxu0 0.0
    %9019 = vmatpush2.msra.mxu0 0.0
    %9020 = vmatprep.subr.mxu0 0.0
    %9021 = vmatpush2.msra.mxu0 0.0
    %9022 = vmatprep.subr.mxu0 0.0
    %9023 = vmatpush2.msra.mxu0 0.0
    %9024 = vmatprep.subr.mxu0 0.0
    %9025 = vmatpush2.msra.mxu0 0.0
    %9026 = vmatprep.subr.mxu0 0.0
    %9027 = vmatpush2.msra.mxu0 0.0
    %9028 = vmatprep.subr.mxu0 0.0
    %9029 = vmatpush2.msra.mxu0 0.0
    %9030 = vmatprep.subr.mxu0 0.0
    %9031 = vmatpush2.msra.mxu0 0.0
    %9032 = vmatprep.subr.mxu0 0.0
    %9033 = vmatpush2.msra.mxu0 0.0
    %9034 = vmatprep.subr.mxu0 0.0
    %9035 = vmatpush2.msra.mxu0 0.0
    %9036 = vmatprep.subr.mxu0 0.0
    %9037 = vmatpush2.msra.mxu0 0.0
    %9038 = vmatprep.subr.mxu0 0.0
    %9039 = vmatpush2.msra.mxu0 0.0
    %9040 = vmatprep.subr.mxu0 0.0
    %9041 = vmatpush2.msra.mxu0 0.0
    %9042 = vmatprep.subr.mxu0 0.0
    %9043 = vmatpush2.msra.mxu0 0.0
    %9044 = vmatprep.subr.mxu0 0.0
    %9045 = vmatpush2.msra.mxu0 0.0
    %9046 = vmatprep.subr.mxu0 0.0
    %9047 = vmatpush2.msra.mxu0 0.0
    %9048 = vmatprep.subr.mxu0 0.0
    %9049 = vmatpush2.msra.mxu0 0.0
    %9050 = vmatprep.mubr.f32.mxu0 0.0
    %9051 = vmatmul.mubr.f32.gmra.mxu0 %v8561
    %v9052 = vpop.f32.mrf.mxu0
    %v9053 = vadd.f32 0.0, %v9052
    %v9054 = vpop.f32.mrf.mxu0
    %9055 = vdwg.mxu0
    %9056 = vmatprep.subr.mxu0 0.0
    %9057 = vmatpush1.msra.mxu0 0.0
    %9058 = vmatprep.subr.mxu0 0.0
    %9059 = vmatpush1.msra.mxu0 0.0
    %9060 = vmatprep.subr.mxu0 0.0
    %9061 = vmatpush1.msra.mxu0 0.0
    %9062 = vmatprep.subr.mxu0 0.0
    %9063 = vmatpush1.msra.mxu0 0.0
    %9064 = vmatprep.subr.mxu0 0.0
    %9065 = vmatpush1.msra.mxu0 0.0
    %9066 = vmatprep.subr.mxu0 0.0
    %9067 = vmatpush1.msra.mxu0 0.0
    %9068 = vmatprep.subr.mxu0 0.0
    %9069 = vmatpush1.msra.mxu0 0.0
    %9070 = vmatprep.subr.mxu0 0.0
    %9071 = vmatpush1.msra.mxu0 0.0
    %9072 = vmatprep.subr.mxu0 0.0
    %9073 = vmatpush1.msra.mxu0 0.0
    %9074 = vmatprep.subr.mxu0 0.0
    %9075 = vmatpush1.msra.mxu0 0.0
    %9076 = vmatprep.subr.mxu0 0.0
    %9077 = vmatpush1.msra.mxu0 0.0
    %9078 = vmatprep.subr.mxu0 0.0
    %9079 = vmatpush1.msra.mxu0 0.0
    %9080 = vmatprep.subr.mxu0 0.0
    %9081 = vmatpush1.msra.mxu0 %v133
    %9082 = vmatprep.subr.mxu0 0.0
    %9083 = vmatpush1.msra.mxu0 %v132
    %9084 = vmatprep.subr.mxu0 0.0
    %9085 = vmatpush1.msra.mxu0 %v131
    %9086 = vmatprep.subr.mxu0 0.0
    %9087 = vmatpush1.msra.mxu0 %v130
    %9088 = vmatprep.subr.mxu0 0.0
    %9089 = vmatpush2.msra.mxu0 0.0
    %9090 = vmatprep.subr.mxu0 0.0
    %9091 = vmatpush2.msra.mxu0 0.0
    %9092 = vmatprep.subr.mxu0 0.0
    %9093 = vmatpush2.msra.mxu0 0.0
    %9094 = vmatprep.subr.mxu0 0.0
    %9095 = vmatpush2.msra.mxu0 0.0
    %9096 = vmatprep.subr.mxu0 0.0
    %9097 = vmatpush2.msra.mxu0 0.0
    %9098 = vmatprep.subr.mxu0 0.0
    %9099 = vmatpush2.msra.mxu0 0.0
    %9100 = vmatprep.subr.mxu0 0.0
    %9101 = vmatpush2.msra.mxu0 0.0
    %9102 = vmatprep.subr.mxu0 0.0
    %9103 = vmatpush2.msra.mxu0 0.0
    %9104 = vmatprep.subr.mxu0 0.0
    %9105 = vmatpush2.msra.mxu0 0.0
    %9106 = vmatprep.subr.mxu0 0.0
    %9107 = vmatpush2.msra.mxu0 0.0
    %9108 = vmatprep.subr.mxu0 0.0
    %9109 = vmatpush2.msra.mxu0 0.0
    %9110 = vmatprep.subr.mxu0 0.0
    %9111 = vmatpush2.msra.mxu0 0.0
    %9112 = vmatprep.subr.mxu0 0.0
    %9113 = vmatpush2.msra.mxu0 0.0
    %9114 = vmatprep.subr.mxu0 0.0
    %9115 = vmatpush2.msra.mxu0 0.0
    %9116 = vmatprep.subr.mxu0 0.0
    %9117 = vmatpush2.msra.mxu0 0.0
    %9118 = vmatprep.subr.mxu0 0.0
    %9119 = vmatpush2.msra.mxu0 0.0
    %9120 = vmatprep.mubr.f32.mxu0 0.0
    %9121 = vmatmul.mubr.f32.gmra.mxu0 %v7966
    %v9122 = vpop.f32.mrf.mxu0
    %v9123 = vadd.f32 %v9053, %v9122
    %v9124 = vpop.f32.mrf.mxu0
    %9125 = vdwg.mxu0
    %v9126 = vadd.f32 %v9123, %v1966
    %v9127 = vxor.u32 %v8703, 2147483648
    %v9128 = vmul.f32 %v9127, 1.442695
    %v9129 = vpow.pop %v9128
    %v9130 = vadd.f32 %v9129, 1.0
    %v9131 = vrcp.pop %v9130
    %v9132 = vmul.f32 1.0, %v9131
    %v9133 = vxor.u32 %v8844, 2147483648
    %v9134 = vmul.f32 %v9133, 1.442695
    %v9135 = vpow.pop %v9134
    %v9136 = vadd.f32 %v9135, 1.0
    %v9137 = vrcp.pop %v9136
    %v9138 = vmul.f32 1.0, %v9137
    %v9139 = vtanh.pop %v8985
    %v9140 = vxor.u32 %v9126, 2147483648
    %v9141 = vmul.f32 %v9140, 1.442695
    %v9142 = vpow.pop %v9141
    %v9143 = vadd.f32 %v9142, 1.0
    %v9144 = vrcp.pop %v9143
    %v9145 = vmul.f32 1.0, %v9144
    %v9146 = vmul.f32 %v9138, %v7955
    %v9147 = vmul.f32 %v9132, %v9139
    %v9148 = vadd.f32 %v9146, %v9147
    %v9149 = vtanh.pop %v9148
    %v9150 = vmul.f32 %v9145, %v9149
    %vm9151 = vcmp.eq.s32.totalorder %v165, 6
    %v9152 = vsel %vm9151, 1, 0
    %9153 = vset.pattern.permute.xlu0 0
    %9154 = vperm.xlu0 %9153, %v9152
    %v9155 = vpop.permute.xlu0 %9154
    %vm9156 = vcmp.eq.s32.totalorder %v9155, 1
    %v9157 = vsel %vm9156, %v9150, %v7964
    %v9159 = vsel %vm166, %v9150, 0
    %9161 = vmatprep.subr.mxu0 0.0
    %9162 = vmatpush1.msra.mxu0 0.0
    %9163 = vmatprep.subr.mxu0 0.0
    %9164 = vmatpush1.msra.mxu0 0.0
    %9165 = vmatprep.subr.mxu0 0.0
    %9166 = vmatpush1.msra.mxu0 0.0
    %9167 = vmatprep.subr.mxu0 0.0
    %9168 = vmatpush1.msra.mxu0 0.0
    %9169 = vmatprep.subr.mxu0 0.0
    %9170 = vmatpush1.msra.mxu0 0.0
    %9171 = vmatprep.subr.mxu0 0.0
    %9172 = vmatpush1.msra.mxu0 0.0
    %9173 = vmatprep.subr.mxu0 0.0
    %9174 = vmatpush1.msra.mxu0 0.0
    %9175 = vmatprep.subr.mxu0 0.0
    %9176 = vmatpush1.msra.mxu0 0.0
    %9177 = vmatprep.subr.mxu0 0.0
    %9178 = vmatpush1.msra.mxu0 0.0
    %9179 = vmatprep.subr.mxu0 0.0
    %9180 = vmatpush1.msra.mxu0 0.0
    %9181 = vmatprep.subr.mxu0 0.0
    %9182 = vmatpush1.msra.mxu0 0.0
    %9183 = vmatprep.subr.mxu0 0.0
    %9184 = vmatpush1.msra.mxu0 0.0
    %9185 = vmatprep.subr.mxu0 0.0
    %9186 = vmatpush1.msra.mxu0 %v137
    %9187 = vmatprep.subr.mxu0 0.0
    %9188 = vmatpush1.msra.mxu0 %v136
    %9189 = vmatprep.subr.mxu0 0.0
    %9190 = vmatpush1.msra.mxu0 %v135
    %9191 = vmatprep.subr.mxu0 0.0
    %9192 = vmatpush1.msra.mxu0 %v134
    %9193 = vmatprep.subr.mxu0 0.0
    %9194 = vmatpush2.msra.mxu0 0.0
    %9195 = vmatprep.subr.mxu0 0.0
    %9196 = vmatpush2.msra.mxu0 0.0
    %9197 = vmatprep.subr.mxu0 0.0
    %9198 = vmatpush2.msra.mxu0 0.0
    %9199 = vmatprep.subr.mxu0 0.0
    %9200 = vmatpush2.msra.mxu0 0.0
    %9201 = vmatprep.subr.mxu0 0.0
    %9202 = vmatpush2.msra.mxu0 0.0
    %9203 = vmatprep.subr.mxu0 0.0
    %9204 = vmatpush2.msra.mxu0 0.0
    %9205 = vmatprep.subr.mxu0 0.0
    %9206 = vmatpush2.msra.mxu0 0.0
    %9207 = vmatprep.subr.mxu0 0.0
    %9208 = vmatpush2.msra.mxu0 0.0
    %9209 = vmatprep.subr.mxu0 0.0
    %9210 = vmatpush2.msra.mxu0 0.0
    %9211 = vmatprep.subr.mxu0 0.0
    %9212 = vmatpush2.msra.mxu0 0.0
    %9213 = vmatprep.subr.mxu0 0.0
    %9214 = vmatpush2.msra.mxu0 0.0
    %9215 = vmatprep.subr.mxu0 0.0
    %9216 = vmatpush2.msra.mxu0 0.0
    %9217 = vmatprep.subr.mxu0 0.0
    %9218 = vmatpush2.msra.mxu0 0.0
    %9219 = vmatprep.subr.mxu0 0.0
    %9220 = vmatpush2.msra.mxu0 0.0
    %9221 = vmatprep.subr.mxu0 0.0
    %9222 = vmatpush2.msra.mxu0 0.0
    %9223 = vmatprep.subr.mxu0 0.0
    %9224 = vmatpush2.msra.mxu0 0.0
    %9225 = vmatprep.mubr.f32.mxu0 0.0
    %9226 = vmatmul.mubr.f32.gmra.mxu0 %v9159
    %v9227 = vpop.f32.mrf.mxu0
    %v9228 = vadd.f32 0.0, %v9227
    %v9229 = vpop.f32.mrf.mxu0
    %9230 = vdwg.mxu0
    %v9232 = vsel %vm166, %v8559, 0
    %9234 = vmatprep.subr.mxu0 0.0
    %9235 = vmatpush1.msra.mxu0 0.0
    %9236 = vmatprep.subr.mxu0 0.0
    %9237 = vmatpush1.msra.mxu0 0.0
    %9238 = vmatprep.subr.mxu0 0.0
    %9239 = vmatpush1.msra.mxu0 0.0
    %9240 = vmatprep.subr.mxu0 0.0
    %9241 = vmatpush1.msra.mxu0 0.0
    %9242 = vmatprep.subr.mxu0 0.0
    %9243 = vmatpush1.msra.mxu0 0.0
    %9244 = vmatprep.subr.mxu0 0.0
    %9245 = vmatpush1.msra.mxu0 0.0
    %9246 = vmatprep.subr.mxu0 0.0
    %9247 = vmatpush1.msra.mxu0 0.0
    %9248 = vmatprep.subr.mxu0 0.0
    %9249 = vmatpush1.msra.mxu0 0.0
    %9250 = vmatprep.subr.mxu0 0.0
    %9251 = vmatpush1.msra.mxu0 0.0
    %9252 = vmatprep.subr.mxu0 0.0
    %9253 = vmatpush1.msra.mxu0 0.0
    %9254 = vmatprep.subr.mxu0 0.0
    %9255 = vmatpush1.msra.mxu0 0.0
    %9256 = vmatprep.subr.mxu0 0.0
    %9257 = vmatpush1.msra.mxu0 0.0
    %9258 = vmatprep.subr.mxu0 0.0
    %9259 = vmatpush1.msra.mxu0 %v118
    %9260 = vmatprep.subr.mxu0 0.0
    %9261 = vmatpush1.msra.mxu0 %v117
    %9262 = vmatprep.subr.mxu0 0.0
    %9263 = vmatpush1.msra.mxu0 %v116
    %9264 = vmatprep.subr.mxu0 0.0
    %9265 = vmatpush1.msra.mxu0 %v115
    %9266 = vmatprep.subr.mxu0 0.0
    %9267 = vmatpush2.msra.mxu0 0.0
    %9268 = vmatprep.subr.mxu0 0.0
    %9269 = vmatpush2.msra.mxu0 0.0
    %9270 = vmatprep.subr.mxu0 0.0
    %9271 = vmatpush2.msra.mxu0 0.0
    %9272 = vmatprep.subr.mxu0 0.0
    %9273 = vmatpush2.msra.mxu0 0.0
    %9274 = vmatprep.subr.mxu0 0.0
    %9275 = vmatpush2.msra.mxu0 0.0
    %9276 = vmatprep.subr.mxu0 0.0
    %9277 = vmatpush2.msra.mxu0 0.0
    %9278 = vmatprep.subr.mxu0 0.0
    %9279 = vmatpush2.msra.mxu0 0.0
    %9280 = vmatprep.subr.mxu0 0.0
    %9281 = vmatpush2.msra.mxu0 0.0
    %9282 = vmatprep.subr.mxu0 0.0
    %9283 = vmatpush2.msra.mxu0 0.0
    %9284 = vmatprep.subr.mxu0 0.0
    %9285 = vmatpush2.msra.mxu0 0.0
    %9286 = vmatprep.subr.mxu0 0.0
    %9287 = vmatpush2.msra.mxu0 0.0
    %9288 = vmatprep.subr.mxu0 0.0
    %9289 = vmatpush2.msra.mxu0 0.0
    %9290 = vmatprep.subr.mxu0 0.0
    %9291 = vmatpush2.msra.mxu0 0.0
    %9292 = vmatprep.subr.mxu0 0.0
    %9293 = vmatpush2.msra.mxu0 0.0
    %9294 = vmatprep.subr.mxu0 0.0
    %9295 = vmatpush2.msra.mxu0 0.0
    %9296 = vmatprep.subr.mxu0 0.0
    %9297 = vmatpush2.msra.mxu0 0.0
    %9298 = vmatprep.mubr.f32.mxu0 0.0
    %9299 = vmatmul.mubr.f32.gmra.mxu0 %v9232
    %v9300 = vpop.f32.mrf.mxu0
    %v9301 = vadd.f32 %v9228, %v9300
    %v9302 = vpop.f32.mrf.mxu0
    %9303 = vdwg.mxu0
    %v9304 = vadd.f32 %v9301, %v1525
    %9305 = vmatprep.subr.mxu0 0.0
    %9306 = vmatpush1.msra.mxu0 0.0
    %9307 = vmatprep.subr.mxu0 0.0
    %9308 = vmatpush1.msra.mxu0 0.0
    %9309 = vmatprep.subr.mxu0 0.0
    %9310 = vmatpush1.msra.mxu0 0.0
    %9311 = vmatprep.subr.mxu0 0.0
    %9312 = vmatpush1.msra.mxu0 0.0
    %9313 = vmatprep.subr.mxu0 0.0
    %9314 = vmatpush1.msra.mxu0 0.0
    %9315 = vmatprep.subr.mxu0 0.0
    %9316 = vmatpush1.msra.mxu0 0.0
    %9317 = vmatprep.subr.mxu0 0.0
    %9318 = vmatpush1.msra.mxu0 0.0
    %9319 = vmatprep.subr.mxu0 0.0
    %9320 = vmatpush1.msra.mxu0 0.0
    %9321 = vmatprep.subr.mxu0 0.0
    %9322 = vmatpush1.msra.mxu0 0.0
    %9323 = vmatprep.subr.mxu0 0.0
    %9324 = vmatpush1.msra.mxu0 0.0
    %9325 = vmatprep.subr.mxu0 0.0
    %9326 = vmatpush1.msra.mxu0 0.0
    %9327 = vmatprep.subr.mxu0 0.0
    %9328 = vmatpush1.msra.mxu0 0.0
    %9329 = vmatprep.subr.mxu0 0.0
    %9330 = vmatpush1.msra.mxu0 %v142
    %9331 = vmatprep.subr.mxu0 0.0
    %9332 = vmatpush1.msra.mxu0 %v141
    %9333 = vmatprep.subr.mxu0 0.0
    %9334 = vmatpush1.msra.mxu0 %v140
    %9335 = vmatprep.subr.mxu0 0.0
    %9336 = vmatpush1.msra.mxu0 %v139
    %9337 = vmatprep.subr.mxu0 0.0
    %9338 = vmatpush2.msra.mxu0 0.0
    %9339 = vmatprep.subr.mxu0 0.0
    %9340 = vmatpush2.msra.mxu0 0.0
    %9341 = vmatprep.subr.mxu0 0.0
    %9342 = vmatpush2.msra.mxu0 0.0
    %9343 = vmatprep.subr.mxu0 0.0
    %9344 = vmatpush2.msra.mxu0 0.0
    %9345 = vmatprep.subr.mxu0 0.0
    %9346 = vmatpush2.msra.mxu0 0.0
    %9347 = vmatprep.subr.mxu0 0.0
    %9348 = vmatpush2.msra.mxu0 0.0
    %9349 = vmatprep.subr.mxu0 0.0
    %9350 = vmatpush2.msra.mxu0 0.0
    %9351 = vmatprep.subr.mxu0 0.0
    %9352 = vmatpush2.msra.mxu0 0.0
    %9353 = vmatprep.subr.mxu0 0.0
    %9354 = vmatpush2.msra.mxu0 0.0
    %9355 = vmatprep.subr.mxu0 0.0
    %9356 = vmatpush2.msra.mxu0 0.0
    %9357 = vmatprep.subr.mxu0 0.0
    %9358 = vmatpush2.msra.mxu0 0.0
    %9359 = vmatprep.subr.mxu0 0.0
    %9360 = vmatpush2.msra.mxu0 0.0
    %9361 = vmatprep.subr.mxu0 0.0
    %9362 = vmatpush2.msra.mxu0 0.0
    %9363 = vmatprep.subr.mxu0 0.0
    %9364 = vmatpush2.msra.mxu0 0.0
    %9365 = vmatprep.subr.mxu0 0.0
    %9366 = vmatpush2.msra.mxu0 0.0
    %9367 = vmatprep.subr.mxu0 0.0
    %9368 = vmatpush2.msra.mxu0 0.0
    %9369 = vmatprep.mubr.f32.mxu0 0.0
    %9370 = vmatmul.mubr.f32.gmra.mxu0 %v9159
    %v9371 = vpop.f32.mrf.mxu0
    %v9372 = vadd.f32 0.0, %v9371
    %v9373 = vpop.f32.mrf.mxu0
    %9374 = vdwg.mxu0
    %9375 = vmatprep.subr.mxu0 0.0
    %9376 = vmatpush1.msra.mxu0 0.0
    %9377 = vmatprep.subr.mxu0 0.0
    %9378 = vmatpush1.msra.mxu0 0.0
    %9379 = vmatprep.subr.mxu0 0.0
    %9380 = vmatpush1.msra.mxu0 0.0
    %9381 = vmatprep.subr.mxu0 0.0
    %9382 = vmatpush1.msra.mxu0 0.0
    %9383 = vmatprep.subr.mxu0 0.0
    %9384 = vmatpush1.msra.mxu0 0.0
    %9385 = vmatprep.subr.mxu0 0.0
    %9386 = vmatpush1.msra.mxu0 0.0
    %9387 = vmatprep.subr.mxu0 0.0
    %9388 = vmatpush1.msra.mxu0 0.0
    %9389 = vmatprep.subr.mxu0 0.0
    %9390 = vmatpush1.msra.mxu0 0.0
    %9391 = vmatprep.subr.mxu0 0.0
    %9392 = vmatpush1.msra.mxu0 0.0
    %9393 = vmatprep.subr.mxu0 0.0
    %9394 = vmatpush1.msra.mxu0 0.0
    %9395 = vmatprep.subr.mxu0 0.0
    %9396 = vmatpush1.msra.mxu0 0.0
    %9397 = vmatprep.subr.mxu0 0.0
    %9398 = vmatpush1.msra.mxu0 0.0
    %9399 = vmatprep.subr.mxu0 0.0
    %9400 = vmatpush1.msra.mxu0 %v123
    %9401 = vmatprep.subr.mxu0 0.0
    %9402 = vmatpush1.msra.mxu0 %v122
    %9403 = vmatprep.subr.mxu0 0.0
    %9404 = vmatpush1.msra.mxu0 %v121
    %9405 = vmatprep.subr.mxu0 0.0
    %9406 = vmatpush1.msra.mxu0 %v120
    %9407 = vmatprep.subr.mxu0 0.0
    %9408 = vmatpush2.msra.mxu0 0.0
    %9409 = vmatprep.subr.mxu0 0.0
    %9410 = vmatpush2.msra.mxu0 0.0
    %9411 = vmatprep.subr.mxu0 0.0
    %9412 = vmatpush2.msra.mxu0 0.0
    %9413 = vmatprep.subr.mxu0 0.0
    %9414 = vmatpush2.msra.mxu0 0.0
    %9415 = vmatprep.subr.mxu0 0.0
    %9416 = vmatpush2.msra.mxu0 0.0
    %9417 = vmatprep.subr.mxu0 0.0
    %9418 = vmatpush2.msra.mxu0 0.0
    %9419 = vmatprep.subr.mxu0 0.0
    %9420 = vmatpush2.msra.mxu0 0.0
    %9421 = vmatprep.subr.mxu0 0.0
    %9422 = vmatpush2.msra.mxu0 0.0
    %9423 = vmatprep.subr.mxu0 0.0
    %9424 = vmatpush2.msra.mxu0 0.0
    %9425 = vmatprep.subr.mxu0 0.0
    %9426 = vmatpush2.msra.mxu0 0.0
    %9427 = vmatprep.subr.mxu0 0.0
    %9428 = vmatpush2.msra.mxu0 0.0
    %9429 = vmatprep.subr.mxu0 0.0
    %9430 = vmatpush2.msra.mxu0 0.0
    %9431 = vmatprep.subr.mxu0 0.0
    %9432 = vmatpush2.msra.mxu0 0.0
    %9433 = vmatprep.subr.mxu0 0.0
    %9434 = vmatpush2.msra.mxu0 0.0
    %9435 = vmatprep.subr.mxu0 0.0
    %9436 = vmatpush2.msra.mxu0 0.0
    %9437 = vmatprep.subr.mxu0 0.0
    %9438 = vmatpush2.msra.mxu0 0.0
    %9439 = vmatprep.mubr.f32.mxu0 0.0
    %9440 = vmatmul.mubr.f32.gmra.mxu0 %v9232
    %v9441 = vpop.f32.mrf.mxu0
    %v9442 = vadd.f32 %v9372, %v9441
    %v9443 = vpop.f32.mrf.mxu0
    %9444 = vdwg.mxu0
    %v9445 = vadd.f32 %v9442, %v1672
    %9446 = vmatprep.subr.mxu0 0.0
    %9447 = vmatpush1.msra.mxu0 0.0
    %9448 = vmatprep.subr.mxu0 0.0
    %9449 = vmatpush1.msra.mxu0 0.0
    %9450 = vmatprep.subr.mxu0 0.0
    %9451 = vmatpush1.msra.mxu0 0.0
    %9452 = vmatprep.subr.mxu0 0.0
    %9453 = vmatpush1.msra.mxu0 0.0
    %9454 = vmatprep.subr.mxu0 0.0
    %9455 = vmatpush1.msra.mxu0 0.0
    %9456 = vmatprep.subr.mxu0 0.0
    %9457 = vmatpush1.msra.mxu0 0.0
    %9458 = vmatprep.subr.mxu0 0.0
    %9459 = vmatpush1.msra.mxu0 0.0
    %9460 = vmatprep.subr.mxu0 0.0
    %9461 = vmatpush1.msra.mxu0 0.0
    %9462 = vmatprep.subr.mxu0 0.0
    %9463 = vmatpush1.msra.mxu0 0.0
    %9464 = vmatprep.subr.mxu0 0.0
    %9465 = vmatpush1.msra.mxu0 0.0
    %9466 = vmatprep.subr.mxu0 0.0
    %9467 = vmatpush1.msra.mxu0 0.0
    %9468 = vmatprep.subr.mxu0 0.0
    %9469 = vmatpush1.msra.mxu0 0.0
    %9470 = vmatprep.subr.mxu0 0.0
    %9471 = vmatpush1.msra.mxu0 %v147
    %9472 = vmatprep.subr.mxu0 0.0
    %9473 = vmatpush1.msra.mxu0 %v146
    %9474 = vmatprep.subr.mxu0 0.0
    %9475 = vmatpush1.msra.mxu0 %v145
    %9476 = vmatprep.subr.mxu0 0.0
    %9477 = vmatpush1.msra.mxu0 %v144
    %9478 = vmatprep.subr.mxu0 0.0
    %9479 = vmatpush2.msra.mxu0 0.0
    %9480 = vmatprep.subr.mxu0 0.0
    %9481 = vmatpush2.msra.mxu0 0.0
    %9482 = vmatprep.subr.mxu0 0.0
    %9483 = vmatpush2.msra.mxu0 0.0
    %9484 = vmatprep.subr.mxu0 0.0
    %9485 = vmatpush2.msra.mxu0 0.0
    %9486 = vmatprep.subr.mxu0 0.0
    %9487 = vmatpush2.msra.mxu0 0.0
    %9488 = vmatprep.subr.mxu0 0.0
    %9489 = vmatpush2.msra.mxu0 0.0
    %9490 = vmatprep.subr.mxu0 0.0
    %9491 = vmatpush2.msra.mxu0 0.0
    %9492 = vmatprep.subr.mxu0 0.0
    %9493 = vmatpush2.msra.mxu0 0.0
    %9494 = vmatprep.subr.mxu0 0.0
    %9495 = vmatpush2.msra.mxu0 0.0
    %9496 = vmatprep.subr.mxu0 0.0
    %9497 = vmatpush2.msra.mxu0 0.0
    %9498 = vmatprep.subr.mxu0 0.0
    %9499 = vmatpush2.msra.mxu0 0.0
    %9500 = vmatprep.subr.mxu0 0.0
    %9501 = vmatpush2.msra.mxu0 0.0
    %9502 = vmatprep.subr.mxu0 0.0
    %9503 = vmatpush2.msra.mxu0 0.0
    %9504 = vmatprep.subr.mxu0 0.0
    %9505 = vmatpush2.msra.mxu0 0.0
    %9506 = vmatprep.subr.mxu0 0.0
    %9507 = vmatpush2.msra.mxu0 0.0
    %9508 = vmatprep.subr.mxu0 0.0
    %9509 = vmatpush2.msra.mxu0 0.0
    %9510 = vmatprep.mubr.f32.mxu0 0.0
    %9511 = vmatmul.mubr.f32.gmra.mxu0 %v9159
    %v9512 = vpop.f32.mrf.mxu0
    %v9513 = vadd.f32 0.0, %v9512
    %v9514 = vpop.f32.mrf.mxu0
    %9515 = vdwg.mxu0
    %9516 = vmatprep.subr.mxu0 0.0
    %9517 = vmatpush1.msra.mxu0 0.0
    %9518 = vmatprep.subr.mxu0 0.0
    %9519 = vmatpush1.msra.mxu0 0.0
    %9520 = vmatprep.subr.mxu0 0.0
    %9521 = vmatpush1.msra.mxu0 0.0
    %9522 = vmatprep.subr.mxu0 0.0
    %9523 = vmatpush1.msra.mxu0 0.0
    %9524 = vmatprep.subr.mxu0 0.0
    %9525 = vmatpush1.msra.mxu0 0.0
    %9526 = vmatprep.subr.mxu0 0.0
    %9527 = vmatpush1.msra.mxu0 0.0
    %9528 = vmatprep.subr.mxu0 0.0
    %9529 = vmatpush1.msra.mxu0 0.0
    %9530 = vmatprep.subr.mxu0 0.0
    %9531 = vmatpush1.msra.mxu0 0.0
    %9532 = vmatprep.subr.mxu0 0.0
    %9533 = vmatpush1.msra.mxu0 0.0
    %9534 = vmatprep.subr.mxu0 0.0
    %9535 = vmatpush1.msra.mxu0 0.0
    %9536 = vmatprep.subr.mxu0 0.0
    %9537 = vmatpush1.msra.mxu0 0.0
    %9538 = vmatprep.subr.mxu0 0.0
    %9539 = vmatpush1.msra.mxu0 0.0
    %9540 = vmatprep.subr.mxu0 0.0
    %9541 = vmatpush1.msra.mxu0 %v128
    %9542 = vmatprep.subr.mxu0 0.0
    %9543 = vmatpush1.msra.mxu0 %v127
    %9544 = vmatprep.subr.mxu0 0.0
    %9545 = vmatpush1.msra.mxu0 %v126
    %9546 = vmatprep.subr.mxu0 0.0
    %9547 = vmatpush1.msra.mxu0 %v125
    %9548 = vmatprep.subr.mxu0 0.0
    %9549 = vmatpush2.msra.mxu0 0.0
    %9550 = vmatprep.subr.mxu0 0.0
    %9551 = vmatpush2.msra.mxu0 0.0
    %9552 = vmatprep.subr.mxu0 0.0
    %9553 = vmatpush2.msra.mxu0 0.0
    %9554 = vmatprep.subr.mxu0 0.0
    %9555 = vmatpush2.msra.mxu0 0.0
    %9556 = vmatprep.subr.mxu0 0.0
    %9557 = vmatpush2.msra.mxu0 0.0
    %9558 = vmatprep.subr.mxu0 0.0
    %9559 = vmatpush2.msra.mxu0 0.0
    %9560 = vmatprep.subr.mxu0 0.0
    %9561 = vmatpush2.msra.mxu0 0.0
    %9562 = vmatprep.subr.mxu0 0.0
    %9563 = vmatpush2.msra.mxu0 0.0
    %9564 = vmatprep.subr.mxu0 0.0
    %9565 = vmatpush2.msra.mxu0 0.0
    %9566 = vmatprep.subr.mxu0 0.0
    %9567 = vmatpush2.msra.mxu0 0.0
    %9568 = vmatprep.subr.mxu0 0.0
    %9569 = vmatpush2.msra.mxu0 0.0
    %9570 = vmatprep.subr.mxu0 0.0
    %9571 = vmatpush2.msra.mxu0 0.0
    %9572 = vmatprep.subr.mxu0 0.0
    %9573 = vmatpush2.msra.mxu0 0.0
    %9574 = vmatprep.subr.mxu0 0.0
    %9575 = vmatpush2.msra.mxu0 0.0
    %9576 = vmatprep.subr.mxu0 0.0
    %9577 = vmatpush2.msra.mxu0 0.0
    %9578 = vmatprep.subr.mxu0 0.0
    %9579 = vmatpush2.msra.mxu0 0.0
    %9580 = vmatprep.mubr.f32.mxu0 0.0
    %9581 = vmatmul.mubr.f32.gmra.mxu0 %v9232
    %v9582 = vpop.f32.mrf.mxu0
    %v9583 = vadd.f32 %v9513, %v9582
    %v9584 = vpop.f32.mrf.mxu0
    %9585 = vdwg.mxu0
    %v9586 = vadd.f32 %v9583, %v1819
    %9587 = vmatprep.subr.mxu0 0.0
    %9588 = vmatpush1.msra.mxu0 0.0
    %9589 = vmatprep.subr.mxu0 0.0
    %9590 = vmatpush1.msra.mxu0 0.0
    %9591 = vmatprep.subr.mxu0 0.0
    %9592 = vmatpush1.msra.mxu0 0.0
    %9593 = vmatprep.subr.mxu0 0.0
    %9594 = vmatpush1.msra.mxu0 0.0
    %9595 = vmatprep.subr.mxu0 0.0
    %9596 = vmatpush1.msra.mxu0 0.0
    %9597 = vmatprep.subr.mxu0 0.0
    %9598 = vmatpush1.msra.mxu0 0.0
    %9599 = vmatprep.subr.mxu0 0.0
    %9600 = vmatpush1.msra.mxu0 0.0
    %9601 = vmatprep.subr.mxu0 0.0
    %9602 = vmatpush1.msra.mxu0 0.0
    %9603 = vmatprep.subr.mxu0 0.0
    %9604 = vmatpush1.msra.mxu0 0.0
    %9605 = vmatprep.subr.mxu0 0.0
    %9606 = vmatpush1.msra.mxu0 0.0
    %9607 = vmatprep.subr.mxu0 0.0
    %9608 = vmatpush1.msra.mxu0 0.0
    %9609 = vmatprep.subr.mxu0 0.0
    %9610 = vmatpush1.msra.mxu0 0.0
    %9611 = vmatprep.subr.mxu0 0.0
    %9612 = vmatpush1.msra.mxu0 %v152
    %9613 = vmatprep.subr.mxu0 0.0
    %9614 = vmatpush1.msra.mxu0 %v151
    %9615 = vmatprep.subr.mxu0 0.0
    %9616 = vmatpush1.msra.mxu0 %v150
    %9617 = vmatprep.subr.mxu0 0.0
    %9618 = vmatpush1.msra.mxu0 %v149
    %9619 = vmatprep.subr.mxu0 0.0
    %9620 = vmatpush2.msra.mxu0 0.0
    %9621 = vmatprep.subr.mxu0 0.0
    %9622 = vmatpush2.msra.mxu0 0.0
    %9623 = vmatprep.subr.mxu0 0.0
    %9624 = vmatpush2.msra.mxu0 0.0
    %9625 = vmatprep.subr.mxu0 0.0
    %9626 = vmatpush2.msra.mxu0 0.0
    %9627 = vmatprep.subr.mxu0 0.0
    %9628 = vmatpush2.msra.mxu0 0.0
    %9629 = vmatprep.subr.mxu0 0.0
    %9630 = vmatpush2.msra.mxu0 0.0
    %9631 = vmatprep.subr.mxu0 0.0
    %9632 = vmatpush2.msra.mxu0 0.0
    %9633 = vmatprep.subr.mxu0 0.0
    %9634 = vmatpush2.msra.mxu0 0.0
    %9635 = vmatprep.subr.mxu0 0.0
    %9636 = vmatpush2.msra.mxu0 0.0
    %9637 = vmatprep.subr.mxu0 0.0
    %9638 = vmatpush2.msra.mxu0 0.0
    %9639 = vmatprep.subr.mxu0 0.0
    %9640 = vmatpush2.msra.mxu0 0.0
    %9641 = vmatprep.subr.mxu0 0.0
    %9642 = vmatpush2.msra.mxu0 0.0
    %9643 = vmatprep.subr.mxu0 0.0
    %9644 = vmatpush2.msra.mxu0 0.0
    %9645 = vmatprep.subr.mxu0 0.0
    %9646 = vmatpush2.msra.mxu0 0.0
    %9647 = vmatprep.subr.mxu0 0.0
    %9648 = vmatpush2.msra.mxu0 0.0
    %9649 = vmatprep.subr.mxu0 0.0
    %9650 = vmatpush2.msra.mxu0 0.0
    %9651 = vmatprep.mubr.f32.mxu0 0.0
    %9652 = vmatmul.mubr.f32.gmra.mxu0 %v9159
    %v9653 = vpop.f32.mrf.mxu0
    %v9654 = vadd.f32 0.0, %v9653
    %v9655 = vpop.f32.mrf.mxu0
    %9656 = vdwg.mxu0
    %9657 = vmatprep.subr.mxu0 0.0
    %9658 = vmatpush1.msra.mxu0 0.0
    %9659 = vmatprep.subr.mxu0 0.0
    %9660 = vmatpush1.msra.mxu0 0.0
    %9661 = vmatprep.subr.mxu0 0.0
    %9662 = vmatpush1.msra.mxu0 0.0
    %9663 = vmatprep.subr.mxu0 0.0
    %9664 = vmatpush1.msra.mxu0 0.0
    %9665 = vmatprep.subr.mxu0 0.0
    %9666 = vmatpush1.msra.mxu0 0.0
    %9667 = vmatprep.subr.mxu0 0.0
    %9668 = vmatpush1.msra.mxu0 0.0
    %9669 = vmatprep.subr.mxu0 0.0
    %9670 = vmatpush1.msra.mxu0 0.0
    %9671 = vmatprep.subr.mxu0 0.0
    %9672 = vmatpush1.msra.mxu0 0.0
    %9673 = vmatprep.subr.mxu0 0.0
    %9674 = vmatpush1.msra.mxu0 0.0
    %9675 = vmatprep.subr.mxu0 0.0
    %9676 = vmatpush1.msra.mxu0 0.0
    %9677 = vmatprep.subr.mxu0 0.0
    %9678 = vmatpush1.msra.mxu0 0.0
    %9679 = vmatprep.subr.mxu0 0.0
    %9680 = vmatpush1.msra.mxu0 0.0
    %9681 = vmatprep.subr.mxu0 0.0
    %9682 = vmatpush1.msra.mxu0 %v133
    %9683 = vmatprep.subr.mxu0 0.0
    %9684 = vmatpush1.msra.mxu0 %v132
    %9685 = vmatprep.subr.mxu0 0.0
    %9686 = vmatpush1.msra.mxu0 %v131
    %9687 = vmatprep.subr.mxu0 0.0
    %9688 = vmatpush1.msra.mxu0 %v130
    %9689 = vmatprep.subr.mxu0 0.0
    %9690 = vmatpush2.msra.mxu0 0.0
    %9691 = vmatprep.subr.mxu0 0.0
    %9692 = vmatpush2.msra.mxu0 0.0
    %9693 = vmatprep.subr.mxu0 0.0
    %9694 = vmatpush2.msra.mxu0 0.0
    %9695 = vmatprep.subr.mxu0 0.0
    %9696 = vmatpush2.msra.mxu0 0.0
    %9697 = vmatprep.subr.mxu0 0.0
    %9698 = vmatpush2.msra.mxu0 0.0
    %9699 = vmatprep.subr.mxu0 0.0
    %9700 = vmatpush2.msra.mxu0 0.0
    %9701 = vmatprep.subr.mxu0 0.0
    %9702 = vmatpush2.msra.mxu0 0.0
    %9703 = vmatprep.subr.mxu0 0.0
    %9704 = vmatpush2.msra.mxu0 0.0
    %9705 = vmatprep.subr.mxu0 0.0
    %9706 = vmatpush2.msra.mxu0 0.0
    %9707 = vmatprep.subr.mxu0 0.0
    %9708 = vmatpush2.msra.mxu0 0.0
    %9709 = vmatprep.subr.mxu0 0.0
    %9710 = vmatpush2.msra.mxu0 0.0
    %9711 = vmatprep.subr.mxu0 0.0
    %9712 = vmatpush2.msra.mxu0 0.0
    %9713 = vmatprep.subr.mxu0 0.0
    %9714 = vmatpush2.msra.mxu0 0.0
    %9715 = vmatprep.subr.mxu0 0.0
    %9716 = vmatpush2.msra.mxu0 0.0
    %9717 = vmatprep.subr.mxu0 0.0
    %9718 = vmatpush2.msra.mxu0 0.0
    %9719 = vmatprep.subr.mxu0 0.0
    %9720 = vmatpush2.msra.mxu0 0.0
    %9721 = vmatprep.mubr.f32.mxu0 0.0
    %9722 = vmatmul.mubr.f32.gmra.mxu0 %v9232
    %v9723 = vpop.f32.mrf.mxu0
    %v9724 = vadd.f32 %v9654, %v9723
    %v9725 = vpop.f32.mrf.mxu0
    %9726 = vdwg.mxu0
    %v9727 = vadd.f32 %v9724, %v1966
    %v9728 = vxor.u32 %v9304, 2147483648
    %v9729 = vmul.f32 %v9728, 1.442695
    %v9730 = vpow.pop %v9729
    %v9731 = vadd.f32 %v9730, 1.0
    %v9732 = vrcp.pop %v9731
    %v9733 = vmul.f32 1.0, %v9732
    %v9734 = vxor.u32 %v9445, 2147483648
    %v9735 = vmul.f32 %v9734, 1.442695
    %v9736 = vpow.pop %v9735
    %v9737 = vadd.f32 %v9736, 1.0
    %v9738 = vrcp.pop %v9737
    %v9739 = vmul.f32 1.0, %v9738
    %v9740 = vtanh.pop %v9586
    %v9741 = vxor.u32 %v9727, 2147483648
    %v9742 = vmul.f32 %v9741, 1.442695
    %v9743 = vpow.pop %v9742
    %v9744 = vadd.f32 %v9743, 1.0
    %v9745 = vrcp.pop %v9744
    %v9746 = vmul.f32 1.0, %v9745
    %v9747 = vmul.f32 %v9739, %v9148
    %v9748 = vmul.f32 %v9733, %v9740
    %v9749 = vadd.f32 %v9747, %v9748
    %v9750 = vtanh.pop %v9749
    %v9751 = vmul.f32 %v9746, %v9750
    %vm9752 = vcmp.eq.s32.totalorder %v165, 7
    %v9753 = vsel %vm9752, 1, 0
    %9754 = vset.pattern.permute.xlu0 0
    %9755 = vperm.xlu0 %9754, %v9753
    %v9756 = vpop.permute.xlu0 %9755
    %vm9757 = vcmp.eq.s32.totalorder %v9756, 1
    %v9758 = vsel %vm9757, %v9751, %v9157
    %v9759 = vld [vmem:[%s8] sm:$0xff]
    %v9760 = vld [vmem:[%s8 + $0x8] sm:$0xff]
    %v9761 = vld [vmem:[%s8 + $0x10] sm:$0xff]
    %v9762 = vld [vmem:[%s8 + $0x18] sm:$0xff]
    %v9763 = vld [vmem:[%s9] sm:$0x1]
    %v9765 = vlaneseq
    %v9766 = vshrl.u32 %v9765, 7
    %v9767 = vsub.s32 0, %v9766
    %v9768 = vrot.slane %v9763, %v9767
    %v9771 = vsel %vm166, %v9758, 0
    %9773 = vmatprep.subr.mxu0 0.0
    %9774 = vmatpush1.msra.mxu0 0.0
    %9775 = vmatprep.subr.mxu0 0.0
    %9776 = vmatpush1.msra.mxu0 0.0
    %9777 = vmatprep.subr.mxu0 0.0
    %9778 = vmatpush1.msra.mxu0 0.0
    %9779 = vmatprep.subr.mxu0 0.0
    %9780 = vmatpush1.msra.mxu0 0.0
    %9781 = vmatprep.subr.mxu0 0.0
    %9782 = vmatpush1.msra.mxu0 0.0
    %9783 = vmatprep.subr.mxu0 0.0
    %9784 = vmatpush1.msra.mxu0 0.0
    %9785 = vmatprep.subr.mxu0 0.0
    %9786 = vmatpush1.msra.mxu0 0.0
    %9787 = vmatprep.subr.mxu0 0.0
    %9788 = vmatpush1.msra.mxu0 0.0
    %9789 = vmatprep.subr.mxu0 0.0
    %9790 = vmatpush1.msra.mxu0 0.0
    %9791 = vmatprep.subr.mxu0 0.0
    %9792 = vmatpush1.msra.mxu0 0.0
    %9793 = vmatprep.subr.mxu0 0.0
    %9794 = vmatpush1.msra.mxu0 0.0
    %9795 = vmatprep.subr.mxu0 0.0
    %9796 = vmatpush1.msra.mxu0 0.0
    %9797 = vmatprep.subr.mxu0 0.0
    %9798 = vmatpush1.msra.mxu0 %v9762
    %9799 = vmatprep.subr.mxu0 0.0
    %9800 = vmatpush1.msra.mxu0 %v9761
    %9801 = vmatprep.subr.mxu0 0.0
    %9802 = vmatpush1.msra.mxu0 %v9760
    %9803 = vmatprep.subr.mxu0 0.0
    %9804 = vmatpush1.msra.mxu0 %v9759
    %9805 = vmatprep.subr.mxu0 0.0
    %9806 = vmatpush2.msra.mxu0 0.0
    %9807 = vmatprep.subr.mxu0 0.0
    %9808 = vmatpush2.msra.mxu0 0.0
    %9809 = vmatprep.subr.mxu0 0.0
    %9810 = vmatpush2.msra.mxu0 0.0
    %9811 = vmatprep.subr.mxu0 0.0
    %9812 = vmatpush2.msra.mxu0 0.0
    %9813 = vmatprep.subr.mxu0 0.0
    %9814 = vmatpush2.msra.mxu0 0.0
    %9815 = vmatprep.subr.mxu0 0.0
    %9816 = vmatpush2.msra.mxu0 0.0
    %9817 = vmatprep.subr.mxu0 0.0
    %9818 = vmatpush2.msra.mxu0 0.0
    %9819 = vmatprep.subr.mxu0 0.0
    %9820 = vmatpush2.msra.mxu0 0.0
    %9821 = vmatprep.subr.mxu0 0.0
    %9822 = vmatpush2.msra.mxu0 0.0
    %9823 = vmatprep.subr.mxu0 0.0
    %9824 = vmatpush2.msra.mxu0 0.0
    %9825 = vmatprep.subr.mxu0 0.0
    %9826 = vmatpush2.msra.mxu0 0.0
    %9827 = vmatprep.subr.mxu0 0.0
    %9828 = vmatpush2.msra.mxu0 0.0
    %9829 = vmatprep.subr.mxu0 0.0
    %9830 = vmatpush2.msra.mxu0 0.0
    %9831 = vmatprep.subr.mxu0 0.0
    %9832 = vmatpush2.msra.mxu0 0.0
    %9833 = vmatprep.subr.mxu0 0.0
    %9834 = vmatpush2.msra.mxu0 0.0
    %9835 = vmatprep.subr.mxu0 0.0
    %9836 = vmatpush2.msra.mxu0 0.0
    %9837 = vmatprep.mubr.f32.mxu0 0.0
    %9838 = vmatmul.mubr.f32.gmra.mxu0 %v9771
    %v9839 = vpop.f32.mrf.mxu0
    %v9840 = vadd.f32 %v9768, %v9839
    %v9841 = vpop.f32.mrf.mxu0
    %9842 = vdwg.mxu0
    %v9843 = vmul.f32 %v9840, %v9840
    %vm9844 = vcmask 123904
    %v9845 = vsel %vm9844, %v9843, 0.0
    %9846 = vadd.xlane.f32.xlu0 %v9845
    %v9847 = vpop.xlane.xlu0 %9846
    %v9848 = vrot.slane %v9847, 4
    %v9849 = vadd.f32 %v9847, %v9848
    %v9850 = vrot.slane %v9849, 2
    %v9851 = vadd.f32 %v9849, %v9850
    %v9852 = vrot.slane %v9851, 1
    %v9853 = vadd.f32 %v9851, %v9852
    %s9854 = vtos %v9853
    %v9855 = vstv %s9854
    %v9856 = vrsqrt.pop %v9855
    %s9857 = vtos %v9856
    %v9858 = vstv %s9857
    %v9859 = vmul.f32 %v9840, %v9858
    %9860 = vst.msk [vmem:[#allocation10] sm:$0x3] %vm9844, %v9859
    // Predicated region
    $region50: #{speaker_encoder.1} parent=1 // pred_check
      _
    $region51: #{speaker_encoder.1} parent=1 // pred_check_branch
      %9862 = sbr.rel (0) target = $region53
    $region52: #{speaker_encoder.1} parent=1 // pred_region
      %s9864 = ssub.s32 32, 32
      %9865 = vsyncadd [#allocation6], %s9864
      %s9867 = sshll.u32 [#allocation10], 4
      %s9868 = int_to_ptr.vmem [resolvable:$true] %s9867
      %9870 = dma.vmem_to_hbm [thread:$0]  %s9868, 32, %s10, [#allocation6]
    $region53: #{speaker_encoder.1} parent=1 // pred_fallthru
      _
    // Predicated region
    $region54: #{speaker_encoder.1} parent=1 // pred_check
      _
    $region55: #{speaker_encoder.1} parent=1 // pred_check_branch
      %9872 = sbr.rel (0) target = $region57
    $region56: #{speaker_encoder.1} parent=1 // pred_region
      %9873 = dma.done [#allocation6], 32
    $region57: #{speaker_encoder.1} parent=1 // pred_fallthru
      _
    %9874 = vsyncpa [#allocation5], 1
    %9875 = vsyncpa [#allocation8], 1
    %9876 = vsyncpa [#allocation6], 1

</llo_original>
